<compile_context>
chip_gen: v6e
topology: v6e:2x2x1
jax: 0.10.0
libtpu: 0.0.40
codegen_flags: <defaults>
</compile_context>

<pallas_src>
import functools

import jax
import jax.numpy as jnp
from jax.experimental import pallas as pl
from jax.experimental.pallas import tpu as pltpu


def _ffn_kernel(x_ref, w1_ref, b1_ref, w2_ref, b2_ref, o_ref):
    # x_ref:  (tm, D) in the input's native dtype (e.g. f32)
    # w1_ref: (D, H), w2_ref: (H, D) in the compute dtype (bf16 by default)
    # b1_ref: (1, H), b2_ref: (1, D) in f32 (added post f32 accumulation)
    # o_ref:  (tm, D) in the output dtype
    #
    # Cast x in-kernel (VPU, hidden under the MXU slot) instead of in the
    # wrapper, which would cost an extra un-fused HBM read+write pass.
    x = x_ref[...].astype(w1_ref.dtype)
    h = jnp.dot(x, w1_ref[...], preferred_element_type=jnp.float32) + b1_ref[...]
    h = jnp.maximum(h, 0.0)                                   # ReLU (VPU, f32)
    y = jnp.dot(h.astype(w2_ref.dtype), w2_ref[...],
                preferred_element_type=jnp.float32) + b2_ref[...]
    o_ref[...] = y.astype(o_ref.dtype)


def _round_up(a, b):
    return pl.cdiv(a, b) * b


@functools.partial(jax.jit, static_argnames=("tm", "compute_dtype", "out_dtype"))
def poswise_ffn(x, w1t, b1, w2t, b2, *, tm=512,
                compute_dtype=jnp.bfloat16, out_dtype=None):
    """Position-wise FFN.  x: [B,S,D]; w1t: [D,H]; b1: [H]; w2t: [H,D]; b2: [D].

    compute_dtype: MXU operand dtype (bf16 default; pass None for full f32).
      Accumulation is always f32.
    out_dtype: output dtype (defaults to x.dtype; pass bf16 to halve the
      output HBM store if downstream tolerates it — mainly a v5e win).
    """
    B, S, D = x.shape
    H = w1t.shape[1]
    out_dtype = jnp.dtype(x.dtype) if out_dtype is None else jnp.dtype(out_dtype)
    compute_dtype = (jnp.dtype(x.dtype) if compute_dtype is None
                     else jnp.dtype(compute_dtype))

    M = B * S
    x2d = x.reshape(M, D)          # metadata-only for a contiguous [B,S,D]

    # Row tile: large enough to amortize the ~0.35 us/step pipeline overhead,
    # but (a) never more rows than exist (rounded up to the 8-row sublane) and
    # (b) at least 2 grid steps when possible so both TensorCores of a v7x
    # megacore get work on small batches (neutral on 1-TC v5e/v6e).
    tm = min(tm, max(8, _round_up(pl.cdiv(M, 2), 8)))
    grid_m = pl.cdiv(M, tm)        # last block may be partial; Pallas masks it

    # MXU operands live in compute_dtype; biases stay f32 (post-accumulation).
    if w1t.dtype != compute_dtype:
        w1t = w1t.astype(compute_dtype)
    if w2t.dtype != compute_dtype:
        w2t = w2t.astype(compute_dtype)
    b1_2d = b1.reshape(1, H).astype(jnp.float32)
    b2_2d = b2.reshape(1, D).astype(jnp.float32)

    itemsize = lambda dt: jnp.dtype(dt).itemsize
    cost = pl.CostEstimate(
        flops=4 * M * D * H,                                   # two M*D*H matmuls
        transcendentals=0,
        bytes_accessed=(M * D * itemsize(x.dtype)              # x read
                        + 2 * D * H * itemsize(compute_dtype)  # W1^T + W2^T
                        + 4 * (H + D)                          # biases (f32)
                        + M * D * itemsize(out_dtype)),        # output store
    )

    # Grid-invariant operands are DMA'd once; single-buffer them so they don't
    # pay the default double-buffer VMEM residency.
    def resident(shape):
        return pl.BlockSpec(shape, lambda i: (0,) * len(shape),
                            pipeline_mode=pl.Buffered(1))

    out2d = pl.pallas_call(
        _ffn_kernel,
        out_shape=jax.ShapeDtypeStruct((M, D), out_dtype),
        grid_spec=pltpu.PrefetchScalarGridSpec(
            num_scalar_prefetch=0,
            grid=(grid_m,),
            in_specs=[
                pl.BlockSpec((tm, D), lambda i: (i, 0)),   # x row tile (pipelined)
                resident((D, H)),                          # W1^T, VMEM-resident
                resident((1, H)),                          # b1
                resident((H, D)),                          # W2^T, VMEM-resident
                resident((1, D)),                          # b2
            ],
            out_specs=pl.BlockSpec((tm, D), lambda i: (i, 0)),
        ),
        compiler_params=pltpu.CompilerParams(
            dimension_semantics=("parallel",),   # shard the M grid across TCs
            # Budget sized for the smallest-VMEM target (v7x: 64 MiB/TC):
            # bf16 weights (~4 MiB) + double-buffered x/out tiles + f32 hidden
            # temporaries stay well under this for tm <= 1024.
            vmem_limit_bytes=56 << 20,
        ),
        cost_estimate=cost,
    )(x2d, w1t, b1_2d, w2t, b2_2d)

    return out2d.reshape(B, S, D)


def _reference(x2d, w1t, b1, w2t, b2):
    h = jnp.maximum(x2d @ w1t + b1, 0.0)
    return h @ w2t + b2


if __name__ == "__main__":
    # Shapes fixed by the module: d_model = 512 (`dim`), hidden = 2048
    # (hardcoded in __init__).  S=197 makes M=394, which exercises both the
    # >=2-grid-step clamp (tm -> 200) and the masked partial last block.
    B, S, D, H = 2, 197, 512, 2048

    key = jax.random.PRNGKey(0)
    kx, kw1, kb1, kw2, kb2 = jax.random.split(key, 5)

    x = jax.random.normal(kx, (B, S, D), dtype=jnp.float32)

    # Deterministic init matching nn.Linear conventions:
    #   W1: (H, D), b1: (H,), W2: (D, H), b2: (D,)  -- passed transposed.
    bound1 = 1.0 / (D ** 0.5)
    bound2 = 1.0 / (H ** 0.5)
    w1 = jax.random.uniform(kw1, (H, D), jnp.float32, -bound1, bound1)
    b1 = jax.random.uniform(kb1, (H,), jnp.float32, -bound1, bound1)
    w2 = jax.random.uniform(kw2, (D, H), jnp.float32, -bound2, bound2)
    b2 = jax.random.uniform(kb2, (D,), jnp.float32, -bound2, bound2)

    w1t = w1.T  # (D, H)
    w2t = w2.T  # (H, D)

    ref = _reference(x.reshape(B * S, D), w1t, b1, w2t, b2).reshape(B, S, D)

    # Default path: bf16 MXU operands, f32 accumulation, f32 output.
    out = jax.block_until_ready(poswise_ffn(x, w1t, b1, w2t, b2))
    assert out.shape == (B, S, D)
    assert out.dtype == x.dtype
    assert jnp.allclose(out, ref, atol=2e-2, rtol=2e-2), "bf16-compute mismatch vs reference"

    # Full-f32 path (exactly matches the PyTorch module's default dtype).
    out_f32 = jax.block_until_ready(
        poswise_ffn(x, w1t, b1, w2t, b2, compute_dtype=None))
    assert jnp.allclose(out_f32, ref, atol=1e-3, rtol=1e-3), "f32 mismatch vs reference"

    print("KERNEL_OK")
</pallas_src>

<mosaic_0001>
module attributes {stable_mosaic.version = 11 : i64} {
  func.func @_ffn_kernel(%arg0: i32, %arg1: memref<200x512xf32, #tpu.memory_space<vmem>>, %arg2: memref<512x2048xbf16, #tpu.memory_space<vmem>>, %arg3: memref<1x2048xf32, #tpu.memory_space<vmem>>, %arg4: memref<2048x512xbf16, #tpu.memory_space<vmem>>, %arg5: memref<1x512xf32, #tpu.memory_space<vmem>>, %arg6: memref<200x512xf32, #tpu.memory_space<vmem>>) attributes {dimension_semantics = [#tpu.dimension_semantics<parallel>], iteration_bounds = array<i64: 2>, scalar_prefetch = 0 : i64, scratch_operands = 0 : i64, tpu.core_type = #tpu.core_type<tc>, window_params = [{transform_indices = @transform_0, window_bounds = array<i64: 200, 512>}, {pipeline_mode = #tpu.pipeline_mode<synchronous>, transform_indices = @transform_1, window_bounds = array<i64: 512, 2048>}, {pipeline_mode = #tpu.pipeline_mode<synchronous>, transform_indices = @transform_2, window_bounds = array<i64: 1, 2048>}, {pipeline_mode = #tpu.pipeline_mode<synchronous>, transform_indices = @transform_3, window_bounds = array<i64: 2048, 512>}, {pipeline_mode = #tpu.pipeline_mode<synchronous>, transform_indices = @transform_4, window_bounds = array<i64: 1, 512>}, {transform_indices = @transform_5, window_bounds = array<i64: 200, 512>}]} {
    %c0 = arith.constant 0 : index
    %c0_0 = arith.constant 0 : index
    %0 = vector.load %arg1[%c0, %c0_0] : memref<200x512xf32, #tpu.memory_space<vmem>>, vector<200x512xf32>
    %1 = arith.truncf %0 : vector<200x512xf32> to vector<200x512xbf16>
    %c0_1 = arith.constant 0 : index
    %c0_2 = arith.constant 0 : index
    %2 = vector.load %arg2[%c0_1, %c0_2] : memref<512x2048xbf16, #tpu.memory_space<vmem>>, vector<512x2048xbf16>
    %cst = arith.constant dense<0.000000e+00> : vector<200x2048xf32>
    %3 = tpu.matmul %1, %2, %cst {dimension_numbers = #tpu.dot_dimension_numbers<[1], [0], [0], [1], [0, 0, 1, 1], [], []>} : vector<200x512xbf16>, vector<512x2048xbf16>, vector<200x2048xf32> -> vector<200x2048xf32>
    %c0_3 = arith.constant 0 : index
    %c0_4 = arith.constant 0 : index
    %4 = vector.load %arg3[%c0_3, %c0_4] : memref<1x2048xf32, #tpu.memory_space<vmem>>, vector<1x2048xf32>
    %5 = vector.broadcast %4 : vector<1x2048xf32> to vector<200x2048xf32>
    %6 = arith.addf %3, %5 : vector<200x2048xf32>
    %cst_5 = arith.constant 0.000000e+00 : f32
    %7 = vector.broadcast %cst_5 : f32 to vector<200x2048xf32>
    %8 = arith.maximumf %6, %7 : vector<200x2048xf32>
    %9 = arith.truncf %8 : vector<200x2048xf32> to vector<200x2048xbf16>
    %c0_6 = arith.constant 0 : index
    %c0_7 = arith.constant 0 : index
    %10 = vector.load %arg4[%c0_6, %c0_7] : memref<2048x512xbf16, #tpu.memory_space<vmem>>, vector<2048x512xbf16>
    %cst_8 = arith.constant dense<0.000000e+00> : vector<200x512xf32>
    %11 = tpu.matmul %9, %10, %cst_8 {dimension_numbers = #tpu.dot_dimension_numbers<[1], [0], [0], [1], [0, 0, 1, 1], [], []>} : vector<200x2048xbf16>, vector<2048x512xbf16>, vector<200x512xf32> -> vector<200x512xf32>
    %c0_9 = arith.constant 0 : index
    %c0_10 = arith.constant 0 : index
    %12 = vector.load %arg5[%c0_9, %c0_10] : memref<1x512xf32, #tpu.memory_space<vmem>>, vector<1x512xf32>
    %13 = vector.broadcast %12 : vector<1x512xf32> to vector<200x512xf32>
    %14 = arith.addf %11, %13 : vector<200x512xf32>
    %c0_11 = arith.constant 0 : index
    %c0_12 = arith.constant 0 : index
    %15 = vector.load %arg6[%c0_11, %c0_12] : memref<200x512xf32, #tpu.memory_space<vmem>>, vector<200x512xf32>
    tpu.vector_store %arg6[%c0_11, %c0_12], %14 {strides = array<i32>} : memref<200x512xf32, #tpu.memory_space<vmem>>, vector<200x512xf32>,
    return
  }
  func.func @transform_0(%arg0: i32) -> (i32, i32) {
    %c0_i32 = arith.constant 0 : i32
    %c0_i32_0 = arith.constant 0 : i32
    return %arg0, %c0_i32 : i32, i32
  }
  func.func @transform_1(%arg0: i32) -> (i32, i32) {
    %c0_i32 = arith.constant 0 : i32
    %c0_i32_0 = arith.constant 0 : i32
    %c0_i32_1 = arith.constant 0 : i32
    return %c0_i32, %c0_i32_0 : i32, i32
  }
  func.func @transform_2(%arg0: i32) -> (i32, i32) {
    %c0_i32 = arith.constant 0 : i32
    %c0_i32_0 = arith.constant 0 : i32
    %c0_i32_1 = arith.constant 0 : i32
    return %c0_i32, %c0_i32_0 : i32, i32
  }
  func.func @transform_3(%arg0: i32) -> (i32, i32) {
    %c0_i32 = arith.constant 0 : i32
    %c0_i32_0 = arith.constant 0 : i32
    %c0_i32_1 = arith.constant 0 : i32
    return %c0_i32, %c0_i32_0 : i32, i32
  }
  func.func @transform_4(%arg0: i32) -> (i32, i32) {
    %c0_i32 = arith.constant 0 : i32
    %c0_i32_0 = arith.constant 0 : i32
    %c0_i32_1 = arith.constant 0 : i32
    return %c0_i32, %c0_i32_0 : i32, i32
  }
  func.func @transform_5(%arg0: i32) -> (i32, i32) {
    %c0_i32 = arith.constant 0 : i32
    %c0_i32_0 = arith.constant 0 : i32
    return %arg0, %c0_i32 : i32, i32
  }
}

</mosaic_0001>

<llo_original>
// kernel: poswise_ffn.1
$region0: #{poswise_ffn.1}
  #allocation0 [shape = 'u32[]', space=smem, size = 0x4, offset = 0x4, fixed_abs, tag = 'smem constant byte address 0x4 - core index']
  #allocation1 [shape = 'u32[144,128]{1,0:T(1,128)}', space=vmem, size = 0x12000, scoped, tag = 'internal scratch']
  %s0 = inlined_call_operand.vmem [shape: f32[394,512], index: 0, kind: input, shape index: {}]
  %s1 = inlined_call_operand.vmem [shape: bf16[512,2048], index: 1, kind: input, shape index: {}]
  %s2 = inlined_call_operand.vmem [shape: f32[1,2048], index: 2, kind: input, shape index: {}]
  %s3 = inlined_call_operand.vmem [shape: bf16[2048,512], index: 3, kind: input, shape index: {}]
  %s4 = inlined_call_operand.vmem [shape: f32[1,512], index: 4, kind: input, shape index: {}]
  %s5 = inlined_call_operand.vmem [shape: f32[394,512], index: 5, kind: output, shape index: {}]
  %s6 = sld [smem:[#allocation0]]
  $region53: #{poswise_ffn.1} parent=0
    _
  %s8 = ssub.s32 1, %s6
  %s9 = scalar_select 0, %s8, %s6
  loop: start=0, step=1, limit=4
  $region2: #{poswise_ffn.1} parent=0 // loop_pre_header
    _
  $region3: #{poswise_ffn.1} parent=0 // loop_header
    %s11 = sphi 0, %s15
    %p12 = scmp.ge.s32.totalorder %s11, 4
    %s21 = sphi 0, %s23
    %s24 = sphi 0, %s21
    %s25 = sphi 0, %s24
    %s41 = sphi 0, %s25
    %s45 = sphi 0, %s45
    %s47 = sphi 0, %s45
    %s48 = sphi 0, %s47
    %s62 = sphi 0, %s48
    %s66 = sphi 0, %s66
    %s68 = sphi 0, %s66
    %s69 = sphi 0, %s68
    %s83 = sphi 0, %s69
    %s87 = sphi 0, %s87
    %s89 = sphi 0, %s87
    %s90 = sphi 0, %s89
    %s104 = sphi 0, %s90
    %s108 = sphi 0, %s108
    %s110 = sphi 0, %s108
    %s111 = sphi 0, %s110
    %s125 = sphi 0, %s111
    %s131 = sphi 0, %s133
    %s134 = sphi 0, %s131
    %s135 = sphi 0, %s134
    %s151 = sphi 0, %s135
  $region4: #{poswise_ffn.1} parent=0 // loop_header_branch
    %14 = sbr.rel (%p12) target = $region8
  $region5: #{poswise_ffn.1} parent=0 // loop_body
    %s16 = ssub.s32 %s11, 1
    %s17 = ssub.s32 %s11, 2
    %s18 = sadd.s32 %s11, 1
    %s19 = ssub.s32 %s11, %s18
    %p20 = scmp.eq.s32.totalorder %s19, 0
    %s22 = sadd.s32 %s21, 1
    %s23 = scalar_select %p20, %s21, %s22
    %p26 = pneg %p20
    %p27 = scmp.eq.s32.totalorder %s11, 1
    %p28 = por %p26, %p27
    %p29 = scmp.ne.s32.totalorder %s21, %s24
    %p30 = scmp.eq.s32.totalorder %s11, 0
    %p31 = por %p29, %p30
    %p32 = scmp.ne.s32.totalorder %s21, %s24
    %p33 = scmp.eq.s32.totalorder %s16, 1
    %p34 = por %p32, %p33
    %p35 = scmp.ne.s32.totalorder %s24, %s25
    %p36 = scmp.eq.s32.totalorder %s16, 0
    %p37 = por %p35, %p36
    %p38 = scmp.ne.s32.totalorder %s24, %s25
    %p39 = scmp.eq.s32.totalorder %s17, 1
    %p40 = por %p38, %p39
    %p42 = scmp.ne.s32.totalorder %s25, %s41
    %p43 = scmp.eq.s32.totalorder %s17, 0
    %p44 = por %p42, %p43
    %s46 = sadd.s32 %s45, 1
    %p49 = scmp.eq.s32.totalorder %s11, 1
    %p50 = scmp.ne.s32.totalorder %s45, %s47
    %p51 = scmp.eq.s32.totalorder %s11, 0
    %p52 = por %p50, %p51
    %p53 = scmp.ne.s32.totalorder %s45, %s47
    %p54 = scmp.eq.s32.totalorder %s16, 1
    %p55 = por %p53, %p54
    %p56 = scmp.ne.s32.totalorder %s47, %s48
    %p57 = scmp.eq.s32.totalorder %s16, 0
    %p58 = por %p56, %p57
    %p59 = scmp.ne.s32.totalorder %s47, %s48
    %p60 = scmp.eq.s32.totalorder %s17, 1
    %p61 = por %p59, %p60
    %p63 = scmp.ne.s32.totalorder %s48, %s62
    %p64 = scmp.eq.s32.totalorder %s17, 0
    %p65 = por %p63, %p64
    %s67 = sadd.s32 %s66, 1
    %p70 = scmp.eq.s32.totalorder %s11, 1
    %p71 = scmp.ne.s32.totalorder %s66, %s68
    %p72 = scmp.eq.s32.totalorder %s11, 0
    %p73 = por %p71, %p72
    %p74 = scmp.ne.s32.totalorder %s66, %s68
    %p75 = scmp.eq.s32.totalorder %s16, 1
    %p76 = por %p74, %p75
    %p77 = scmp.ne.s32.totalorder %s68, %s69
    %p78 = scmp.eq.s32.totalorder %s16, 0
    %p79 = por %p77, %p78
    %p80 = scmp.ne.s32.totalorder %s68, %s69
    %p81 = scmp.eq.s32.totalorder %s17, 1
    %p82 = por %p80, %p81
    %p84 = scmp.ne.s32.totalorder %s69, %s83
    %p85 = scmp.eq.s32.totalorder %s17, 0
    %p86 = por %p84, %p85
    %s88 = sadd.s32 %s87, 1
    %p91 = scmp.eq.s32.totalorder %s11, 1
    %p92 = scmp.ne.s32.totalorder %s87, %s89
    %p93 = scmp.eq.s32.totalorder %s11, 0
    %p94 = por %p92, %p93
    %p95 = scmp.ne.s32.totalorder %s87, %s89
    %p96 = scmp.eq.s32.totalorder %s16, 1
    %p97 = por %p95, %p96
    %p98 = scmp.ne.s32.totalorder %s89, %s90
    %p99 = scmp.eq.s32.totalorder %s16, 0
    %p100 = por %p98, %p99
    %p101 = scmp.ne.s32.totalorder %s89, %s90
    %p102 = scmp.eq.s32.totalorder %s17, 1
    %p103 = por %p101, %p102
    %p105 = scmp.ne.s32.totalorder %s90, %s104
    %p106 = scmp.eq.s32.totalorder %s17, 0
    %p107 = por %p105, %p106
    %s109 = sadd.s32 %s108, 1
    %p112 = scmp.eq.s32.totalorder %s11, 1
    %p113 = scmp.ne.s32.totalorder %s108, %s110
    %p114 = scmp.eq.s32.totalorder %s11, 0
    %p115 = por %p113, %p114
    %p116 = scmp.ne.s32.totalorder %s108, %s110
    %p117 = scmp.eq.s32.totalorder %s16, 1
    %p118 = por %p116, %p117
    %p119 = scmp.ne.s32.totalorder %s110, %s111
    %p120 = scmp.eq.s32.totalorder %s16, 0
    %p121 = por %p119, %p120
    %p122 = scmp.ne.s32.totalorder %s110, %s111
    %p123 = scmp.eq.s32.totalorder %s17, 1
    %p124 = por %p122, %p123
    %p126 = scmp.ne.s32.totalorder %s111, %s125
    %p127 = scmp.eq.s32.totalorder %s17, 0
    %p128 = por %p126, %p127
    %s129 = ssub.s32 %s11, %s18
    %p130 = scmp.eq.s32.totalorder %s129, 0
    %s132 = sadd.s32 %s131, 1
    %s133 = scalar_select %p130, %s131, %s132
    %p136 = pneg %p130
    %p137 = scmp.eq.s32.totalorder %s11, 1
    %p138 = por %p136, %p137
    %p139 = scmp.ne.s32.totalorder %s131, %s134
    %p140 = scmp.eq.s32.totalorder %s11, 0
    %p141 = por %p139, %p140
    %p142 = scmp.ne.s32.totalorder %s131, %s134
    %p143 = scmp.eq.s32.totalorder %s16, 1
    %p144 = por %p142, %p143
    %p145 = scmp.ne.s32.totalorder %s134, %s135
    %p146 = scmp.eq.s32.totalorder %s16, 0
    %p147 = por %p145, %p146
    %p148 = scmp.ne.s32.totalorder %s134, %s135
    %p149 = scmp.eq.s32.totalorder %s17, 1
    %p150 = por %p148, %p149
    %p152 = scmp.ne.s32.totalorder %s135, %s151
    %p153 = scmp.eq.s32.totalorder %s17, 0
    %p154 = por %p152, %p153
    %p155 = scmp.le.s32.totalorder 1, %s11
    %p156 = scmp.lt.s32.totalorder %s11, 3
    %p157 = pnand %p155, %p156
    %p158 = pneg %p157
    // Predicated region
    $region9: #{poswise_ffn.1} parent=5 // pred_check
      _
    $region10: #{poswise_ffn.1} parent=5 // pred_check_branch
      %160 = sbr.rel (%p157) target = $region12
    $region11: #{poswise_ffn.1} parent=5 // pred_region
      %s161 = ssub.s32 %s11, 1
      // Predicated region
      $region13: #{poswise_ffn.1} parent=11 // pred_check
        %p162 = pneg %p58
      $region14: #{poswise_ffn.1} parent=11 // pred_check_branch
        %164 = sbr.rel (%p162) target = $region16
      $region15: #{poswise_ffn.1} parent=11 // pred_region
        _
      $region16: #{poswise_ffn.1} parent=11 // pred_fallthru
        _
      // Predicated region
      $region17: #{poswise_ffn.1} parent=11 // pred_check
        %p165 = pneg %p79
      $region18: #{poswise_ffn.1} parent=11 // pred_check_branch
        %167 = sbr.rel (%p165) target = $region20
      $region19: #{poswise_ffn.1} parent=11 // pred_region
        _
      $region20: #{poswise_ffn.1} parent=11 // pred_fallthru
        _
      // Predicated region
      $region21: #{poswise_ffn.1} parent=11 // pred_check
        %p168 = pneg %p100
      $region22: #{poswise_ffn.1} parent=11 // pred_check_branch
        %170 = sbr.rel (%p168) target = $region24
      $region23: #{poswise_ffn.1} parent=11 // pred_region
        _
      $region24: #{poswise_ffn.1} parent=11 // pred_fallthru
        _
      // Predicated region
      $region25: #{poswise_ffn.1} parent=11 // pred_check
        %p171 = pneg %p121
      $region26: #{poswise_ffn.1} parent=11 // pred_check_branch
        %173 = sbr.rel (%p171) target = $region28
      $region27: #{poswise_ffn.1} parent=11 // pred_region
        _
      $region28: #{poswise_ffn.1} parent=11 // pred_fallthru
        _
    $region12: #{poswise_ffn.1} parent=5 // pred_fallthru
      _
    %p174 = scmp.lt.s32.totalorder %s11, 2
    // Predicated region
    $region29: #{poswise_ffn.1} parent=5 // pred_check
      %p175 = pneg %p174
    $region30: #{poswise_ffn.1} parent=5 // pred_check_branch
      %177 = sbr.rel (%p175) target = $region32
    $region31: #{poswise_ffn.1} parent=5 // pred_region
      // Predicated region
      $region33: #{poswise_ffn.1} parent=31 // pred_check
        %p178 = pneg %p31
      $region34: #{poswise_ffn.1} parent=31 // pred_check_branch
        %180 = sbr.rel (%p178) target = $region36
      $region35: #{poswise_ffn.1} parent=31 // pred_region
        %s181 = smul.u32 25, %s11
        %p182 = scmp.lt.s32.totalorder %s181, 49
        %s183 = scalar_select %p182, %s181, 49
        %s184 = smul.addr %s183, 4
        %s185 = smul.addr %s184, 8
        %s186 = scalar_lea.vmem %s0, %s185
        %s187 = smul.u32 25, %s11
      $region36: #{poswise_ffn.1} parent=31 // pred_fallthru
        _
    $region32: #{poswise_ffn.1} parent=5 // pred_fallthru
      _
    %p188 = scmp.le.s32.totalorder 1, %s11
    %p189 = scmp.lt.s32.totalorder %s11, 3
    %p190 = pnand %p188, %p189
    %p191 = pneg %p190
    // Predicated region
    $region37: #{poswise_ffn.1} parent=5 // pred_check
      _
    $region38: #{poswise_ffn.1} parent=5 // pred_check_branch
      %193 = sbr.rel (%p190) target = $region40
    $region39: #{poswise_ffn.1} parent=5 // pred_region
      %s194 = ssub.s32 %s11, 1
      %s195 = smul.u32 25, %s16
      %p196 = scmp.lt.s32.totalorder %s195, 49
      %s197 = scalar_select %p196, %s195, 49
      %s198 = smul.addr %s197, 4
      %s199 = smul.addr %s198, 8
      %s200 = scalar_lea.vmem %s0, %s199
      %p201 = pneg %p37
      %p202 = pneg %p34
      %p203 = pneg %p58
      %p204 = pneg %p55
      %p205 = pneg %p79
      %p206 = pneg %p76
      %p207 = pneg %p100
      %p208 = pneg %p97
      %p209 = pneg %p121
      %p210 = pneg %p118
      %p211 = pneg %p147
      %p212 = pneg %p144
      %s213 = smul.u32 25, %s16
      %p214 = scmp.lt.s32.totalorder %s213, 49
      %s215 = scalar_select %p214, %s213, 49
      %s216 = smul.addr %s215, 4
      %s217 = smul.addr %s216, 8
      %s218 = scalar_lea.vmem %s5, %s217
      %s219 = smul.u32 25, %s16
      %p220 = scmp.lt.s32.totalorder %s219, 49
      %s221 = scalar_select %p220, %s219, 49
      %s222 = smul.addr %s221, 4
      %s223 = smul.addr %s222, 8
      %s224 = scalar_lea.vmem %s0, %s223
      %s225 = smul.u32 25, %s16
      %s226 = smul.u32 25, %s16
      %p227 = scmp.lt.s32.totalorder %s226, 49
      %s228 = scalar_select %p227, %s226, 49
      %s229 = smul.addr %s228, 4
      %s230 = smul.addr %s229, 8
      %s231 = scalar_lea.vmem %s5, %s230
      %s232 = smul.u32 25, %s16
      %v233 = vld [vmem:[%s224] sm:$0xff]
      %v234 = vld [vmem:[%s224 + $0x8] sm:$0xff]
      %v235 = vld [vmem:[%s224 + $0x10] sm:$0xff]
      %v236 = vld [vmem:[%s224 + $0x18] sm:$0xff]
      %v237 = vld [vmem:[%s224 + $0x20] sm:$0xff]
      %v238 = vld [vmem:[%s224 + $0x28] sm:$0xff]
      %v239 = vld [vmem:[%s224 + $0x30] sm:$0xff]
      %v240 = vld [vmem:[%s224 + $0x38] sm:$0xff]
      %v241 = vld [vmem:[%s224 + $0x40] sm:$0xff]
      %v242 = vld [vmem:[%s224 + $0x48] sm:$0xff]
      %v243 = vld [vmem:[%s224 + $0x50] sm:$0xff]
      %v244 = vld [vmem:[%s224 + $0x58] sm:$0xff]
      %v245 = vld [vmem:[%s224 + $0x60] sm:$0xff]
      %v246 = vld [vmem:[%s224 + $0x68] sm:$0xff]
      %v247 = vld [vmem:[%s224 + $0x70] sm:$0xff]
      %v248 = vld [vmem:[%s224 + $0x78] sm:$0xff]
      %v249 = vld [vmem:[%s224 + $0x80] sm:$0xff]
      %v250 = vld [vmem:[%s224 + $0x88] sm:$0xff]
      %v251 = vld [vmem:[%s224 + $0x90] sm:$0xff]
      %v252 = vld [vmem:[%s224 + $0x98] sm:$0xff]
      %v253 = vld [vmem:[%s224 + $0xa0] sm:$0xff]
      %v254 = vld [vmem:[%s224 + $0xa8] sm:$0xff]
      %v255 = vld [vmem:[%s224 + $0xb0] sm:$0xff]
      %v256 = vld [vmem:[%s224 + $0xb8] sm:$0xff]
      %v257 = vld [vmem:[%s224 + $0xc0] sm:$0xff]
      %v258 = vld [vmem:[%s224 + $0xc8] sm:$0xff]
      %v259 = vld [vmem:[%s224 + $0xd0] sm:$0xff]
      %v260 = vld [vmem:[%s224 + $0xd8] sm:$0xff]
      %v261 = vld [vmem:[%s224 + $0xe0] sm:$0xff]
      %v262 = vld [vmem:[%s224 + $0xe8] sm:$0xff]
      %v263 = vld [vmem:[%s224 + $0xf0] sm:$0xff]
      %v264 = vld [vmem:[%s224 + $0xf8] sm:$0xff]
      %v265 = vld [vmem:[%s224 + $0x100] sm:$0xff]
      %v266 = vld [vmem:[%s224 + $0x108] sm:$0xff]
      %v267 = vld [vmem:[%s224 + $0x110] sm:$0xff]
      %v268 = vld [vmem:[%s224 + $0x118] sm:$0xff]
      %v269 = vld [vmem:[%s224 + $0x120] sm:$0xff]
      %v270 = vld [vmem:[%s224 + $0x128] sm:$0xff]
      %v271 = vld [vmem:[%s224 + $0x130] sm:$0xff]
      %v272 = vld [vmem:[%s224 + $0x138] sm:$0xff]
      %v273 = vld [vmem:[%s224 + $0x140] sm:$0xff]
      %v274 = vld [vmem:[%s224 + $0x148] sm:$0xff]
      %v275 = vld [vmem:[%s224 + $0x150] sm:$0xff]
      %v276 = vld [vmem:[%s224 + $0x158] sm:$0xff]
      %v277 = vld [vmem:[%s224 + $0x160] sm:$0xff]
      %v278 = vld [vmem:[%s224 + $0x168] sm:$0xff]
      %v279 = vld [vmem:[%s224 + $0x170] sm:$0xff]
      %v280 = vld [vmem:[%s224 + $0x178] sm:$0xff]
      %v281 = vld [vmem:[%s224 + $0x180] sm:$0xff]
      %v282 = vld [vmem:[%s224 + $0x188] sm:$0xff]
      %v283 = vld [vmem:[%s224 + $0x190] sm:$0xff]
      %v284 = vld [vmem:[%s224 + $0x198] sm:$0xff]
      %v285 = vld [vmem:[%s224 + $0x1a0] sm:$0xff]
      %v286 = vld [vmem:[%s224 + $0x1a8] sm:$0xff]
      %v287 = vld [vmem:[%s224 + $0x1b0] sm:$0xff]
      %v288 = vld [vmem:[%s224 + $0x1b8] sm:$0xff]
      %v289 = vld [vmem:[%s224 + $0x1c0] sm:$0xff]
      %v290 = vld [vmem:[%s224 + $0x1c8] sm:$0xff]
      %v291 = vld [vmem:[%s224 + $0x1d0] sm:$0xff]
      %v292 = vld [vmem:[%s224 + $0x1d8] sm:$0xff]
      %v293 = vld [vmem:[%s224 + $0x1e0] sm:$0xff]
      %v294 = vld [vmem:[%s224 + $0x1e8] sm:$0xff]
      %v295 = vld [vmem:[%s224 + $0x1f0] sm:$0xff]
      %v296 = vld [vmem:[%s224 + $0x1f8] sm:$0xff]
      %v297 = vld [vmem:[%s224 + $0x200] sm:$0xff]
      %v298 = vld [vmem:[%s224 + $0x208] sm:$0xff]
      %v299 = vld [vmem:[%s224 + $0x210] sm:$0xff]
      %v300 = vld [vmem:[%s224 + $0x218] sm:$0xff]
      %v301 = vld [vmem:[%s224 + $0x220] sm:$0xff]
      %v302 = vld [vmem:[%s224 + $0x228] sm:$0xff]
      %v303 = vld [vmem:[%s224 + $0x230] sm:$0xff]
      %v304 = vld [vmem:[%s224 + $0x238] sm:$0xff]
      %v305 = vld [vmem:[%s224 + $0x240] sm:$0xff]
      %v306 = vld [vmem:[%s224 + $0x248] sm:$0xff]
      %v307 = vld [vmem:[%s224 + $0x250] sm:$0xff]
      %v308 = vld [vmem:[%s224 + $0x258] sm:$0xff]
      %v309 = vld [vmem:[%s224 + $0x260] sm:$0xff]
      %v310 = vld [vmem:[%s224 + $0x268] sm:$0xff]
      %v311 = vld [vmem:[%s224 + $0x270] sm:$0xff]
      %v312 = vld [vmem:[%s224 + $0x278] sm:$0xff]
      %v313 = vld [vmem:[%s224 + $0x280] sm:$0xff]
      %v314 = vld [vmem:[%s224 + $0x288] sm:$0xff]
      %v315 = vld [vmem:[%s224 + $0x290] sm:$0xff]
      %v316 = vld [vmem:[%s224 + $0x298] sm:$0xff]
      %v317 = vld [vmem:[%s224 + $0x2a0] sm:$0xff]
      %v318 = vld [vmem:[%s224 + $0x2a8] sm:$0xff]
      %v319 = vld [vmem:[%s224 + $0x2b0] sm:$0xff]
      %v320 = vld [vmem:[%s224 + $0x2b8] sm:$0xff]
      %v321 = vld [vmem:[%s224 + $0x2c0] sm:$0xff]
      %v322 = vld [vmem:[%s224 + $0x2c8] sm:$0xff]
      %v323 = vld [vmem:[%s224 + $0x2d0] sm:$0xff]
      %v324 = vld [vmem:[%s224 + $0x2d8] sm:$0xff]
      %v325 = vld [vmem:[%s224 + $0x2e0] sm:$0xff]
      %v326 = vld [vmem:[%s224 + $0x2e8] sm:$0xff]
      %v327 = vld [vmem:[%s224 + $0x2f0] sm:$0xff]
      %v328 = vld [vmem:[%s224 + $0x2f8] sm:$0xff]
      %v329 = vld [vmem:[%s224 + $0x300] sm:$0xff]
      %v330 = vld [vmem:[%s224 + $0x308] sm:$0xff]
      %v331 = vld [vmem:[%s224 + $0x310] sm:$0xff]
      %v332 = vld [vmem:[%s224 + $0x318] sm:$0xff]
      %v333 = vpack.c.bf16 %v237, %v233
      %v334 = vpack.c.bf16 %v238, %v234
      %v335 = vpack.c.bf16 %v239, %v235
      %v336 = vpack.c.bf16 %v240, %v236
      %v337 = vpack.c.bf16 %v245, %v241
      %v338 = vpack.c.bf16 %v246, %v242
      %v339 = vpack.c.bf16 %v247, %v243
      %v340 = vpack.c.bf16 %v248, %v244
      %v341 = vpack.c.bf16 %v253, %v249
      %v342 = vpack.c.bf16 %v254, %v250
      %v343 = vpack.c.bf16 %v255, %v251
      %v344 = vpack.c.bf16 %v256, %v252
      %v345 = vpack.c.bf16 %v261, %v257
      %v346 = vpack.c.bf16 %v262, %v258
      %v347 = vpack.c.bf16 %v263, %v259
      %v348 = vpack.c.bf16 %v264, %v260
      %v349 = vpack.c.bf16 %v269, %v265
      %v350 = vpack.c.bf16 %v270, %v266
      %v351 = vpack.c.bf16 %v271, %v267
      %v352 = vpack.c.bf16 %v272, %v268
      %v353 = vpack.c.bf16 %v277, %v273
      %v354 = vpack.c.bf16 %v278, %v274
      %v355 = vpack.c.bf16 %v279, %v275
      %v356 = vpack.c.bf16 %v280, %v276
      %v357 = vpack.c.bf16 %v285, %v281
      %v358 = vpack.c.bf16 %v286, %v282
      %v359 = vpack.c.bf16 %v287, %v283
      %v360 = vpack.c.bf16 %v288, %v284
      %v361 = vpack.c.bf16 %v293, %v289
      %v362 = vpack.c.bf16 %v294, %v290
      %v363 = vpack.c.bf16 %v295, %v291
      %v364 = vpack.c.bf16 %v296, %v292
      %v365 = vpack.c.bf16 %v301, %v297
      %v366 = vpack.c.bf16 %v302, %v298
      %v367 = vpack.c.bf16 %v303, %v299
      %v368 = vpack.c.bf16 %v304, %v300
      %v369 = vpack.c.bf16 %v309, %v305
      %v370 = vpack.c.bf16 %v310, %v306
      %v371 = vpack.c.bf16 %v311, %v307
      %v372 = vpack.c.bf16 %v312, %v308
      %v373 = vpack.c.bf16 %v317, %v313
      %v374 = vpack.c.bf16 %v318, %v314
      %v375 = vpack.c.bf16 %v319, %v315
      %v376 = vpack.c.bf16 %v320, %v316
      %v377 = vpack.c.bf16 %v325, %v321
      %v378 = vpack.c.bf16 %v326, %v322
      %v379 = vpack.c.bf16 %v327, %v323
      %v380 = vpack.c.bf16 %v328, %v324
      %v381 = vpack.c.bf16 %v329, %v329
      %v382 = vpack.c.bf16 %v330, %v330
      %v383 = vpack.c.bf16 %v331, %v331
      %v384 = vpack.c.bf16 %v332, %v332
      %v385 = vld [vmem:[%s1] sm:$0xff]
      %v386 = vld [vmem:[%s1 + $0x8] sm:$0xff]
      %v387 = vld [vmem:[%s1 + $0x10] sm:$0xff]
      %v388 = vld [vmem:[%s1 + $0x18] sm:$0xff]
      %v389 = vld [vmem:[%s1 + $0x20] sm:$0xff]
      %v390 = vld [vmem:[%s1 + $0x28] sm:$0xff]
      %v391 = vld [vmem:[%s1 + $0x30] sm:$0xff]
      %v392 = vld [vmem:[%s1 + $0x38] sm:$0xff]
      %v393 = vld [vmem:[%s1 + $0x40] sm:$0xff]
      %v394 = vld [vmem:[%s1 + $0x48] sm:$0xff]
      %v395 = vld [vmem:[%s1 + $0x50] sm:$0xff]
      %v396 = vld [vmem:[%s1 + $0x58] sm:$0xff]
      %v397 = vld [vmem:[%s1 + $0x60] sm:$0xff]
      %v398 = vld [vmem:[%s1 + $0x68] sm:$0xff]
      %v399 = vld [vmem:[%s1 + $0x70] sm:$0xff]
      %v400 = vld [vmem:[%s1 + $0x78] sm:$0xff]
      %v401 = vld [vmem:[%s1 + $0x80] sm:$0xff]
      %v402 = vld [vmem:[%s1 + $0x88] sm:$0xff]
      %v403 = vld [vmem:[%s1 + $0x90] sm:$0xff]
      %v404 = vld [vmem:[%s1 + $0x98] sm:$0xff]
      %v405 = vld [vmem:[%s1 + $0xa0] sm:$0xff]
      %v406 = vld [vmem:[%s1 + $0xa8] sm:$0xff]
      %v407 = vld [vmem:[%s1 + $0xb0] sm:$0xff]
      %v408 = vld [vmem:[%s1 + $0xb8] sm:$0xff]
      %v409 = vld [vmem:[%s1 + $0xc0] sm:$0xff]
      %v410 = vld [vmem:[%s1 + $0xc8] sm:$0xff]
      %v411 = vld [vmem:[%s1 + $0xd0] sm:$0xff]
      %v412 = vld [vmem:[%s1 + $0xd8] sm:$0xff]
      %v413 = vld [vmem:[%s1 + $0xe0] sm:$0xff]
      %v414 = vld [vmem:[%s1 + $0xe8] sm:$0xff]
      %v415 = vld [vmem:[%s1 + $0xf0] sm:$0xff]
      %v416 = vld [vmem:[%s1 + $0xf8] sm:$0xff]
      %v417 = vld [vmem:[%s1 + $0x100] sm:$0xff]
      %v418 = vld [vmem:[%s1 + $0x108] sm:$0xff]
      %v419 = vld [vmem:[%s1 + $0x110] sm:$0xff]
      %v420 = vld [vmem:[%s1 + $0x118] sm:$0xff]
      %v421 = vld [vmem:[%s1 + $0x120] sm:$0xff]
      %v422 = vld [vmem:[%s1 + $0x128] sm:$0xff]
      %v423 = vld [vmem:[%s1 + $0x130] sm:$0xff]
      %v424 = vld [vmem:[%s1 + $0x138] sm:$0xff]
      %v425 = vld [vmem:[%s1 + $0x140] sm:$0xff]
      %v426 = vld [vmem:[%s1 + $0x148] sm:$0xff]
      %v427 = vld [vmem:[%s1 + $0x150] sm:$0xff]
      %v428 = vld [vmem:[%s1 + $0x158] sm:$0xff]
      %v429 = vld [vmem:[%s1 + $0x160] sm:$0xff]
      %v430 = vld [vmem:[%s1 + $0x168] sm:$0xff]
      %v431 = vld [vmem:[%s1 + $0x170] sm:$0xff]
      %v432 = vld [vmem:[%s1 + $0x178] sm:$0xff]
      %v433 = vld [vmem:[%s1 + $0x180] sm:$0xff]
      %v434 = vld [vmem:[%s1 + $0x188] sm:$0xff]
      %v435 = vld [vmem:[%s1 + $0x190] sm:$0xff]
      %v436 = vld [vmem:[%s1 + $0x198] sm:$0xff]
      %v437 = vld [vmem:[%s1 + $0x1a0] sm:$0xff]
      %v438 = vld [vmem:[%s1 + $0x1a8] sm:$0xff]
      %v439 = vld [vmem:[%s1 + $0x1b0] sm:$0xff]
      %v440 = vld [vmem:[%s1 + $0x1b8] sm:$0xff]
      %v441 = vld [vmem:[%s1 + $0x1c0] sm:$0xff]
      %v442 = vld [vmem:[%s1 + $0x1c8] sm:$0xff]
      %v443 = vld [vmem:[%s1 + $0x1d0] sm:$0xff]
      %v444 = vld [vmem:[%s1 + $0x1d8] sm:$0xff]
      %v445 = vld [vmem:[%s1 + $0x1e0] sm:$0xff]
      %v446 = vld [vmem:[%s1 + $0x1e8] sm:$0xff]
      %v447 = vld [vmem:[%s1 + $0x1f0] sm:$0xff]
      %v448 = vld [vmem:[%s1 + $0x1f8] sm:$0xff]
      %v449 = vld [vmem:[%s1 + $0x200] sm:$0xff]
      %v450 = vld [vmem:[%s1 + $0x208] sm:$0xff]
      %v451 = vld [vmem:[%s1 + $0x210] sm:$0xff]
      %v452 = vld [vmem:[%s1 + $0x218] sm:$0xff]
      %v453 = vld [vmem:[%s1 + $0x220] sm:$0xff]
      %v454 = vld [vmem:[%s1 + $0x228] sm:$0xff]
      %v455 = vld [vmem:[%s1 + $0x230] sm:$0xff]
      %v456 = vld [vmem:[%s1 + $0x238] sm:$0xff]
      %v457 = vld [vmem:[%s1 + $0x240] sm:$0xff]
      %v458 = vld [vmem:[%s1 + $0x248] sm:$0xff]
      %v459 = vld [vmem:[%s1 + $0x250] sm:$0xff]
      %v460 = vld [vmem:[%s1 + $0x258] sm:$0xff]
      %v461 = vld [vmem:[%s1 + $0x260] sm:$0xff]
      %v462 = vld [vmem:[%s1 + $0x268] sm:$0xff]
      %v463 = vld [vmem:[%s1 + $0x270] sm:$0xff]
      %v464 = vld [vmem:[%s1 + $0x278] sm:$0xff]
      %v465 = vld [vmem:[%s1 + $0x280] sm:$0xff]
      %v466 = vld [vmem:[%s1 + $0x288] sm:$0xff]
      %v467 = vld [vmem:[%s1 + $0x290] sm:$0xff]
      %v468 = vld [vmem:[%s1 + $0x298] sm:$0xff]
      %v469 = vld [vmem:[%s1 + $0x2a0] sm:$0xff]
      %v470 = vld [vmem:[%s1 + $0x2a8] sm:$0xff]
      %v471 = vld [vmem:[%s1 + $0x2b0] sm:$0xff]
      %v472 = vld [vmem:[%s1 + $0x2b8] sm:$0xff]
      %v473 = vld [vmem:[%s1 + $0x2c0] sm:$0xff]
      %v474 = vld [vmem:[%s1 + $0x2c8] sm:$0xff]
      %v475 = vld [vmem:[%s1 + $0x2d0] sm:$0xff]
      %v476 = vld [vmem:[%s1 + $0x2d8] sm:$0xff]
      %v477 = vld [vmem:[%s1 + $0x2e0] sm:$0xff]
      %v478 = vld [vmem:[%s1 + $0x2e8] sm:$0xff]
      %v479 = vld [vmem:[%s1 + $0x2f0] sm:$0xff]
      %v480 = vld [vmem:[%s1 + $0x2f8] sm:$0xff]
      %v481 = vld [vmem:[%s1 + $0x300] sm:$0xff]
      %v482 = vld [vmem:[%s1 + $0x308] sm:$0xff]
      %v483 = vld [vmem:[%s1 + $0x310] sm:$0xff]
      %v484 = vld [vmem:[%s1 + $0x318] sm:$0xff]
      %v485 = vld [vmem:[%s1 + $0x320] sm:$0xff]
      %v486 = vld [vmem:[%s1 + $0x328] sm:$0xff]
      %v487 = vld [vmem:[%s1 + $0x330] sm:$0xff]
      %v488 = vld [vmem:[%s1 + $0x338] sm:$0xff]
      %v489 = vld [vmem:[%s1 + $0x340] sm:$0xff]
      %v490 = vld [vmem:[%s1 + $0x348] sm:$0xff]
      %v491 = vld [vmem:[%s1 + $0x350] sm:$0xff]
      %v492 = vld [vmem:[%s1 + $0x358] sm:$0xff]
      %v493 = vld [vmem:[%s1 + $0x360] sm:$0xff]
      %v494 = vld [vmem:[%s1 + $0x368] sm:$0xff]
      %v495 = vld [vmem:[%s1 + $0x370] sm:$0xff]
      %v496 = vld [vmem:[%s1 + $0x378] sm:$0xff]
      %v497 = vld [vmem:[%s1 + $0x380] sm:$0xff]
      %v498 = vld [vmem:[%s1 + $0x388] sm:$0xff]
      %v499 = vld [vmem:[%s1 + $0x390] sm:$0xff]
      %v500 = vld [vmem:[%s1 + $0x398] sm:$0xff]
      %v501 = vld [vmem:[%s1 + $0x3a0] sm:$0xff]
      %v502 = vld [vmem:[%s1 + $0x3a8] sm:$0xff]
      %v503 = vld [vmem:[%s1 + $0x3b0] sm:$0xff]
      %v504 = vld [vmem:[%s1 + $0x3b8] sm:$0xff]
      %v505 = vld [vmem:[%s1 + $0x3c0] sm:$0xff]
      %v506 = vld [vmem:[%s1 + $0x3c8] sm:$0xff]
      %v507 = vld [vmem:[%s1 + $0x3d0] sm:$0xff]
      %v508 = vld [vmem:[%s1 + $0x3d8] sm:$0xff]
      %v509 = vld [vmem:[%s1 + $0x3e0] sm:$0xff]
      %v510 = vld [vmem:[%s1 + $0x3e8] sm:$0xff]
      %v511 = vld [vmem:[%s1 + $0x3f0] sm:$0xff]
      %v512 = vld [vmem:[%s1 + $0x3f8] sm:$0xff]
      %v513 = vld [vmem:[%s1 + $0x400] sm:$0xff]
      %v514 = vld [vmem:[%s1 + $0x408] sm:$0xff]
      %v515 = vld [vmem:[%s1 + $0x410] sm:$0xff]
      %v516 = vld [vmem:[%s1 + $0x418] sm:$0xff]
      %v517 = vld [vmem:[%s1 + $0x420] sm:$0xff]
      %v518 = vld [vmem:[%s1 + $0x428] sm:$0xff]
      %v519 = vld [vmem:[%s1 + $0x430] sm:$0xff]
      %v520 = vld [vmem:[%s1 + $0x438] sm:$0xff]
      %v521 = vld [vmem:[%s1 + $0x440] sm:$0xff]
      %v522 = vld [vmem:[%s1 + $0x448] sm:$0xff]
      %v523 = vld [vmem:[%s1 + $0x450] sm:$0xff]
      %v524 = vld [vmem:[%s1 + $0x458] sm:$0xff]
      %v525 = vld [vmem:[%s1 + $0x460] sm:$0xff]
      %v526 = vld [vmem:[%s1 + $0x468] sm:$0xff]
      %v527 = vld [vmem:[%s1 + $0x470] sm:$0xff]
      %v528 = vld [vmem:[%s1 + $0x478] sm:$0xff]
      %v529 = vld [vmem:[%s1 + $0x480] sm:$0xff]
      %v530 = vld [vmem:[%s1 + $0x488] sm:$0xff]
      %v531 = vld [vmem:[%s1 + $0x490] sm:$0xff]
      %v532 = vld [vmem:[%s1 + $0x498] sm:$0xff]
      %v533 = vld [vmem:[%s1 + $0x4a0] sm:$0xff]
      %v534 = vld [vmem:[%s1 + $0x4a8] sm:$0xff]
      %v535 = vld [vmem:[%s1 + $0x4b0] sm:$0xff]
      %v536 = vld [vmem:[%s1 + $0x4b8] sm:$0xff]
      %v537 = vld [vmem:[%s1 + $0x4c0] sm:$0xff]
      %v538 = vld [vmem:[%s1 + $0x4c8] sm:$0xff]
      %v539 = vld [vmem:[%s1 + $0x4d0] sm:$0xff]
      %v540 = vld [vmem:[%s1 + $0x4d8] sm:$0xff]
      %v541 = vld [vmem:[%s1 + $0x4e0] sm:$0xff]
      %v542 = vld [vmem:[%s1 + $0x4e8] sm:$0xff]
      %v543 = vld [vmem:[%s1 + $0x4f0] sm:$0xff]
      %v544 = vld [vmem:[%s1 + $0x4f8] sm:$0xff]
      %v545 = vld [vmem:[%s1 + $0x500] sm:$0xff]
      %v546 = vld [vmem:[%s1 + $0x508] sm:$0xff]
      %v547 = vld [vmem:[%s1 + $0x510] sm:$0xff]
      %v548 = vld [vmem:[%s1 + $0x518] sm:$0xff]
      %v549 = vld [vmem:[%s1 + $0x520] sm:$0xff]
      %v550 = vld [vmem:[%s1 + $0x528] sm:$0xff]
      %v551 = vld [vmem:[%s1 + $0x530] sm:$0xff]
      %v552 = vld [vmem:[%s1 + $0x538] sm:$0xff]
      %v553 = vld [vmem:[%s1 + $0x540] sm:$0xff]
      %v554 = vld [vmem:[%s1 + $0x548] sm:$0xff]
      %v555 = vld [vmem:[%s1 + $0x550] sm:$0xff]
      %v556 = vld [vmem:[%s1 + $0x558] sm:$0xff]
      %v557 = vld [vmem:[%s1 + $0x560] sm:$0xff]
      %v558 = vld [vmem:[%s1 + $0x568] sm:$0xff]
      %v559 = vld [vmem:[%s1 + $0x570] sm:$0xff]
      %v560 = vld [vmem:[%s1 + $0x578] sm:$0xff]
      %v561 = vld [vmem:[%s1 + $0x580] sm:$0xff]
      %v562 = vld [vmem:[%s1 + $0x588] sm:$0xff]
      %v563 = vld [vmem:[%s1 + $0x590] sm:$0xff]
      %v564 = vld [vmem:[%s1 + $0x598] sm:$0xff]
      %v565 = vld [vmem:[%s1 + $0x5a0] sm:$0xff]
      %v566 = vld [vmem:[%s1 + $0x5a8] sm:$0xff]
      %v567 = vld [vmem:[%s1 + $0x5b0] sm:$0xff]
      %v568 = vld [vmem:[%s1 + $0x5b8] sm:$0xff]
      %v569 = vld [vmem:[%s1 + $0x5c0] sm:$0xff]
      %v570 = vld [vmem:[%s1 + $0x5c8] sm:$0xff]
      %v571 = vld [vmem:[%s1 + $0x5d0] sm:$0xff]
      %v572 = vld [vmem:[%s1 + $0x5d8] sm:$0xff]
      %v573 = vld [vmem:[%s1 + $0x5e0] sm:$0xff]
      %v574 = vld [vmem:[%s1 + $0x5e8] sm:$0xff]
      %v575 = vld [vmem:[%s1 + $0x5f0] sm:$0xff]
      %v576 = vld [vmem:[%s1 + $0x5f8] sm:$0xff]
      %v577 = vld [vmem:[%s1 + $0x600] sm:$0xff]
      %v578 = vld [vmem:[%s1 + $0x608] sm:$0xff]
      %v579 = vld [vmem:[%s1 + $0x610] sm:$0xff]
      %v580 = vld [vmem:[%s1 + $0x618] sm:$0xff]
      %v581 = vld [vmem:[%s1 + $0x620] sm:$0xff]
      %v582 = vld [vmem:[%s1 + $0x628] sm:$0xff]
      %v583 = vld [vmem:[%s1 + $0x630] sm:$0xff]
      %v584 = vld [vmem:[%s1 + $0x638] sm:$0xff]
      %v585 = vld [vmem:[%s1 + $0x640] sm:$0xff]
      %v586 = vld [vmem:[%s1 + $0x648] sm:$0xff]
      %v587 = vld [vmem:[%s1 + $0x650] sm:$0xff]
      %v588 = vld [vmem:[%s1 + $0x658] sm:$0xff]
      %v589 = vld [vmem:[%s1 + $0x660] sm:$0xff]
      %v590 = vld [vmem:[%s1 + $0x668] sm:$0xff]
      %v591 = vld [vmem:[%s1 + $0x670] sm:$0xff]
      %v592 = vld [vmem:[%s1 + $0x678] sm:$0xff]
      %v593 = vld [vmem:[%s1 + $0x680] sm:$0xff]
      %v594 = vld [vmem:[%s1 + $0x688] sm:$0xff]
      %v595 = vld [vmem:[%s1 + $0x690] sm:$0xff]
      %v596 = vld [vmem:[%s1 + $0x698] sm:$0xff]
      %v597 = vld [vmem:[%s1 + $0x6a0] sm:$0xff]
      %v598 = vld [vmem:[%s1 + $0x6a8] sm:$0xff]
      %v599 = vld [vmem:[%s1 + $0x6b0] sm:$0xff]
      %v600 = vld [vmem:[%s1 + $0x6b8] sm:$0xff]
      %v601 = vld [vmem:[%s1 + $0x6c0] sm:$0xff]
      %v602 = vld [vmem:[%s1 + $0x6c8] sm:$0xff]
      %v603 = vld [vmem:[%s1 + $0x6d0] sm:$0xff]
      %v604 = vld [vmem:[%s1 + $0x6d8] sm:$0xff]
      %v605 = vld [vmem:[%s1 + $0x6e0] sm:$0xff]
      %v606 = vld [vmem:[%s1 + $0x6e8] sm:$0xff]
      %v607 = vld [vmem:[%s1 + $0x6f0] sm:$0xff]
      %v608 = vld [vmem:[%s1 + $0x6f8] sm:$0xff]
      %v609 = vld [vmem:[%s1 + $0x700] sm:$0xff]
      %v610 = vld [vmem:[%s1 + $0x708] sm:$0xff]
      %v611 = vld [vmem:[%s1 + $0x710] sm:$0xff]
      %v612 = vld [vmem:[%s1 + $0x718] sm:$0xff]
      %v613 = vld [vmem:[%s1 + $0x720] sm:$0xff]
      %v614 = vld [vmem:[%s1 + $0x728] sm:$0xff]
      %v615 = vld [vmem:[%s1 + $0x730] sm:$0xff]
      %v616 = vld [vmem:[%s1 + $0x738] sm:$0xff]
      %v617 = vld [vmem:[%s1 + $0x740] sm:$0xff]
      %v618 = vld [vmem:[%s1 + $0x748] sm:$0xff]
      %v619 = vld [vmem:[%s1 + $0x750] sm:$0xff]
      %v620 = vld [vmem:[%s1 + $0x758] sm:$0xff]
      %v621 = vld [vmem:[%s1 + $0x760] sm:$0xff]
      %v622 = vld [vmem:[%s1 + $0x768] sm:$0xff]
      %v623 = vld [vmem:[%s1 + $0x770] sm:$0xff]
      %v624 = vld [vmem:[%s1 + $0x778] sm:$0xff]
      %v625 = vld [vmem:[%s1 + $0x780] sm:$0xff]
      %v626 = vld [vmem:[%s1 + $0x788] sm:$0xff]
      %v627 = vld [vmem:[%s1 + $0x790] sm:$0xff]
      %v628 = vld [vmem:[%s1 + $0x798] sm:$0xff]
      %v629 = vld [vmem:[%s1 + $0x7a0] sm:$0xff]
      %v630 = vld [vmem:[%s1 + $0x7a8] sm:$0xff]
      %v631 = vld [vmem:[%s1 + $0x7b0] sm:$0xff]
      %v632 = vld [vmem:[%s1 + $0x7b8] sm:$0xff]
      %v633 = vld [vmem:[%s1 + $0x7c0] sm:$0xff]
      %v634 = vld [vmem:[%s1 + $0x7c8] sm:$0xff]
      %v635 = vld [vmem:[%s1 + $0x7d0] sm:$0xff]
      %v636 = vld [vmem:[%s1 + $0x7d8] sm:$0xff]
      %v637 = vld [vmem:[%s1 + $0x7e0] sm:$0xff]
      %v638 = vld [vmem:[%s1 + $0x7e8] sm:$0xff]
      %v639 = vld [vmem:[%s1 + $0x7f0] sm:$0xff]
      %v640 = vld [vmem:[%s1 + $0x7f8] sm:$0xff]
      %v641 = vld [vmem:[%s1 + $0x800] sm:$0xff]
      %v642 = vld [vmem:[%s1 + $0x808] sm:$0xff]
      %v643 = vld [vmem:[%s1 + $0x810] sm:$0xff]
      %v644 = vld [vmem:[%s1 + $0x818] sm:$0xff]
      %v645 = vld [vmem:[%s1 + $0x820] sm:$0xff]
      %v646 = vld [vmem:[%s1 + $0x828] sm:$0xff]
      %v647 = vld [vmem:[%s1 + $0x830] sm:$0xff]
      %v648 = vld [vmem:[%s1 + $0x838] sm:$0xff]
      %v649 = vld [vmem:[%s1 + $0x840] sm:$0xff]
      %v650 = vld [vmem:[%s1 + $0x848] sm:$0xff]
      %v651 = vld [vmem:[%s1 + $0x850] sm:$0xff]
      %v652 = vld [vmem:[%s1 + $0x858] sm:$0xff]
      %v653 = vld [vmem:[%s1 + $0x860] sm:$0xff]
      %v654 = vld [vmem:[%s1 + $0x868] sm:$0xff]
      %v655 = vld [vmem:[%s1 + $0x870] sm:$0xff]
      %v656 = vld [vmem:[%s1 + $0x878] sm:$0xff]
      %v657 = vld [vmem:[%s1 + $0x880] sm:$0xff]
      %v658 = vld [vmem:[%s1 + $0x888] sm:$0xff]
      %v659 = vld [vmem:[%s1 + $0x890] sm:$0xff]
      %v660 = vld [vmem:[%s1 + $0x898] sm:$0xff]
      %v661 = vld [vmem:[%s1 + $0x8a0] sm:$0xff]
      %v662 = vld [vmem:[%s1 + $0x8a8] sm:$0xff]
      %v663 = vld [vmem:[%s1 + $0x8b0] sm:$0xff]
      %v664 = vld [vmem:[%s1 + $0x8b8] sm:$0xff]
      %v665 = vld [vmem:[%s1 + $0x8c0] sm:$0xff]
      %v666 = vld [vmem:[%s1 + $0x8c8] sm:$0xff]
      %v667 = vld [vmem:[%s1 + $0x8d0] sm:$0xff]
      %v668 = vld [vmem:[%s1 + $0x8d8] sm:$0xff]
      %v669 = vld [vmem:[%s1 + $0x8e0] sm:$0xff]
      %v670 = vld [vmem:[%s1 + $0x8e8] sm:$0xff]
      %v671 = vld [vmem:[%s1 + $0x8f0] sm:$0xff]
      %v672 = vld [vmem:[%s1 + $0x8f8] sm:$0xff]
      %v673 = vld [vmem:[%s1 + $0x900] sm:$0xff]
      %v674 = vld [vmem:[%s1 + $0x908] sm:$0xff]
      %v675 = vld [vmem:[%s1 + $0x910] sm:$0xff]
      %v676 = vld [vmem:[%s1 + $0x918] sm:$0xff]
      %v677 = vld [vmem:[%s1 + $0x920] sm:$0xff]
      %v678 = vld [vmem:[%s1 + $0x928] sm:$0xff]
      %v679 = vld [vmem:[%s1 + $0x930] sm:$0xff]
      %v680 = vld [vmem:[%s1 + $0x938] sm:$0xff]
      %v681 = vld [vmem:[%s1 + $0x940] sm:$0xff]
      %v682 = vld [vmem:[%s1 + $0x948] sm:$0xff]
      %v683 = vld [vmem:[%s1 + $0x950] sm:$0xff]
      %v684 = vld [vmem:[%s1 + $0x958] sm:$0xff]
      %v685 = vld [vmem:[%s1 + $0x960] sm:$0xff]
      %v686 = vld [vmem:[%s1 + $0x968] sm:$0xff]
      %v687 = vld [vmem:[%s1 + $0x970] sm:$0xff]
      %v688 = vld [vmem:[%s1 + $0x978] sm:$0xff]
      %v689 = vld [vmem:[%s1 + $0x980] sm:$0xff]
      %v690 = vld [vmem:[%s1 + $0x988] sm:$0xff]
      %v691 = vld [vmem:[%s1 + $0x990] sm:$0xff]
      %v692 = vld [vmem:[%s1 + $0x998] sm:$0xff]
      %v693 = vld [vmem:[%s1 + $0x9a0] sm:$0xff]
      %v694 = vld [vmem:[%s1 + $0x9a8] sm:$0xff]
      %v695 = vld [vmem:[%s1 + $0x9b0] sm:$0xff]
      %v696 = vld [vmem:[%s1 + $0x9b8] sm:$0xff]
      %v697 = vld [vmem:[%s1 + $0x9c0] sm:$0xff]
      %v698 = vld [vmem:[%s1 + $0x9c8] sm:$0xff]
      %v699 = vld [vmem:[%s1 + $0x9d0] sm:$0xff]
      %v700 = vld [vmem:[%s1 + $0x9d8] sm:$0xff]
      %v701 = vld [vmem:[%s1 + $0x9e0] sm:$0xff]
      %v702 = vld [vmem:[%s1 + $0x9e8] sm:$0xff]
      %v703 = vld [vmem:[%s1 + $0x9f0] sm:$0xff]
      %v704 = vld [vmem:[%s1 + $0x9f8] sm:$0xff]
      %v705 = vld [vmem:[%s1 + $0xa00] sm:$0xff]
      %v706 = vld [vmem:[%s1 + $0xa08] sm:$0xff]
      %v707 = vld [vmem:[%s1 + $0xa10] sm:$0xff]
      %v708 = vld [vmem:[%s1 + $0xa18] sm:$0xff]
      %v709 = vld [vmem:[%s1 + $0xa20] sm:$0xff]
      %v710 = vld [vmem:[%s1 + $0xa28] sm:$0xff]
      %v711 = vld [vmem:[%s1 + $0xa30] sm:$0xff]
      %v712 = vld [vmem:[%s1 + $0xa38] sm:$0xff]
      %v713 = vld [vmem:[%s1 + $0xa40] sm:$0xff]
      %v714 = vld [vmem:[%s1 + $0xa48] sm:$0xff]
      %v715 = vld [vmem:[%s1 + $0xa50] sm:$0xff]
      %v716 = vld [vmem:[%s1 + $0xa58] sm:$0xff]
      %v717 = vld [vmem:[%s1 + $0xa60] sm:$0xff]
      %v718 = vld [vmem:[%s1 + $0xa68] sm:$0xff]
      %v719 = vld [vmem:[%s1 + $0xa70] sm:$0xff]
      %v720 = vld [vmem:[%s1 + $0xa78] sm:$0xff]
      %v721 = vld [vmem:[%s1 + $0xa80] sm:$0xff]
      %v722 = vld [vmem:[%s1 + $0xa88] sm:$0xff]
      %v723 = vld [vmem:[%s1 + $0xa90] sm:$0xff]
      %v724 = vld [vmem:[%s1 + $0xa98] sm:$0xff]
      %v725 = vld [vmem:[%s1 + $0xaa0] sm:$0xff]
      %v726 = vld [vmem:[%s1 + $0xaa8] sm:$0xff]
      %v727 = vld [vmem:[%s1 + $0xab0] sm:$0xff]
      %v728 = vld [vmem:[%s1 + $0xab8] sm:$0xff]
      %v729 = vld [vmem:[%s1 + $0xac0] sm:$0xff]
      %v730 = vld [vmem:[%s1 + $0xac8] sm:$0xff]
      %v731 = vld [vmem:[%s1 + $0xad0] sm:$0xff]
      %v732 = vld [vmem:[%s1 + $0xad8] sm:$0xff]
      %v733 = vld [vmem:[%s1 + $0xae0] sm:$0xff]
      %v734 = vld [vmem:[%s1 + $0xae8] sm:$0xff]
      %v735 = vld [vmem:[%s1 + $0xaf0] sm:$0xff]
      %v736 = vld [vmem:[%s1 + $0xaf8] sm:$0xff]
      %v737 = vld [vmem:[%s1 + $0xb00] sm:$0xff]
      %v738 = vld [vmem:[%s1 + $0xb08] sm:$0xff]
      %v739 = vld [vmem:[%s1 + $0xb10] sm:$0xff]
      %v740 = vld [vmem:[%s1 + $0xb18] sm:$0xff]
      %v741 = vld [vmem:[%s1 + $0xb20] sm:$0xff]
      %v742 = vld [vmem:[%s1 + $0xb28] sm:$0xff]
      %v743 = vld [vmem:[%s1 + $0xb30] sm:$0xff]
      %v744 = vld [vmem:[%s1 + $0xb38] sm:$0xff]
      %v745 = vld [vmem:[%s1 + $0xb40] sm:$0xff]
      %v746 = vld [vmem:[%s1 + $0xb48] sm:$0xff]
      %v747 = vld [vmem:[%s1 + $0xb50] sm:$0xff]
      %v748 = vld [vmem:[%s1 + $0xb58] sm:$0xff]
      %v749 = vld [vmem:[%s1 + $0xb60] sm:$0xff]
      %v750 = vld [vmem:[%s1 + $0xb68] sm:$0xff]
      %v751 = vld [vmem:[%s1 + $0xb70] sm:$0xff]
      %v752 = vld [vmem:[%s1 + $0xb78] sm:$0xff]
      %v753 = vld [vmem:[%s1 + $0xb80] sm:$0xff]
      %v754 = vld [vmem:[%s1 + $0xb88] sm:$0xff]
      %v755 = vld [vmem:[%s1 + $0xb90] sm:$0xff]
      %v756 = vld [vmem:[%s1 + $0xb98] sm:$0xff]
      %v757 = vld [vmem:[%s1 + $0xba0] sm:$0xff]
      %v758 = vld [vmem:[%s1 + $0xba8] sm:$0xff]
      %v759 = vld [vmem:[%s1 + $0xbb0] sm:$0xff]
      %v760 = vld [vmem:[%s1 + $0xbb8] sm:$0xff]
      %v761 = vld [vmem:[%s1 + $0xbc0] sm:$0xff]
      %v762 = vld [vmem:[%s1 + $0xbc8] sm:$0xff]
      %v763 = vld [vmem:[%s1 + $0xbd0] sm:$0xff]
      %v764 = vld [vmem:[%s1 + $0xbd8] sm:$0xff]
      %v765 = vld [vmem:[%s1 + $0xbe0] sm:$0xff]
      %v766 = vld [vmem:[%s1 + $0xbe8] sm:$0xff]
      %v767 = vld [vmem:[%s1 + $0xbf0] sm:$0xff]
      %v768 = vld [vmem:[%s1 + $0xbf8] sm:$0xff]
      %v769 = vld [vmem:[%s1 + $0xc00] sm:$0xff]
      %v770 = vld [vmem:[%s1 + $0xc08] sm:$0xff]
      %v771 = vld [vmem:[%s1 + $0xc10] sm:$0xff]
      %v772 = vld [vmem:[%s1 + $0xc18] sm:$0xff]
      %v773 = vld [vmem:[%s1 + $0xc20] sm:$0xff]
      %v774 = vld [vmem:[%s1 + $0xc28] sm:$0xff]
      %v775 = vld [vmem:[%s1 + $0xc30] sm:$0xff]
      %v776 = vld [vmem:[%s1 + $0xc38] sm:$0xff]
      %v777 = vld [vmem:[%s1 + $0xc40] sm:$0xff]
      %v778 = vld [vmem:[%s1 + $0xc48] sm:$0xff]
      %v779 = vld [vmem:[%s1 + $0xc50] sm:$0xff]
      %v780 = vld [vmem:[%s1 + $0xc58] sm:$0xff]
      %v781 = vld [vmem:[%s1 + $0xc60] sm:$0xff]
      %v782 = vld [vmem:[%s1 + $0xc68] sm:$0xff]
      %v783 = vld [vmem:[%s1 + $0xc70] sm:$0xff]
      %v784 = vld [vmem:[%s1 + $0xc78] sm:$0xff]
      %v785 = vld [vmem:[%s1 + $0xc80] sm:$0xff]
      %v786 = vld [vmem:[%s1 + $0xc88] sm:$0xff]
      %v787 = vld [vmem:[%s1 + $0xc90] sm:$0xff]
      %v788 = vld [vmem:[%s1 + $0xc98] sm:$0xff]
      %v789 = vld [vmem:[%s1 + $0xca0] sm:$0xff]
      %v790 = vld [vmem:[%s1 + $0xca8] sm:$0xff]
      %v791 = vld [vmem:[%s1 + $0xcb0] sm:$0xff]
      %v792 = vld [vmem:[%s1 + $0xcb8] sm:$0xff]
      %v793 = vld [vmem:[%s1 + $0xcc0] sm:$0xff]
      %v794 = vld [vmem:[%s1 + $0xcc8] sm:$0xff]
      %v795 = vld [vmem:[%s1 + $0xcd0] sm:$0xff]
      %v796 = vld [vmem:[%s1 + $0xcd8] sm:$0xff]
      %v797 = vld [vmem:[%s1 + $0xce0] sm:$0xff]
      %v798 = vld [vmem:[%s1 + $0xce8] sm:$0xff]
      %v799 = vld [vmem:[%s1 + $0xcf0] sm:$0xff]
      %v800 = vld [vmem:[%s1 + $0xcf8] sm:$0xff]
      %v801 = vld [vmem:[%s1 + $0xd00] sm:$0xff]
      %v802 = vld [vmem:[%s1 + $0xd08] sm:$0xff]
      %v803 = vld [vmem:[%s1 + $0xd10] sm:$0xff]
      %v804 = vld [vmem:[%s1 + $0xd18] sm:$0xff]
      %v805 = vld [vmem:[%s1 + $0xd20] sm:$0xff]
      %v806 = vld [vmem:[%s1 + $0xd28] sm:$0xff]
      %v807 = vld [vmem:[%s1 + $0xd30] sm:$0xff]
      %v808 = vld [vmem:[%s1 + $0xd38] sm:$0xff]
      %v809 = vld [vmem:[%s1 + $0xd40] sm:$0xff]
      %v810 = vld [vmem:[%s1 + $0xd48] sm:$0xff]
      %v811 = vld [vmem:[%s1 + $0xd50] sm:$0xff]
      %v812 = vld [vmem:[%s1 + $0xd58] sm:$0xff]
      %v813 = vld [vmem:[%s1 + $0xd60] sm:$0xff]
      %v814 = vld [vmem:[%s1 + $0xd68] sm:$0xff]
      %v815 = vld [vmem:[%s1 + $0xd70] sm:$0xff]
      %v816 = vld [vmem:[%s1 + $0xd78] sm:$0xff]
      %v817 = vld [vmem:[%s1 + $0xd80] sm:$0xff]
      %v818 = vld [vmem:[%s1 + $0xd88] sm:$0xff]
      %v819 = vld [vmem:[%s1 + $0xd90] sm:$0xff]
      %v820 = vld [vmem:[%s1 + $0xd98] sm:$0xff]
      %v821 = vld [vmem:[%s1 + $0xda0] sm:$0xff]
      %v822 = vld [vmem:[%s1 + $0xda8] sm:$0xff]
      %v823 = vld [vmem:[%s1 + $0xdb0] sm:$0xff]
      %v824 = vld [vmem:[%s1 + $0xdb8] sm:$0xff]
      %v825 = vld [vmem:[%s1 + $0xdc0] sm:$0xff]
      %v826 = vld [vmem:[%s1 + $0xdc8] sm:$0xff]
      %v827 = vld [vmem:[%s1 + $0xdd0] sm:$0xff]
      %v828 = vld [vmem:[%s1 + $0xdd8] sm:$0xff]
      %v829 = vld [vmem:[%s1 + $0xde0] sm:$0xff]
      %v830 = vld [vmem:[%s1 + $0xde8] sm:$0xff]
      %v831 = vld [vmem:[%s1 + $0xdf0] sm:$0xff]
      %v832 = vld [vmem:[%s1 + $0xdf8] sm:$0xff]
      %v833 = vld [vmem:[%s1 + $0xe00] sm:$0xff]
      %v834 = vld [vmem:[%s1 + $0xe08] sm:$0xff]
      %v835 = vld [vmem:[%s1 + $0xe10] sm:$0xff]
      %v836 = vld [vmem:[%s1 + $0xe18] sm:$0xff]
      %v837 = vld [vmem:[%s1 + $0xe20] sm:$0xff]
      %v838 = vld [vmem:[%s1 + $0xe28] sm:$0xff]
      %v839 = vld [vmem:[%s1 + $0xe30] sm:$0xff]
      %v840 = vld [vmem:[%s1 + $0xe38] sm:$0xff]
      %v841 = vld [vmem:[%s1 + $0xe40] sm:$0xff]
      %v842 = vld [vmem:[%s1 + $0xe48] sm:$0xff]
      %v843 = vld [vmem:[%s1 + $0xe50] sm:$0xff]
      %v844 = vld [vmem:[%s1 + $0xe58] sm:$0xff]
      %v845 = vld [vmem:[%s1 + $0xe60] sm:$0xff]
      %v846 = vld [vmem:[%s1 + $0xe68] sm:$0xff]
      %v847 = vld [vmem:[%s1 + $0xe70] sm:$0xff]
      %v848 = vld [vmem:[%s1 + $0xe78] sm:$0xff]
      %v849 = vld [vmem:[%s1 + $0xe80] sm:$0xff]
      %v850 = vld [vmem:[%s1 + $0xe88] sm:$0xff]
      %v851 = vld [vmem:[%s1 + $0xe90] sm:$0xff]
      %v852 = vld [vmem:[%s1 + $0xe98] sm:$0xff]
      %v853 = vld [vmem:[%s1 + $0xea0] sm:$0xff]
      %v854 = vld [vmem:[%s1 + $0xea8] sm:$0xff]
      %v855 = vld [vmem:[%s1 + $0xeb0] sm:$0xff]
      %v856 = vld [vmem:[%s1 + $0xeb8] sm:$0xff]
      %v857 = vld [vmem:[%s1 + $0xec0] sm:$0xff]
      %v858 = vld [vmem:[%s1 + $0xec8] sm:$0xff]
      %v859 = vld [vmem:[%s1 + $0xed0] sm:$0xff]
      %v860 = vld [vmem:[%s1 + $0xed8] sm:$0xff]
      %v861 = vld [vmem:[%s1 + $0xee0] sm:$0xff]
      %v862 = vld [vmem:[%s1 + $0xee8] sm:$0xff]
      %v863 = vld [vmem:[%s1 + $0xef0] sm:$0xff]
      %v864 = vld [vmem:[%s1 + $0xef8] sm:$0xff]
      %v865 = vld [vmem:[%s1 + $0xf00] sm:$0xff]
      %v866 = vld [vmem:[%s1 + $0xf08] sm:$0xff]
      %v867 = vld [vmem:[%s1 + $0xf10] sm:$0xff]
      %v868 = vld [vmem:[%s1 + $0xf18] sm:$0xff]
      %v869 = vld [vmem:[%s1 + $0xf20] sm:$0xff]
      %v870 = vld [vmem:[%s1 + $0xf28] sm:$0xff]
      %v871 = vld [vmem:[%s1 + $0xf30] sm:$0xff]
      %v872 = vld [vmem:[%s1 + $0xf38] sm:$0xff]
      %v873 = vld [vmem:[%s1 + $0xf40] sm:$0xff]
      %v874 = vld [vmem:[%s1 + $0xf48] sm:$0xff]
      %v875 = vld [vmem:[%s1 + $0xf50] sm:$0xff]
      %v876 = vld [vmem:[%s1 + $0xf58] sm:$0xff]
      %v877 = vld [vmem:[%s1 + $0xf60] sm:$0xff]
      %v878 = vld [vmem:[%s1 + $0xf68] sm:$0xff]
      %v879 = vld [vmem:[%s1 + $0xf70] sm:$0xff]
      %v880 = vld [vmem:[%s1 + $0xf78] sm:$0xff]
      %v881 = vld [vmem:[%s1 + $0xf80] sm:$0xff]
      %v882 = vld [vmem:[%s1 + $0xf88] sm:$0xff]
      %v883 = vld [vmem:[%s1 + $0xf90] sm:$0xff]
      %v884 = vld [vmem:[%s1 + $0xf98] sm:$0xff]
      %v885 = vld [vmem:[%s1 + $0xfa0] sm:$0xff]
      %v886 = vld [vmem:[%s1 + $0xfa8] sm:$0xff]
      %v887 = vld [vmem:[%s1 + $0xfb0] sm:$0xff]
      %v888 = vld [vmem:[%s1 + $0xfb8] sm:$0xff]
      %v889 = vld [vmem:[%s1 + $0xfc0] sm:$0xff]
      %v890 = vld [vmem:[%s1 + $0xfc8] sm:$0xff]
      %v891 = vld [vmem:[%s1 + $0xfd0] sm:$0xff]
      %v892 = vld [vmem:[%s1 + $0xfd8] sm:$0xff]
      %v893 = vld [vmem:[%s1 + $0xfe0] sm:$0xff]
      %v894 = vld [vmem:[%s1 + $0xfe8] sm:$0xff]
      %v895 = vld [vmem:[%s1 + $0xff0] sm:$0xff]
      %v896 = vld [vmem:[%s1 + $0xff8] sm:$0xff]
      %v897 = vld [vmem:[%s2] sm:$0xff]
      %v898 = vld [vmem:[%s2 + $0x8] sm:$0xff]
      %v901 = vlaneseq
      %v902 = vshrl.u32 %v901, 7
      %v903 = vsub.s32 0, %v902
      %v904 = vrot.slane %v897, %v903
      %v905 = vlaneseq
      %v906 = vshrl.u32 %v905, 7
      %v907 = vsub.s32 1, %v906
      %v908 = vrot.slane %v897, %v907
      %v909 = vlaneseq
      %v910 = vshrl.u32 %v909, 7
      %v911 = vsub.s32 2, %v910
      %v912 = vrot.slane %v897, %v911
      %v913 = vlaneseq
      %v914 = vshrl.u32 %v913, 7
      %v915 = vsub.s32 3, %v914
      %v916 = vrot.slane %v897, %v915
      %v917 = vlaneseq
      %v918 = vshrl.u32 %v917, 7
      %v919 = vsub.s32 4, %v918
      %v920 = vrot.slane %v897, %v919
      %v921 = vlaneseq
      %v922 = vshrl.u32 %v921, 7
      %v923 = vsub.s32 5, %v922
      %v924 = vrot.slane %v897, %v923
      %v925 = vlaneseq
      %v926 = vshrl.u32 %v925, 7
      %v927 = vsub.s32 6, %v926
      %v928 = vrot.slane %v897, %v927
      %v929 = vlaneseq
      %v930 = vshrl.u32 %v929, 7
      %v931 = vsub.s32 7, %v930
      %v932 = vrot.slane %v897, %v931
      %v933 = vlaneseq
      %v934 = vshrl.u32 %v933, 7
      %v935 = vsub.s32 0, %v934
      %v936 = vrot.slane %v898, %v935
      %v937 = vlaneseq
      %v938 = vshrl.u32 %v937, 7
      %v939 = vsub.s32 1, %v938
      %v940 = vrot.slane %v898, %v939
      %v941 = vlaneseq
      %v942 = vshrl.u32 %v941, 7
      %v943 = vsub.s32 2, %v942
      %v944 = vrot.slane %v898, %v943
      %v945 = vlaneseq
      %v946 = vshrl.u32 %v945, 7
      %v947 = vsub.s32 3, %v946
      %v948 = vrot.slane %v898, %v947
      %v949 = vlaneseq
      %v950 = vshrl.u32 %v949, 7
      %v951 = vsub.s32 4, %v950
      %v952 = vrot.slane %v898, %v951
      %v953 = vlaneseq
      %v954 = vshrl.u32 %v953, 7
      %v955 = vsub.s32 5, %v954
      %v956 = vrot.slane %v898, %v955
      %v957 = vlaneseq
      %v958 = vshrl.u32 %v957, 7
      %v959 = vsub.s32 6, %v958
      %v960 = vrot.slane %v898, %v959
      %v961 = vlaneseq
      %v962 = vshrl.u32 %v961, 7
      %v963 = vsub.s32 7, %v962
      %v964 = vrot.slane %v898, %v963
      %v1493 = vunpack.c.l.b16 %v385
      %v1494 = vunpack.c.h.b16 %v385
      %v1495 = vunpack.c.l.b16 %v386
      %v1496 = vunpack.c.h.b16 %v386
      %v1497 = vunpack.c.l.b16 %v387
      %v1498 = vunpack.c.h.b16 %v387
      %v1499 = vunpack.c.l.b16 %v388
      %v1500 = vunpack.c.h.b16 %v388
      %v1501 = vunpack.c.l.b16 %v389
      %v1502 = vunpack.c.h.b16 %v389
      %v1503 = vunpack.c.l.b16 %v390
      %v1504 = vunpack.c.h.b16 %v390
      %v1505 = vunpack.c.l.b16 %v391
      %v1506 = vunpack.c.h.b16 %v391
      %v1507 = vunpack.c.l.b16 %v392
      %v1508 = vunpack.c.h.b16 %v392
      %v1509 = vunpack.c.l.b16 %v393
      %v1510 = vunpack.c.h.b16 %v393
      %v1511 = vunpack.c.l.b16 %v394
      %v1512 = vunpack.c.h.b16 %v394
      %v1513 = vunpack.c.l.b16 %v395
      %v1514 = vunpack.c.h.b16 %v395
      %v1515 = vunpack.c.l.b16 %v396
      %v1516 = vunpack.c.h.b16 %v396
      %v1517 = vunpack.c.l.b16 %v397
      %v1518 = vunpack.c.h.b16 %v397
      %v1519 = vunpack.c.l.b16 %v398
      %v1520 = vunpack.c.h.b16 %v398
      %v1521 = vunpack.c.l.b16 %v399
      %v1522 = vunpack.c.h.b16 %v399
      %v1523 = vunpack.c.l.b16 %v400
      %v1524 = vunpack.c.h.b16 %v400
      %v1525 = vunpack.c.l.b16 %v401
      %v1526 = vunpack.c.h.b16 %v401
      %v1527 = vunpack.c.l.b16 %v402
      %v1528 = vunpack.c.h.b16 %v402
      %v1529 = vunpack.c.l.b16 %v403
      %v1530 = vunpack.c.h.b16 %v403
      %v1531 = vunpack.c.l.b16 %v404
      %v1532 = vunpack.c.h.b16 %v404
      %v1533 = vunpack.c.l.b16 %v405
      %v1534 = vunpack.c.h.b16 %v405
      %v1535 = vunpack.c.l.b16 %v406
      %v1536 = vunpack.c.h.b16 %v406
      %v1537 = vunpack.c.l.b16 %v407
      %v1538 = vunpack.c.h.b16 %v407
      %v1539 = vunpack.c.l.b16 %v408
      %v1540 = vunpack.c.h.b16 %v408
      %v1541 = vunpack.c.l.b16 %v409
      %v1542 = vunpack.c.h.b16 %v409
      %v1543 = vunpack.c.l.b16 %v410
      %v1544 = vunpack.c.h.b16 %v410
      %v1545 = vunpack.c.l.b16 %v411
      %v1546 = vunpack.c.h.b16 %v411
      %v1547 = vunpack.c.l.b16 %v412
      %v1548 = vunpack.c.h.b16 %v412
      %v1549 = vunpack.c.l.b16 %v413
      %v1550 = vunpack.c.h.b16 %v413
      %v1551 = vunpack.c.l.b16 %v414
      %v1552 = vunpack.c.h.b16 %v414
      %v1553 = vunpack.c.l.b16 %v415
      %v1554 = vunpack.c.h.b16 %v415
      %v1555 = vunpack.c.l.b16 %v416
      %v1556 = vunpack.c.h.b16 %v416
      %v1557 = vunpack.c.l.b16 %v417
      %v1558 = vunpack.c.h.b16 %v417
      %v1559 = vunpack.c.l.b16 %v418
      %v1560 = vunpack.c.h.b16 %v418
      %v1561 = vunpack.c.l.b16 %v419
      %v1562 = vunpack.c.h.b16 %v419
      %v1563 = vunpack.c.l.b16 %v420
      %v1564 = vunpack.c.h.b16 %v420
      %v1565 = vunpack.c.l.b16 %v421
      %v1566 = vunpack.c.h.b16 %v421
      %v1567 = vunpack.c.l.b16 %v422
      %v1568 = vunpack.c.h.b16 %v422
      %v1569 = vunpack.c.l.b16 %v423
      %v1570 = vunpack.c.h.b16 %v423
      %v1571 = vunpack.c.l.b16 %v424
      %v1572 = vunpack.c.h.b16 %v424
      %v1573 = vunpack.c.l.b16 %v425
      %v1574 = vunpack.c.h.b16 %v425
      %v1575 = vunpack.c.l.b16 %v426
      %v1576 = vunpack.c.h.b16 %v426
      %v1577 = vunpack.c.l.b16 %v427
      %v1578 = vunpack.c.h.b16 %v427
      %v1579 = vunpack.c.l.b16 %v428
      %v1580 = vunpack.c.h.b16 %v428
      %v1581 = vunpack.c.l.b16 %v429
      %v1582 = vunpack.c.h.b16 %v429
      %v1583 = vunpack.c.l.b16 %v430
      %v1584 = vunpack.c.h.b16 %v430
      %v1585 = vunpack.c.l.b16 %v431
      %v1586 = vunpack.c.h.b16 %v431
      %v1587 = vunpack.c.l.b16 %v432
      %v1588 = vunpack.c.h.b16 %v432
      %v1589 = vunpack.c.l.b16 %v433
      %v1590 = vunpack.c.h.b16 %v433
      %v1591 = vunpack.c.l.b16 %v434
      %v1592 = vunpack.c.h.b16 %v434
      %v1593 = vunpack.c.l.b16 %v435
      %v1594 = vunpack.c.h.b16 %v435
      %v1595 = vunpack.c.l.b16 %v436
      %v1596 = vunpack.c.h.b16 %v436
      %v1597 = vunpack.c.l.b16 %v437
      %v1598 = vunpack.c.h.b16 %v437
      %v1599 = vunpack.c.l.b16 %v438
      %v1600 = vunpack.c.h.b16 %v438
      %v1601 = vunpack.c.l.b16 %v439
      %v1602 = vunpack.c.h.b16 %v439
      %v1603 = vunpack.c.l.b16 %v440
      %v1604 = vunpack.c.h.b16 %v440
      %v1605 = vunpack.c.l.b16 %v441
      %v1606 = vunpack.c.h.b16 %v441
      %v1607 = vunpack.c.l.b16 %v442
      %v1608 = vunpack.c.h.b16 %v442
      %v1609 = vunpack.c.l.b16 %v443
      %v1610 = vunpack.c.h.b16 %v443
      %v1611 = vunpack.c.l.b16 %v444
      %v1612 = vunpack.c.h.b16 %v444
      %v1613 = vunpack.c.l.b16 %v445
      %v1614 = vunpack.c.h.b16 %v445
      %v1615 = vunpack.c.l.b16 %v446
      %v1616 = vunpack.c.h.b16 %v446
      %v1617 = vunpack.c.l.b16 %v447
      %v1618 = vunpack.c.h.b16 %v447
      %v1619 = vunpack.c.l.b16 %v448
      %v1620 = vunpack.c.h.b16 %v448
      %v1621 = vunpack.c.l.b16 %v449
      %v1622 = vunpack.c.h.b16 %v449
      %v1623 = vunpack.c.l.b16 %v450
      %v1624 = vunpack.c.h.b16 %v450
      %v1625 = vunpack.c.l.b16 %v451
      %v1626 = vunpack.c.h.b16 %v451
      %v1627 = vunpack.c.l.b16 %v452
      %v1628 = vunpack.c.h.b16 %v452
      %v1629 = vunpack.c.l.b16 %v453
      %v1630 = vunpack.c.h.b16 %v453
      %v1631 = vunpack.c.l.b16 %v454
      %v1632 = vunpack.c.h.b16 %v454
      %v1633 = vunpack.c.l.b16 %v455
      %v1634 = vunpack.c.h.b16 %v455
      %v1635 = vunpack.c.l.b16 %v456
      %v1636 = vunpack.c.h.b16 %v456
      %v1637 = vunpack.c.l.b16 %v457
      %v1638 = vunpack.c.h.b16 %v457
      %v1639 = vunpack.c.l.b16 %v458
      %v1640 = vunpack.c.h.b16 %v458
      %v1641 = vunpack.c.l.b16 %v459
      %v1642 = vunpack.c.h.b16 %v459
      %v1643 = vunpack.c.l.b16 %v460
      %v1644 = vunpack.c.h.b16 %v460
      %v1645 = vunpack.c.l.b16 %v461
      %v1646 = vunpack.c.h.b16 %v461
      %v1647 = vunpack.c.l.b16 %v462
      %v1648 = vunpack.c.h.b16 %v462
      %v1649 = vunpack.c.l.b16 %v463
      %v1650 = vunpack.c.h.b16 %v463
      %v1651 = vunpack.c.l.b16 %v464
      %v1652 = vunpack.c.h.b16 %v464
      %v1653 = vunpack.c.l.b16 %v465
      %v1654 = vunpack.c.h.b16 %v465
      %v1655 = vunpack.c.l.b16 %v466
      %v1656 = vunpack.c.h.b16 %v466
      %v1657 = vunpack.c.l.b16 %v467
      %v1658 = vunpack.c.h.b16 %v467
      %v1659 = vunpack.c.l.b16 %v468
      %v1660 = vunpack.c.h.b16 %v468
      %v1661 = vunpack.c.l.b16 %v469
      %v1662 = vunpack.c.h.b16 %v469
      %v1663 = vunpack.c.l.b16 %v470
      %v1664 = vunpack.c.h.b16 %v470
      %v1665 = vunpack.c.l.b16 %v471
      %v1666 = vunpack.c.h.b16 %v471
      %v1667 = vunpack.c.l.b16 %v472
      %v1668 = vunpack.c.h.b16 %v472
      %v1669 = vunpack.c.l.b16 %v473
      %v1670 = vunpack.c.h.b16 %v473
      %v1671 = vunpack.c.l.b16 %v474
      %v1672 = vunpack.c.h.b16 %v474
      %v1673 = vunpack.c.l.b16 %v475
      %v1674 = vunpack.c.h.b16 %v475
      %v1675 = vunpack.c.l.b16 %v476
      %v1676 = vunpack.c.h.b16 %v476
      %v1677 = vunpack.c.l.b16 %v477
      %v1678 = vunpack.c.h.b16 %v477
      %v1679 = vunpack.c.l.b16 %v478
      %v1680 = vunpack.c.h.b16 %v478
      %v1681 = vunpack.c.l.b16 %v479
      %v1682 = vunpack.c.h.b16 %v479
      %v1683 = vunpack.c.l.b16 %v480
      %v1684 = vunpack.c.h.b16 %v480
      %v1685 = vunpack.c.l.b16 %v481
      %v1686 = vunpack.c.h.b16 %v481
      %v1687 = vunpack.c.l.b16 %v482
      %v1688 = vunpack.c.h.b16 %v482
      %v1689 = vunpack.c.l.b16 %v483
      %v1690 = vunpack.c.h.b16 %v483
      %v1691 = vunpack.c.l.b16 %v484
      %v1692 = vunpack.c.h.b16 %v484
      %v1693 = vunpack.c.l.b16 %v485
      %v1694 = vunpack.c.h.b16 %v485
      %v1695 = vunpack.c.l.b16 %v486
      %v1696 = vunpack.c.h.b16 %v486
      %v1697 = vunpack.c.l.b16 %v487
      %v1698 = vunpack.c.h.b16 %v487
      %v1699 = vunpack.c.l.b16 %v488
      %v1700 = vunpack.c.h.b16 %v488
      %v1701 = vunpack.c.l.b16 %v489
      %v1702 = vunpack.c.h.b16 %v489
      %v1703 = vunpack.c.l.b16 %v490
      %v1704 = vunpack.c.h.b16 %v490
      %v1705 = vunpack.c.l.b16 %v491
      %v1706 = vunpack.c.h.b16 %v491
      %v1707 = vunpack.c.l.b16 %v492
      %v1708 = vunpack.c.h.b16 %v492
      %v1709 = vunpack.c.l.b16 %v493
      %v1710 = vunpack.c.h.b16 %v493
      %v1711 = vunpack.c.l.b16 %v494
      %v1712 = vunpack.c.h.b16 %v494
      %v1713 = vunpack.c.l.b16 %v495
      %v1714 = vunpack.c.h.b16 %v495
      %v1715 = vunpack.c.l.b16 %v496
      %v1716 = vunpack.c.h.b16 %v496
      %v1717 = vunpack.c.l.b16 %v497
      %v1718 = vunpack.c.h.b16 %v497
      %v1719 = vunpack.c.l.b16 %v498
      %v1720 = vunpack.c.h.b16 %v498
      %v1721 = vunpack.c.l.b16 %v499
      %v1722 = vunpack.c.h.b16 %v499
      %v1723 = vunpack.c.l.b16 %v500
      %v1724 = vunpack.c.h.b16 %v500
      %v1725 = vunpack.c.l.b16 %v501
      %v1726 = vunpack.c.h.b16 %v501
      %v1727 = vunpack.c.l.b16 %v502
      %v1728 = vunpack.c.h.b16 %v502
      %v1729 = vunpack.c.l.b16 %v503
      %v1730 = vunpack.c.h.b16 %v503
      %v1731 = vunpack.c.l.b16 %v504
      %v1732 = vunpack.c.h.b16 %v504
      %v1733 = vunpack.c.l.b16 %v505
      %v1734 = vunpack.c.h.b16 %v505
      %v1735 = vunpack.c.l.b16 %v506
      %v1736 = vunpack.c.h.b16 %v506
      %v1737 = vunpack.c.l.b16 %v507
      %v1738 = vunpack.c.h.b16 %v507
      %v1739 = vunpack.c.l.b16 %v508
      %v1740 = vunpack.c.h.b16 %v508
      %v1741 = vunpack.c.l.b16 %v509
      %v1742 = vunpack.c.h.b16 %v509
      %v1743 = vunpack.c.l.b16 %v510
      %v1744 = vunpack.c.h.b16 %v510
      %v1745 = vunpack.c.l.b16 %v511
      %v1746 = vunpack.c.h.b16 %v511
      %v1747 = vunpack.c.l.b16 %v512
      %v1748 = vunpack.c.h.b16 %v512
      %v1749 = vunpack.c.l.b16 %v513
      %v1750 = vunpack.c.h.b16 %v513
      %v1751 = vunpack.c.l.b16 %v514
      %v1752 = vunpack.c.h.b16 %v514
      %v1753 = vunpack.c.l.b16 %v515
      %v1754 = vunpack.c.h.b16 %v515
      %v1755 = vunpack.c.l.b16 %v516
      %v1756 = vunpack.c.h.b16 %v516
      %v1757 = vunpack.c.l.b16 %v517
      %v1758 = vunpack.c.h.b16 %v517
      %v1759 = vunpack.c.l.b16 %v518
      %v1760 = vunpack.c.h.b16 %v518
      %v1761 = vunpack.c.l.b16 %v519
      %v1762 = vunpack.c.h.b16 %v519
      %v1763 = vunpack.c.l.b16 %v520
      %v1764 = vunpack.c.h.b16 %v520
      %v1765 = vunpack.c.l.b16 %v521
      %v1766 = vunpack.c.h.b16 %v521
      %v1767 = vunpack.c.l.b16 %v522
      %v1768 = vunpack.c.h.b16 %v522
      %v1769 = vunpack.c.l.b16 %v523
      %v1770 = vunpack.c.h.b16 %v523
      %v1771 = vunpack.c.l.b16 %v524
      %v1772 = vunpack.c.h.b16 %v524
      %v1773 = vunpack.c.l.b16 %v525
      %v1774 = vunpack.c.h.b16 %v525
      %v1775 = vunpack.c.l.b16 %v526
      %v1776 = vunpack.c.h.b16 %v526
      %v1777 = vunpack.c.l.b16 %v527
      %v1778 = vunpack.c.h.b16 %v527
      %v1779 = vunpack.c.l.b16 %v528
      %v1780 = vunpack.c.h.b16 %v528
      %v1781 = vunpack.c.l.b16 %v529
      %v1782 = vunpack.c.h.b16 %v529
      %v1783 = vunpack.c.l.b16 %v530
      %v1784 = vunpack.c.h.b16 %v530
      %v1785 = vunpack.c.l.b16 %v531
      %v1786 = vunpack.c.h.b16 %v531
      %v1787 = vunpack.c.l.b16 %v532
      %v1788 = vunpack.c.h.b16 %v532
      %v1789 = vunpack.c.l.b16 %v533
      %v1790 = vunpack.c.h.b16 %v533
      %v1791 = vunpack.c.l.b16 %v534
      %v1792 = vunpack.c.h.b16 %v534
      %v1793 = vunpack.c.l.b16 %v535
      %v1794 = vunpack.c.h.b16 %v535
      %v1795 = vunpack.c.l.b16 %v536
      %v1796 = vunpack.c.h.b16 %v536
      %v1797 = vunpack.c.l.b16 %v537
      %v1798 = vunpack.c.h.b16 %v537
      %v1799 = vunpack.c.l.b16 %v538
      %v1800 = vunpack.c.h.b16 %v538
      %v1801 = vunpack.c.l.b16 %v539
      %v1802 = vunpack.c.h.b16 %v539
      %v1803 = vunpack.c.l.b16 %v540
      %v1804 = vunpack.c.h.b16 %v540
      %v1805 = vunpack.c.l.b16 %v541
      %v1806 = vunpack.c.h.b16 %v541
      %v1807 = vunpack.c.l.b16 %v542
      %v1808 = vunpack.c.h.b16 %v542
      %v1809 = vunpack.c.l.b16 %v543
      %v1810 = vunpack.c.h.b16 %v543
      %v1811 = vunpack.c.l.b16 %v544
      %v1812 = vunpack.c.h.b16 %v544
      %v1813 = vunpack.c.l.b16 %v545
      %v1814 = vunpack.c.h.b16 %v545
      %v1815 = vunpack.c.l.b16 %v546
      %v1816 = vunpack.c.h.b16 %v546
      %v1817 = vunpack.c.l.b16 %v547
      %v1818 = vunpack.c.h.b16 %v547
      %v1819 = vunpack.c.l.b16 %v548
      %v1820 = vunpack.c.h.b16 %v548
      %v1821 = vunpack.c.l.b16 %v549
      %v1822 = vunpack.c.h.b16 %v549
      %v1823 = vunpack.c.l.b16 %v550
      %v1824 = vunpack.c.h.b16 %v550
      %v1825 = vunpack.c.l.b16 %v551
      %v1826 = vunpack.c.h.b16 %v551
      %v1827 = vunpack.c.l.b16 %v552
      %v1828 = vunpack.c.h.b16 %v552
      %v1829 = vunpack.c.l.b16 %v553
      %v1830 = vunpack.c.h.b16 %v553
      %v1831 = vunpack.c.l.b16 %v554
      %v1832 = vunpack.c.h.b16 %v554
      %v1833 = vunpack.c.l.b16 %v555
      %v1834 = vunpack.c.h.b16 %v555
      %v1835 = vunpack.c.l.b16 %v556
      %v1836 = vunpack.c.h.b16 %v556
      %v1837 = vunpack.c.l.b16 %v557
      %v1838 = vunpack.c.h.b16 %v557
      %v1839 = vunpack.c.l.b16 %v558
      %v1840 = vunpack.c.h.b16 %v558
      %v1841 = vunpack.c.l.b16 %v559
      %v1842 = vunpack.c.h.b16 %v559
      %v1843 = vunpack.c.l.b16 %v560
      %v1844 = vunpack.c.h.b16 %v560
      %v1845 = vunpack.c.l.b16 %v561
      %v1846 = vunpack.c.h.b16 %v561
      %v1847 = vunpack.c.l.b16 %v562
      %v1848 = vunpack.c.h.b16 %v562
      %v1849 = vunpack.c.l.b16 %v563
      %v1850 = vunpack.c.h.b16 %v563
      %v1851 = vunpack.c.l.b16 %v564
      %v1852 = vunpack.c.h.b16 %v564
      %v1853 = vunpack.c.l.b16 %v565
      %v1854 = vunpack.c.h.b16 %v565
      %v1855 = vunpack.c.l.b16 %v566
      %v1856 = vunpack.c.h.b16 %v566
      %v1857 = vunpack.c.l.b16 %v567
      %v1858 = vunpack.c.h.b16 %v567
      %v1859 = vunpack.c.l.b16 %v568
      %v1860 = vunpack.c.h.b16 %v568
      %v1861 = vunpack.c.l.b16 %v569
      %v1862 = vunpack.c.h.b16 %v569
      %v1863 = vunpack.c.l.b16 %v570
      %v1864 = vunpack.c.h.b16 %v570
      %v1865 = vunpack.c.l.b16 %v571
      %v1866 = vunpack.c.h.b16 %v571
      %v1867 = vunpack.c.l.b16 %v572
      %v1868 = vunpack.c.h.b16 %v572
      %v1869 = vunpack.c.l.b16 %v573
      %v1870 = vunpack.c.h.b16 %v573
      %v1871 = vunpack.c.l.b16 %v574
      %v1872 = vunpack.c.h.b16 %v574
      %v1873 = vunpack.c.l.b16 %v575
      %v1874 = vunpack.c.h.b16 %v575
      %v1875 = vunpack.c.l.b16 %v576
      %v1876 = vunpack.c.h.b16 %v576
      %v1877 = vunpack.c.l.b16 %v577
      %v1878 = vunpack.c.h.b16 %v577
      %v1879 = vunpack.c.l.b16 %v578
      %v1880 = vunpack.c.h.b16 %v578
      %v1881 = vunpack.c.l.b16 %v579
      %v1882 = vunpack.c.h.b16 %v579
      %v1883 = vunpack.c.l.b16 %v580
      %v1884 = vunpack.c.h.b16 %v580
      %v1885 = vunpack.c.l.b16 %v581
      %v1886 = vunpack.c.h.b16 %v581
      %v1887 = vunpack.c.l.b16 %v582
      %v1888 = vunpack.c.h.b16 %v582
      %v1889 = vunpack.c.l.b16 %v583
      %v1890 = vunpack.c.h.b16 %v583
      %v1891 = vunpack.c.l.b16 %v584
      %v1892 = vunpack.c.h.b16 %v584
      %v1893 = vunpack.c.l.b16 %v585
      %v1894 = vunpack.c.h.b16 %v585
      %v1895 = vunpack.c.l.b16 %v586
      %v1896 = vunpack.c.h.b16 %v586
      %v1897 = vunpack.c.l.b16 %v587
      %v1898 = vunpack.c.h.b16 %v587
      %v1899 = vunpack.c.l.b16 %v588
      %v1900 = vunpack.c.h.b16 %v588
      %v1901 = vunpack.c.l.b16 %v589
      %v1902 = vunpack.c.h.b16 %v589
      %v1903 = vunpack.c.l.b16 %v590
      %v1904 = vunpack.c.h.b16 %v590
      %v1905 = vunpack.c.l.b16 %v591
      %v1906 = vunpack.c.h.b16 %v591
      %v1907 = vunpack.c.l.b16 %v592
      %v1908 = vunpack.c.h.b16 %v592
      %v1909 = vunpack.c.l.b16 %v593
      %v1910 = vunpack.c.h.b16 %v593
      %v1911 = vunpack.c.l.b16 %v594
      %v1912 = vunpack.c.h.b16 %v594
      %v1913 = vunpack.c.l.b16 %v595
      %v1914 = vunpack.c.h.b16 %v595
      %v1915 = vunpack.c.l.b16 %v596
      %v1916 = vunpack.c.h.b16 %v596
      %v1917 = vunpack.c.l.b16 %v597
      %v1918 = vunpack.c.h.b16 %v597
      %v1919 = vunpack.c.l.b16 %v598
      %v1920 = vunpack.c.h.b16 %v598
      %v1921 = vunpack.c.l.b16 %v599
      %v1922 = vunpack.c.h.b16 %v599
      %v1923 = vunpack.c.l.b16 %v600
      %v1924 = vunpack.c.h.b16 %v600
      %v1925 = vunpack.c.l.b16 %v601
      %v1926 = vunpack.c.h.b16 %v601
      %v1927 = vunpack.c.l.b16 %v602
      %v1928 = vunpack.c.h.b16 %v602
      %v1929 = vunpack.c.l.b16 %v603
      %v1930 = vunpack.c.h.b16 %v603
      %v1931 = vunpack.c.l.b16 %v604
      %v1932 = vunpack.c.h.b16 %v604
      %v1933 = vunpack.c.l.b16 %v605
      %v1934 = vunpack.c.h.b16 %v605
      %v1935 = vunpack.c.l.b16 %v606
      %v1936 = vunpack.c.h.b16 %v606
      %v1937 = vunpack.c.l.b16 %v607
      %v1938 = vunpack.c.h.b16 %v607
      %v1939 = vunpack.c.l.b16 %v608
      %v1940 = vunpack.c.h.b16 %v608
      %v1941 = vunpack.c.l.b16 %v609
      %v1942 = vunpack.c.h.b16 %v609
      %v1943 = vunpack.c.l.b16 %v610
      %v1944 = vunpack.c.h.b16 %v610
      %v1945 = vunpack.c.l.b16 %v611
      %v1946 = vunpack.c.h.b16 %v611
      %v1947 = vunpack.c.l.b16 %v612
      %v1948 = vunpack.c.h.b16 %v612
      %v1949 = vunpack.c.l.b16 %v613
      %v1950 = vunpack.c.h.b16 %v613
      %v1951 = vunpack.c.l.b16 %v614
      %v1952 = vunpack.c.h.b16 %v614
      %v1953 = vunpack.c.l.b16 %v615
      %v1954 = vunpack.c.h.b16 %v615
      %v1955 = vunpack.c.l.b16 %v616
      %v1956 = vunpack.c.h.b16 %v616
      %v1957 = vunpack.c.l.b16 %v617
      %v1958 = vunpack.c.h.b16 %v617
      %v1959 = vunpack.c.l.b16 %v618
      %v1960 = vunpack.c.h.b16 %v618
      %v1961 = vunpack.c.l.b16 %v619
      %v1962 = vunpack.c.h.b16 %v619
      %v1963 = vunpack.c.l.b16 %v620
      %v1964 = vunpack.c.h.b16 %v620
      %v1965 = vunpack.c.l.b16 %v621
      %v1966 = vunpack.c.h.b16 %v621
      %v1967 = vunpack.c.l.b16 %v622
      %v1968 = vunpack.c.h.b16 %v622
      %v1969 = vunpack.c.l.b16 %v623
      %v1970 = vunpack.c.h.b16 %v623
      %v1971 = vunpack.c.l.b16 %v624
      %v1972 = vunpack.c.h.b16 %v624
      %v1973 = vunpack.c.l.b16 %v625
      %v1974 = vunpack.c.h.b16 %v625
      %v1975 = vunpack.c.l.b16 %v626
      %v1976 = vunpack.c.h.b16 %v626
      %v1977 = vunpack.c.l.b16 %v627
      %v1978 = vunpack.c.h.b16 %v627
      %v1979 = vunpack.c.l.b16 %v628
      %v1980 = vunpack.c.h.b16 %v628
      %v1981 = vunpack.c.l.b16 %v629
      %v1982 = vunpack.c.h.b16 %v629
      %v1983 = vunpack.c.l.b16 %v630
      %v1984 = vunpack.c.h.b16 %v630
      %v1985 = vunpack.c.l.b16 %v631
      %v1986 = vunpack.c.h.b16 %v631
      %v1987 = vunpack.c.l.b16 %v632
      %v1988 = vunpack.c.h.b16 %v632
      %v1989 = vunpack.c.l.b16 %v633
      %v1990 = vunpack.c.h.b16 %v633
      %v1991 = vunpack.c.l.b16 %v634
      %v1992 = vunpack.c.h.b16 %v634
      %v1993 = vunpack.c.l.b16 %v635
      %v1994 = vunpack.c.h.b16 %v635
      %v1995 = vunpack.c.l.b16 %v636
      %v1996 = vunpack.c.h.b16 %v636
      %v1997 = vunpack.c.l.b16 %v637
      %v1998 = vunpack.c.h.b16 %v637
      %v1999 = vunpack.c.l.b16 %v638
      %v2000 = vunpack.c.h.b16 %v638
      %v2001 = vunpack.c.l.b16 %v639
      %v2002 = vunpack.c.h.b16 %v639
      %v2003 = vunpack.c.l.b16 %v640
      %v2004 = vunpack.c.h.b16 %v640
      %v2005 = vunpack.c.l.b16 %v641
      %v2006 = vunpack.c.h.b16 %v641
      %v2007 = vunpack.c.l.b16 %v642
      %v2008 = vunpack.c.h.b16 %v642
      %v2009 = vunpack.c.l.b16 %v643
      %v2010 = vunpack.c.h.b16 %v643
      %v2011 = vunpack.c.l.b16 %v644
      %v2012 = vunpack.c.h.b16 %v644
      %v2013 = vunpack.c.l.b16 %v645
      %v2014 = vunpack.c.h.b16 %v645
      %v2015 = vunpack.c.l.b16 %v646
      %v2016 = vunpack.c.h.b16 %v646
      %v2017 = vunpack.c.l.b16 %v647
      %v2018 = vunpack.c.h.b16 %v647
      %v2019 = vunpack.c.l.b16 %v648
      %v2020 = vunpack.c.h.b16 %v648
      %v2021 = vunpack.c.l.b16 %v649
      %v2022 = vunpack.c.h.b16 %v649
      %v2023 = vunpack.c.l.b16 %v650
      %v2024 = vunpack.c.h.b16 %v650
      %v2025 = vunpack.c.l.b16 %v651
      %v2026 = vunpack.c.h.b16 %v651
      %v2027 = vunpack.c.l.b16 %v652
      %v2028 = vunpack.c.h.b16 %v652
      %v2029 = vunpack.c.l.b16 %v653
      %v2030 = vunpack.c.h.b16 %v653
      %v2031 = vunpack.c.l.b16 %v654
      %v2032 = vunpack.c.h.b16 %v654
      %v2033 = vunpack.c.l.b16 %v655
      %v2034 = vunpack.c.h.b16 %v655
      %v2035 = vunpack.c.l.b16 %v656
      %v2036 = vunpack.c.h.b16 %v656
      %v2037 = vunpack.c.l.b16 %v657
      %v2038 = vunpack.c.h.b16 %v657
      %v2039 = vunpack.c.l.b16 %v658
      %v2040 = vunpack.c.h.b16 %v658
      %v2041 = vunpack.c.l.b16 %v659
      %v2042 = vunpack.c.h.b16 %v659
      %v2043 = vunpack.c.l.b16 %v660
      %v2044 = vunpack.c.h.b16 %v660
      %v2045 = vunpack.c.l.b16 %v661
      %v2046 = vunpack.c.h.b16 %v661
      %v2047 = vunpack.c.l.b16 %v662
      %v2048 = vunpack.c.h.b16 %v662
      %v2049 = vunpack.c.l.b16 %v663
      %v2050 = vunpack.c.h.b16 %v663
      %v2051 = vunpack.c.l.b16 %v664
      %v2052 = vunpack.c.h.b16 %v664
      %v2053 = vunpack.c.l.b16 %v665
      %v2054 = vunpack.c.h.b16 %v665
      %v2055 = vunpack.c.l.b16 %v666
      %v2056 = vunpack.c.h.b16 %v666
      %v2057 = vunpack.c.l.b16 %v667
      %v2058 = vunpack.c.h.b16 %v667
      %v2059 = vunpack.c.l.b16 %v668
      %v2060 = vunpack.c.h.b16 %v668
      %v2061 = vunpack.c.l.b16 %v669
      %v2062 = vunpack.c.h.b16 %v669
      %v2063 = vunpack.c.l.b16 %v670
      %v2064 = vunpack.c.h.b16 %v670
      %v2065 = vunpack.c.l.b16 %v671
      %v2066 = vunpack.c.h.b16 %v671
      %v2067 = vunpack.c.l.b16 %v672
      %v2068 = vunpack.c.h.b16 %v672
      %v2069 = vunpack.c.l.b16 %v673
      %v2070 = vunpack.c.h.b16 %v673
      %v2071 = vunpack.c.l.b16 %v674
      %v2072 = vunpack.c.h.b16 %v674
      %v2073 = vunpack.c.l.b16 %v675
      %v2074 = vunpack.c.h.b16 %v675
      %v2075 = vunpack.c.l.b16 %v676
      %v2076 = vunpack.c.h.b16 %v676
      %v2077 = vunpack.c.l.b16 %v677
      %v2078 = vunpack.c.h.b16 %v677
      %v2079 = vunpack.c.l.b16 %v678
      %v2080 = vunpack.c.h.b16 %v678
      %v2081 = vunpack.c.l.b16 %v679
      %v2082 = vunpack.c.h.b16 %v679
      %v2083 = vunpack.c.l.b16 %v680
      %v2084 = vunpack.c.h.b16 %v680
      %v2085 = vunpack.c.l.b16 %v681
      %v2086 = vunpack.c.h.b16 %v681
      %v2087 = vunpack.c.l.b16 %v682
      %v2088 = vunpack.c.h.b16 %v682
      %v2089 = vunpack.c.l.b16 %v683
      %v2090 = vunpack.c.h.b16 %v683
      %v2091 = vunpack.c.l.b16 %v684
      %v2092 = vunpack.c.h.b16 %v684
      %v2093 = vunpack.c.l.b16 %v685
      %v2094 = vunpack.c.h.b16 %v685
      %v2095 = vunpack.c.l.b16 %v686
      %v2096 = vunpack.c.h.b16 %v686
      %v2097 = vunpack.c.l.b16 %v687
      %v2098 = vunpack.c.h.b16 %v687
      %v2099 = vunpack.c.l.b16 %v688
      %v2100 = vunpack.c.h.b16 %v688
      %v2101 = vunpack.c.l.b16 %v689
      %v2102 = vunpack.c.h.b16 %v689
      %v2103 = vunpack.c.l.b16 %v690
      %v2104 = vunpack.c.h.b16 %v690
      %v2105 = vunpack.c.l.b16 %v691
      %v2106 = vunpack.c.h.b16 %v691
      %v2107 = vunpack.c.l.b16 %v692
      %v2108 = vunpack.c.h.b16 %v692
      %v2109 = vunpack.c.l.b16 %v693
      %v2110 = vunpack.c.h.b16 %v693
      %v2111 = vunpack.c.l.b16 %v694
      %v2112 = vunpack.c.h.b16 %v694
      %v2113 = vunpack.c.l.b16 %v695
      %v2114 = vunpack.c.h.b16 %v695
      %v2115 = vunpack.c.l.b16 %v696
      %v2116 = vunpack.c.h.b16 %v696
      %v2117 = vunpack.c.l.b16 %v697
      %v2118 = vunpack.c.h.b16 %v697
      %v2119 = vunpack.c.l.b16 %v698
      %v2120 = vunpack.c.h.b16 %v698
      %v2121 = vunpack.c.l.b16 %v699
      %v2122 = vunpack.c.h.b16 %v699
      %v2123 = vunpack.c.l.b16 %v700
      %v2124 = vunpack.c.h.b16 %v700
      %v2125 = vunpack.c.l.b16 %v701
      %v2126 = vunpack.c.h.b16 %v701
      %v2127 = vunpack.c.l.b16 %v702
      %v2128 = vunpack.c.h.b16 %v702
      %v2129 = vunpack.c.l.b16 %v703
      %v2130 = vunpack.c.h.b16 %v703
      %v2131 = vunpack.c.l.b16 %v704
      %v2132 = vunpack.c.h.b16 %v704
      %v2133 = vunpack.c.l.b16 %v705
      %v2134 = vunpack.c.h.b16 %v705
      %v2135 = vunpack.c.l.b16 %v706
      %v2136 = vunpack.c.h.b16 %v706
      %v2137 = vunpack.c.l.b16 %v707
      %v2138 = vunpack.c.h.b16 %v707
      %v2139 = vunpack.c.l.b16 %v708
      %v2140 = vunpack.c.h.b16 %v708
      %v2141 = vunpack.c.l.b16 %v709
      %v2142 = vunpack.c.h.b16 %v709
      %v2143 = vunpack.c.l.b16 %v710
      %v2144 = vunpack.c.h.b16 %v710
      %v2145 = vunpack.c.l.b16 %v711
      %v2146 = vunpack.c.h.b16 %v711
      %v2147 = vunpack.c.l.b16 %v712
      %v2148 = vunpack.c.h.b16 %v712
      %v2149 = vunpack.c.l.b16 %v713
      %v2150 = vunpack.c.h.b16 %v713
      %v2151 = vunpack.c.l.b16 %v714
      %v2152 = vunpack.c.h.b16 %v714
      %v2153 = vunpack.c.l.b16 %v715
      %v2154 = vunpack.c.h.b16 %v715
      %v2155 = vunpack.c.l.b16 %v716
      %v2156 = vunpack.c.h.b16 %v716
      %v2157 = vunpack.c.l.b16 %v717
      %v2158 = vunpack.c.h.b16 %v717
      %v2159 = vunpack.c.l.b16 %v718
      %v2160 = vunpack.c.h.b16 %v718
      %v2161 = vunpack.c.l.b16 %v719
      %v2162 = vunpack.c.h.b16 %v719
      %v2163 = vunpack.c.l.b16 %v720
      %v2164 = vunpack.c.h.b16 %v720
      %v2165 = vunpack.c.l.b16 %v721
      %v2166 = vunpack.c.h.b16 %v721
      %v2167 = vunpack.c.l.b16 %v722
      %v2168 = vunpack.c.h.b16 %v722
      %v2169 = vunpack.c.l.b16 %v723
      %v2170 = vunpack.c.h.b16 %v723
      %v2171 = vunpack.c.l.b16 %v724
      %v2172 = vunpack.c.h.b16 %v724
      %v2173 = vunpack.c.l.b16 %v725
      %v2174 = vunpack.c.h.b16 %v725
      %v2175 = vunpack.c.l.b16 %v726
      %v2176 = vunpack.c.h.b16 %v726
      %v2177 = vunpack.c.l.b16 %v727
      %v2178 = vunpack.c.h.b16 %v727
      %v2179 = vunpack.c.l.b16 %v728
      %v2180 = vunpack.c.h.b16 %v728
      %v2181 = vunpack.c.l.b16 %v729
      %v2182 = vunpack.c.h.b16 %v729
      %v2183 = vunpack.c.l.b16 %v730
      %v2184 = vunpack.c.h.b16 %v730
      %v2185 = vunpack.c.l.b16 %v731
      %v2186 = vunpack.c.h.b16 %v731
      %v2187 = vunpack.c.l.b16 %v732
      %v2188 = vunpack.c.h.b16 %v732
      %v2189 = vunpack.c.l.b16 %v733
      %v2190 = vunpack.c.h.b16 %v733
      %v2191 = vunpack.c.l.b16 %v734
      %v2192 = vunpack.c.h.b16 %v734
      %v2193 = vunpack.c.l.b16 %v735
      %v2194 = vunpack.c.h.b16 %v735
      %v2195 = vunpack.c.l.b16 %v736
      %v2196 = vunpack.c.h.b16 %v736
      %v2197 = vunpack.c.l.b16 %v737
      %v2198 = vunpack.c.h.b16 %v737
      %v2199 = vunpack.c.l.b16 %v738
      %v2200 = vunpack.c.h.b16 %v738
      %v2201 = vunpack.c.l.b16 %v739
      %v2202 = vunpack.c.h.b16 %v739
      %v2203 = vunpack.c.l.b16 %v740
      %v2204 = vunpack.c.h.b16 %v740
      %v2205 = vunpack.c.l.b16 %v741
      %v2206 = vunpack.c.h.b16 %v741
      %v2207 = vunpack.c.l.b16 %v742
      %v2208 = vunpack.c.h.b16 %v742
      %v2209 = vunpack.c.l.b16 %v743
      %v2210 = vunpack.c.h.b16 %v743
      %v2211 = vunpack.c.l.b16 %v744
      %v2212 = vunpack.c.h.b16 %v744
      %v2213 = vunpack.c.l.b16 %v745
      %v2214 = vunpack.c.h.b16 %v745
      %v2215 = vunpack.c.l.b16 %v746
      %v2216 = vunpack.c.h.b16 %v746
      %v2217 = vunpack.c.l.b16 %v747
      %v2218 = vunpack.c.h.b16 %v747
      %v2219 = vunpack.c.l.b16 %v748
      %v2220 = vunpack.c.h.b16 %v748
      %v2221 = vunpack.c.l.b16 %v749
      %v2222 = vunpack.c.h.b16 %v749
      %v2223 = vunpack.c.l.b16 %v750
      %v2224 = vunpack.c.h.b16 %v750
      %v2225 = vunpack.c.l.b16 %v751
      %v2226 = vunpack.c.h.b16 %v751
      %v2227 = vunpack.c.l.b16 %v752
      %v2228 = vunpack.c.h.b16 %v752
      %v2229 = vunpack.c.l.b16 %v753
      %v2230 = vunpack.c.h.b16 %v753
      %v2231 = vunpack.c.l.b16 %v754
      %v2232 = vunpack.c.h.b16 %v754
      %v2233 = vunpack.c.l.b16 %v755
      %v2234 = vunpack.c.h.b16 %v755
      %v2235 = vunpack.c.l.b16 %v756
      %v2236 = vunpack.c.h.b16 %v756
      %v2237 = vunpack.c.l.b16 %v757
      %v2238 = vunpack.c.h.b16 %v757
      %v2239 = vunpack.c.l.b16 %v758
      %v2240 = vunpack.c.h.b16 %v758
      %v2241 = vunpack.c.l.b16 %v759
      %v2242 = vunpack.c.h.b16 %v759
      %v2243 = vunpack.c.l.b16 %v760
      %v2244 = vunpack.c.h.b16 %v760
      %v2245 = vunpack.c.l.b16 %v761
      %v2246 = vunpack.c.h.b16 %v761
      %v2247 = vunpack.c.l.b16 %v762
      %v2248 = vunpack.c.h.b16 %v762
      %v2249 = vunpack.c.l.b16 %v763
      %v2250 = vunpack.c.h.b16 %v763
      %v2251 = vunpack.c.l.b16 %v764
      %v2252 = vunpack.c.h.b16 %v764
      %v2253 = vunpack.c.l.b16 %v765
      %v2254 = vunpack.c.h.b16 %v765
      %v2255 = vunpack.c.l.b16 %v766
      %v2256 = vunpack.c.h.b16 %v766
      %v2257 = vunpack.c.l.b16 %v767
      %v2258 = vunpack.c.h.b16 %v767
      %v2259 = vunpack.c.l.b16 %v768
      %v2260 = vunpack.c.h.b16 %v768
      %v2261 = vunpack.c.l.b16 %v769
      %v2262 = vunpack.c.h.b16 %v769
      %v2263 = vunpack.c.l.b16 %v770
      %v2264 = vunpack.c.h.b16 %v770
      %v2265 = vunpack.c.l.b16 %v771
      %v2266 = vunpack.c.h.b16 %v771
      %v2267 = vunpack.c.l.b16 %v772
      %v2268 = vunpack.c.h.b16 %v772
      %v2269 = vunpack.c.l.b16 %v773
      %v2270 = vunpack.c.h.b16 %v773
      %v2271 = vunpack.c.l.b16 %v774
      %v2272 = vunpack.c.h.b16 %v774
      %v2273 = vunpack.c.l.b16 %v775
      %v2274 = vunpack.c.h.b16 %v775
      %v2275 = vunpack.c.l.b16 %v776
      %v2276 = vunpack.c.h.b16 %v776
      %v2277 = vunpack.c.l.b16 %v777
      %v2278 = vunpack.c.h.b16 %v777
      %v2279 = vunpack.c.l.b16 %v778
      %v2280 = vunpack.c.h.b16 %v778
      %v2281 = vunpack.c.l.b16 %v779
      %v2282 = vunpack.c.h.b16 %v779
      %v2283 = vunpack.c.l.b16 %v780
      %v2284 = vunpack.c.h.b16 %v780
      %v2285 = vunpack.c.l.b16 %v781
      %v2286 = vunpack.c.h.b16 %v781
      %v2287 = vunpack.c.l.b16 %v782
      %v2288 = vunpack.c.h.b16 %v782
      %v2289 = vunpack.c.l.b16 %v783
      %v2290 = vunpack.c.h.b16 %v783
      %v2291 = vunpack.c.l.b16 %v784
      %v2292 = vunpack.c.h.b16 %v784
      %v2293 = vunpack.c.l.b16 %v785
      %v2294 = vunpack.c.h.b16 %v785
      %v2295 = vunpack.c.l.b16 %v786
      %v2296 = vunpack.c.h.b16 %v786
      %v2297 = vunpack.c.l.b16 %v787
      %v2298 = vunpack.c.h.b16 %v787
      %v2299 = vunpack.c.l.b16 %v788
      %v2300 = vunpack.c.h.b16 %v788
      %v2301 = vunpack.c.l.b16 %v789
      %v2302 = vunpack.c.h.b16 %v789
      %v2303 = vunpack.c.l.b16 %v790
      %v2304 = vunpack.c.h.b16 %v790
      %v2305 = vunpack.c.l.b16 %v791
      %v2306 = vunpack.c.h.b16 %v791
      %v2307 = vunpack.c.l.b16 %v792
      %v2308 = vunpack.c.h.b16 %v792
      %v2309 = vunpack.c.l.b16 %v793
      %v2310 = vunpack.c.h.b16 %v793
      %v2311 = vunpack.c.l.b16 %v794
      %v2312 = vunpack.c.h.b16 %v794
      %v2313 = vunpack.c.l.b16 %v795
      %v2314 = vunpack.c.h.b16 %v795
      %v2315 = vunpack.c.l.b16 %v796
      %v2316 = vunpack.c.h.b16 %v796
      %v2317 = vunpack.c.l.b16 %v797
      %v2318 = vunpack.c.h.b16 %v797
      %v2319 = vunpack.c.l.b16 %v798
      %v2320 = vunpack.c.h.b16 %v798
      %v2321 = vunpack.c.l.b16 %v799
      %v2322 = vunpack.c.h.b16 %v799
      %v2323 = vunpack.c.l.b16 %v800
      %v2324 = vunpack.c.h.b16 %v800
      %v2325 = vunpack.c.l.b16 %v801
      %v2326 = vunpack.c.h.b16 %v801
      %v2327 = vunpack.c.l.b16 %v802
      %v2328 = vunpack.c.h.b16 %v802
      %v2329 = vunpack.c.l.b16 %v803
      %v2330 = vunpack.c.h.b16 %v803
      %v2331 = vunpack.c.l.b16 %v804
      %v2332 = vunpack.c.h.b16 %v804
      %v2333 = vunpack.c.l.b16 %v805
      %v2334 = vunpack.c.h.b16 %v805
      %v2335 = vunpack.c.l.b16 %v806
      %v2336 = vunpack.c.h.b16 %v806
      %v2337 = vunpack.c.l.b16 %v807
      %v2338 = vunpack.c.h.b16 %v807
      %v2339 = vunpack.c.l.b16 %v808
      %v2340 = vunpack.c.h.b16 %v808
      %v2341 = vunpack.c.l.b16 %v809
      %v2342 = vunpack.c.h.b16 %v809
      %v2343 = vunpack.c.l.b16 %v810
      %v2344 = vunpack.c.h.b16 %v810
      %v2345 = vunpack.c.l.b16 %v811
      %v2346 = vunpack.c.h.b16 %v811
      %v2347 = vunpack.c.l.b16 %v812
      %v2348 = vunpack.c.h.b16 %v812
      %v2349 = vunpack.c.l.b16 %v813
      %v2350 = vunpack.c.h.b16 %v813
      %v2351 = vunpack.c.l.b16 %v814
      %v2352 = vunpack.c.h.b16 %v814
      %v2353 = vunpack.c.l.b16 %v815
      %v2354 = vunpack.c.h.b16 %v815
      %v2355 = vunpack.c.l.b16 %v816
      %v2356 = vunpack.c.h.b16 %v816
      %v2357 = vunpack.c.l.b16 %v817
      %v2358 = vunpack.c.h.b16 %v817
      %v2359 = vunpack.c.l.b16 %v818
      %v2360 = vunpack.c.h.b16 %v818
      %v2361 = vunpack.c.l.b16 %v819
      %v2362 = vunpack.c.h.b16 %v819
      %v2363 = vunpack.c.l.b16 %v820
      %v2364 = vunpack.c.h.b16 %v820
      %v2365 = vunpack.c.l.b16 %v821
      %v2366 = vunpack.c.h.b16 %v821
      %v2367 = vunpack.c.l.b16 %v822
      %v2368 = vunpack.c.h.b16 %v822
      %v2369 = vunpack.c.l.b16 %v823
      %v2370 = vunpack.c.h.b16 %v823
      %v2371 = vunpack.c.l.b16 %v824
      %v2372 = vunpack.c.h.b16 %v824
      %v2373 = vunpack.c.l.b16 %v825
      %v2374 = vunpack.c.h.b16 %v825
      %v2375 = vunpack.c.l.b16 %v826
      %v2376 = vunpack.c.h.b16 %v826
      %v2377 = vunpack.c.l.b16 %v827
      %v2378 = vunpack.c.h.b16 %v827
      %v2379 = vunpack.c.l.b16 %v828
      %v2380 = vunpack.c.h.b16 %v828
      %v2381 = vunpack.c.l.b16 %v829
      %v2382 = vunpack.c.h.b16 %v829
      %v2383 = vunpack.c.l.b16 %v830
      %v2384 = vunpack.c.h.b16 %v830
      %v2385 = vunpack.c.l.b16 %v831
      %v2386 = vunpack.c.h.b16 %v831
      %v2387 = vunpack.c.l.b16 %v832
      %v2388 = vunpack.c.h.b16 %v832
      %v2389 = vunpack.c.l.b16 %v833
      %v2390 = vunpack.c.h.b16 %v833
      %v2391 = vunpack.c.l.b16 %v834
      %v2392 = vunpack.c.h.b16 %v834
      %v2393 = vunpack.c.l.b16 %v835
      %v2394 = vunpack.c.h.b16 %v835
      %v2395 = vunpack.c.l.b16 %v836
      %v2396 = vunpack.c.h.b16 %v836
      %v2397 = vunpack.c.l.b16 %v837
      %v2398 = vunpack.c.h.b16 %v837
      %v2399 = vunpack.c.l.b16 %v838
      %v2400 = vunpack.c.h.b16 %v838
      %v2401 = vunpack.c.l.b16 %v839
      %v2402 = vunpack.c.h.b16 %v839
      %v2403 = vunpack.c.l.b16 %v840
      %v2404 = vunpack.c.h.b16 %v840
      %v2405 = vunpack.c.l.b16 %v841
      %v2406 = vunpack.c.h.b16 %v841
      %v2407 = vunpack.c.l.b16 %v842
      %v2408 = vunpack.c.h.b16 %v842
      %v2409 = vunpack.c.l.b16 %v843
      %v2410 = vunpack.c.h.b16 %v843
      %v2411 = vunpack.c.l.b16 %v844
      %v2412 = vunpack.c.h.b16 %v844
      %v2413 = vunpack.c.l.b16 %v845
      %v2414 = vunpack.c.h.b16 %v845
      %v2415 = vunpack.c.l.b16 %v846
      %v2416 = vunpack.c.h.b16 %v846
      %v2417 = vunpack.c.l.b16 %v847
      %v2418 = vunpack.c.h.b16 %v847
      %v2419 = vunpack.c.l.b16 %v848
      %v2420 = vunpack.c.h.b16 %v848
      %v2421 = vunpack.c.l.b16 %v849
      %v2422 = vunpack.c.h.b16 %v849
      %v2423 = vunpack.c.l.b16 %v850
      %v2424 = vunpack.c.h.b16 %v850
      %v2425 = vunpack.c.l.b16 %v851
      %v2426 = vunpack.c.h.b16 %v851
      %v2427 = vunpack.c.l.b16 %v852
      %v2428 = vunpack.c.h.b16 %v852
      %v2429 = vunpack.c.l.b16 %v853
      %v2430 = vunpack.c.h.b16 %v853
      %v2431 = vunpack.c.l.b16 %v854
      %v2432 = vunpack.c.h.b16 %v854
      %v2433 = vunpack.c.l.b16 %v855
      %v2434 = vunpack.c.h.b16 %v855
      %v2435 = vunpack.c.l.b16 %v856
      %v2436 = vunpack.c.h.b16 %v856
      %v2437 = vunpack.c.l.b16 %v857
      %v2438 = vunpack.c.h.b16 %v857
      %v2439 = vunpack.c.l.b16 %v858
      %v2440 = vunpack.c.h.b16 %v858
      %v2441 = vunpack.c.l.b16 %v859
      %v2442 = vunpack.c.h.b16 %v859
      %v2443 = vunpack.c.l.b16 %v860
      %v2444 = vunpack.c.h.b16 %v860
      %v2445 = vunpack.c.l.b16 %v861
      %v2446 = vunpack.c.h.b16 %v861
      %v2447 = vunpack.c.l.b16 %v862
      %v2448 = vunpack.c.h.b16 %v862
      %v2449 = vunpack.c.l.b16 %v863
      %v2450 = vunpack.c.h.b16 %v863
      %v2451 = vunpack.c.l.b16 %v864
      %v2452 = vunpack.c.h.b16 %v864
      %v2453 = vunpack.c.l.b16 %v865
      %v2454 = vunpack.c.h.b16 %v865
      %v2455 = vunpack.c.l.b16 %v866
      %v2456 = vunpack.c.h.b16 %v866
      %v2457 = vunpack.c.l.b16 %v867
      %v2458 = vunpack.c.h.b16 %v867
      %v2459 = vunpack.c.l.b16 %v868
      %v2460 = vunpack.c.h.b16 %v868
      %v2461 = vunpack.c.l.b16 %v869
      %v2462 = vunpack.c.h.b16 %v869
      %v2463 = vunpack.c.l.b16 %v870
      %v2464 = vunpack.c.h.b16 %v870
      %v2465 = vunpack.c.l.b16 %v871
      %v2466 = vunpack.c.h.b16 %v871
      %v2467 = vunpack.c.l.b16 %v872
      %v2468 = vunpack.c.h.b16 %v872
      %v2469 = vunpack.c.l.b16 %v873
      %v2470 = vunpack.c.h.b16 %v873
      %v2471 = vunpack.c.l.b16 %v874
      %v2472 = vunpack.c.h.b16 %v874
      %v2473 = vunpack.c.l.b16 %v875
      %v2474 = vunpack.c.h.b16 %v875
      %v2475 = vunpack.c.l.b16 %v876
      %v2476 = vunpack.c.h.b16 %v876
      %v2477 = vunpack.c.l.b16 %v877
      %v2478 = vunpack.c.h.b16 %v877
      %v2479 = vunpack.c.l.b16 %v878
      %v2480 = vunpack.c.h.b16 %v878
      %v2481 = vunpack.c.l.b16 %v879
      %v2482 = vunpack.c.h.b16 %v879
      %v2483 = vunpack.c.l.b16 %v880
      %v2484 = vunpack.c.h.b16 %v880
      %v2485 = vunpack.c.l.b16 %v881
      %v2486 = vunpack.c.h.b16 %v881
      %v2487 = vunpack.c.l.b16 %v882
      %v2488 = vunpack.c.h.b16 %v882
      %v2489 = vunpack.c.l.b16 %v883
      %v2490 = vunpack.c.h.b16 %v883
      %v2491 = vunpack.c.l.b16 %v884
      %v2492 = vunpack.c.h.b16 %v884
      %v2493 = vunpack.c.l.b16 %v885
      %v2494 = vunpack.c.h.b16 %v885
      %v2495 = vunpack.c.l.b16 %v886
      %v2496 = vunpack.c.h.b16 %v886
      %v2497 = vunpack.c.l.b16 %v887
      %v2498 = vunpack.c.h.b16 %v887
      %v2499 = vunpack.c.l.b16 %v888
      %v2500 = vunpack.c.h.b16 %v888
      %v2501 = vunpack.c.l.b16 %v889
      %v2502 = vunpack.c.h.b16 %v889
      %v2503 = vunpack.c.l.b16 %v890
      %v2504 = vunpack.c.h.b16 %v890
      %v2505 = vunpack.c.l.b16 %v891
      %v2506 = vunpack.c.h.b16 %v891
      %v2507 = vunpack.c.l.b16 %v892
      %v2508 = vunpack.c.h.b16 %v892
      %v2509 = vunpack.c.l.b16 %v893
      %v2510 = vunpack.c.h.b16 %v893
      %v2511 = vunpack.c.l.b16 %v894
      %v2512 = vunpack.c.h.b16 %v894
      %v2513 = vunpack.c.l.b16 %v895
      %v2514 = vunpack.c.h.b16 %v895
      %v2515 = vunpack.c.l.b16 %v896
      %v2516 = vunpack.c.h.b16 %v896
      %v2517 = vpack.c.b16 %v1509, %v1493
      %v2518 = vpack.c.b16 %v1510, %v1494
      %v2519 = vpack.c.b16 %v1511, %v1495
      %v2520 = vpack.c.b16 %v1512, %v1496
      %v2521 = vpack.c.b16 %v1513, %v1497
      %v2522 = vpack.c.b16 %v1514, %v1498
      %v2523 = vpack.c.b16 %v1515, %v1499
      %v2524 = vpack.c.b16 %v1516, %v1500
      %v2525 = vpack.c.b16 %v1517, %v1501
      %v2526 = vpack.c.b16 %v1518, %v1502
      %v2527 = vpack.c.b16 %v1519, %v1503
      %v2528 = vpack.c.b16 %v1520, %v1504
      %v2529 = vpack.c.b16 %v1521, %v1505
      %v2530 = vpack.c.b16 %v1522, %v1506
      %v2531 = vpack.c.b16 %v1523, %v1507
      %v2532 = vpack.c.b16 %v1524, %v1508
      %v2533 = vpack.c.b16 %v1541, %v1525
      %v2534 = vpack.c.b16 %v1542, %v1526
      %v2535 = vpack.c.b16 %v1543, %v1527
      %v2536 = vpack.c.b16 %v1544, %v1528
      %v2537 = vpack.c.b16 %v1545, %v1529
      %v2538 = vpack.c.b16 %v1546, %v1530
      %v2539 = vpack.c.b16 %v1547, %v1531
      %v2540 = vpack.c.b16 %v1548, %v1532
      %v2541 = vpack.c.b16 %v1549, %v1533
      %v2542 = vpack.c.b16 %v1550, %v1534
      %v2543 = vpack.c.b16 %v1551, %v1535
      %v2544 = vpack.c.b16 %v1552, %v1536
      %v2545 = vpack.c.b16 %v1553, %v1537
      %v2546 = vpack.c.b16 %v1554, %v1538
      %v2547 = vpack.c.b16 %v1555, %v1539
      %v2548 = vpack.c.b16 %v1556, %v1540
      %v2549 = vpack.c.b16 %v1573, %v1557
      %v2550 = vpack.c.b16 %v1574, %v1558
      %v2551 = vpack.c.b16 %v1575, %v1559
      %v2552 = vpack.c.b16 %v1576, %v1560
      %v2553 = vpack.c.b16 %v1577, %v1561
      %v2554 = vpack.c.b16 %v1578, %v1562
      %v2555 = vpack.c.b16 %v1579, %v1563
      %v2556 = vpack.c.b16 %v1580, %v1564
      %v2557 = vpack.c.b16 %v1581, %v1565
      %v2558 = vpack.c.b16 %v1582, %v1566
      %v2559 = vpack.c.b16 %v1583, %v1567
      %v2560 = vpack.c.b16 %v1584, %v1568
      %v2561 = vpack.c.b16 %v1585, %v1569
      %v2562 = vpack.c.b16 %v1586, %v1570
      %v2563 = vpack.c.b16 %v1587, %v1571
      %v2564 = vpack.c.b16 %v1588, %v1572
      %v2565 = vpack.c.b16 %v1605, %v1589
      %v2566 = vpack.c.b16 %v1606, %v1590
      %v2567 = vpack.c.b16 %v1607, %v1591
      %v2568 = vpack.c.b16 %v1608, %v1592
      %v2569 = vpack.c.b16 %v1609, %v1593
      %v2570 = vpack.c.b16 %v1610, %v1594
      %v2571 = vpack.c.b16 %v1611, %v1595
      %v2572 = vpack.c.b16 %v1612, %v1596
      %v2573 = vpack.c.b16 %v1613, %v1597
      %v2574 = vpack.c.b16 %v1614, %v1598
      %v2575 = vpack.c.b16 %v1615, %v1599
      %v2576 = vpack.c.b16 %v1616, %v1600
      %v2577 = vpack.c.b16 %v1617, %v1601
      %v2578 = vpack.c.b16 %v1618, %v1602
      %v2579 = vpack.c.b16 %v1619, %v1603
      %v2580 = vpack.c.b16 %v1620, %v1604
      %v2581 = vpack.c.b16 %v1637, %v1621
      %v2582 = vpack.c.b16 %v1638, %v1622
      %v2583 = vpack.c.b16 %v1639, %v1623
      %v2584 = vpack.c.b16 %v1640, %v1624
      %v2585 = vpack.c.b16 %v1641, %v1625
      %v2586 = vpack.c.b16 %v1642, %v1626
      %v2587 = vpack.c.b16 %v1643, %v1627
      %v2588 = vpack.c.b16 %v1644, %v1628
      %v2589 = vpack.c.b16 %v1645, %v1629
      %v2590 = vpack.c.b16 %v1646, %v1630
      %v2591 = vpack.c.b16 %v1647, %v1631
      %v2592 = vpack.c.b16 %v1648, %v1632
      %v2593 = vpack.c.b16 %v1649, %v1633
      %v2594 = vpack.c.b16 %v1650, %v1634
      %v2595 = vpack.c.b16 %v1651, %v1635
      %v2596 = vpack.c.b16 %v1652, %v1636
      %v2597 = vpack.c.b16 %v1669, %v1653
      %v2598 = vpack.c.b16 %v1670, %v1654
      %v2599 = vpack.c.b16 %v1671, %v1655
      %v2600 = vpack.c.b16 %v1672, %v1656
      %v2601 = vpack.c.b16 %v1673, %v1657
      %v2602 = vpack.c.b16 %v1674, %v1658
      %v2603 = vpack.c.b16 %v1675, %v1659
      %v2604 = vpack.c.b16 %v1676, %v1660
      %v2605 = vpack.c.b16 %v1677, %v1661
      %v2606 = vpack.c.b16 %v1678, %v1662
      %v2607 = vpack.c.b16 %v1679, %v1663
      %v2608 = vpack.c.b16 %v1680, %v1664
      %v2609 = vpack.c.b16 %v1681, %v1665
      %v2610 = vpack.c.b16 %v1682, %v1666
      %v2611 = vpack.c.b16 %v1683, %v1667
      %v2612 = vpack.c.b16 %v1684, %v1668
      %v2613 = vpack.c.b16 %v1701, %v1685
      %v2614 = vpack.c.b16 %v1702, %v1686
      %v2615 = vpack.c.b16 %v1703, %v1687
      %v2616 = vpack.c.b16 %v1704, %v1688
      %v2617 = vpack.c.b16 %v1705, %v1689
      %v2618 = vpack.c.b16 %v1706, %v1690
      %v2619 = vpack.c.b16 %v1707, %v1691
      %v2620 = vpack.c.b16 %v1708, %v1692
      %v2621 = vpack.c.b16 %v1709, %v1693
      %v2622 = vpack.c.b16 %v1710, %v1694
      %v2623 = vpack.c.b16 %v1711, %v1695
      %v2624 = vpack.c.b16 %v1712, %v1696
      %v2625 = vpack.c.b16 %v1713, %v1697
      %v2626 = vpack.c.b16 %v1714, %v1698
      %v2627 = vpack.c.b16 %v1715, %v1699
      %v2628 = vpack.c.b16 %v1716, %v1700
      %v2629 = vpack.c.b16 %v1733, %v1717
      %v2630 = vpack.c.b16 %v1734, %v1718
      %v2631 = vpack.c.b16 %v1735, %v1719
      %v2632 = vpack.c.b16 %v1736, %v1720
      %v2633 = vpack.c.b16 %v1737, %v1721
      %v2634 = vpack.c.b16 %v1738, %v1722
      %v2635 = vpack.c.b16 %v1739, %v1723
      %v2636 = vpack.c.b16 %v1740, %v1724
      %v2637 = vpack.c.b16 %v1741, %v1725
      %v2638 = vpack.c.b16 %v1742, %v1726
      %v2639 = vpack.c.b16 %v1743, %v1727
      %v2640 = vpack.c.b16 %v1744, %v1728
      %v2641 = vpack.c.b16 %v1745, %v1729
      %v2642 = vpack.c.b16 %v1746, %v1730
      %v2643 = vpack.c.b16 %v1747, %v1731
      %v2644 = vpack.c.b16 %v1748, %v1732
      %v2645 = vpack.c.b16 %v1765, %v1749
      %v2646 = vpack.c.b16 %v1766, %v1750
      %v2647 = vpack.c.b16 %v1767, %v1751
      %v2648 = vpack.c.b16 %v1768, %v1752
      %v2649 = vpack.c.b16 %v1769, %v1753
      %v2650 = vpack.c.b16 %v1770, %v1754
      %v2651 = vpack.c.b16 %v1771, %v1755
      %v2652 = vpack.c.b16 %v1772, %v1756
      %v2653 = vpack.c.b16 %v1773, %v1757
      %v2654 = vpack.c.b16 %v1774, %v1758
      %v2655 = vpack.c.b16 %v1775, %v1759
      %v2656 = vpack.c.b16 %v1776, %v1760
      %v2657 = vpack.c.b16 %v1777, %v1761
      %v2658 = vpack.c.b16 %v1778, %v1762
      %v2659 = vpack.c.b16 %v1779, %v1763
      %v2660 = vpack.c.b16 %v1780, %v1764
      %v2661 = vpack.c.b16 %v1797, %v1781
      %v2662 = vpack.c.b16 %v1798, %v1782
      %v2663 = vpack.c.b16 %v1799, %v1783
      %v2664 = vpack.c.b16 %v1800, %v1784
      %v2665 = vpack.c.b16 %v1801, %v1785
      %v2666 = vpack.c.b16 %v1802, %v1786
      %v2667 = vpack.c.b16 %v1803, %v1787
      %v2668 = vpack.c.b16 %v1804, %v1788
      %v2669 = vpack.c.b16 %v1805, %v1789
      %v2670 = vpack.c.b16 %v1806, %v1790
      %v2671 = vpack.c.b16 %v1807, %v1791
      %v2672 = vpack.c.b16 %v1808, %v1792
      %v2673 = vpack.c.b16 %v1809, %v1793
      %v2674 = vpack.c.b16 %v1810, %v1794
      %v2675 = vpack.c.b16 %v1811, %v1795
      %v2676 = vpack.c.b16 %v1812, %v1796
      %v2677 = vpack.c.b16 %v1829, %v1813
      %v2678 = vpack.c.b16 %v1830, %v1814
      %v2679 = vpack.c.b16 %v1831, %v1815
      %v2680 = vpack.c.b16 %v1832, %v1816
      %v2681 = vpack.c.b16 %v1833, %v1817
      %v2682 = vpack.c.b16 %v1834, %v1818
      %v2683 = vpack.c.b16 %v1835, %v1819
      %v2684 = vpack.c.b16 %v1836, %v1820
      %v2685 = vpack.c.b16 %v1837, %v1821
      %v2686 = vpack.c.b16 %v1838, %v1822
      %v2687 = vpack.c.b16 %v1839, %v1823
      %v2688 = vpack.c.b16 %v1840, %v1824
      %v2689 = vpack.c.b16 %v1841, %v1825
      %v2690 = vpack.c.b16 %v1842, %v1826
      %v2691 = vpack.c.b16 %v1843, %v1827
      %v2692 = vpack.c.b16 %v1844, %v1828
      %v2693 = vpack.c.b16 %v1861, %v1845
      %v2694 = vpack.c.b16 %v1862, %v1846
      %v2695 = vpack.c.b16 %v1863, %v1847
      %v2696 = vpack.c.b16 %v1864, %v1848
      %v2697 = vpack.c.b16 %v1865, %v1849
      %v2698 = vpack.c.b16 %v1866, %v1850
      %v2699 = vpack.c.b16 %v1867, %v1851
      %v2700 = vpack.c.b16 %v1868, %v1852
      %v2701 = vpack.c.b16 %v1869, %v1853
      %v2702 = vpack.c.b16 %v1870, %v1854
      %v2703 = vpack.c.b16 %v1871, %v1855
      %v2704 = vpack.c.b16 %v1872, %v1856
      %v2705 = vpack.c.b16 %v1873, %v1857
      %v2706 = vpack.c.b16 %v1874, %v1858
      %v2707 = vpack.c.b16 %v1875, %v1859
      %v2708 = vpack.c.b16 %v1876, %v1860
      %v2709 = vpack.c.b16 %v1893, %v1877
      %v2710 = vpack.c.b16 %v1894, %v1878
      %v2711 = vpack.c.b16 %v1895, %v1879
      %v2712 = vpack.c.b16 %v1896, %v1880
      %v2713 = vpack.c.b16 %v1897, %v1881
      %v2714 = vpack.c.b16 %v1898, %v1882
      %v2715 = vpack.c.b16 %v1899, %v1883
      %v2716 = vpack.c.b16 %v1900, %v1884
      %v2717 = vpack.c.b16 %v1901, %v1885
      %v2718 = vpack.c.b16 %v1902, %v1886
      %v2719 = vpack.c.b16 %v1903, %v1887
      %v2720 = vpack.c.b16 %v1904, %v1888
      %v2721 = vpack.c.b16 %v1905, %v1889
      %v2722 = vpack.c.b16 %v1906, %v1890
      %v2723 = vpack.c.b16 %v1907, %v1891
      %v2724 = vpack.c.b16 %v1908, %v1892
      %v2725 = vpack.c.b16 %v1925, %v1909
      %v2726 = vpack.c.b16 %v1926, %v1910
      %v2727 = vpack.c.b16 %v1927, %v1911
      %v2728 = vpack.c.b16 %v1928, %v1912
      %v2729 = vpack.c.b16 %v1929, %v1913
      %v2730 = vpack.c.b16 %v1930, %v1914
      %v2731 = vpack.c.b16 %v1931, %v1915
      %v2732 = vpack.c.b16 %v1932, %v1916
      %v2733 = vpack.c.b16 %v1933, %v1917
      %v2734 = vpack.c.b16 %v1934, %v1918
      %v2735 = vpack.c.b16 %v1935, %v1919
      %v2736 = vpack.c.b16 %v1936, %v1920
      %v2737 = vpack.c.b16 %v1937, %v1921
      %v2738 = vpack.c.b16 %v1938, %v1922
      %v2739 = vpack.c.b16 %v1939, %v1923
      %v2740 = vpack.c.b16 %v1940, %v1924
      %v2741 = vpack.c.b16 %v1957, %v1941
      %v2742 = vpack.c.b16 %v1958, %v1942
      %v2743 = vpack.c.b16 %v1959, %v1943
      %v2744 = vpack.c.b16 %v1960, %v1944
      %v2745 = vpack.c.b16 %v1961, %v1945
      %v2746 = vpack.c.b16 %v1962, %v1946
      %v2747 = vpack.c.b16 %v1963, %v1947
      %v2748 = vpack.c.b16 %v1964, %v1948
      %v2749 = vpack.c.b16 %v1965, %v1949
      %v2750 = vpack.c.b16 %v1966, %v1950
      %v2751 = vpack.c.b16 %v1967, %v1951
      %v2752 = vpack.c.b16 %v1968, %v1952
      %v2753 = vpack.c.b16 %v1969, %v1953
      %v2754 = vpack.c.b16 %v1970, %v1954
      %v2755 = vpack.c.b16 %v1971, %v1955
      %v2756 = vpack.c.b16 %v1972, %v1956
      %v2757 = vpack.c.b16 %v1989, %v1973
      %v2758 = vpack.c.b16 %v1990, %v1974
      %v2759 = vpack.c.b16 %v1991, %v1975
      %v2760 = vpack.c.b16 %v1992, %v1976
      %v2761 = vpack.c.b16 %v1993, %v1977
      %v2762 = vpack.c.b16 %v1994, %v1978
      %v2763 = vpack.c.b16 %v1995, %v1979
      %v2764 = vpack.c.b16 %v1996, %v1980
      %v2765 = vpack.c.b16 %v1997, %v1981
      %v2766 = vpack.c.b16 %v1998, %v1982
      %v2767 = vpack.c.b16 %v1999, %v1983
      %v2768 = vpack.c.b16 %v2000, %v1984
      %v2769 = vpack.c.b16 %v2001, %v1985
      %v2770 = vpack.c.b16 %v2002, %v1986
      %v2771 = vpack.c.b16 %v2003, %v1987
      %v2772 = vpack.c.b16 %v2004, %v1988
      %v2773 = vpack.c.b16 %v2021, %v2005
      %v2774 = vpack.c.b16 %v2022, %v2006
      %v2775 = vpack.c.b16 %v2023, %v2007
      %v2776 = vpack.c.b16 %v2024, %v2008
      %v2777 = vpack.c.b16 %v2025, %v2009
      %v2778 = vpack.c.b16 %v2026, %v2010
      %v2779 = vpack.c.b16 %v2027, %v2011
      %v2780 = vpack.c.b16 %v2028, %v2012
      %v2781 = vpack.c.b16 %v2029, %v2013
      %v2782 = vpack.c.b16 %v2030, %v2014
      %v2783 = vpack.c.b16 %v2031, %v2015
      %v2784 = vpack.c.b16 %v2032, %v2016
      %v2785 = vpack.c.b16 %v2033, %v2017
      %v2786 = vpack.c.b16 %v2034, %v2018
      %v2787 = vpack.c.b16 %v2035, %v2019
      %v2788 = vpack.c.b16 %v2036, %v2020
      %v2789 = vpack.c.b16 %v2053, %v2037
      %v2790 = vpack.c.b16 %v2054, %v2038
      %v2791 = vpack.c.b16 %v2055, %v2039
      %v2792 = vpack.c.b16 %v2056, %v2040
      %v2793 = vpack.c.b16 %v2057, %v2041
      %v2794 = vpack.c.b16 %v2058, %v2042
      %v2795 = vpack.c.b16 %v2059, %v2043
      %v2796 = vpack.c.b16 %v2060, %v2044
      %v2797 = vpack.c.b16 %v2061, %v2045
      %v2798 = vpack.c.b16 %v2062, %v2046
      %v2799 = vpack.c.b16 %v2063, %v2047
      %v2800 = vpack.c.b16 %v2064, %v2048
      %v2801 = vpack.c.b16 %v2065, %v2049
      %v2802 = vpack.c.b16 %v2066, %v2050
      %v2803 = vpack.c.b16 %v2067, %v2051
      %v2804 = vpack.c.b16 %v2068, %v2052
      %v2805 = vpack.c.b16 %v2085, %v2069
      %v2806 = vpack.c.b16 %v2086, %v2070
      %v2807 = vpack.c.b16 %v2087, %v2071
      %v2808 = vpack.c.b16 %v2088, %v2072
      %v2809 = vpack.c.b16 %v2089, %v2073
      %v2810 = vpack.c.b16 %v2090, %v2074
      %v2811 = vpack.c.b16 %v2091, %v2075
      %v2812 = vpack.c.b16 %v2092, %v2076
      %v2813 = vpack.c.b16 %v2093, %v2077
      %v2814 = vpack.c.b16 %v2094, %v2078
      %v2815 = vpack.c.b16 %v2095, %v2079
      %v2816 = vpack.c.b16 %v2096, %v2080
      %v2817 = vpack.c.b16 %v2097, %v2081
      %v2818 = vpack.c.b16 %v2098, %v2082
      %v2819 = vpack.c.b16 %v2099, %v2083
      %v2820 = vpack.c.b16 %v2100, %v2084
      %v2821 = vpack.c.b16 %v2117, %v2101
      %v2822 = vpack.c.b16 %v2118, %v2102
      %v2823 = vpack.c.b16 %v2119, %v2103
      %v2824 = vpack.c.b16 %v2120, %v2104
      %v2825 = vpack.c.b16 %v2121, %v2105
      %v2826 = vpack.c.b16 %v2122, %v2106
      %v2827 = vpack.c.b16 %v2123, %v2107
      %v2828 = vpack.c.b16 %v2124, %v2108
      %v2829 = vpack.c.b16 %v2125, %v2109
      %v2830 = vpack.c.b16 %v2126, %v2110
      %v2831 = vpack.c.b16 %v2127, %v2111
      %v2832 = vpack.c.b16 %v2128, %v2112
      %v2833 = vpack.c.b16 %v2129, %v2113
      %v2834 = vpack.c.b16 %v2130, %v2114
      %v2835 = vpack.c.b16 %v2131, %v2115
      %v2836 = vpack.c.b16 %v2132, %v2116
      %v2837 = vpack.c.b16 %v2149, %v2133
      %v2838 = vpack.c.b16 %v2150, %v2134
      %v2839 = vpack.c.b16 %v2151, %v2135
      %v2840 = vpack.c.b16 %v2152, %v2136
      %v2841 = vpack.c.b16 %v2153, %v2137
      %v2842 = vpack.c.b16 %v2154, %v2138
      %v2843 = vpack.c.b16 %v2155, %v2139
      %v2844 = vpack.c.b16 %v2156, %v2140
      %v2845 = vpack.c.b16 %v2157, %v2141
      %v2846 = vpack.c.b16 %v2158, %v2142
      %v2847 = vpack.c.b16 %v2159, %v2143
      %v2848 = vpack.c.b16 %v2160, %v2144
      %v2849 = vpack.c.b16 %v2161, %v2145
      %v2850 = vpack.c.b16 %v2162, %v2146
      %v2851 = vpack.c.b16 %v2163, %v2147
      %v2852 = vpack.c.b16 %v2164, %v2148
      %v2853 = vpack.c.b16 %v2181, %v2165
      %v2854 = vpack.c.b16 %v2182, %v2166
      %v2855 = vpack.c.b16 %v2183, %v2167
      %v2856 = vpack.c.b16 %v2184, %v2168
      %v2857 = vpack.c.b16 %v2185, %v2169
      %v2858 = vpack.c.b16 %v2186, %v2170
      %v2859 = vpack.c.b16 %v2187, %v2171
      %v2860 = vpack.c.b16 %v2188, %v2172
      %v2861 = vpack.c.b16 %v2189, %v2173
      %v2862 = vpack.c.b16 %v2190, %v2174
      %v2863 = vpack.c.b16 %v2191, %v2175
      %v2864 = vpack.c.b16 %v2192, %v2176
      %v2865 = vpack.c.b16 %v2193, %v2177
      %v2866 = vpack.c.b16 %v2194, %v2178
      %v2867 = vpack.c.b16 %v2195, %v2179
      %v2868 = vpack.c.b16 %v2196, %v2180
      %v2869 = vpack.c.b16 %v2213, %v2197
      %v2870 = vpack.c.b16 %v2214, %v2198
      %v2871 = vpack.c.b16 %v2215, %v2199
      %v2872 = vpack.c.b16 %v2216, %v2200
      %v2873 = vpack.c.b16 %v2217, %v2201
      %v2874 = vpack.c.b16 %v2218, %v2202
      %v2875 = vpack.c.b16 %v2219, %v2203
      %v2876 = vpack.c.b16 %v2220, %v2204
      %v2877 = vpack.c.b16 %v2221, %v2205
      %v2878 = vpack.c.b16 %v2222, %v2206
      %v2879 = vpack.c.b16 %v2223, %v2207
      %v2880 = vpack.c.b16 %v2224, %v2208
      %v2881 = vpack.c.b16 %v2225, %v2209
      %v2882 = vpack.c.b16 %v2226, %v2210
      %v2883 = vpack.c.b16 %v2227, %v2211
      %v2884 = vpack.c.b16 %v2228, %v2212
      %v2885 = vpack.c.b16 %v2245, %v2229
      %v2886 = vpack.c.b16 %v2246, %v2230
      %v2887 = vpack.c.b16 %v2247, %v2231
      %v2888 = vpack.c.b16 %v2248, %v2232
      %v2889 = vpack.c.b16 %v2249, %v2233
      %v2890 = vpack.c.b16 %v2250, %v2234
      %v2891 = vpack.c.b16 %v2251, %v2235
      %v2892 = vpack.c.b16 %v2252, %v2236
      %v2893 = vpack.c.b16 %v2253, %v2237
      %v2894 = vpack.c.b16 %v2254, %v2238
      %v2895 = vpack.c.b16 %v2255, %v2239
      %v2896 = vpack.c.b16 %v2256, %v2240
      %v2897 = vpack.c.b16 %v2257, %v2241
      %v2898 = vpack.c.b16 %v2258, %v2242
      %v2899 = vpack.c.b16 %v2259, %v2243
      %v2900 = vpack.c.b16 %v2260, %v2244
      %v2901 = vpack.c.b16 %v2277, %v2261
      %v2902 = vpack.c.b16 %v2278, %v2262
      %v2903 = vpack.c.b16 %v2279, %v2263
      %v2904 = vpack.c.b16 %v2280, %v2264
      %v2905 = vpack.c.b16 %v2281, %v2265
      %v2906 = vpack.c.b16 %v2282, %v2266
      %v2907 = vpack.c.b16 %v2283, %v2267
      %v2908 = vpack.c.b16 %v2284, %v2268
      %v2909 = vpack.c.b16 %v2285, %v2269
      %v2910 = vpack.c.b16 %v2286, %v2270
      %v2911 = vpack.c.b16 %v2287, %v2271
      %v2912 = vpack.c.b16 %v2288, %v2272
      %v2913 = vpack.c.b16 %v2289, %v2273
      %v2914 = vpack.c.b16 %v2290, %v2274
      %v2915 = vpack.c.b16 %v2291, %v2275
      %v2916 = vpack.c.b16 %v2292, %v2276
      %v2917 = vpack.c.b16 %v2309, %v2293
      %v2918 = vpack.c.b16 %v2310, %v2294
      %v2919 = vpack.c.b16 %v2311, %v2295
      %v2920 = vpack.c.b16 %v2312, %v2296
      %v2921 = vpack.c.b16 %v2313, %v2297
      %v2922 = vpack.c.b16 %v2314, %v2298
      %v2923 = vpack.c.b16 %v2315, %v2299
      %v2924 = vpack.c.b16 %v2316, %v2300
      %v2925 = vpack.c.b16 %v2317, %v2301
      %v2926 = vpack.c.b16 %v2318, %v2302
      %v2927 = vpack.c.b16 %v2319, %v2303
      %v2928 = vpack.c.b16 %v2320, %v2304
      %v2929 = vpack.c.b16 %v2321, %v2305
      %v2930 = vpack.c.b16 %v2322, %v2306
      %v2931 = vpack.c.b16 %v2323, %v2307
      %v2932 = vpack.c.b16 %v2324, %v2308
      %v2933 = vpack.c.b16 %v2341, %v2325
      %v2934 = vpack.c.b16 %v2342, %v2326
      %v2935 = vpack.c.b16 %v2343, %v2327
      %v2936 = vpack.c.b16 %v2344, %v2328
      %v2937 = vpack.c.b16 %v2345, %v2329
      %v2938 = vpack.c.b16 %v2346, %v2330
      %v2939 = vpack.c.b16 %v2347, %v2331
      %v2940 = vpack.c.b16 %v2348, %v2332
      %v2941 = vpack.c.b16 %v2349, %v2333
      %v2942 = vpack.c.b16 %v2350, %v2334
      %v2943 = vpack.c.b16 %v2351, %v2335
      %v2944 = vpack.c.b16 %v2352, %v2336
      %v2945 = vpack.c.b16 %v2353, %v2337
      %v2946 = vpack.c.b16 %v2354, %v2338
      %v2947 = vpack.c.b16 %v2355, %v2339
      %v2948 = vpack.c.b16 %v2356, %v2340
      %v2949 = vpack.c.b16 %v2373, %v2357
      %v2950 = vpack.c.b16 %v2374, %v2358
      %v2951 = vpack.c.b16 %v2375, %v2359
      %v2952 = vpack.c.b16 %v2376, %v2360
      %v2953 = vpack.c.b16 %v2377, %v2361
      %v2954 = vpack.c.b16 %v2378, %v2362
      %v2955 = vpack.c.b16 %v2379, %v2363
      %v2956 = vpack.c.b16 %v2380, %v2364
      %v2957 = vpack.c.b16 %v2381, %v2365
      %v2958 = vpack.c.b16 %v2382, %v2366
      %v2959 = vpack.c.b16 %v2383, %v2367
      %v2960 = vpack.c.b16 %v2384, %v2368
      %v2961 = vpack.c.b16 %v2385, %v2369
      %v2962 = vpack.c.b16 %v2386, %v2370
      %v2963 = vpack.c.b16 %v2387, %v2371
      %v2964 = vpack.c.b16 %v2388, %v2372
      %v2965 = vpack.c.b16 %v2405, %v2389
      %v2966 = vpack.c.b16 %v2406, %v2390
      %v2967 = vpack.c.b16 %v2407, %v2391
      %v2968 = vpack.c.b16 %v2408, %v2392
      %v2969 = vpack.c.b16 %v2409, %v2393
      %v2970 = vpack.c.b16 %v2410, %v2394
      %v2971 = vpack.c.b16 %v2411, %v2395
      %v2972 = vpack.c.b16 %v2412, %v2396
      %v2973 = vpack.c.b16 %v2413, %v2397
      %v2974 = vpack.c.b16 %v2414, %v2398
      %v2975 = vpack.c.b16 %v2415, %v2399
      %v2976 = vpack.c.b16 %v2416, %v2400
      %v2977 = vpack.c.b16 %v2417, %v2401
      %v2978 = vpack.c.b16 %v2418, %v2402
      %v2979 = vpack.c.b16 %v2419, %v2403
      %v2980 = vpack.c.b16 %v2420, %v2404
      %v2981 = vpack.c.b16 %v2437, %v2421
      %v2982 = vpack.c.b16 %v2438, %v2422
      %v2983 = vpack.c.b16 %v2439, %v2423
      %v2984 = vpack.c.b16 %v2440, %v2424
      %v2985 = vpack.c.b16 %v2441, %v2425
      %v2986 = vpack.c.b16 %v2442, %v2426
      %v2987 = vpack.c.b16 %v2443, %v2427
      %v2988 = vpack.c.b16 %v2444, %v2428
      %v2989 = vpack.c.b16 %v2445, %v2429
      %v2990 = vpack.c.b16 %v2446, %v2430
      %v2991 = vpack.c.b16 %v2447, %v2431
      %v2992 = vpack.c.b16 %v2448, %v2432
      %v2993 = vpack.c.b16 %v2449, %v2433
      %v2994 = vpack.c.b16 %v2450, %v2434
      %v2995 = vpack.c.b16 %v2451, %v2435
      %v2996 = vpack.c.b16 %v2452, %v2436
      %v2997 = vpack.c.b16 %v2469, %v2453
      %v2998 = vpack.c.b16 %v2470, %v2454
      %v2999 = vpack.c.b16 %v2471, %v2455
      %v3000 = vpack.c.b16 %v2472, %v2456
      %v3001 = vpack.c.b16 %v2473, %v2457
      %v3002 = vpack.c.b16 %v2474, %v2458
      %v3003 = vpack.c.b16 %v2475, %v2459
      %v3004 = vpack.c.b16 %v2476, %v2460
      %v3005 = vpack.c.b16 %v2477, %v2461
      %v3006 = vpack.c.b16 %v2478, %v2462
      %v3007 = vpack.c.b16 %v2479, %v2463
      %v3008 = vpack.c.b16 %v2480, %v2464
      %v3009 = vpack.c.b16 %v2481, %v2465
      %v3010 = vpack.c.b16 %v2482, %v2466
      %v3011 = vpack.c.b16 %v2483, %v2467
      %v3012 = vpack.c.b16 %v2484, %v2468
      %v3013 = vpack.c.b16 %v2501, %v2485
      %v3014 = vpack.c.b16 %v2502, %v2486
      %v3015 = vpack.c.b16 %v2503, %v2487
      %v3016 = vpack.c.b16 %v2504, %v2488
      %v3017 = vpack.c.b16 %v2505, %v2489
      %v3018 = vpack.c.b16 %v2506, %v2490
      %v3019 = vpack.c.b16 %v2507, %v2491
      %v3020 = vpack.c.b16 %v2508, %v2492
      %v3021 = vpack.c.b16 %v2509, %v2493
      %v3022 = vpack.c.b16 %v2510, %v2494
      %v3023 = vpack.c.b16 %v2511, %v2495
      %v3024 = vpack.c.b16 %v2512, %v2496
      %v3025 = vpack.c.b16 %v2513, %v2497
      %v3026 = vpack.c.b16 %v2514, %v2498
      %v3027 = vpack.c.b16 %v2515, %v2499
      %v3028 = vpack.c.b16 %v2516, %v2500
      %3541 = vmatprep.subr.bf16.mxu0 %v2630
      %3542 = vmatpush1.bf16.msra.mxu0 %v2629
      %3543 = vmatprep.subr.bf16.mxu0 %v2614
      %3544 = vmatpush1.bf16.msra.mxu0 %v2613
      %3545 = vmatprep.subr.bf16.mxu0 %v2598
      %3546 = vmatpush1.bf16.msra.mxu0 %v2597
      %3547 = vmatprep.subr.bf16.mxu0 %v2582
      %3548 = vmatpush1.bf16.msra.mxu0 %v2581
      %3549 = vmatprep.subr.bf16.mxu0 %v2566
      %3550 = vmatpush1.bf16.msra.mxu0 %v2565
      %3551 = vmatprep.subr.bf16.mxu0 %v2550
      %3552 = vmatpush1.bf16.msra.mxu0 %v2549
      %3553 = vmatprep.subr.bf16.mxu0 %v2534
      %3554 = vmatpush1.bf16.msra.mxu0 %v2533
      %3555 = vmatprep.subr.bf16.mxu0 %v2518
      %3556 = vmatpush1.bf16.msra.mxu0 %v2517
      %3557 = vmatprep.subr.bf16.mxu0 %v2758
      %3558 = vmatpush2.bf16.msra.mxu0 %v2757
      %3559 = vmatprep.subr.bf16.mxu0 %v2742
      %3560 = vmatpush2.bf16.msra.mxu0 %v2741
      %3561 = vmatprep.subr.bf16.mxu0 %v2726
      %3562 = vmatpush2.bf16.msra.mxu0 %v2725
      %3563 = vmatprep.subr.bf16.mxu0 %v2710
      %3564 = vmatpush2.bf16.msra.mxu0 %v2709
      %3565 = vmatprep.subr.bf16.mxu0 %v2694
      %3566 = vmatpush2.bf16.msra.mxu0 %v2693
      %3567 = vmatprep.subr.bf16.mxu0 %v2678
      %3568 = vmatpush2.bf16.msra.mxu0 %v2677
      %3569 = vmatprep.subr.bf16.mxu0 %v2662
      %3570 = vmatpush2.bf16.msra.mxu0 %v2661
      %3571 = vmatprep.subr.bf16.mxu0 %v2646
      %3572 = vmatpush2.bf16.msra.mxu0 %v2645
      %3573 = vmatprep.mubr.bf16.mxu0 %v334
      %3574 = vmatmul.mubr.bf16.gmra.mxu0 %v333
      %v3575 = vpop.f32.mrf.mxu0
      %v3576 = vadd.f32 %v904, %v3575
      %v3577 = vpop.f32.mrf.mxu0
      %v3578 = vadd.f32 %v908, %v3577
      %v3579 = vpop.f32.mrf.mxu0
      %v3580 = vadd.f32 %v904, %v3579
      %v3581 = vpop.f32.mrf.mxu0
      %v3582 = vadd.f32 %v908, %v3581
      %3583 = vmatprep.mubr.bf16.mxu0 %v338
      %3584 = vmatmul.mubr.bf16.gmra.mxu0 %v337
      %v3585 = vpop.f32.mrf.mxu0
      %v3586 = vadd.f32 %v904, %v3585
      %v3587 = vpop.f32.mrf.mxu0
      %v3588 = vadd.f32 %v908, %v3587
      %v3589 = vpop.f32.mrf.mxu0
      %v3590 = vadd.f32 %v904, %v3589
      %v3591 = vpop.f32.mrf.mxu0
      %v3592 = vadd.f32 %v908, %v3591
      %3593 = vmatprep.mubr.bf16.mxu0 %v342
      %3594 = vmatmul.mubr.bf16.gmra.mxu0 %v341
      %v3595 = vpop.f32.mrf.mxu0
      %v3596 = vadd.f32 %v904, %v3595
      %v3597 = vpop.f32.mrf.mxu0
      %v3598 = vadd.f32 %v908, %v3597
      %v3599 = vpop.f32.mrf.mxu0
      %v3600 = vadd.f32 %v904, %v3599
      %v3601 = vpop.f32.mrf.mxu0
      %v3602 = vadd.f32 %v908, %v3601
      %3603 = vmatprep.mubr.bf16.mxu0 %v346
      %3604 = vmatmul.mubr.bf16.gmra.mxu0 %v345
      %v3605 = vpop.f32.mrf.mxu0
      %v3606 = vadd.f32 %v904, %v3605
      %v3607 = vpop.f32.mrf.mxu0
      %v3608 = vadd.f32 %v908, %v3607
      %v3609 = vpop.f32.mrf.mxu0
      %v3610 = vadd.f32 %v904, %v3609
      %v3611 = vpop.f32.mrf.mxu0
      %v3612 = vadd.f32 %v908, %v3611
      %3613 = vmatprep.mubr.bf16.mxu0 %v350
      %3614 = vmatmul.mubr.bf16.gmra.mxu0 %v349
      %v3615 = vpop.f32.mrf.mxu0
      %v3616 = vadd.f32 %v904, %v3615
      %v3617 = vpop.f32.mrf.mxu0
      %v3618 = vadd.f32 %v908, %v3617
      %v3619 = vpop.f32.mrf.mxu0
      %v3620 = vadd.f32 %v904, %v3619
      %v3621 = vpop.f32.mrf.mxu0
      %v3622 = vadd.f32 %v908, %v3621
      %3623 = vmatprep.mubr.bf16.mxu0 %v354
      %3624 = vmatmul.mubr.bf16.gmra.mxu0 %v353
      %v3625 = vpop.f32.mrf.mxu0
      %v3626 = vadd.f32 %v904, %v3625
      %v3627 = vpop.f32.mrf.mxu0
      %v3628 = vadd.f32 %v908, %v3627
      %v3629 = vpop.f32.mrf.mxu0
      %v3630 = vadd.f32 %v904, %v3629
      %v3631 = vpop.f32.mrf.mxu0
      %v3632 = vadd.f32 %v908, %v3631
      %3633 = vmatprep.mubr.bf16.mxu0 %v358
      %3634 = vmatmul.mubr.bf16.gmra.mxu0 %v357
      %v3635 = vpop.f32.mrf.mxu0
      %v3636 = vadd.f32 %v904, %v3635
      %v3637 = vpop.f32.mrf.mxu0
      %v3638 = vadd.f32 %v908, %v3637
      %v3639 = vpop.f32.mrf.mxu0
      %v3640 = vadd.f32 %v904, %v3639
      %v3641 = vpop.f32.mrf.mxu0
      %v3642 = vadd.f32 %v908, %v3641
      %3643 = vmatprep.mubr.bf16.mxu0 %v362
      %3644 = vmatmul.mubr.bf16.gmra.mxu0 %v361
      %v3645 = vpop.f32.mrf.mxu0
      %v3646 = vadd.f32 %v904, %v3645
      %v3647 = vpop.f32.mrf.mxu0
      %v3648 = vadd.f32 %v908, %v3647
      %v3649 = vpop.f32.mrf.mxu0
      %v3650 = vadd.f32 %v904, %v3649
      %v3651 = vpop.f32.mrf.mxu0
      %v3652 = vadd.f32 %v908, %v3651
      %3653 = vmatprep.mubr.bf16.mxu0 %v366
      %3654 = vmatmul.mubr.bf16.gmra.mxu0 %v365
      %v3655 = vpop.f32.mrf.mxu0
      %v3656 = vadd.f32 %v904, %v3655
      %v3657 = vpop.f32.mrf.mxu0
      %v3658 = vadd.f32 %v908, %v3657
      %v3659 = vpop.f32.mrf.mxu0
      %v3660 = vadd.f32 %v904, %v3659
      %v3661 = vpop.f32.mrf.mxu0
      %v3662 = vadd.f32 %v908, %v3661
      %3663 = vmatprep.mubr.bf16.mxu0 %v370
      %3664 = vmatmul.mubr.bf16.gmra.mxu0 %v369
      %v3665 = vpop.f32.mrf.mxu0
      %v3666 = vadd.f32 %v904, %v3665
      %v3667 = vpop.f32.mrf.mxu0
      %v3668 = vadd.f32 %v908, %v3667
      %v3669 = vpop.f32.mrf.mxu0
      %v3670 = vadd.f32 %v904, %v3669
      %v3671 = vpop.f32.mrf.mxu0
      %v3672 = vadd.f32 %v908, %v3671
      %3673 = vmatprep.mubr.bf16.mxu0 %v374
      %3674 = vmatmul.mubr.bf16.gmra.mxu0 %v373
      %v3675 = vpop.f32.mrf.mxu0
      %v3676 = vadd.f32 %v904, %v3675
      %v3677 = vpop.f32.mrf.mxu0
      %v3678 = vadd.f32 %v908, %v3677
      %v3679 = vpop.f32.mrf.mxu0
      %v3680 = vadd.f32 %v904, %v3679
      %v3681 = vpop.f32.mrf.mxu0
      %v3682 = vadd.f32 %v908, %v3681
      %3683 = vmatprep.mubr.bf16.mxu0 %v378
      %3684 = vmatmul.mubr.bf16.gmra.mxu0 %v377
      %v3685 = vpop.f32.mrf.mxu0
      %v3686 = vadd.f32 %v904, %v3685
      %v3687 = vpop.f32.mrf.mxu0
      %v3688 = vadd.f32 %v908, %v3687
      %v3689 = vpop.f32.mrf.mxu0
      %v3690 = vadd.f32 %v904, %v3689
      %v3691 = vpop.f32.mrf.mxu0
      %v3692 = vadd.f32 %v908, %v3691
      %3693 = vmatprep.mubr.bf16.mxu0 %v382
      %3694 = vmatmul.mubr.bf16.gmra.mxu0 %v381
      %v3695 = vpop.f32.mrf.mxu0
      %v3696 = vadd.f32 %v904, %v3695
      %v3697 = vpop.f32.mrf.mxu0
      %v3698 = vadd.f32 %v908, %v3697
      %v3699 = vpop.f32.mrf.mxu0
      %v3700 = vpop.f32.mrf.mxu0
      %3701 = vdwg.mxu0
      %3702 = vmatprep.subr.bf16.mxu0 %v2886
      %3703 = vmatpush1.bf16.msra.mxu0 %v2885
      %3704 = vmatprep.subr.bf16.mxu0 %v2870
      %3705 = vmatpush1.bf16.msra.mxu0 %v2869
      %3706 = vmatprep.subr.bf16.mxu0 %v2854
      %3707 = vmatpush1.bf16.msra.mxu0 %v2853
      %3708 = vmatprep.subr.bf16.mxu0 %v2838
      %3709 = vmatpush1.bf16.msra.mxu0 %v2837
      %3710 = vmatprep.subr.bf16.mxu0 %v2822
      %3711 = vmatpush1.bf16.msra.mxu0 %v2821
      %3712 = vmatprep.subr.bf16.mxu0 %v2806
      %3713 = vmatpush1.bf16.msra.mxu0 %v2805
      %3714 = vmatprep.subr.bf16.mxu0 %v2790
      %3715 = vmatpush1.bf16.msra.mxu0 %v2789
      %3716 = vmatprep.subr.bf16.mxu0 %v2774
      %3717 = vmatpush1.bf16.msra.mxu0 %v2773
      %3718 = vmatprep.subr.bf16.mxu0 %v3014
      %3719 = vmatpush2.bf16.msra.mxu0 %v3013
      %3720 = vmatprep.subr.bf16.mxu0 %v2998
      %3721 = vmatpush2.bf16.msra.mxu0 %v2997
      %3722 = vmatprep.subr.bf16.mxu0 %v2982
      %3723 = vmatpush2.bf16.msra.mxu0 %v2981
      %3724 = vmatprep.subr.bf16.mxu0 %v2966
      %3725 = vmatpush2.bf16.msra.mxu0 %v2965
      %3726 = vmatprep.subr.bf16.mxu0 %v2950
      %3727 = vmatpush2.bf16.msra.mxu0 %v2949
      %3728 = vmatprep.subr.bf16.mxu0 %v2934
      %3729 = vmatpush2.bf16.msra.mxu0 %v2933
      %3730 = vmatprep.subr.bf16.mxu0 %v2918
      %3731 = vmatpush2.bf16.msra.mxu0 %v2917
      %3732 = vmatprep.subr.bf16.mxu0 %v2902
      %3733 = vmatpush2.bf16.msra.mxu0 %v2901
      %3734 = vmatprep.mubr.bf16.mxu0 %v336
      %3735 = vmatmul.mubr.bf16.gmra.mxu0 %v335
      %v3736 = vpop.f32.mrf.mxu0
      %v3737 = vadd.f32 %v3576, %v3736
      %v3738 = vpop.f32.mrf.mxu0
      %v3739 = vadd.f32 %v3578, %v3738
      %v3740 = vpop.f32.mrf.mxu0
      %v3741 = vadd.f32 %v3580, %v3740
      %v3742 = vpop.f32.mrf.mxu0
      %v3743 = vadd.f32 %v3582, %v3742
      %3744 = vmatprep.mubr.bf16.mxu0 %v340
      %3745 = vmatmul.mubr.bf16.gmra.mxu0 %v339
      %v3746 = vpop.f32.mrf.mxu0
      %v3747 = vadd.f32 %v3586, %v3746
      %v3748 = vpop.f32.mrf.mxu0
      %v3749 = vadd.f32 %v3588, %v3748
      %v3750 = vpop.f32.mrf.mxu0
      %v3751 = vadd.f32 %v3590, %v3750
      %v3752 = vpop.f32.mrf.mxu0
      %v3753 = vadd.f32 %v3592, %v3752
      %3754 = vmatprep.mubr.bf16.mxu0 %v344
      %3755 = vmatmul.mubr.bf16.gmra.mxu0 %v343
      %v3756 = vpop.f32.mrf.mxu0
      %v3757 = vadd.f32 %v3596, %v3756
      %v3758 = vpop.f32.mrf.mxu0
      %v3759 = vadd.f32 %v3598, %v3758
      %v3760 = vpop.f32.mrf.mxu0
      %v3761 = vadd.f32 %v3600, %v3760
      %v3762 = vpop.f32.mrf.mxu0
      %v3763 = vadd.f32 %v3602, %v3762
      %3764 = vmatprep.mubr.bf16.mxu0 %v348
      %3765 = vmatmul.mubr.bf16.gmra.mxu0 %v347
      %v3766 = vpop.f32.mrf.mxu0
      %v3767 = vadd.f32 %v3606, %v3766
      %v3768 = vpop.f32.mrf.mxu0
      %v3769 = vadd.f32 %v3608, %v3768
      %v3770 = vpop.f32.mrf.mxu0
      %v3771 = vadd.f32 %v3610, %v3770
      %v3772 = vpop.f32.mrf.mxu0
      %v3773 = vadd.f32 %v3612, %v3772
      %3774 = vmatprep.mubr.bf16.mxu0 %v352
      %3775 = vmatmul.mubr.bf16.gmra.mxu0 %v351
      %v3776 = vpop.f32.mrf.mxu0
      %v3777 = vadd.f32 %v3616, %v3776
      %v3778 = vpop.f32.mrf.mxu0
      %v3779 = vadd.f32 %v3618, %v3778
      %v3780 = vpop.f32.mrf.mxu0
      %v3781 = vadd.f32 %v3620, %v3780
      %v3782 = vpop.f32.mrf.mxu0
      %v3783 = vadd.f32 %v3622, %v3782
      %3784 = vmatprep.mubr.bf16.mxu0 %v356
      %3785 = vmatmul.mubr.bf16.gmra.mxu0 %v355
      %v3786 = vpop.f32.mrf.mxu0
      %v3787 = vadd.f32 %v3626, %v3786
      %v3788 = vpop.f32.mrf.mxu0
      %v3789 = vadd.f32 %v3628, %v3788
      %v3790 = vpop.f32.mrf.mxu0
      %v3791 = vadd.f32 %v3630, %v3790
      %v3792 = vpop.f32.mrf.mxu0
      %v3793 = vadd.f32 %v3632, %v3792
      %3794 = vmatprep.mubr.bf16.mxu0 %v360
      %3795 = vmatmul.mubr.bf16.gmra.mxu0 %v359
      %v3796 = vpop.f32.mrf.mxu0
      %v3797 = vadd.f32 %v3636, %v3796
      %v3798 = vpop.f32.mrf.mxu0
      %v3799 = vadd.f32 %v3638, %v3798
      %v3800 = vpop.f32.mrf.mxu0
      %v3801 = vadd.f32 %v3640, %v3800
      %v3802 = vpop.f32.mrf.mxu0
      %v3803 = vadd.f32 %v3642, %v3802
      %3804 = vmatprep.mubr.bf16.mxu0 %v364
      %3805 = vmatmul.mubr.bf16.gmra.mxu0 %v363
      %v3806 = vpop.f32.mrf.mxu0
      %v3807 = vadd.f32 %v3646, %v3806
      %v3808 = vpop.f32.mrf.mxu0
      %v3809 = vadd.f32 %v3648, %v3808
      %v3810 = vpop.f32.mrf.mxu0
      %v3811 = vadd.f32 %v3650, %v3810
      %v3812 = vpop.f32.mrf.mxu0
      %v3813 = vadd.f32 %v3652, %v3812
      %3814 = vmatprep.mubr.bf16.mxu0 %v368
      %3815 = vmatmul.mubr.bf16.gmra.mxu0 %v367
      %v3816 = vpop.f32.mrf.mxu0
      %v3817 = vadd.f32 %v3656, %v3816
      %v3818 = vpop.f32.mrf.mxu0
      %v3819 = vadd.f32 %v3658, %v3818
      %v3820 = vpop.f32.mrf.mxu0
      %v3821 = vadd.f32 %v3660, %v3820
      %v3822 = vpop.f32.mrf.mxu0
      %v3823 = vadd.f32 %v3662, %v3822
      %3824 = vmatprep.mubr.bf16.mxu0 %v372
      %3825 = vmatmul.mubr.bf16.gmra.mxu0 %v371
      %v3826 = vpop.f32.mrf.mxu0
      %v3827 = vadd.f32 %v3666, %v3826
      %v3828 = vpop.f32.mrf.mxu0
      %v3829 = vadd.f32 %v3668, %v3828
      %v3830 = vpop.f32.mrf.mxu0
      %v3831 = vadd.f32 %v3670, %v3830
      %v3832 = vpop.f32.mrf.mxu0
      %v3833 = vadd.f32 %v3672, %v3832
      %3834 = vmatprep.mubr.bf16.mxu0 %v376
      %3835 = vmatmul.mubr.bf16.gmra.mxu0 %v375
      %v3836 = vpop.f32.mrf.mxu0
      %v3837 = vadd.f32 %v3676, %v3836
      %v3838 = vpop.f32.mrf.mxu0
      %v3839 = vadd.f32 %v3678, %v3838
      %v3840 = vpop.f32.mrf.mxu0
      %v3841 = vadd.f32 %v3680, %v3840
      %v3842 = vpop.f32.mrf.mxu0
      %v3843 = vadd.f32 %v3682, %v3842
      %3844 = vmatprep.mubr.bf16.mxu0 %v380
      %3845 = vmatmul.mubr.bf16.gmra.mxu0 %v379
      %v3846 = vpop.f32.mrf.mxu0
      %v3847 = vadd.f32 %v3686, %v3846
      %v3848 = vpop.f32.mrf.mxu0
      %v3849 = vadd.f32 %v3688, %v3848
      %v3850 = vpop.f32.mrf.mxu0
      %v3851 = vadd.f32 %v3690, %v3850
      %v3852 = vpop.f32.mrf.mxu0
      %v3853 = vadd.f32 %v3692, %v3852
      %3854 = vmatprep.mubr.bf16.mxu0 %v384
      %3855 = vmatmul.mubr.bf16.gmra.mxu0 %v383
      %v3856 = vpop.f32.mrf.mxu0
      %v3857 = vadd.f32 %v3696, %v3856
      %v3858 = vpop.f32.mrf.mxu0
      %v3859 = vadd.f32 %v3698, %v3858
      %v3860 = vpop.f32.mrf.mxu0
      %v3861 = vpop.f32.mrf.mxu0
      %3862 = vdwg.mxu0
      %3863 = vmatprep.subr.bf16.mxu0 %v2632
      %3864 = vmatpush1.bf16.msra.mxu0 %v2631
      %3865 = vmatprep.subr.bf16.mxu0 %v2616
      %3866 = vmatpush1.bf16.msra.mxu0 %v2615
      %3867 = vmatprep.subr.bf16.mxu0 %v2600
      %3868 = vmatpush1.bf16.msra.mxu0 %v2599
      %3869 = vmatprep.subr.bf16.mxu0 %v2584
      %3870 = vmatpush1.bf16.msra.mxu0 %v2583
      %3871 = vmatprep.subr.bf16.mxu0 %v2568
      %3872 = vmatpush1.bf16.msra.mxu0 %v2567
      %3873 = vmatprep.subr.bf16.mxu0 %v2552
      %3874 = vmatpush1.bf16.msra.mxu0 %v2551
      %3875 = vmatprep.subr.bf16.mxu0 %v2536
      %3876 = vmatpush1.bf16.msra.mxu0 %v2535
      %3877 = vmatprep.subr.bf16.mxu0 %v2520
      %3878 = vmatpush1.bf16.msra.mxu0 %v2519
      %3879 = vmatprep.subr.bf16.mxu0 %v2760
      %3880 = vmatpush2.bf16.msra.mxu0 %v2759
      %3881 = vmatprep.subr.bf16.mxu0 %v2744
      %3882 = vmatpush2.bf16.msra.mxu0 %v2743
      %3883 = vmatprep.subr.bf16.mxu0 %v2728
      %3884 = vmatpush2.bf16.msra.mxu0 %v2727
      %3885 = vmatprep.subr.bf16.mxu0 %v2712
      %3886 = vmatpush2.bf16.msra.mxu0 %v2711
      %3887 = vmatprep.subr.bf16.mxu0 %v2696
      %3888 = vmatpush2.bf16.msra.mxu0 %v2695
      %3889 = vmatprep.subr.bf16.mxu0 %v2680
      %3890 = vmatpush2.bf16.msra.mxu0 %v2679
      %3891 = vmatprep.subr.bf16.mxu0 %v2664
      %3892 = vmatpush2.bf16.msra.mxu0 %v2663
      %3893 = vmatprep.subr.bf16.mxu0 %v2648
      %3894 = vmatpush2.bf16.msra.mxu0 %v2647
      %3895 = vmatprep.mubr.bf16.mxu0 %v334
      %3896 = vmatmul.mubr.bf16.gmra.mxu0 %v333
      %v3897 = vpop.f32.mrf.mxu0
      %v3898 = vadd.f32 %v912, %v3897
      %v3899 = vpop.f32.mrf.mxu0
      %v3900 = vadd.f32 %v916, %v3899
      %v3901 = vpop.f32.mrf.mxu0
      %v3902 = vadd.f32 %v912, %v3901
      %v3903 = vpop.f32.mrf.mxu0
      %v3904 = vadd.f32 %v916, %v3903
      %3905 = vmatprep.mubr.bf16.mxu0 %v338
      %3906 = vmatmul.mubr.bf16.gmra.mxu0 %v337
      %v3907 = vpop.f32.mrf.mxu0
      %v3908 = vadd.f32 %v912, %v3907
      %v3909 = vpop.f32.mrf.mxu0
      %v3910 = vadd.f32 %v916, %v3909
      %v3911 = vpop.f32.mrf.mxu0
      %v3912 = vadd.f32 %v912, %v3911
      %v3913 = vpop.f32.mrf.mxu0
      %v3914 = vadd.f32 %v916, %v3913
      %3915 = vmatprep.mubr.bf16.mxu0 %v342
      %3916 = vmatmul.mubr.bf16.gmra.mxu0 %v341
      %v3917 = vpop.f32.mrf.mxu0
      %v3918 = vadd.f32 %v912, %v3917
      %v3919 = vpop.f32.mrf.mxu0
      %v3920 = vadd.f32 %v916, %v3919
      %v3921 = vpop.f32.mrf.mxu0
      %v3922 = vadd.f32 %v912, %v3921
      %v3923 = vpop.f32.mrf.mxu0
      %v3924 = vadd.f32 %v916, %v3923
      %3925 = vmatprep.mubr.bf16.mxu0 %v346
      %3926 = vmatmul.mubr.bf16.gmra.mxu0 %v345
      %v3927 = vpop.f32.mrf.mxu0
      %v3928 = vadd.f32 %v912, %v3927
      %v3929 = vpop.f32.mrf.mxu0
      %v3930 = vadd.f32 %v916, %v3929
      %v3931 = vpop.f32.mrf.mxu0
      %v3932 = vadd.f32 %v912, %v3931
      %v3933 = vpop.f32.mrf.mxu0
      %v3934 = vadd.f32 %v916, %v3933
      %3935 = vmatprep.mubr.bf16.mxu0 %v350
      %3936 = vmatmul.mubr.bf16.gmra.mxu0 %v349
      %v3937 = vpop.f32.mrf.mxu0
      %v3938 = vadd.f32 %v912, %v3937
      %v3939 = vpop.f32.mrf.mxu0
      %v3940 = vadd.f32 %v916, %v3939
      %v3941 = vpop.f32.mrf.mxu0
      %v3942 = vadd.f32 %v912, %v3941
      %v3943 = vpop.f32.mrf.mxu0
      %v3944 = vadd.f32 %v916, %v3943
      %3945 = vmatprep.mubr.bf16.mxu0 %v354
      %3946 = vmatmul.mubr.bf16.gmra.mxu0 %v353
      %v3947 = vpop.f32.mrf.mxu0
      %v3948 = vadd.f32 %v912, %v3947
      %v3949 = vpop.f32.mrf.mxu0
      %v3950 = vadd.f32 %v916, %v3949
      %v3951 = vpop.f32.mrf.mxu0
      %v3952 = vadd.f32 %v912, %v3951
      %v3953 = vpop.f32.mrf.mxu0
      %v3954 = vadd.f32 %v916, %v3953
      %3955 = vmatprep.mubr.bf16.mxu0 %v358
      %3956 = vmatmul.mubr.bf16.gmra.mxu0 %v357
      %v3957 = vpop.f32.mrf.mxu0
      %v3958 = vadd.f32 %v912, %v3957
      %v3959 = vpop.f32.mrf.mxu0
      %v3960 = vadd.f32 %v916, %v3959
      %v3961 = vpop.f32.mrf.mxu0
      %v3962 = vadd.f32 %v912, %v3961
      %v3963 = vpop.f32.mrf.mxu0
      %v3964 = vadd.f32 %v916, %v3963
      %3965 = vmatprep.mubr.bf16.mxu0 %v362
      %3966 = vmatmul.mubr.bf16.gmra.mxu0 %v361
      %v3967 = vpop.f32.mrf.mxu0
      %v3968 = vadd.f32 %v912, %v3967
      %v3969 = vpop.f32.mrf.mxu0
      %v3970 = vadd.f32 %v916, %v3969
      %v3971 = vpop.f32.mrf.mxu0
      %v3972 = vadd.f32 %v912, %v3971
      %v3973 = vpop.f32.mrf.mxu0
      %v3974 = vadd.f32 %v916, %v3973
      %3975 = vmatprep.mubr.bf16.mxu0 %v366
      %3976 = vmatmul.mubr.bf16.gmra.mxu0 %v365
      %v3977 = vpop.f32.mrf.mxu0
      %v3978 = vadd.f32 %v912, %v3977
      %v3979 = vpop.f32.mrf.mxu0
      %v3980 = vadd.f32 %v916, %v3979
      %v3981 = vpop.f32.mrf.mxu0
      %v3982 = vadd.f32 %v912, %v3981
      %v3983 = vpop.f32.mrf.mxu0
      %v3984 = vadd.f32 %v916, %v3983
      %3985 = vmatprep.mubr.bf16.mxu0 %v370
      %3986 = vmatmul.mubr.bf16.gmra.mxu0 %v369
      %v3987 = vpop.f32.mrf.mxu0
      %v3988 = vadd.f32 %v912, %v3987
      %v3989 = vpop.f32.mrf.mxu0
      %v3990 = vadd.f32 %v916, %v3989
      %v3991 = vpop.f32.mrf.mxu0
      %v3992 = vadd.f32 %v912, %v3991
      %v3993 = vpop.f32.mrf.mxu0
      %v3994 = vadd.f32 %v916, %v3993
      %3995 = vmatprep.mubr.bf16.mxu0 %v374
      %3996 = vmatmul.mubr.bf16.gmra.mxu0 %v373
      %v3997 = vpop.f32.mrf.mxu0
      %v3998 = vadd.f32 %v912, %v3997
      %v3999 = vpop.f32.mrf.mxu0
      %v4000 = vadd.f32 %v916, %v3999
      %v4001 = vpop.f32.mrf.mxu0
      %v4002 = vadd.f32 %v912, %v4001
      %v4003 = vpop.f32.mrf.mxu0
      %v4004 = vadd.f32 %v916, %v4003
      %4005 = vmatprep.mubr.bf16.mxu0 %v378
      %4006 = vmatmul.mubr.bf16.gmra.mxu0 %v377
      %v4007 = vpop.f32.mrf.mxu0
      %v4008 = vadd.f32 %v912, %v4007
      %v4009 = vpop.f32.mrf.mxu0
      %v4010 = vadd.f32 %v916, %v4009
      %v4011 = vpop.f32.mrf.mxu0
      %v4012 = vadd.f32 %v912, %v4011
      %v4013 = vpop.f32.mrf.mxu0
      %v4014 = vadd.f32 %v916, %v4013
      %4015 = vmatprep.mubr.bf16.mxu0 %v382
      %4016 = vmatmul.mubr.bf16.gmra.mxu0 %v381
      %v4017 = vpop.f32.mrf.mxu0
      %v4018 = vadd.f32 %v912, %v4017
      %v4019 = vpop.f32.mrf.mxu0
      %v4020 = vadd.f32 %v916, %v4019
      %v4021 = vpop.f32.mrf.mxu0
      %v4022 = vpop.f32.mrf.mxu0
      %4023 = vdwg.mxu0
      %4024 = vmatprep.subr.bf16.mxu0 %v2888
      %4025 = vmatpush1.bf16.msra.mxu0 %v2887
      %4026 = vmatprep.subr.bf16.mxu0 %v2872
      %4027 = vmatpush1.bf16.msra.mxu0 %v2871
      %4028 = vmatprep.subr.bf16.mxu0 %v2856
      %4029 = vmatpush1.bf16.msra.mxu0 %v2855
      %4030 = vmatprep.subr.bf16.mxu0 %v2840
      %4031 = vmatpush1.bf16.msra.mxu0 %v2839
      %4032 = vmatprep.subr.bf16.mxu0 %v2824
      %4033 = vmatpush1.bf16.msra.mxu0 %v2823
      %4034 = vmatprep.subr.bf16.mxu0 %v2808
      %4035 = vmatpush1.bf16.msra.mxu0 %v2807
      %4036 = vmatprep.subr.bf16.mxu0 %v2792
      %4037 = vmatpush1.bf16.msra.mxu0 %v2791
      %4038 = vmatprep.subr.bf16.mxu0 %v2776
      %4039 = vmatpush1.bf16.msra.mxu0 %v2775
      %4040 = vmatprep.subr.bf16.mxu0 %v3016
      %4041 = vmatpush2.bf16.msra.mxu0 %v3015
      %4042 = vmatprep.subr.bf16.mxu0 %v3000
      %4043 = vmatpush2.bf16.msra.mxu0 %v2999
      %4044 = vmatprep.subr.bf16.mxu0 %v2984
      %4045 = vmatpush2.bf16.msra.mxu0 %v2983
      %4046 = vmatprep.subr.bf16.mxu0 %v2968
      %4047 = vmatpush2.bf16.msra.mxu0 %v2967
      %4048 = vmatprep.subr.bf16.mxu0 %v2952
      %4049 = vmatpush2.bf16.msra.mxu0 %v2951
      %4050 = vmatprep.subr.bf16.mxu0 %v2936
      %4051 = vmatpush2.bf16.msra.mxu0 %v2935
      %4052 = vmatprep.subr.bf16.mxu0 %v2920
      %4053 = vmatpush2.bf16.msra.mxu0 %v2919
      %4054 = vmatprep.subr.bf16.mxu0 %v2904
      %4055 = vmatpush2.bf16.msra.mxu0 %v2903
      %4056 = vmatprep.mubr.bf16.mxu0 %v336
      %4057 = vmatmul.mubr.bf16.gmra.mxu0 %v335
      %v4058 = vpop.f32.mrf.mxu0
      %v4059 = vadd.f32 %v3898, %v4058
      %v4060 = vpop.f32.mrf.mxu0
      %v4061 = vadd.f32 %v3900, %v4060
      %v4062 = vpop.f32.mrf.mxu0
      %v4063 = vadd.f32 %v3902, %v4062
      %v4064 = vpop.f32.mrf.mxu0
      %v4065 = vadd.f32 %v3904, %v4064
      %4066 = vmatprep.mubr.bf16.mxu0 %v340
      %4067 = vmatmul.mubr.bf16.gmra.mxu0 %v339
      %v4068 = vpop.f32.mrf.mxu0
      %v4069 = vadd.f32 %v3908, %v4068
      %v4070 = vpop.f32.mrf.mxu0
      %v4071 = vadd.f32 %v3910, %v4070
      %v4072 = vpop.f32.mrf.mxu0
      %v4073 = vadd.f32 %v3912, %v4072
      %v4074 = vpop.f32.mrf.mxu0
      %v4075 = vadd.f32 %v3914, %v4074
      %4076 = vmatprep.mubr.bf16.mxu0 %v344
      %4077 = vmatmul.mubr.bf16.gmra.mxu0 %v343
      %v4078 = vpop.f32.mrf.mxu0
      %v4079 = vadd.f32 %v3918, %v4078
      %v4080 = vpop.f32.mrf.mxu0
      %v4081 = vadd.f32 %v3920, %v4080
      %v4082 = vpop.f32.mrf.mxu0
      %v4083 = vadd.f32 %v3922, %v4082
      %v4084 = vpop.f32.mrf.mxu0
      %v4085 = vadd.f32 %v3924, %v4084
      %4086 = vmatprep.mubr.bf16.mxu0 %v348
      %4087 = vmatmul.mubr.bf16.gmra.mxu0 %v347
      %v4088 = vpop.f32.mrf.mxu0
      %v4089 = vadd.f32 %v3928, %v4088
      %v4090 = vpop.f32.mrf.mxu0
      %v4091 = vadd.f32 %v3930, %v4090
      %v4092 = vpop.f32.mrf.mxu0
      %v4093 = vadd.f32 %v3932, %v4092
      %v4094 = vpop.f32.mrf.mxu0
      %v4095 = vadd.f32 %v3934, %v4094
      %4096 = vmatprep.mubr.bf16.mxu0 %v352
      %4097 = vmatmul.mubr.bf16.gmra.mxu0 %v351
      %v4098 = vpop.f32.mrf.mxu0
      %v4099 = vadd.f32 %v3938, %v4098
      %v4100 = vpop.f32.mrf.mxu0
      %v4101 = vadd.f32 %v3940, %v4100
      %v4102 = vpop.f32.mrf.mxu0
      %v4103 = vadd.f32 %v3942, %v4102
      %v4104 = vpop.f32.mrf.mxu0
      %v4105 = vadd.f32 %v3944, %v4104
      %4106 = vmatprep.mubr.bf16.mxu0 %v356
      %4107 = vmatmul.mubr.bf16.gmra.mxu0 %v355
      %v4108 = vpop.f32.mrf.mxu0
      %v4109 = vadd.f32 %v3948, %v4108
      %v4110 = vpop.f32.mrf.mxu0
      %v4111 = vadd.f32 %v3950, %v4110
      %v4112 = vpop.f32.mrf.mxu0
      %v4113 = vadd.f32 %v3952, %v4112
      %v4114 = vpop.f32.mrf.mxu0
      %v4115 = vadd.f32 %v3954, %v4114
      %4116 = vmatprep.mubr.bf16.mxu0 %v360
      %4117 = vmatmul.mubr.bf16.gmra.mxu0 %v359
      %v4118 = vpop.f32.mrf.mxu0
      %v4119 = vadd.f32 %v3958, %v4118
      %v4120 = vpop.f32.mrf.mxu0
      %v4121 = vadd.f32 %v3960, %v4120
      %v4122 = vpop.f32.mrf.mxu0
      %v4123 = vadd.f32 %v3962, %v4122
      %v4124 = vpop.f32.mrf.mxu0
      %v4125 = vadd.f32 %v3964, %v4124
      %4126 = vmatprep.mubr.bf16.mxu0 %v364
      %4127 = vmatmul.mubr.bf16.gmra.mxu0 %v363
      %v4128 = vpop.f32.mrf.mxu0
      %v4129 = vadd.f32 %v3968, %v4128
      %v4130 = vpop.f32.mrf.mxu0
      %v4131 = vadd.f32 %v3970, %v4130
      %v4132 = vpop.f32.mrf.mxu0
      %v4133 = vadd.f32 %v3972, %v4132
      %v4134 = vpop.f32.mrf.mxu0
      %v4135 = vadd.f32 %v3974, %v4134
      %4136 = vmatprep.mubr.bf16.mxu0 %v368
      %4137 = vmatmul.mubr.bf16.gmra.mxu0 %v367
      %v4138 = vpop.f32.mrf.mxu0
      %v4139 = vadd.f32 %v3978, %v4138
      %v4140 = vpop.f32.mrf.mxu0
      %v4141 = vadd.f32 %v3980, %v4140
      %v4142 = vpop.f32.mrf.mxu0
      %v4143 = vadd.f32 %v3982, %v4142
      %v4144 = vpop.f32.mrf.mxu0
      %v4145 = vadd.f32 %v3984, %v4144
      %4146 = vmatprep.mubr.bf16.mxu0 %v372
      %4147 = vmatmul.mubr.bf16.gmra.mxu0 %v371
      %v4148 = vpop.f32.mrf.mxu0
      %v4149 = vadd.f32 %v3988, %v4148
      %v4150 = vpop.f32.mrf.mxu0
      %v4151 = vadd.f32 %v3990, %v4150
      %v4152 = vpop.f32.mrf.mxu0
      %v4153 = vadd.f32 %v3992, %v4152
      %v4154 = vpop.f32.mrf.mxu0
      %v4155 = vadd.f32 %v3994, %v4154
      %4156 = vmatprep.mubr.bf16.mxu0 %v376
      %4157 = vmatmul.mubr.bf16.gmra.mxu0 %v375
      %v4158 = vpop.f32.mrf.mxu0
      %v4159 = vadd.f32 %v3998, %v4158
      %v4160 = vpop.f32.mrf.mxu0
      %v4161 = vadd.f32 %v4000, %v4160
      %v4162 = vpop.f32.mrf.mxu0
      %v4163 = vadd.f32 %v4002, %v4162
      %v4164 = vpop.f32.mrf.mxu0
      %v4165 = vadd.f32 %v4004, %v4164
      %4166 = vmatprep.mubr.bf16.mxu0 %v380
      %4167 = vmatmul.mubr.bf16.gmra.mxu0 %v379
      %v4168 = vpop.f32.mrf.mxu0
      %v4169 = vadd.f32 %v4008, %v4168
      %v4170 = vpop.f32.mrf.mxu0
      %v4171 = vadd.f32 %v4010, %v4170
      %v4172 = vpop.f32.mrf.mxu0
      %v4173 = vadd.f32 %v4012, %v4172
      %v4174 = vpop.f32.mrf.mxu0
      %v4175 = vadd.f32 %v4014, %v4174
      %4176 = vmatprep.mubr.bf16.mxu0 %v384
      %4177 = vmatmul.mubr.bf16.gmra.mxu0 %v383
      %v4178 = vpop.f32.mrf.mxu0
      %v4179 = vadd.f32 %v4018, %v4178
      %v4180 = vpop.f32.mrf.mxu0
      %v4181 = vadd.f32 %v4020, %v4180
      %v4182 = vpop.f32.mrf.mxu0
      %v4183 = vpop.f32.mrf.mxu0
      %4184 = vdwg.mxu0
      %4185 = vmatprep.subr.bf16.mxu0 %v2634
      %4186 = vmatpush1.bf16.msra.mxu0 %v2633
      %4187 = vmatprep.subr.bf16.mxu0 %v2618
      %4188 = vmatpush1.bf16.msra.mxu0 %v2617
      %4189 = vmatprep.subr.bf16.mxu0 %v2602
      %4190 = vmatpush1.bf16.msra.mxu0 %v2601
      %4191 = vmatprep.subr.bf16.mxu0 %v2586
      %4192 = vmatpush1.bf16.msra.mxu0 %v2585
      %4193 = vmatprep.subr.bf16.mxu0 %v2570
      %4194 = vmatpush1.bf16.msra.mxu0 %v2569
      %4195 = vmatprep.subr.bf16.mxu0 %v2554
      %4196 = vmatpush1.bf16.msra.mxu0 %v2553
      %4197 = vmatprep.subr.bf16.mxu0 %v2538
      %4198 = vmatpush1.bf16.msra.mxu0 %v2537
      %4199 = vmatprep.subr.bf16.mxu0 %v2522
      %4200 = vmatpush1.bf16.msra.mxu0 %v2521
      %4201 = vmatprep.subr.bf16.mxu0 %v2762
      %4202 = vmatpush2.bf16.msra.mxu0 %v2761
      %4203 = vmatprep.subr.bf16.mxu0 %v2746
      %4204 = vmatpush2.bf16.msra.mxu0 %v2745
      %4205 = vmatprep.subr.bf16.mxu0 %v2730
      %4206 = vmatpush2.bf16.msra.mxu0 %v2729
      %4207 = vmatprep.subr.bf16.mxu0 %v2714
      %4208 = vmatpush2.bf16.msra.mxu0 %v2713
      %4209 = vmatprep.subr.bf16.mxu0 %v2698
      %4210 = vmatpush2.bf16.msra.mxu0 %v2697
      %4211 = vmatprep.subr.bf16.mxu0 %v2682
      %4212 = vmatpush2.bf16.msra.mxu0 %v2681
      %4213 = vmatprep.subr.bf16.mxu0 %v2666
      %4214 = vmatpush2.bf16.msra.mxu0 %v2665
      %4215 = vmatprep.subr.bf16.mxu0 %v2650
      %4216 = vmatpush2.bf16.msra.mxu0 %v2649
      %4217 = vmatprep.mubr.bf16.mxu0 %v334
      %4218 = vmatmul.mubr.bf16.gmra.mxu0 %v333
      %v4219 = vpop.f32.mrf.mxu0
      %v4220 = vadd.f32 %v920, %v4219
      %v4221 = vpop.f32.mrf.mxu0
      %v4222 = vadd.f32 %v924, %v4221
      %v4223 = vpop.f32.mrf.mxu0
      %v4224 = vadd.f32 %v920, %v4223
      %v4225 = vpop.f32.mrf.mxu0
      %v4226 = vadd.f32 %v924, %v4225
      %4227 = vmatprep.mubr.bf16.mxu0 %v338
      %4228 = vmatmul.mubr.bf16.gmra.mxu0 %v337
      %v4229 = vpop.f32.mrf.mxu0
      %v4230 = vadd.f32 %v920, %v4229
      %v4231 = vpop.f32.mrf.mxu0
      %v4232 = vadd.f32 %v924, %v4231
      %v4233 = vpop.f32.mrf.mxu0
      %v4234 = vadd.f32 %v920, %v4233
      %v4235 = vpop.f32.mrf.mxu0
      %v4236 = vadd.f32 %v924, %v4235
      %4237 = vmatprep.mubr.bf16.mxu0 %v342
      %4238 = vmatmul.mubr.bf16.gmra.mxu0 %v341
      %v4239 = vpop.f32.mrf.mxu0
      %v4240 = vadd.f32 %v920, %v4239
      %v4241 = vpop.f32.mrf.mxu0
      %v4242 = vadd.f32 %v924, %v4241
      %v4243 = vpop.f32.mrf.mxu0
      %v4244 = vadd.f32 %v920, %v4243
      %v4245 = vpop.f32.mrf.mxu0
      %v4246 = vadd.f32 %v924, %v4245
      %4247 = vmatprep.mubr.bf16.mxu0 %v346
      %4248 = vmatmul.mubr.bf16.gmra.mxu0 %v345
      %v4249 = vpop.f32.mrf.mxu0
      %v4250 = vadd.f32 %v920, %v4249
      %v4251 = vpop.f32.mrf.mxu0
      %v4252 = vadd.f32 %v924, %v4251
      %v4253 = vpop.f32.mrf.mxu0
      %v4254 = vadd.f32 %v920, %v4253
      %v4255 = vpop.f32.mrf.mxu0
      %v4256 = vadd.f32 %v924, %v4255
      %4257 = vmatprep.mubr.bf16.mxu0 %v350
      %4258 = vmatmul.mubr.bf16.gmra.mxu0 %v349
      %v4259 = vpop.f32.mrf.mxu0
      %v4260 = vadd.f32 %v920, %v4259
      %v4261 = vpop.f32.mrf.mxu0
      %v4262 = vadd.f32 %v924, %v4261
      %v4263 = vpop.f32.mrf.mxu0
      %v4264 = vadd.f32 %v920, %v4263
      %v4265 = vpop.f32.mrf.mxu0
      %v4266 = vadd.f32 %v924, %v4265
      %4267 = vmatprep.mubr.bf16.mxu0 %v354
      %4268 = vmatmul.mubr.bf16.gmra.mxu0 %v353
      %v4269 = vpop.f32.mrf.mxu0
      %v4270 = vadd.f32 %v920, %v4269
      %v4271 = vpop.f32.mrf.mxu0
      %v4272 = vadd.f32 %v924, %v4271
      %v4273 = vpop.f32.mrf.mxu0
      %v4274 = vadd.f32 %v920, %v4273
      %v4275 = vpop.f32.mrf.mxu0
      %v4276 = vadd.f32 %v924, %v4275
      %4277 = vmatprep.mubr.bf16.mxu0 %v358
      %4278 = vmatmul.mubr.bf16.gmra.mxu0 %v357
      %v4279 = vpop.f32.mrf.mxu0
      %v4280 = vadd.f32 %v920, %v4279
      %v4281 = vpop.f32.mrf.mxu0
      %v4282 = vadd.f32 %v924, %v4281
      %v4283 = vpop.f32.mrf.mxu0
      %v4284 = vadd.f32 %v920, %v4283
      %v4285 = vpop.f32.mrf.mxu0
      %v4286 = vadd.f32 %v924, %v4285
      %4287 = vmatprep.mubr.bf16.mxu0 %v362
      %4288 = vmatmul.mubr.bf16.gmra.mxu0 %v361
      %v4289 = vpop.f32.mrf.mxu0
      %v4290 = vadd.f32 %v920, %v4289
      %v4291 = vpop.f32.mrf.mxu0
      %v4292 = vadd.f32 %v924, %v4291
      %v4293 = vpop.f32.mrf.mxu0
      %v4294 = vadd.f32 %v920, %v4293
      %v4295 = vpop.f32.mrf.mxu0
      %v4296 = vadd.f32 %v924, %v4295
      %4297 = vmatprep.mubr.bf16.mxu0 %v366
      %4298 = vmatmul.mubr.bf16.gmra.mxu0 %v365
      %v4299 = vpop.f32.mrf.mxu0
      %v4300 = vadd.f32 %v920, %v4299
      %v4301 = vpop.f32.mrf.mxu0
      %v4302 = vadd.f32 %v924, %v4301
      %v4303 = vpop.f32.mrf.mxu0
      %v4304 = vadd.f32 %v920, %v4303
      %v4305 = vpop.f32.mrf.mxu0
      %v4306 = vadd.f32 %v924, %v4305
      %4307 = vmatprep.mubr.bf16.mxu0 %v370
      %4308 = vmatmul.mubr.bf16.gmra.mxu0 %v369
      %v4309 = vpop.f32.mrf.mxu0
      %v4310 = vadd.f32 %v920, %v4309
      %v4311 = vpop.f32.mrf.mxu0
      %v4312 = vadd.f32 %v924, %v4311
      %v4313 = vpop.f32.mrf.mxu0
      %v4314 = vadd.f32 %v920, %v4313
      %v4315 = vpop.f32.mrf.mxu0
      %v4316 = vadd.f32 %v924, %v4315
      %4317 = vmatprep.mubr.bf16.mxu0 %v374
      %4318 = vmatmul.mubr.bf16.gmra.mxu0 %v373
      %v4319 = vpop.f32.mrf.mxu0
      %v4320 = vadd.f32 %v920, %v4319
      %v4321 = vpop.f32.mrf.mxu0
      %v4322 = vadd.f32 %v924, %v4321
      %v4323 = vpop.f32.mrf.mxu0
      %v4324 = vadd.f32 %v920, %v4323
      %v4325 = vpop.f32.mrf.mxu0
      %v4326 = vadd.f32 %v924, %v4325
      %4327 = vmatprep.mubr.bf16.mxu0 %v378
      %4328 = vmatmul.mubr.bf16.gmra.mxu0 %v377
      %v4329 = vpop.f32.mrf.mxu0
      %v4330 = vadd.f32 %v920, %v4329
      %v4331 = vpop.f32.mrf.mxu0
      %v4332 = vadd.f32 %v924, %v4331
      %v4333 = vpop.f32.mrf.mxu0
      %v4334 = vadd.f32 %v920, %v4333
      %v4335 = vpop.f32.mrf.mxu0
      %v4336 = vadd.f32 %v924, %v4335
      %4337 = vmatprep.mubr.bf16.mxu0 %v382
      %4338 = vmatmul.mubr.bf16.gmra.mxu0 %v381
      %v4339 = vpop.f32.mrf.mxu0
      %v4340 = vadd.f32 %v920, %v4339
      %v4341 = vpop.f32.mrf.mxu0
      %v4342 = vadd.f32 %v924, %v4341
      %v4343 = vpop.f32.mrf.mxu0
      %v4344 = vpop.f32.mrf.mxu0
      %4345 = vdwg.mxu0
      %4346 = vmatprep.subr.bf16.mxu0 %v2890
      %4347 = vmatpush1.bf16.msra.mxu0 %v2889
      %4348 = vmatprep.subr.bf16.mxu0 %v2874
      %4349 = vmatpush1.bf16.msra.mxu0 %v2873
      %4350 = vmatprep.subr.bf16.mxu0 %v2858
      %4351 = vmatpush1.bf16.msra.mxu0 %v2857
      %4352 = vmatprep.subr.bf16.mxu0 %v2842
      %4353 = vmatpush1.bf16.msra.mxu0 %v2841
      %4354 = vmatprep.subr.bf16.mxu0 %v2826
      %4355 = vmatpush1.bf16.msra.mxu0 %v2825
      %4356 = vmatprep.subr.bf16.mxu0 %v2810
      %4357 = vmatpush1.bf16.msra.mxu0 %v2809
      %4358 = vmatprep.subr.bf16.mxu0 %v2794
      %4359 = vmatpush1.bf16.msra.mxu0 %v2793
      %4360 = vmatprep.subr.bf16.mxu0 %v2778
      %4361 = vmatpush1.bf16.msra.mxu0 %v2777
      %4362 = vmatprep.subr.bf16.mxu0 %v3018
      %4363 = vmatpush2.bf16.msra.mxu0 %v3017
      %4364 = vmatprep.subr.bf16.mxu0 %v3002
      %4365 = vmatpush2.bf16.msra.mxu0 %v3001
      %4366 = vmatprep.subr.bf16.mxu0 %v2986
      %4367 = vmatpush2.bf16.msra.mxu0 %v2985
      %4368 = vmatprep.subr.bf16.mxu0 %v2970
      %4369 = vmatpush2.bf16.msra.mxu0 %v2969
      %4370 = vmatprep.subr.bf16.mxu0 %v2954
      %4371 = vmatpush2.bf16.msra.mxu0 %v2953
      %4372 = vmatprep.subr.bf16.mxu0 %v2938
      %4373 = vmatpush2.bf16.msra.mxu0 %v2937
      %4374 = vmatprep.subr.bf16.mxu0 %v2922
      %4375 = vmatpush2.bf16.msra.mxu0 %v2921
      %4376 = vmatprep.subr.bf16.mxu0 %v2906
      %4377 = vmatpush2.bf16.msra.mxu0 %v2905
      %4378 = vmatprep.mubr.bf16.mxu0 %v336
      %4379 = vmatmul.mubr.bf16.gmra.mxu0 %v335
      %v4380 = vpop.f32.mrf.mxu0
      %v4381 = vadd.f32 %v4220, %v4380
      %v4382 = vpop.f32.mrf.mxu0
      %v4383 = vadd.f32 %v4222, %v4382
      %v4384 = vpop.f32.mrf.mxu0
      %v4385 = vadd.f32 %v4224, %v4384
      %v4386 = vpop.f32.mrf.mxu0
      %v4387 = vadd.f32 %v4226, %v4386
      %4388 = vmatprep.mubr.bf16.mxu0 %v340
      %4389 = vmatmul.mubr.bf16.gmra.mxu0 %v339
      %v4390 = vpop.f32.mrf.mxu0
      %v4391 = vadd.f32 %v4230, %v4390
      %v4392 = vpop.f32.mrf.mxu0
      %v4393 = vadd.f32 %v4232, %v4392
      %v4394 = vpop.f32.mrf.mxu0
      %v4395 = vadd.f32 %v4234, %v4394
      %v4396 = vpop.f32.mrf.mxu0
      %v4397 = vadd.f32 %v4236, %v4396
      %4398 = vmatprep.mubr.bf16.mxu0 %v344
      %4399 = vmatmul.mubr.bf16.gmra.mxu0 %v343
      %v4400 = vpop.f32.mrf.mxu0
      %v4401 = vadd.f32 %v4240, %v4400
      %v4402 = vpop.f32.mrf.mxu0
      %v4403 = vadd.f32 %v4242, %v4402
      %v4404 = vpop.f32.mrf.mxu0
      %v4405 = vadd.f32 %v4244, %v4404
      %v4406 = vpop.f32.mrf.mxu0
      %v4407 = vadd.f32 %v4246, %v4406
      %4408 = vmatprep.mubr.bf16.mxu0 %v348
      %4409 = vmatmul.mubr.bf16.gmra.mxu0 %v347
      %v4410 = vpop.f32.mrf.mxu0
      %v4411 = vadd.f32 %v4250, %v4410
      %v4412 = vpop.f32.mrf.mxu0
      %v4413 = vadd.f32 %v4252, %v4412
      %v4414 = vpop.f32.mrf.mxu0
      %v4415 = vadd.f32 %v4254, %v4414
      %v4416 = vpop.f32.mrf.mxu0
      %v4417 = vadd.f32 %v4256, %v4416
      %4418 = vmatprep.mubr.bf16.mxu0 %v352
      %4419 = vmatmul.mubr.bf16.gmra.mxu0 %v351
      %v4420 = vpop.f32.mrf.mxu0
      %v4421 = vadd.f32 %v4260, %v4420
      %v4422 = vpop.f32.mrf.mxu0
      %v4423 = vadd.f32 %v4262, %v4422
      %v4424 = vpop.f32.mrf.mxu0
      %v4425 = vadd.f32 %v4264, %v4424
      %v4426 = vpop.f32.mrf.mxu0
      %v4427 = vadd.f32 %v4266, %v4426
      %4428 = vmatprep.mubr.bf16.mxu0 %v356
      %4429 = vmatmul.mubr.bf16.gmra.mxu0 %v355
      %v4430 = vpop.f32.mrf.mxu0
      %v4431 = vadd.f32 %v4270, %v4430
      %v4432 = vpop.f32.mrf.mxu0
      %v4433 = vadd.f32 %v4272, %v4432
      %v4434 = vpop.f32.mrf.mxu0
      %v4435 = vadd.f32 %v4274, %v4434
      %v4436 = vpop.f32.mrf.mxu0
      %v4437 = vadd.f32 %v4276, %v4436
      %4438 = vmatprep.mubr.bf16.mxu0 %v360
      %4439 = vmatmul.mubr.bf16.gmra.mxu0 %v359
      %v4440 = vpop.f32.mrf.mxu0
      %v4441 = vadd.f32 %v4280, %v4440
      %v4442 = vpop.f32.mrf.mxu0
      %v4443 = vadd.f32 %v4282, %v4442
      %v4444 = vpop.f32.mrf.mxu0
      %v4445 = vadd.f32 %v4284, %v4444
      %v4446 = vpop.f32.mrf.mxu0
      %v4447 = vadd.f32 %v4286, %v4446
      %4448 = vmatprep.mubr.bf16.mxu0 %v364
      %4449 = vmatmul.mubr.bf16.gmra.mxu0 %v363
      %v4450 = vpop.f32.mrf.mxu0
      %v4451 = vadd.f32 %v4290, %v4450
      %v4452 = vpop.f32.mrf.mxu0
      %v4453 = vadd.f32 %v4292, %v4452
      %v4454 = vpop.f32.mrf.mxu0
      %v4455 = vadd.f32 %v4294, %v4454
      %v4456 = vpop.f32.mrf.mxu0
      %v4457 = vadd.f32 %v4296, %v4456
      %4458 = vmatprep.mubr.bf16.mxu0 %v368
      %4459 = vmatmul.mubr.bf16.gmra.mxu0 %v367
      %v4460 = vpop.f32.mrf.mxu0
      %v4461 = vadd.f32 %v4300, %v4460
      %v4462 = vpop.f32.mrf.mxu0
      %v4463 = vadd.f32 %v4302, %v4462
      %v4464 = vpop.f32.mrf.mxu0
      %v4465 = vadd.f32 %v4304, %v4464
      %v4466 = vpop.f32.mrf.mxu0
      %v4467 = vadd.f32 %v4306, %v4466
      %4468 = vmatprep.mubr.bf16.mxu0 %v372
      %4469 = vmatmul.mubr.bf16.gmra.mxu0 %v371
      %v4470 = vpop.f32.mrf.mxu0
      %v4471 = vadd.f32 %v4310, %v4470
      %v4472 = vpop.f32.mrf.mxu0
      %v4473 = vadd.f32 %v4312, %v4472
      %v4474 = vpop.f32.mrf.mxu0
      %v4475 = vadd.f32 %v4314, %v4474
      %v4476 = vpop.f32.mrf.mxu0
      %v4477 = vadd.f32 %v4316, %v4476
      %4478 = vmatprep.mubr.bf16.mxu0 %v376
      %4479 = vmatmul.mubr.bf16.gmra.mxu0 %v375
      %v4480 = vpop.f32.mrf.mxu0
      %v4481 = vadd.f32 %v4320, %v4480
      %v4482 = vpop.f32.mrf.mxu0
      %v4483 = vadd.f32 %v4322, %v4482
      %v4484 = vpop.f32.mrf.mxu0
      %v4485 = vadd.f32 %v4324, %v4484
      %v4486 = vpop.f32.mrf.mxu0
      %v4487 = vadd.f32 %v4326, %v4486
      %4488 = vmatprep.mubr.bf16.mxu0 %v380
      %4489 = vmatmul.mubr.bf16.gmra.mxu0 %v379
      %v4490 = vpop.f32.mrf.mxu0
      %v4491 = vadd.f32 %v4330, %v4490
      %v4492 = vpop.f32.mrf.mxu0
      %v4493 = vadd.f32 %v4332, %v4492
      %v4494 = vpop.f32.mrf.mxu0
      %v4495 = vadd.f32 %v4334, %v4494
      %v4496 = vpop.f32.mrf.mxu0
      %v4497 = vadd.f32 %v4336, %v4496
      %4498 = vmatprep.mubr.bf16.mxu0 %v384
      %4499 = vmatmul.mubr.bf16.gmra.mxu0 %v383
      %v4500 = vpop.f32.mrf.mxu0
      %v4501 = vadd.f32 %v4340, %v4500
      %v4502 = vpop.f32.mrf.mxu0
      %v4503 = vadd.f32 %v4342, %v4502
      %v4504 = vpop.f32.mrf.mxu0
      %v4505 = vpop.f32.mrf.mxu0
      %4506 = vdwg.mxu0
      %4507 = vmatprep.subr.bf16.mxu0 %v2636
      %4508 = vmatpush1.bf16.msra.mxu0 %v2635
      %4509 = vmatprep.subr.bf16.mxu0 %v2620
      %4510 = vmatpush1.bf16.msra.mxu0 %v2619
      %4511 = vmatprep.subr.bf16.mxu0 %v2604
      %4512 = vmatpush1.bf16.msra.mxu0 %v2603
      %4513 = vmatprep.subr.bf16.mxu0 %v2588
      %4514 = vmatpush1.bf16.msra.mxu0 %v2587
      %4515 = vmatprep.subr.bf16.mxu0 %v2572
      %4516 = vmatpush1.bf16.msra.mxu0 %v2571
      %4517 = vmatprep.subr.bf16.mxu0 %v2556
      %4518 = vmatpush1.bf16.msra.mxu0 %v2555
      %4519 = vmatprep.subr.bf16.mxu0 %v2540
      %4520 = vmatpush1.bf16.msra.mxu0 %v2539
      %4521 = vmatprep.subr.bf16.mxu0 %v2524
      %4522 = vmatpush1.bf16.msra.mxu0 %v2523
      %4523 = vmatprep.subr.bf16.mxu0 %v2764
      %4524 = vmatpush2.bf16.msra.mxu0 %v2763
      %4525 = vmatprep.subr.bf16.mxu0 %v2748
      %4526 = vmatpush2.bf16.msra.mxu0 %v2747
      %4527 = vmatprep.subr.bf16.mxu0 %v2732
      %4528 = vmatpush2.bf16.msra.mxu0 %v2731
      %4529 = vmatprep.subr.bf16.mxu0 %v2716
      %4530 = vmatpush2.bf16.msra.mxu0 %v2715
      %4531 = vmatprep.subr.bf16.mxu0 %v2700
      %4532 = vmatpush2.bf16.msra.mxu0 %v2699
      %4533 = vmatprep.subr.bf16.mxu0 %v2684
      %4534 = vmatpush2.bf16.msra.mxu0 %v2683
      %4535 = vmatprep.subr.bf16.mxu0 %v2668
      %4536 = vmatpush2.bf16.msra.mxu0 %v2667
      %4537 = vmatprep.subr.bf16.mxu0 %v2652
      %4538 = vmatpush2.bf16.msra.mxu0 %v2651
      %4539 = vmatprep.mubr.bf16.mxu0 %v334
      %4540 = vmatmul.mubr.bf16.gmra.mxu0 %v333
      %v4541 = vpop.f32.mrf.mxu0
      %v4542 = vadd.f32 %v928, %v4541
      %v4543 = vpop.f32.mrf.mxu0
      %v4544 = vadd.f32 %v932, %v4543
      %v4545 = vpop.f32.mrf.mxu0
      %v4546 = vadd.f32 %v928, %v4545
      %v4547 = vpop.f32.mrf.mxu0
      %v4548 = vadd.f32 %v932, %v4547
      %4549 = vmatprep.mubr.bf16.mxu0 %v338
      %4550 = vmatmul.mubr.bf16.gmra.mxu0 %v337
      %v4551 = vpop.f32.mrf.mxu0
      %v4552 = vadd.f32 %v928, %v4551
      %v4553 = vpop.f32.mrf.mxu0
      %v4554 = vadd.f32 %v932, %v4553
      %v4555 = vpop.f32.mrf.mxu0
      %v4556 = vadd.f32 %v928, %v4555
      %v4557 = vpop.f32.mrf.mxu0
      %v4558 = vadd.f32 %v932, %v4557
      %4559 = vmatprep.mubr.bf16.mxu0 %v342
      %4560 = vmatmul.mubr.bf16.gmra.mxu0 %v341
      %v4561 = vpop.f32.mrf.mxu0
      %v4562 = vadd.f32 %v928, %v4561
      %v4563 = vpop.f32.mrf.mxu0
      %v4564 = vadd.f32 %v932, %v4563
      %v4565 = vpop.f32.mrf.mxu0
      %v4566 = vadd.f32 %v928, %v4565
      %v4567 = vpop.f32.mrf.mxu0
      %v4568 = vadd.f32 %v932, %v4567
      %4569 = vmatprep.mubr.bf16.mxu0 %v346
      %4570 = vmatmul.mubr.bf16.gmra.mxu0 %v345
      %v4571 = vpop.f32.mrf.mxu0
      %v4572 = vadd.f32 %v928, %v4571
      %v4573 = vpop.f32.mrf.mxu0
      %v4574 = vadd.f32 %v932, %v4573
      %v4575 = vpop.f32.mrf.mxu0
      %v4576 = vadd.f32 %v928, %v4575
      %v4577 = vpop.f32.mrf.mxu0
      %v4578 = vadd.f32 %v932, %v4577
      %4579 = vmatprep.mubr.bf16.mxu0 %v350
      %4580 = vmatmul.mubr.bf16.gmra.mxu0 %v349
      %v4581 = vpop.f32.mrf.mxu0
      %v4582 = vadd.f32 %v928, %v4581
      %v4583 = vpop.f32.mrf.mxu0
      %v4584 = vadd.f32 %v932, %v4583
      %v4585 = vpop.f32.mrf.mxu0
      %v4586 = vadd.f32 %v928, %v4585
      %v4587 = vpop.f32.mrf.mxu0
      %v4588 = vadd.f32 %v932, %v4587
      %4589 = vmatprep.mubr.bf16.mxu0 %v354
      %4590 = vmatmul.mubr.bf16.gmra.mxu0 %v353
      %v4591 = vpop.f32.mrf.mxu0
      %v4592 = vadd.f32 %v928, %v4591
      %v4593 = vpop.f32.mrf.mxu0
      %v4594 = vadd.f32 %v932, %v4593
      %v4595 = vpop.f32.mrf.mxu0
      %v4596 = vadd.f32 %v928, %v4595
      %v4597 = vpop.f32.mrf.mxu0
      %v4598 = vadd.f32 %v932, %v4597
      %4599 = vmatprep.mubr.bf16.mxu0 %v358
      %4600 = vmatmul.mubr.bf16.gmra.mxu0 %v357
      %v4601 = vpop.f32.mrf.mxu0
      %v4602 = vadd.f32 %v928, %v4601
      %v4603 = vpop.f32.mrf.mxu0
      %v4604 = vadd.f32 %v932, %v4603
      %v4605 = vpop.f32.mrf.mxu0
      %v4606 = vadd.f32 %v928, %v4605
      %v4607 = vpop.f32.mrf.mxu0
      %v4608 = vadd.f32 %v932, %v4607
      %4609 = vmatprep.mubr.bf16.mxu0 %v362
      %4610 = vmatmul.mubr.bf16.gmra.mxu0 %v361
      %v4611 = vpop.f32.mrf.mxu0
      %v4612 = vadd.f32 %v928, %v4611
      %v4613 = vpop.f32.mrf.mxu0
      %v4614 = vadd.f32 %v932, %v4613
      %v4615 = vpop.f32.mrf.mxu0
      %v4616 = vadd.f32 %v928, %v4615
      %v4617 = vpop.f32.mrf.mxu0
      %v4618 = vadd.f32 %v932, %v4617
      %4619 = vmatprep.mubr.bf16.mxu0 %v366
      %4620 = vmatmul.mubr.bf16.gmra.mxu0 %v365
      %v4621 = vpop.f32.mrf.mxu0
      %v4622 = vadd.f32 %v928, %v4621
      %v4623 = vpop.f32.mrf.mxu0
      %v4624 = vadd.f32 %v932, %v4623
      %v4625 = vpop.f32.mrf.mxu0
      %v4626 = vadd.f32 %v928, %v4625
      %v4627 = vpop.f32.mrf.mxu0
      %v4628 = vadd.f32 %v932, %v4627
      %4629 = vmatprep.mubr.bf16.mxu0 %v370
      %4630 = vmatmul.mubr.bf16.gmra.mxu0 %v369
      %v4631 = vpop.f32.mrf.mxu0
      %v4632 = vadd.f32 %v928, %v4631
      %v4633 = vpop.f32.mrf.mxu0
      %v4634 = vadd.f32 %v932, %v4633
      %v4635 = vpop.f32.mrf.mxu0
      %v4636 = vadd.f32 %v928, %v4635
      %v4637 = vpop.f32.mrf.mxu0
      %v4638 = vadd.f32 %v932, %v4637
      %4639 = vmatprep.mubr.bf16.mxu0 %v374
      %4640 = vmatmul.mubr.bf16.gmra.mxu0 %v373
      %v4641 = vpop.f32.mrf.mxu0
      %v4642 = vadd.f32 %v928, %v4641
      %v4643 = vpop.f32.mrf.mxu0
      %v4644 = vadd.f32 %v932, %v4643
      %v4645 = vpop.f32.mrf.mxu0
      %v4646 = vadd.f32 %v928, %v4645
      %v4647 = vpop.f32.mrf.mxu0
      %v4648 = vadd.f32 %v932, %v4647
      %4649 = vmatprep.mubr.bf16.mxu0 %v378
      %4650 = vmatmul.mubr.bf16.gmra.mxu0 %v377
      %v4651 = vpop.f32.mrf.mxu0
      %v4652 = vadd.f32 %v928, %v4651
      %v4653 = vpop.f32.mrf.mxu0
      %v4654 = vadd.f32 %v932, %v4653
      %v4655 = vpop.f32.mrf.mxu0
      %v4656 = vadd.f32 %v928, %v4655
      %v4657 = vpop.f32.mrf.mxu0
      %v4658 = vadd.f32 %v932, %v4657
      %4659 = vmatprep.mubr.bf16.mxu0 %v382
      %4660 = vmatmul.mubr.bf16.gmra.mxu0 %v381
      %v4661 = vpop.f32.mrf.mxu0
      %v4662 = vadd.f32 %v928, %v4661
      %v4663 = vpop.f32.mrf.mxu0
      %v4664 = vadd.f32 %v932, %v4663
      %v4665 = vpop.f32.mrf.mxu0
      %v4666 = vpop.f32.mrf.mxu0
      %4667 = vdwg.mxu0
      %4668 = vmatprep.subr.bf16.mxu0 %v2892
      %4669 = vmatpush1.bf16.msra.mxu0 %v2891
      %4670 = vmatprep.subr.bf16.mxu0 %v2876
      %4671 = vmatpush1.bf16.msra.mxu0 %v2875
      %4672 = vmatprep.subr.bf16.mxu0 %v2860
      %4673 = vmatpush1.bf16.msra.mxu0 %v2859
      %4674 = vmatprep.subr.bf16.mxu0 %v2844
      %4675 = vmatpush1.bf16.msra.mxu0 %v2843
      %4676 = vmatprep.subr.bf16.mxu0 %v2828
      %4677 = vmatpush1.bf16.msra.mxu0 %v2827
      %4678 = vmatprep.subr.bf16.mxu0 %v2812
      %4679 = vmatpush1.bf16.msra.mxu0 %v2811
      %4680 = vmatprep.subr.bf16.mxu0 %v2796
      %4681 = vmatpush1.bf16.msra.mxu0 %v2795
      %4682 = vmatprep.subr.bf16.mxu0 %v2780
      %4683 = vmatpush1.bf16.msra.mxu0 %v2779
      %4684 = vmatprep.subr.bf16.mxu0 %v3020
      %4685 = vmatpush2.bf16.msra.mxu0 %v3019
      %4686 = vmatprep.subr.bf16.mxu0 %v3004
      %4687 = vmatpush2.bf16.msra.mxu0 %v3003
      %4688 = vmatprep.subr.bf16.mxu0 %v2988
      %4689 = vmatpush2.bf16.msra.mxu0 %v2987
      %4690 = vmatprep.subr.bf16.mxu0 %v2972
      %4691 = vmatpush2.bf16.msra.mxu0 %v2971
      %4692 = vmatprep.subr.bf16.mxu0 %v2956
      %4693 = vmatpush2.bf16.msra.mxu0 %v2955
      %4694 = vmatprep.subr.bf16.mxu0 %v2940
      %4695 = vmatpush2.bf16.msra.mxu0 %v2939
      %4696 = vmatprep.subr.bf16.mxu0 %v2924
      %4697 = vmatpush2.bf16.msra.mxu0 %v2923
      %4698 = vmatprep.subr.bf16.mxu0 %v2908
      %4699 = vmatpush2.bf16.msra.mxu0 %v2907
      %4700 = vmatprep.mubr.bf16.mxu0 %v336
      %4701 = vmatmul.mubr.bf16.gmra.mxu0 %v335
      %v4702 = vpop.f32.mrf.mxu0
      %v4703 = vadd.f32 %v4542, %v4702
      %v4704 = vpop.f32.mrf.mxu0
      %v4705 = vadd.f32 %v4544, %v4704
      %v4706 = vpop.f32.mrf.mxu0
      %v4707 = vadd.f32 %v4546, %v4706
      %v4708 = vpop.f32.mrf.mxu0
      %v4709 = vadd.f32 %v4548, %v4708
      %4710 = vmatprep.mubr.bf16.mxu0 %v340
      %4711 = vmatmul.mubr.bf16.gmra.mxu0 %v339
      %v4712 = vpop.f32.mrf.mxu0
      %v4713 = vadd.f32 %v4552, %v4712
      %v4714 = vpop.f32.mrf.mxu0
      %v4715 = vadd.f32 %v4554, %v4714
      %v4716 = vpop.f32.mrf.mxu0
      %v4717 = vadd.f32 %v4556, %v4716
      %v4718 = vpop.f32.mrf.mxu0
      %v4719 = vadd.f32 %v4558, %v4718
      %4720 = vmatprep.mubr.bf16.mxu0 %v344
      %4721 = vmatmul.mubr.bf16.gmra.mxu0 %v343
      %v4722 = vpop.f32.mrf.mxu0
      %v4723 = vadd.f32 %v4562, %v4722
      %v4724 = vpop.f32.mrf.mxu0
      %v4725 = vadd.f32 %v4564, %v4724
      %v4726 = vpop.f32.mrf.mxu0
      %v4727 = vadd.f32 %v4566, %v4726
      %v4728 = vpop.f32.mrf.mxu0
      %v4729 = vadd.f32 %v4568, %v4728
      %4730 = vmatprep.mubr.bf16.mxu0 %v348
      %4731 = vmatmul.mubr.bf16.gmra.mxu0 %v347
      %v4732 = vpop.f32.mrf.mxu0
      %v4733 = vadd.f32 %v4572, %v4732
      %v4734 = vpop.f32.mrf.mxu0
      %v4735 = vadd.f32 %v4574, %v4734
      %v4736 = vpop.f32.mrf.mxu0
      %v4737 = vadd.f32 %v4576, %v4736
      %v4738 = vpop.f32.mrf.mxu0
      %v4739 = vadd.f32 %v4578, %v4738
      %4740 = vmatprep.mubr.bf16.mxu0 %v352
      %4741 = vmatmul.mubr.bf16.gmra.mxu0 %v351
      %v4742 = vpop.f32.mrf.mxu0
      %v4743 = vadd.f32 %v4582, %v4742
      %v4744 = vpop.f32.mrf.mxu0
      %v4745 = vadd.f32 %v4584, %v4744
      %v4746 = vpop.f32.mrf.mxu0
      %v4747 = vadd.f32 %v4586, %v4746
      %v4748 = vpop.f32.mrf.mxu0
      %v4749 = vadd.f32 %v4588, %v4748
      %4750 = vmatprep.mubr.bf16.mxu0 %v356
      %4751 = vmatmul.mubr.bf16.gmra.mxu0 %v355
      %v4752 = vpop.f32.mrf.mxu0
      %v4753 = vadd.f32 %v4592, %v4752
      %v4754 = vpop.f32.mrf.mxu0
      %v4755 = vadd.f32 %v4594, %v4754
      %v4756 = vpop.f32.mrf.mxu0
      %v4757 = vadd.f32 %v4596, %v4756
      %v4758 = vpop.f32.mrf.mxu0
      %v4759 = vadd.f32 %v4598, %v4758
      %4760 = vmatprep.mubr.bf16.mxu0 %v360
      %4761 = vmatmul.mubr.bf16.gmra.mxu0 %v359
      %v4762 = vpop.f32.mrf.mxu0
      %v4763 = vadd.f32 %v4602, %v4762
      %v4764 = vpop.f32.mrf.mxu0
      %v4765 = vadd.f32 %v4604, %v4764
      %v4766 = vpop.f32.mrf.mxu0
      %v4767 = vadd.f32 %v4606, %v4766
      %v4768 = vpop.f32.mrf.mxu0
      %v4769 = vadd.f32 %v4608, %v4768
      %4770 = vmatprep.mubr.bf16.mxu0 %v364
      %4771 = vmatmul.mubr.bf16.gmra.mxu0 %v363
      %v4772 = vpop.f32.mrf.mxu0
      %v4773 = vadd.f32 %v4612, %v4772
      %v4774 = vpop.f32.mrf.mxu0
      %v4775 = vadd.f32 %v4614, %v4774
      %v4776 = vpop.f32.mrf.mxu0
      %v4777 = vadd.f32 %v4616, %v4776
      %v4778 = vpop.f32.mrf.mxu0
      %v4779 = vadd.f32 %v4618, %v4778
      %4780 = vmatprep.mubr.bf16.mxu0 %v368
      %4781 = vmatmul.mubr.bf16.gmra.mxu0 %v367
      %v4782 = vpop.f32.mrf.mxu0
      %v4783 = vadd.f32 %v4622, %v4782
      %v4784 = vpop.f32.mrf.mxu0
      %v4785 = vadd.f32 %v4624, %v4784
      %v4786 = vpop.f32.mrf.mxu0
      %v4787 = vadd.f32 %v4626, %v4786
      %v4788 = vpop.f32.mrf.mxu0
      %v4789 = vadd.f32 %v4628, %v4788
      %4790 = vmatprep.mubr.bf16.mxu0 %v372
      %4791 = vmatmul.mubr.bf16.gmra.mxu0 %v371
      %v4792 = vpop.f32.mrf.mxu0
      %v4793 = vadd.f32 %v4632, %v4792
      %v4794 = vpop.f32.mrf.mxu0
      %v4795 = vadd.f32 %v4634, %v4794
      %v4796 = vpop.f32.mrf.mxu0
      %v4797 = vadd.f32 %v4636, %v4796
      %v4798 = vpop.f32.mrf.mxu0
      %v4799 = vadd.f32 %v4638, %v4798
      %4800 = vmatprep.mubr.bf16.mxu0 %v376
      %4801 = vmatmul.mubr.bf16.gmra.mxu0 %v375
      %v4802 = vpop.f32.mrf.mxu0
      %v4803 = vadd.f32 %v4642, %v4802
      %v4804 = vpop.f32.mrf.mxu0
      %v4805 = vadd.f32 %v4644, %v4804
      %v4806 = vpop.f32.mrf.mxu0
      %v4807 = vadd.f32 %v4646, %v4806
      %v4808 = vpop.f32.mrf.mxu0
      %v4809 = vadd.f32 %v4648, %v4808
      %4810 = vmatprep.mubr.bf16.mxu0 %v380
      %4811 = vmatmul.mubr.bf16.gmra.mxu0 %v379
      %v4812 = vpop.f32.mrf.mxu0
      %v4813 = vadd.f32 %v4652, %v4812
      %v4814 = vpop.f32.mrf.mxu0
      %v4815 = vadd.f32 %v4654, %v4814
      %v4816 = vpop.f32.mrf.mxu0
      %v4817 = vadd.f32 %v4656, %v4816
      %v4818 = vpop.f32.mrf.mxu0
      %v4819 = vadd.f32 %v4658, %v4818
      %4820 = vmatprep.mubr.bf16.mxu0 %v384
      %4821 = vmatmul.mubr.bf16.gmra.mxu0 %v383
      %v4822 = vpop.f32.mrf.mxu0
      %v4823 = vadd.f32 %v4662, %v4822
      %v4824 = vpop.f32.mrf.mxu0
      %v4825 = vadd.f32 %v4664, %v4824
      %v4826 = vpop.f32.mrf.mxu0
      %v4827 = vpop.f32.mrf.mxu0
      %4828 = vdwg.mxu0
      %4829 = vmatprep.subr.bf16.mxu0 %v2638
      %4830 = vmatpush1.bf16.msra.mxu0 %v2637
      %4831 = vmatprep.subr.bf16.mxu0 %v2622
      %4832 = vmatpush1.bf16.msra.mxu0 %v2621
      %4833 = vmatprep.subr.bf16.mxu0 %v2606
      %4834 = vmatpush1.bf16.msra.mxu0 %v2605
      %4835 = vmatprep.subr.bf16.mxu0 %v2590
      %4836 = vmatpush1.bf16.msra.mxu0 %v2589
      %4837 = vmatprep.subr.bf16.mxu0 %v2574
      %4838 = vmatpush1.bf16.msra.mxu0 %v2573
      %4839 = vmatprep.subr.bf16.mxu0 %v2558
      %4840 = vmatpush1.bf16.msra.mxu0 %v2557
      %4841 = vmatprep.subr.bf16.mxu0 %v2542
      %4842 = vmatpush1.bf16.msra.mxu0 %v2541
      %4843 = vmatprep.subr.bf16.mxu0 %v2526
      %4844 = vmatpush1.bf16.msra.mxu0 %v2525
      %4845 = vmatprep.subr.bf16.mxu0 %v2766
      %4846 = vmatpush2.bf16.msra.mxu0 %v2765
      %4847 = vmatprep.subr.bf16.mxu0 %v2750
      %4848 = vmatpush2.bf16.msra.mxu0 %v2749
      %4849 = vmatprep.subr.bf16.mxu0 %v2734
      %4850 = vmatpush2.bf16.msra.mxu0 %v2733
      %4851 = vmatprep.subr.bf16.mxu0 %v2718
      %4852 = vmatpush2.bf16.msra.mxu0 %v2717
      %4853 = vmatprep.subr.bf16.mxu0 %v2702
      %4854 = vmatpush2.bf16.msra.mxu0 %v2701
      %4855 = vmatprep.subr.bf16.mxu0 %v2686
      %4856 = vmatpush2.bf16.msra.mxu0 %v2685
      %4857 = vmatprep.subr.bf16.mxu0 %v2670
      %4858 = vmatpush2.bf16.msra.mxu0 %v2669
      %4859 = vmatprep.subr.bf16.mxu0 %v2654
      %4860 = vmatpush2.bf16.msra.mxu0 %v2653
      %4861 = vmatprep.mubr.bf16.mxu0 %v334
      %4862 = vmatmul.mubr.bf16.gmra.mxu0 %v333
      %v4863 = vpop.f32.mrf.mxu0
      %v4864 = vadd.f32 %v936, %v4863
      %v4865 = vpop.f32.mrf.mxu0
      %v4866 = vadd.f32 %v940, %v4865
      %v4867 = vpop.f32.mrf.mxu0
      %v4868 = vadd.f32 %v936, %v4867
      %v4869 = vpop.f32.mrf.mxu0
      %v4870 = vadd.f32 %v940, %v4869
      %4871 = vmatprep.mubr.bf16.mxu0 %v338
      %4872 = vmatmul.mubr.bf16.gmra.mxu0 %v337
      %v4873 = vpop.f32.mrf.mxu0
      %v4874 = vadd.f32 %v936, %v4873
      %v4875 = vpop.f32.mrf.mxu0
      %v4876 = vadd.f32 %v940, %v4875
      %v4877 = vpop.f32.mrf.mxu0
      %v4878 = vadd.f32 %v936, %v4877
      %v4879 = vpop.f32.mrf.mxu0
      %v4880 = vadd.f32 %v940, %v4879
      %4881 = vmatprep.mubr.bf16.mxu0 %v342
      %4882 = vmatmul.mubr.bf16.gmra.mxu0 %v341
      %v4883 = vpop.f32.mrf.mxu0
      %v4884 = vadd.f32 %v936, %v4883
      %v4885 = vpop.f32.mrf.mxu0
      %v4886 = vadd.f32 %v940, %v4885
      %v4887 = vpop.f32.mrf.mxu0
      %v4888 = vadd.f32 %v936, %v4887
      %v4889 = vpop.f32.mrf.mxu0
      %v4890 = vadd.f32 %v940, %v4889
      %4891 = vmatprep.mubr.bf16.mxu0 %v346
      %4892 = vmatmul.mubr.bf16.gmra.mxu0 %v345
      %v4893 = vpop.f32.mrf.mxu0
      %v4894 = vadd.f32 %v936, %v4893
      %v4895 = vpop.f32.mrf.mxu0
      %v4896 = vadd.f32 %v940, %v4895
      %v4897 = vpop.f32.mrf.mxu0
      %v4898 = vadd.f32 %v936, %v4897
      %v4899 = vpop.f32.mrf.mxu0
      %v4900 = vadd.f32 %v940, %v4899
      %4901 = vmatprep.mubr.bf16.mxu0 %v350
      %4902 = vmatmul.mubr.bf16.gmra.mxu0 %v349
      %v4903 = vpop.f32.mrf.mxu0
      %v4904 = vadd.f32 %v936, %v4903
      %v4905 = vpop.f32.mrf.mxu0
      %v4906 = vadd.f32 %v940, %v4905
      %v4907 = vpop.f32.mrf.mxu0
      %v4908 = vadd.f32 %v936, %v4907
      %v4909 = vpop.f32.mrf.mxu0
      %v4910 = vadd.f32 %v940, %v4909
      %4911 = vmatprep.mubr.bf16.mxu0 %v354
      %4912 = vmatmul.mubr.bf16.gmra.mxu0 %v353
      %v4913 = vpop.f32.mrf.mxu0
      %v4914 = vadd.f32 %v936, %v4913
      %v4915 = vpop.f32.mrf.mxu0
      %v4916 = vadd.f32 %v940, %v4915
      %v4917 = vpop.f32.mrf.mxu0
      %v4918 = vadd.f32 %v936, %v4917
      %v4919 = vpop.f32.mrf.mxu0
      %v4920 = vadd.f32 %v940, %v4919
      %4921 = vmatprep.mubr.bf16.mxu0 %v358
      %4922 = vmatmul.mubr.bf16.gmra.mxu0 %v357
      %v4923 = vpop.f32.mrf.mxu0
      %v4924 = vadd.f32 %v936, %v4923
      %v4925 = vpop.f32.mrf.mxu0
      %v4926 = vadd.f32 %v940, %v4925
      %v4927 = vpop.f32.mrf.mxu0
      %v4928 = vadd.f32 %v936, %v4927
      %v4929 = vpop.f32.mrf.mxu0
      %v4930 = vadd.f32 %v940, %v4929
      %4931 = vmatprep.mubr.bf16.mxu0 %v362
      %4932 = vmatmul.mubr.bf16.gmra.mxu0 %v361
      %v4933 = vpop.f32.mrf.mxu0
      %v4934 = vadd.f32 %v936, %v4933
      %v4935 = vpop.f32.mrf.mxu0
      %v4936 = vadd.f32 %v940, %v4935
      %v4937 = vpop.f32.mrf.mxu0
      %v4938 = vadd.f32 %v936, %v4937
      %v4939 = vpop.f32.mrf.mxu0
      %v4940 = vadd.f32 %v940, %v4939
      %4941 = vmatprep.mubr.bf16.mxu0 %v366
      %4942 = vmatmul.mubr.bf16.gmra.mxu0 %v365
      %v4943 = vpop.f32.mrf.mxu0
      %v4944 = vadd.f32 %v936, %v4943
      %v4945 = vpop.f32.mrf.mxu0
      %v4946 = vadd.f32 %v940, %v4945
      %v4947 = vpop.f32.mrf.mxu0
      %v4948 = vadd.f32 %v936, %v4947
      %v4949 = vpop.f32.mrf.mxu0
      %v4950 = vadd.f32 %v940, %v4949
      %4951 = vmatprep.mubr.bf16.mxu0 %v370
      %4952 = vmatmul.mubr.bf16.gmra.mxu0 %v369
      %v4953 = vpop.f32.mrf.mxu0
      %v4954 = vadd.f32 %v936, %v4953
      %v4955 = vpop.f32.mrf.mxu0
      %v4956 = vadd.f32 %v940, %v4955
      %v4957 = vpop.f32.mrf.mxu0
      %v4958 = vadd.f32 %v936, %v4957
      %v4959 = vpop.f32.mrf.mxu0
      %v4960 = vadd.f32 %v940, %v4959
      %4961 = vmatprep.mubr.bf16.mxu0 %v374
      %4962 = vmatmul.mubr.bf16.gmra.mxu0 %v373
      %v4963 = vpop.f32.mrf.mxu0
      %v4964 = vadd.f32 %v936, %v4963
      %v4965 = vpop.f32.mrf.mxu0
      %v4966 = vadd.f32 %v940, %v4965
      %v4967 = vpop.f32.mrf.mxu0
      %v4968 = vadd.f32 %v936, %v4967
      %v4969 = vpop.f32.mrf.mxu0
      %v4970 = vadd.f32 %v940, %v4969
      %4971 = vmatprep.mubr.bf16.mxu0 %v378
      %4972 = vmatmul.mubr.bf16.gmra.mxu0 %v377
      %v4973 = vpop.f32.mrf.mxu0
      %v4974 = vadd.f32 %v936, %v4973
      %v4975 = vpop.f32.mrf.mxu0
      %v4976 = vadd.f32 %v940, %v4975
      %v4977 = vpop.f32.mrf.mxu0
      %v4978 = vadd.f32 %v936, %v4977
      %v4979 = vpop.f32.mrf.mxu0
      %v4980 = vadd.f32 %v940, %v4979
      %4981 = vmatprep.mubr.bf16.mxu0 %v382
      %4982 = vmatmul.mubr.bf16.gmra.mxu0 %v381
      %v4983 = vpop.f32.mrf.mxu0
      %v4984 = vadd.f32 %v936, %v4983
      %v4985 = vpop.f32.mrf.mxu0
      %v4986 = vadd.f32 %v940, %v4985
      %v4987 = vpop.f32.mrf.mxu0
      %v4988 = vpop.f32.mrf.mxu0
      %4989 = vdwg.mxu0
      %4990 = vmatprep.subr.bf16.mxu0 %v2894
      %4991 = vmatpush1.bf16.msra.mxu0 %v2893
      %4992 = vmatprep.subr.bf16.mxu0 %v2878
      %4993 = vmatpush1.bf16.msra.mxu0 %v2877
      %4994 = vmatprep.subr.bf16.mxu0 %v2862
      %4995 = vmatpush1.bf16.msra.mxu0 %v2861
      %4996 = vmatprep.subr.bf16.mxu0 %v2846
      %4997 = vmatpush1.bf16.msra.mxu0 %v2845
      %4998 = vmatprep.subr.bf16.mxu0 %v2830
      %4999 = vmatpush1.bf16.msra.mxu0 %v2829
      %5000 = vmatprep.subr.bf16.mxu0 %v2814
      %5001 = vmatpush1.bf16.msra.mxu0 %v2813
      %5002 = vmatprep.subr.bf16.mxu0 %v2798
      %5003 = vmatpush1.bf16.msra.mxu0 %v2797
      %5004 = vmatprep.subr.bf16.mxu0 %v2782
      %5005 = vmatpush1.bf16.msra.mxu0 %v2781
      %5006 = vmatprep.subr.bf16.mxu0 %v3022
      %5007 = vmatpush2.bf16.msra.mxu0 %v3021
      %5008 = vmatprep.subr.bf16.mxu0 %v3006
      %5009 = vmatpush2.bf16.msra.mxu0 %v3005
      %5010 = vmatprep.subr.bf16.mxu0 %v2990
      %5011 = vmatpush2.bf16.msra.mxu0 %v2989
      %5012 = vmatprep.subr.bf16.mxu0 %v2974
      %5013 = vmatpush2.bf16.msra.mxu0 %v2973
      %5014 = vmatprep.subr.bf16.mxu0 %v2958
      %5015 = vmatpush2.bf16.msra.mxu0 %v2957
      %5016 = vmatprep.subr.bf16.mxu0 %v2942
      %5017 = vmatpush2.bf16.msra.mxu0 %v2941
      %5018 = vmatprep.subr.bf16.mxu0 %v2926
      %5019 = vmatpush2.bf16.msra.mxu0 %v2925
      %5020 = vmatprep.subr.bf16.mxu0 %v2910
      %5021 = vmatpush2.bf16.msra.mxu0 %v2909
      %5022 = vmatprep.mubr.bf16.mxu0 %v336
      %5023 = vmatmul.mubr.bf16.gmra.mxu0 %v335
      %v5024 = vpop.f32.mrf.mxu0
      %v5025 = vadd.f32 %v4864, %v5024
      %v5026 = vpop.f32.mrf.mxu0
      %v5027 = vadd.f32 %v4866, %v5026
      %v5028 = vpop.f32.mrf.mxu0
      %v5029 = vadd.f32 %v4868, %v5028
      %v5030 = vpop.f32.mrf.mxu0
      %v5031 = vadd.f32 %v4870, %v5030
      %5032 = vmatprep.mubr.bf16.mxu0 %v340
      %5033 = vmatmul.mubr.bf16.gmra.mxu0 %v339
      %v5034 = vpop.f32.mrf.mxu0
      %v5035 = vadd.f32 %v4874, %v5034
      %v5036 = vpop.f32.mrf.mxu0
      %v5037 = vadd.f32 %v4876, %v5036
      %v5038 = vpop.f32.mrf.mxu0
      %v5039 = vadd.f32 %v4878, %v5038
      %v5040 = vpop.f32.mrf.mxu0
      %v5041 = vadd.f32 %v4880, %v5040
      %5042 = vmatprep.mubr.bf16.mxu0 %v344
      %5043 = vmatmul.mubr.bf16.gmra.mxu0 %v343
      %v5044 = vpop.f32.mrf.mxu0
      %v5045 = vadd.f32 %v4884, %v5044
      %v5046 = vpop.f32.mrf.mxu0
      %v5047 = vadd.f32 %v4886, %v5046
      %v5048 = vpop.f32.mrf.mxu0
      %v5049 = vadd.f32 %v4888, %v5048
      %v5050 = vpop.f32.mrf.mxu0
      %v5051 = vadd.f32 %v4890, %v5050
      %5052 = vmatprep.mubr.bf16.mxu0 %v348
      %5053 = vmatmul.mubr.bf16.gmra.mxu0 %v347
      %v5054 = vpop.f32.mrf.mxu0
      %v5055 = vadd.f32 %v4894, %v5054
      %v5056 = vpop.f32.mrf.mxu0
      %v5057 = vadd.f32 %v4896, %v5056
      %v5058 = vpop.f32.mrf.mxu0
      %v5059 = vadd.f32 %v4898, %v5058
      %v5060 = vpop.f32.mrf.mxu0
      %v5061 = vadd.f32 %v4900, %v5060
      %5062 = vmatprep.mubr.bf16.mxu0 %v352
      %5063 = vmatmul.mubr.bf16.gmra.mxu0 %v351
      %v5064 = vpop.f32.mrf.mxu0
      %v5065 = vadd.f32 %v4904, %v5064
      %v5066 = vpop.f32.mrf.mxu0
      %v5067 = vadd.f32 %v4906, %v5066
      %v5068 = vpop.f32.mrf.mxu0
      %v5069 = vadd.f32 %v4908, %v5068
      %v5070 = vpop.f32.mrf.mxu0
      %v5071 = vadd.f32 %v4910, %v5070
      %5072 = vmatprep.mubr.bf16.mxu0 %v356
      %5073 = vmatmul.mubr.bf16.gmra.mxu0 %v355
      %v5074 = vpop.f32.mrf.mxu0
      %v5075 = vadd.f32 %v4914, %v5074
      %v5076 = vpop.f32.mrf.mxu0
      %v5077 = vadd.f32 %v4916, %v5076
      %v5078 = vpop.f32.mrf.mxu0
      %v5079 = vadd.f32 %v4918, %v5078
      %v5080 = vpop.f32.mrf.mxu0
      %v5081 = vadd.f32 %v4920, %v5080
      %5082 = vmatprep.mubr.bf16.mxu0 %v360
      %5083 = vmatmul.mubr.bf16.gmra.mxu0 %v359
      %v5084 = vpop.f32.mrf.mxu0
      %v5085 = vadd.f32 %v4924, %v5084
      %v5086 = vpop.f32.mrf.mxu0
      %v5087 = vadd.f32 %v4926, %v5086
      %v5088 = vpop.f32.mrf.mxu0
      %v5089 = vadd.f32 %v4928, %v5088
      %v5090 = vpop.f32.mrf.mxu0
      %v5091 = vadd.f32 %v4930, %v5090
      %5092 = vmatprep.mubr.bf16.mxu0 %v364
      %5093 = vmatmul.mubr.bf16.gmra.mxu0 %v363
      %v5094 = vpop.f32.mrf.mxu0
      %v5095 = vadd.f32 %v4934, %v5094
      %v5096 = vpop.f32.mrf.mxu0
      %v5097 = vadd.f32 %v4936, %v5096
      %v5098 = vpop.f32.mrf.mxu0
      %v5099 = vadd.f32 %v4938, %v5098
      %v5100 = vpop.f32.mrf.mxu0
      %v5101 = vadd.f32 %v4940, %v5100
      %5102 = vmatprep.mubr.bf16.mxu0 %v368
      %5103 = vmatmul.mubr.bf16.gmra.mxu0 %v367
      %v5104 = vpop.f32.mrf.mxu0
      %v5105 = vadd.f32 %v4944, %v5104
      %v5106 = vpop.f32.mrf.mxu0
      %v5107 = vadd.f32 %v4946, %v5106
      %v5108 = vpop.f32.mrf.mxu0
      %v5109 = vadd.f32 %v4948, %v5108
      %v5110 = vpop.f32.mrf.mxu0
      %v5111 = vadd.f32 %v4950, %v5110
      %5112 = vmatprep.mubr.bf16.mxu0 %v372
      %5113 = vmatmul.mubr.bf16.gmra.mxu0 %v371
      %v5114 = vpop.f32.mrf.mxu0
      %v5115 = vadd.f32 %v4954, %v5114
      %v5116 = vpop.f32.mrf.mxu0
      %v5117 = vadd.f32 %v4956, %v5116
      %v5118 = vpop.f32.mrf.mxu0
      %v5119 = vadd.f32 %v4958, %v5118
      %v5120 = vpop.f32.mrf.mxu0
      %v5121 = vadd.f32 %v4960, %v5120
      %5122 = vmatprep.mubr.bf16.mxu0 %v376
      %5123 = vmatmul.mubr.bf16.gmra.mxu0 %v375
      %v5124 = vpop.f32.mrf.mxu0
      %v5125 = vadd.f32 %v4964, %v5124
      %v5126 = vpop.f32.mrf.mxu0
      %v5127 = vadd.f32 %v4966, %v5126
      %v5128 = vpop.f32.mrf.mxu0
      %v5129 = vadd.f32 %v4968, %v5128
      %v5130 = vpop.f32.mrf.mxu0
      %v5131 = vadd.f32 %v4970, %v5130
      %5132 = vmatprep.mubr.bf16.mxu0 %v380
      %5133 = vmatmul.mubr.bf16.gmra.mxu0 %v379
      %v5134 = vpop.f32.mrf.mxu0
      %v5135 = vadd.f32 %v4974, %v5134
      %v5136 = vpop.f32.mrf.mxu0
      %v5137 = vadd.f32 %v4976, %v5136
      %v5138 = vpop.f32.mrf.mxu0
      %v5139 = vadd.f32 %v4978, %v5138
      %v5140 = vpop.f32.mrf.mxu0
      %v5141 = vadd.f32 %v4980, %v5140
      %5142 = vmatprep.mubr.bf16.mxu0 %v384
      %5143 = vmatmul.mubr.bf16.gmra.mxu0 %v383
      %v5144 = vpop.f32.mrf.mxu0
      %v5145 = vadd.f32 %v4984, %v5144
      %v5146 = vpop.f32.mrf.mxu0
      %v5147 = vadd.f32 %v4986, %v5146
      %v5148 = vpop.f32.mrf.mxu0
      %v5149 = vpop.f32.mrf.mxu0
      %5150 = vdwg.mxu0
      %5151 = vmatprep.subr.bf16.mxu0 %v2640
      %5152 = vmatpush1.bf16.msra.mxu0 %v2639
      %5153 = vmatprep.subr.bf16.mxu0 %v2624
      %5154 = vmatpush1.bf16.msra.mxu0 %v2623
      %5155 = vmatprep.subr.bf16.mxu0 %v2608
      %5156 = vmatpush1.bf16.msra.mxu0 %v2607
      %5157 = vmatprep.subr.bf16.mxu0 %v2592
      %5158 = vmatpush1.bf16.msra.mxu0 %v2591
      %5159 = vmatprep.subr.bf16.mxu0 %v2576
      %5160 = vmatpush1.bf16.msra.mxu0 %v2575
      %5161 = vmatprep.subr.bf16.mxu0 %v2560
      %5162 = vmatpush1.bf16.msra.mxu0 %v2559
      %5163 = vmatprep.subr.bf16.mxu0 %v2544
      %5164 = vmatpush1.bf16.msra.mxu0 %v2543
      %5165 = vmatprep.subr.bf16.mxu0 %v2528
      %5166 = vmatpush1.bf16.msra.mxu0 %v2527
      %5167 = vmatprep.subr.bf16.mxu0 %v2768
      %5168 = vmatpush2.bf16.msra.mxu0 %v2767
      %5169 = vmatprep.subr.bf16.mxu0 %v2752
      %5170 = vmatpush2.bf16.msra.mxu0 %v2751
      %5171 = vmatprep.subr.bf16.mxu0 %v2736
      %5172 = vmatpush2.bf16.msra.mxu0 %v2735
      %5173 = vmatprep.subr.bf16.mxu0 %v2720
      %5174 = vmatpush2.bf16.msra.mxu0 %v2719
      %5175 = vmatprep.subr.bf16.mxu0 %v2704
      %5176 = vmatpush2.bf16.msra.mxu0 %v2703
      %5177 = vmatprep.subr.bf16.mxu0 %v2688
      %5178 = vmatpush2.bf16.msra.mxu0 %v2687
      %5179 = vmatprep.subr.bf16.mxu0 %v2672
      %5180 = vmatpush2.bf16.msra.mxu0 %v2671
      %5181 = vmatprep.subr.bf16.mxu0 %v2656
      %5182 = vmatpush2.bf16.msra.mxu0 %v2655
      %5183 = vmatprep.mubr.bf16.mxu0 %v334
      %5184 = vmatmul.mubr.bf16.gmra.mxu0 %v333
      %v5185 = vpop.f32.mrf.mxu0
      %v5186 = vadd.f32 %v944, %v5185
      %v5187 = vpop.f32.mrf.mxu0
      %v5188 = vadd.f32 %v948, %v5187
      %v5189 = vpop.f32.mrf.mxu0
      %v5190 = vadd.f32 %v944, %v5189
      %v5191 = vpop.f32.mrf.mxu0
      %v5192 = vadd.f32 %v948, %v5191
      %5193 = vmatprep.mubr.bf16.mxu0 %v338
      %5194 = vmatmul.mubr.bf16.gmra.mxu0 %v337
      %v5195 = vpop.f32.mrf.mxu0
      %v5196 = vadd.f32 %v944, %v5195
      %v5197 = vpop.f32.mrf.mxu0
      %v5198 = vadd.f32 %v948, %v5197
      %v5199 = vpop.f32.mrf.mxu0
      %v5200 = vadd.f32 %v944, %v5199
      %v5201 = vpop.f32.mrf.mxu0
      %v5202 = vadd.f32 %v948, %v5201
      %5203 = vmatprep.mubr.bf16.mxu0 %v342
      %5204 = vmatmul.mubr.bf16.gmra.mxu0 %v341
      %v5205 = vpop.f32.mrf.mxu0
      %v5206 = vadd.f32 %v944, %v5205
      %v5207 = vpop.f32.mrf.mxu0
      %v5208 = vadd.f32 %v948, %v5207
      %v5209 = vpop.f32.mrf.mxu0
      %v5210 = vadd.f32 %v944, %v5209
      %v5211 = vpop.f32.mrf.mxu0
      %v5212 = vadd.f32 %v948, %v5211
      %5213 = vmatprep.mubr.bf16.mxu0 %v346
      %5214 = vmatmul.mubr.bf16.gmra.mxu0 %v345
      %v5215 = vpop.f32.mrf.mxu0
      %v5216 = vadd.f32 %v944, %v5215
      %v5217 = vpop.f32.mrf.mxu0
      %v5218 = vadd.f32 %v948, %v5217
      %v5219 = vpop.f32.mrf.mxu0
      %v5220 = vadd.f32 %v944, %v5219
      %v5221 = vpop.f32.mrf.mxu0
      %v5222 = vadd.f32 %v948, %v5221
      %5223 = vmatprep.mubr.bf16.mxu0 %v350
      %5224 = vmatmul.mubr.bf16.gmra.mxu0 %v349
      %v5225 = vpop.f32.mrf.mxu0
      %v5226 = vadd.f32 %v944, %v5225
      %v5227 = vpop.f32.mrf.mxu0
      %v5228 = vadd.f32 %v948, %v5227
      %v5229 = vpop.f32.mrf.mxu0
      %v5230 = vadd.f32 %v944, %v5229
      %v5231 = vpop.f32.mrf.mxu0
      %v5232 = vadd.f32 %v948, %v5231
      %5233 = vmatprep.mubr.bf16.mxu0 %v354
      %5234 = vmatmul.mubr.bf16.gmra.mxu0 %v353
      %v5235 = vpop.f32.mrf.mxu0
      %v5236 = vadd.f32 %v944, %v5235
      %v5237 = vpop.f32.mrf.mxu0
      %v5238 = vadd.f32 %v948, %v5237
      %v5239 = vpop.f32.mrf.mxu0
      %v5240 = vadd.f32 %v944, %v5239
      %v5241 = vpop.f32.mrf.mxu0
      %v5242 = vadd.f32 %v948, %v5241
      %5243 = vmatprep.mubr.bf16.mxu0 %v358
      %5244 = vmatmul.mubr.bf16.gmra.mxu0 %v357
      %v5245 = vpop.f32.mrf.mxu0
      %v5246 = vadd.f32 %v944, %v5245
      %v5247 = vpop.f32.mrf.mxu0
      %v5248 = vadd.f32 %v948, %v5247
      %v5249 = vpop.f32.mrf.mxu0
      %v5250 = vadd.f32 %v944, %v5249
      %v5251 = vpop.f32.mrf.mxu0
      %v5252 = vadd.f32 %v948, %v5251
      %5253 = vmatprep.mubr.bf16.mxu0 %v362
      %5254 = vmatmul.mubr.bf16.gmra.mxu0 %v361
      %v5255 = vpop.f32.mrf.mxu0
      %v5256 = vadd.f32 %v944, %v5255
      %v5257 = vpop.f32.mrf.mxu0
      %v5258 = vadd.f32 %v948, %v5257
      %v5259 = vpop.f32.mrf.mxu0
      %v5260 = vadd.f32 %v944, %v5259
      %v5261 = vpop.f32.mrf.mxu0
      %v5262 = vadd.f32 %v948, %v5261
      %5263 = vmatprep.mubr.bf16.mxu0 %v366
      %5264 = vmatmul.mubr.bf16.gmra.mxu0 %v365
      %v5265 = vpop.f32.mrf.mxu0
      %v5266 = vadd.f32 %v944, %v5265
      %v5267 = vpop.f32.mrf.mxu0
      %v5268 = vadd.f32 %v948, %v5267
      %v5269 = vpop.f32.mrf.mxu0
      %v5270 = vadd.f32 %v944, %v5269
      %v5271 = vpop.f32.mrf.mxu0
      %v5272 = vadd.f32 %v948, %v5271
      %5273 = vmatprep.mubr.bf16.mxu0 %v370
      %5274 = vmatmul.mubr.bf16.gmra.mxu0 %v369
      %v5275 = vpop.f32.mrf.mxu0
      %v5276 = vadd.f32 %v944, %v5275
      %v5277 = vpop.f32.mrf.mxu0
      %v5278 = vadd.f32 %v948, %v5277
      %v5279 = vpop.f32.mrf.mxu0
      %v5280 = vadd.f32 %v944, %v5279
      %v5281 = vpop.f32.mrf.mxu0
      %v5282 = vadd.f32 %v948, %v5281
      %5283 = vmatprep.mubr.bf16.mxu0 %v374
      %5284 = vmatmul.mubr.bf16.gmra.mxu0 %v373
      %v5285 = vpop.f32.mrf.mxu0
      %v5286 = vadd.f32 %v944, %v5285
      %v5287 = vpop.f32.mrf.mxu0
      %v5288 = vadd.f32 %v948, %v5287
      %v5289 = vpop.f32.mrf.mxu0
      %v5290 = vadd.f32 %v944, %v5289
      %v5291 = vpop.f32.mrf.mxu0
      %v5292 = vadd.f32 %v948, %v5291
      %5293 = vmatprep.mubr.bf16.mxu0 %v378
      %5294 = vmatmul.mubr.bf16.gmra.mxu0 %v377
      %v5295 = vpop.f32.mrf.mxu0
      %v5296 = vadd.f32 %v944, %v5295
      %v5297 = vpop.f32.mrf.mxu0
      %v5298 = vadd.f32 %v948, %v5297
      %v5299 = vpop.f32.mrf.mxu0
      %v5300 = vadd.f32 %v944, %v5299
      %v5301 = vpop.f32.mrf.mxu0
      %v5302 = vadd.f32 %v948, %v5301
      %5303 = vmatprep.mubr.bf16.mxu0 %v382
      %5304 = vmatmul.mubr.bf16.gmra.mxu0 %v381
      %v5305 = vpop.f32.mrf.mxu0
      %v5306 = vadd.f32 %v944, %v5305
      %v5307 = vpop.f32.mrf.mxu0
      %v5308 = vadd.f32 %v948, %v5307
      %v5309 = vpop.f32.mrf.mxu0
      %v5310 = vpop.f32.mrf.mxu0
      %5311 = vdwg.mxu0
      %5312 = vmatprep.subr.bf16.mxu0 %v2896
      %5313 = vmatpush1.bf16.msra.mxu0 %v2895
      %5314 = vmatprep.subr.bf16.mxu0 %v2880
      %5315 = vmatpush1.bf16.msra.mxu0 %v2879
      %5316 = vmatprep.subr.bf16.mxu0 %v2864
      %5317 = vmatpush1.bf16.msra.mxu0 %v2863
      %5318 = vmatprep.subr.bf16.mxu0 %v2848
      %5319 = vmatpush1.bf16.msra.mxu0 %v2847
      %5320 = vmatprep.subr.bf16.mxu0 %v2832
      %5321 = vmatpush1.bf16.msra.mxu0 %v2831
      %5322 = vmatprep.subr.bf16.mxu0 %v2816
      %5323 = vmatpush1.bf16.msra.mxu0 %v2815
      %5324 = vmatprep.subr.bf16.mxu0 %v2800
      %5325 = vmatpush1.bf16.msra.mxu0 %v2799
      %5326 = vmatprep.subr.bf16.mxu0 %v2784
      %5327 = vmatpush1.bf16.msra.mxu0 %v2783
      %5328 = vmatprep.subr.bf16.mxu0 %v3024
      %5329 = vmatpush2.bf16.msra.mxu0 %v3023
      %5330 = vmatprep.subr.bf16.mxu0 %v3008
      %5331 = vmatpush2.bf16.msra.mxu0 %v3007
      %5332 = vmatprep.subr.bf16.mxu0 %v2992
      %5333 = vmatpush2.bf16.msra.mxu0 %v2991
      %5334 = vmatprep.subr.bf16.mxu0 %v2976
      %5335 = vmatpush2.bf16.msra.mxu0 %v2975
      %5336 = vmatprep.subr.bf16.mxu0 %v2960
      %5337 = vmatpush2.bf16.msra.mxu0 %v2959
      %5338 = vmatprep.subr.bf16.mxu0 %v2944
      %5339 = vmatpush2.bf16.msra.mxu0 %v2943
      %5340 = vmatprep.subr.bf16.mxu0 %v2928
      %5341 = vmatpush2.bf16.msra.mxu0 %v2927
      %5342 = vmatprep.subr.bf16.mxu0 %v2912
      %5343 = vmatpush2.bf16.msra.mxu0 %v2911
      %5344 = vmatprep.mubr.bf16.mxu0 %v336
      %5345 = vmatmul.mubr.bf16.gmra.mxu0 %v335
      %v5346 = vpop.f32.mrf.mxu0
      %v5347 = vadd.f32 %v5186, %v5346
      %v5348 = vpop.f32.mrf.mxu0
      %v5349 = vadd.f32 %v5188, %v5348
      %v5350 = vpop.f32.mrf.mxu0
      %v5351 = vadd.f32 %v5190, %v5350
      %v5352 = vpop.f32.mrf.mxu0
      %v5353 = vadd.f32 %v5192, %v5352
      %5354 = vmatprep.mubr.bf16.mxu0 %v340
      %5355 = vmatmul.mubr.bf16.gmra.mxu0 %v339
      %v5356 = vpop.f32.mrf.mxu0
      %v5357 = vadd.f32 %v5196, %v5356
      %v5358 = vpop.f32.mrf.mxu0
      %v5359 = vadd.f32 %v5198, %v5358
      %v5360 = vpop.f32.mrf.mxu0
      %v5361 = vadd.f32 %v5200, %v5360
      %v5362 = vpop.f32.mrf.mxu0
      %v5363 = vadd.f32 %v5202, %v5362
      %5364 = vmatprep.mubr.bf16.mxu0 %v344
      %5365 = vmatmul.mubr.bf16.gmra.mxu0 %v343
      %v5366 = vpop.f32.mrf.mxu0
      %v5367 = vadd.f32 %v5206, %v5366
      %v5368 = vpop.f32.mrf.mxu0
      %v5369 = vadd.f32 %v5208, %v5368
      %v5370 = vpop.f32.mrf.mxu0
      %v5371 = vadd.f32 %v5210, %v5370
      %v5372 = vpop.f32.mrf.mxu0
      %v5373 = vadd.f32 %v5212, %v5372
      %5374 = vmatprep.mubr.bf16.mxu0 %v348
      %5375 = vmatmul.mubr.bf16.gmra.mxu0 %v347
      %v5376 = vpop.f32.mrf.mxu0
      %v5377 = vadd.f32 %v5216, %v5376
      %v5378 = vpop.f32.mrf.mxu0
      %v5379 = vadd.f32 %v5218, %v5378
      %v5380 = vpop.f32.mrf.mxu0
      %v5381 = vadd.f32 %v5220, %v5380
      %v5382 = vpop.f32.mrf.mxu0
      %v5383 = vadd.f32 %v5222, %v5382
      %5384 = vmatprep.mubr.bf16.mxu0 %v352
      %5385 = vmatmul.mubr.bf16.gmra.mxu0 %v351
      %v5386 = vpop.f32.mrf.mxu0
      %v5387 = vadd.f32 %v5226, %v5386
      %v5388 = vpop.f32.mrf.mxu0
      %v5389 = vadd.f32 %v5228, %v5388
      %v5390 = vpop.f32.mrf.mxu0
      %v5391 = vadd.f32 %v5230, %v5390
      %v5392 = vpop.f32.mrf.mxu0
      %v5393 = vadd.f32 %v5232, %v5392
      %5394 = vmatprep.mubr.bf16.mxu0 %v356
      %5395 = vmatmul.mubr.bf16.gmra.mxu0 %v355
      %v5396 = vpop.f32.mrf.mxu0
      %v5397 = vadd.f32 %v5236, %v5396
      %v5398 = vpop.f32.mrf.mxu0
      %v5399 = vadd.f32 %v5238, %v5398
      %v5400 = vpop.f32.mrf.mxu0
      %v5401 = vadd.f32 %v5240, %v5400
      %v5402 = vpop.f32.mrf.mxu0
      %v5403 = vadd.f32 %v5242, %v5402
      %5404 = vmatprep.mubr.bf16.mxu0 %v360
      %5405 = vmatmul.mubr.bf16.gmra.mxu0 %v359
      %v5406 = vpop.f32.mrf.mxu0
      %v5407 = vadd.f32 %v5246, %v5406
      %v5408 = vpop.f32.mrf.mxu0
      %v5409 = vadd.f32 %v5248, %v5408
      %v5410 = vpop.f32.mrf.mxu0
      %v5411 = vadd.f32 %v5250, %v5410
      %v5412 = vpop.f32.mrf.mxu0
      %v5413 = vadd.f32 %v5252, %v5412
      %5414 = vmatprep.mubr.bf16.mxu0 %v364
      %5415 = vmatmul.mubr.bf16.gmra.mxu0 %v363
      %v5416 = vpop.f32.mrf.mxu0
      %v5417 = vadd.f32 %v5256, %v5416
      %v5418 = vpop.f32.mrf.mxu0
      %v5419 = vadd.f32 %v5258, %v5418
      %v5420 = vpop.f32.mrf.mxu0
      %v5421 = vadd.f32 %v5260, %v5420
      %v5422 = vpop.f32.mrf.mxu0
      %v5423 = vadd.f32 %v5262, %v5422
      %5424 = vmatprep.mubr.bf16.mxu0 %v368
      %5425 = vmatmul.mubr.bf16.gmra.mxu0 %v367
      %v5426 = vpop.f32.mrf.mxu0
      %v5427 = vadd.f32 %v5266, %v5426
      %v5428 = vpop.f32.mrf.mxu0
      %v5429 = vadd.f32 %v5268, %v5428
      %v5430 = vpop.f32.mrf.mxu0
      %v5431 = vadd.f32 %v5270, %v5430
      %v5432 = vpop.f32.mrf.mxu0
      %v5433 = vadd.f32 %v5272, %v5432
      %5434 = vmatprep.mubr.bf16.mxu0 %v372
      %5435 = vmatmul.mubr.bf16.gmra.mxu0 %v371
      %v5436 = vpop.f32.mrf.mxu0
      %v5437 = vadd.f32 %v5276, %v5436
      %v5438 = vpop.f32.mrf.mxu0
      %v5439 = vadd.f32 %v5278, %v5438
      %v5440 = vpop.f32.mrf.mxu0
      %v5441 = vadd.f32 %v5280, %v5440
      %v5442 = vpop.f32.mrf.mxu0
      %v5443 = vadd.f32 %v5282, %v5442
      %5444 = vmatprep.mubr.bf16.mxu0 %v376
      %5445 = vmatmul.mubr.bf16.gmra.mxu0 %v375
      %v5446 = vpop.f32.mrf.mxu0
      %v5447 = vadd.f32 %v5286, %v5446
      %v5448 = vpop.f32.mrf.mxu0
      %v5449 = vadd.f32 %v5288, %v5448
      %v5450 = vpop.f32.mrf.mxu0
      %v5451 = vadd.f32 %v5290, %v5450
      %v5452 = vpop.f32.mrf.mxu0
      %v5453 = vadd.f32 %v5292, %v5452
      %5454 = vmatprep.mubr.bf16.mxu0 %v380
      %5455 = vmatmul.mubr.bf16.gmra.mxu0 %v379
      %v5456 = vpop.f32.mrf.mxu0
      %v5457 = vadd.f32 %v5296, %v5456
      %v5458 = vpop.f32.mrf.mxu0
      %v5459 = vadd.f32 %v5298, %v5458
      %v5460 = vpop.f32.mrf.mxu0
      %v5461 = vadd.f32 %v5300, %v5460
      %v5462 = vpop.f32.mrf.mxu0
      %v5463 = vadd.f32 %v5302, %v5462
      %5464 = vmatprep.mubr.bf16.mxu0 %v384
      %5465 = vmatmul.mubr.bf16.gmra.mxu0 %v383
      %v5466 = vpop.f32.mrf.mxu0
      %v5467 = vadd.f32 %v5306, %v5466
      %v5468 = vpop.f32.mrf.mxu0
      %v5469 = vadd.f32 %v5308, %v5468
      %v5470 = vpop.f32.mrf.mxu0
      %v5471 = vpop.f32.mrf.mxu0
      %5472 = vdwg.mxu0
      %5473 = vmatprep.subr.bf16.mxu0 %v2642
      %5474 = vmatpush1.bf16.msra.mxu0 %v2641
      %5475 = vmatprep.subr.bf16.mxu0 %v2626
      %5476 = vmatpush1.bf16.msra.mxu0 %v2625
      %5477 = vmatprep.subr.bf16.mxu0 %v2610
      %5478 = vmatpush1.bf16.msra.mxu0 %v2609
      %5479 = vmatprep.subr.bf16.mxu0 %v2594
      %5480 = vmatpush1.bf16.msra.mxu0 %v2593
      %5481 = vmatprep.subr.bf16.mxu0 %v2578
      %5482 = vmatpush1.bf16.msra.mxu0 %v2577
      %5483 = vmatprep.subr.bf16.mxu0 %v2562
      %5484 = vmatpush1.bf16.msra.mxu0 %v2561
      %5485 = vmatprep.subr.bf16.mxu0 %v2546
      %5486 = vmatpush1.bf16.msra.mxu0 %v2545
      %5487 = vmatprep.subr.bf16.mxu0 %v2530
      %5488 = vmatpush1.bf16.msra.mxu0 %v2529
      %5489 = vmatprep.subr.bf16.mxu0 %v2770
      %5490 = vmatpush2.bf16.msra.mxu0 %v2769
      %5491 = vmatprep.subr.bf16.mxu0 %v2754
      %5492 = vmatpush2.bf16.msra.mxu0 %v2753
      %5493 = vmatprep.subr.bf16.mxu0 %v2738
      %5494 = vmatpush2.bf16.msra.mxu0 %v2737
      %5495 = vmatprep.subr.bf16.mxu0 %v2722
      %5496 = vmatpush2.bf16.msra.mxu0 %v2721
      %5497 = vmatprep.subr.bf16.mxu0 %v2706
      %5498 = vmatpush2.bf16.msra.mxu0 %v2705
      %5499 = vmatprep.subr.bf16.mxu0 %v2690
      %5500 = vmatpush2.bf16.msra.mxu0 %v2689
      %5501 = vmatprep.subr.bf16.mxu0 %v2674
      %5502 = vmatpush2.bf16.msra.mxu0 %v2673
      %5503 = vmatprep.subr.bf16.mxu0 %v2658
      %5504 = vmatpush2.bf16.msra.mxu0 %v2657
      %5505 = vmatprep.mubr.bf16.mxu0 %v334
      %5506 = vmatmul.mubr.bf16.gmra.mxu0 %v333
      %v5507 = vpop.f32.mrf.mxu0
      %v5508 = vadd.f32 %v952, %v5507
      %v5509 = vpop.f32.mrf.mxu0
      %v5510 = vadd.f32 %v956, %v5509
      %v5511 = vpop.f32.mrf.mxu0
      %v5512 = vadd.f32 %v952, %v5511
      %v5513 = vpop.f32.mrf.mxu0
      %v5514 = vadd.f32 %v956, %v5513
      %5515 = vmatprep.mubr.bf16.mxu0 %v338
      %5516 = vmatmul.mubr.bf16.gmra.mxu0 %v337
      %v5517 = vpop.f32.mrf.mxu0
      %v5518 = vadd.f32 %v952, %v5517
      %v5519 = vpop.f32.mrf.mxu0
      %v5520 = vadd.f32 %v956, %v5519
      %v5521 = vpop.f32.mrf.mxu0
      %v5522 = vadd.f32 %v952, %v5521
      %v5523 = vpop.f32.mrf.mxu0
      %v5524 = vadd.f32 %v956, %v5523
      %5525 = vmatprep.mubr.bf16.mxu0 %v342
      %5526 = vmatmul.mubr.bf16.gmra.mxu0 %v341
      %v5527 = vpop.f32.mrf.mxu0
      %v5528 = vadd.f32 %v952, %v5527
      %v5529 = vpop.f32.mrf.mxu0
      %v5530 = vadd.f32 %v956, %v5529
      %v5531 = vpop.f32.mrf.mxu0
      %v5532 = vadd.f32 %v952, %v5531
      %v5533 = vpop.f32.mrf.mxu0
      %v5534 = vadd.f32 %v956, %v5533
      %5535 = vmatprep.mubr.bf16.mxu0 %v346
      %5536 = vmatmul.mubr.bf16.gmra.mxu0 %v345
      %v5537 = vpop.f32.mrf.mxu0
      %v5538 = vadd.f32 %v952, %v5537
      %v5539 = vpop.f32.mrf.mxu0
      %v5540 = vadd.f32 %v956, %v5539
      %v5541 = vpop.f32.mrf.mxu0
      %v5542 = vadd.f32 %v952, %v5541
      %v5543 = vpop.f32.mrf.mxu0
      %v5544 = vadd.f32 %v956, %v5543
      %5545 = vmatprep.mubr.bf16.mxu0 %v350
      %5546 = vmatmul.mubr.bf16.gmra.mxu0 %v349
      %v5547 = vpop.f32.mrf.mxu0
      %v5548 = vadd.f32 %v952, %v5547
      %v5549 = vpop.f32.mrf.mxu0
      %v5550 = vadd.f32 %v956, %v5549
      %v5551 = vpop.f32.mrf.mxu0
      %v5552 = vadd.f32 %v952, %v5551
      %v5553 = vpop.f32.mrf.mxu0
      %v5554 = vadd.f32 %v956, %v5553
      %5555 = vmatprep.mubr.bf16.mxu0 %v354
      %5556 = vmatmul.mubr.bf16.gmra.mxu0 %v353
      %v5557 = vpop.f32.mrf.mxu0
      %v5558 = vadd.f32 %v952, %v5557
      %v5559 = vpop.f32.mrf.mxu0
      %v5560 = vadd.f32 %v956, %v5559
      %v5561 = vpop.f32.mrf.mxu0
      %v5562 = vadd.f32 %v952, %v5561
      %v5563 = vpop.f32.mrf.mxu0
      %v5564 = vadd.f32 %v956, %v5563
      %5565 = vmatprep.mubr.bf16.mxu0 %v358
      %5566 = vmatmul.mubr.bf16.gmra.mxu0 %v357
      %v5567 = vpop.f32.mrf.mxu0
      %v5568 = vadd.f32 %v952, %v5567
      %v5569 = vpop.f32.mrf.mxu0
      %v5570 = vadd.f32 %v956, %v5569
      %v5571 = vpop.f32.mrf.mxu0
      %v5572 = vadd.f32 %v952, %v5571
      %v5573 = vpop.f32.mrf.mxu0
      %v5574 = vadd.f32 %v956, %v5573
      %5575 = vmatprep.mubr.bf16.mxu0 %v362
      %5576 = vmatmul.mubr.bf16.gmra.mxu0 %v361
      %v5577 = vpop.f32.mrf.mxu0
      %v5578 = vadd.f32 %v952, %v5577
      %v5579 = vpop.f32.mrf.mxu0
      %v5580 = vadd.f32 %v956, %v5579
      %v5581 = vpop.f32.mrf.mxu0
      %v5582 = vadd.f32 %v952, %v5581
      %v5583 = vpop.f32.mrf.mxu0
      %v5584 = vadd.f32 %v956, %v5583
      %5585 = vmatprep.mubr.bf16.mxu0 %v366
      %5586 = vmatmul.mubr.bf16.gmra.mxu0 %v365
      %v5587 = vpop.f32.mrf.mxu0
      %v5588 = vadd.f32 %v952, %v5587
      %v5589 = vpop.f32.mrf.mxu0
      %v5590 = vadd.f32 %v956, %v5589
      %v5591 = vpop.f32.mrf.mxu0
      %v5592 = vadd.f32 %v952, %v5591
      %v5593 = vpop.f32.mrf.mxu0
      %v5594 = vadd.f32 %v956, %v5593
      %5595 = vmatprep.mubr.bf16.mxu0 %v370
      %5596 = vmatmul.mubr.bf16.gmra.mxu0 %v369
      %v5597 = vpop.f32.mrf.mxu0
      %v5598 = vadd.f32 %v952, %v5597
      %v5599 = vpop.f32.mrf.mxu0
      %v5600 = vadd.f32 %v956, %v5599
      %v5601 = vpop.f32.mrf.mxu0
      %v5602 = vadd.f32 %v952, %v5601
      %v5603 = vpop.f32.mrf.mxu0
      %v5604 = vadd.f32 %v956, %v5603
      %5605 = vmatprep.mubr.bf16.mxu0 %v374
      %5606 = vmatmul.mubr.bf16.gmra.mxu0 %v373
      %v5607 = vpop.f32.mrf.mxu0
      %v5608 = vadd.f32 %v952, %v5607
      %v5609 = vpop.f32.mrf.mxu0
      %v5610 = vadd.f32 %v956, %v5609
      %v5611 = vpop.f32.mrf.mxu0
      %v5612 = vadd.f32 %v952, %v5611
      %v5613 = vpop.f32.mrf.mxu0
      %v5614 = vadd.f32 %v956, %v5613
      %5615 = vmatprep.mubr.bf16.mxu0 %v378
      %5616 = vmatmul.mubr.bf16.gmra.mxu0 %v377
      %v5617 = vpop.f32.mrf.mxu0
      %v5618 = vadd.f32 %v952, %v5617
      %v5619 = vpop.f32.mrf.mxu0
      %v5620 = vadd.f32 %v956, %v5619
      %v5621 = vpop.f32.mrf.mxu0
      %v5622 = vadd.f32 %v952, %v5621
      %v5623 = vpop.f32.mrf.mxu0
      %v5624 = vadd.f32 %v956, %v5623
      %5625 = vmatprep.mubr.bf16.mxu0 %v382
      %5626 = vmatmul.mubr.bf16.gmra.mxu0 %v381
      %v5627 = vpop.f32.mrf.mxu0
      %v5628 = vadd.f32 %v952, %v5627
      %v5629 = vpop.f32.mrf.mxu0
      %v5630 = vadd.f32 %v956, %v5629
      %v5631 = vpop.f32.mrf.mxu0
      %v5632 = vpop.f32.mrf.mxu0
      %5633 = vdwg.mxu0
      %5634 = vmatprep.subr.bf16.mxu0 %v2898
      %5635 = vmatpush1.bf16.msra.mxu0 %v2897
      %5636 = vmatprep.subr.bf16.mxu0 %v2882
      %5637 = vmatpush1.bf16.msra.mxu0 %v2881
      %5638 = vmatprep.subr.bf16.mxu0 %v2866
      %5639 = vmatpush1.bf16.msra.mxu0 %v2865
      %5640 = vmatprep.subr.bf16.mxu0 %v2850
      %5641 = vmatpush1.bf16.msra.mxu0 %v2849
      %5642 = vmatprep.subr.bf16.mxu0 %v2834
      %5643 = vmatpush1.bf16.msra.mxu0 %v2833
      %5644 = vmatprep.subr.bf16.mxu0 %v2818
      %5645 = vmatpush1.bf16.msra.mxu0 %v2817
      %5646 = vmatprep.subr.bf16.mxu0 %v2802
      %5647 = vmatpush1.bf16.msra.mxu0 %v2801
      %5648 = vmatprep.subr.bf16.mxu0 %v2786
      %5649 = vmatpush1.bf16.msra.mxu0 %v2785
      %5650 = vmatprep.subr.bf16.mxu0 %v3026
      %5651 = vmatpush2.bf16.msra.mxu0 %v3025
      %5652 = vmatprep.subr.bf16.mxu0 %v3010
      %5653 = vmatpush2.bf16.msra.mxu0 %v3009
      %5654 = vmatprep.subr.bf16.mxu0 %v2994
      %5655 = vmatpush2.bf16.msra.mxu0 %v2993
      %5656 = vmatprep.subr.bf16.mxu0 %v2978
      %5657 = vmatpush2.bf16.msra.mxu0 %v2977
      %5658 = vmatprep.subr.bf16.mxu0 %v2962
      %5659 = vmatpush2.bf16.msra.mxu0 %v2961
      %5660 = vmatprep.subr.bf16.mxu0 %v2946
      %5661 = vmatpush2.bf16.msra.mxu0 %v2945
      %5662 = vmatprep.subr.bf16.mxu0 %v2930
      %5663 = vmatpush2.bf16.msra.mxu0 %v2929
      %5664 = vmatprep.subr.bf16.mxu0 %v2914
      %5665 = vmatpush2.bf16.msra.mxu0 %v2913
      %5666 = vmatprep.mubr.bf16.mxu0 %v336
      %5667 = vmatmul.mubr.bf16.gmra.mxu0 %v335
      %v5668 = vpop.f32.mrf.mxu0
      %v5669 = vadd.f32 %v5508, %v5668
      %v5670 = vpop.f32.mrf.mxu0
      %v5671 = vadd.f32 %v5510, %v5670
      %v5672 = vpop.f32.mrf.mxu0
      %v5673 = vadd.f32 %v5512, %v5672
      %v5674 = vpop.f32.mrf.mxu0
      %v5675 = vadd.f32 %v5514, %v5674
      %5676 = vmatprep.mubr.bf16.mxu0 %v340
      %5677 = vmatmul.mubr.bf16.gmra.mxu0 %v339
      %v5678 = vpop.f32.mrf.mxu0
      %v5679 = vadd.f32 %v5518, %v5678
      %v5680 = vpop.f32.mrf.mxu0
      %v5681 = vadd.f32 %v5520, %v5680
      %v5682 = vpop.f32.mrf.mxu0
      %v5683 = vadd.f32 %v5522, %v5682
      %v5684 = vpop.f32.mrf.mxu0
      %v5685 = vadd.f32 %v5524, %v5684
      %5686 = vmatprep.mubr.bf16.mxu0 %v344
      %5687 = vmatmul.mubr.bf16.gmra.mxu0 %v343
      %v5688 = vpop.f32.mrf.mxu0
      %v5689 = vadd.f32 %v5528, %v5688
      %v5690 = vpop.f32.mrf.mxu0
      %v5691 = vadd.f32 %v5530, %v5690
      %v5692 = vpop.f32.mrf.mxu0
      %v5693 = vadd.f32 %v5532, %v5692
      %v5694 = vpop.f32.mrf.mxu0
      %v5695 = vadd.f32 %v5534, %v5694
      %5696 = vmatprep.mubr.bf16.mxu0 %v348
      %5697 = vmatmul.mubr.bf16.gmra.mxu0 %v347
      %v5698 = vpop.f32.mrf.mxu0
      %v5699 = vadd.f32 %v5538, %v5698
      %v5700 = vpop.f32.mrf.mxu0
      %v5701 = vadd.f32 %v5540, %v5700
      %v5702 = vpop.f32.mrf.mxu0
      %v5703 = vadd.f32 %v5542, %v5702
      %v5704 = vpop.f32.mrf.mxu0
      %v5705 = vadd.f32 %v5544, %v5704
      %5706 = vmatprep.mubr.bf16.mxu0 %v352
      %5707 = vmatmul.mubr.bf16.gmra.mxu0 %v351
      %v5708 = vpop.f32.mrf.mxu0
      %v5709 = vadd.f32 %v5548, %v5708
      %v5710 = vpop.f32.mrf.mxu0
      %v5711 = vadd.f32 %v5550, %v5710
      %v5712 = vpop.f32.mrf.mxu0
      %v5713 = vadd.f32 %v5552, %v5712
      %v5714 = vpop.f32.mrf.mxu0
      %v5715 = vadd.f32 %v5554, %v5714
      %5716 = vmatprep.mubr.bf16.mxu0 %v356
      %5717 = vmatmul.mubr.bf16.gmra.mxu0 %v355
      %v5718 = vpop.f32.mrf.mxu0
      %v5719 = vadd.f32 %v5558, %v5718
      %v5720 = vpop.f32.mrf.mxu0
      %v5721 = vadd.f32 %v5560, %v5720
      %v5722 = vpop.f32.mrf.mxu0
      %v5723 = vadd.f32 %v5562, %v5722
      %v5724 = vpop.f32.mrf.mxu0
      %v5725 = vadd.f32 %v5564, %v5724
      %5726 = vmatprep.mubr.bf16.mxu0 %v360
      %5727 = vmatmul.mubr.bf16.gmra.mxu0 %v359
      %v5728 = vpop.f32.mrf.mxu0
      %v5729 = vadd.f32 %v5568, %v5728
      %v5730 = vpop.f32.mrf.mxu0
      %v5731 = vadd.f32 %v5570, %v5730
      %v5732 = vpop.f32.mrf.mxu0
      %v5733 = vadd.f32 %v5572, %v5732
      %v5734 = vpop.f32.mrf.mxu0
      %v5735 = vadd.f32 %v5574, %v5734
      %5736 = vmatprep.mubr.bf16.mxu0 %v364
      %5737 = vmatmul.mubr.bf16.gmra.mxu0 %v363
      %v5738 = vpop.f32.mrf.mxu0
      %v5739 = vadd.f32 %v5578, %v5738
      %v5740 = vpop.f32.mrf.mxu0
      %v5741 = vadd.f32 %v5580, %v5740
      %v5742 = vpop.f32.mrf.mxu0
      %v5743 = vadd.f32 %v5582, %v5742
      %v5744 = vpop.f32.mrf.mxu0
      %v5745 = vadd.f32 %v5584, %v5744
      %5746 = vmatprep.mubr.bf16.mxu0 %v368
      %5747 = vmatmul.mubr.bf16.gmra.mxu0 %v367
      %v5748 = vpop.f32.mrf.mxu0
      %v5749 = vadd.f32 %v5588, %v5748
      %v5750 = vpop.f32.mrf.mxu0
      %v5751 = vadd.f32 %v5590, %v5750
      %v5752 = vpop.f32.mrf.mxu0
      %v5753 = vadd.f32 %v5592, %v5752
      %v5754 = vpop.f32.mrf.mxu0
      %v5755 = vadd.f32 %v5594, %v5754
      %5756 = vmatprep.mubr.bf16.mxu0 %v372
      %5757 = vmatmul.mubr.bf16.gmra.mxu0 %v371
      %v5758 = vpop.f32.mrf.mxu0
      %v5759 = vadd.f32 %v5598, %v5758
      %v5760 = vpop.f32.mrf.mxu0
      %v5761 = vadd.f32 %v5600, %v5760
      %v5762 = vpop.f32.mrf.mxu0
      %v5763 = vadd.f32 %v5602, %v5762
      %v5764 = vpop.f32.mrf.mxu0
      %v5765 = vadd.f32 %v5604, %v5764
      %5766 = vmatprep.mubr.bf16.mxu0 %v376
      %5767 = vmatmul.mubr.bf16.gmra.mxu0 %v375
      %v5768 = vpop.f32.mrf.mxu0
      %v5769 = vadd.f32 %v5608, %v5768
      %v5770 = vpop.f32.mrf.mxu0
      %v5771 = vadd.f32 %v5610, %v5770
      %v5772 = vpop.f32.mrf.mxu0
      %v5773 = vadd.f32 %v5612, %v5772
      %v5774 = vpop.f32.mrf.mxu0
      %v5775 = vadd.f32 %v5614, %v5774
      %5776 = vmatprep.mubr.bf16.mxu0 %v380
      %5777 = vmatmul.mubr.bf16.gmra.mxu0 %v379
      %v5778 = vpop.f32.mrf.mxu0
      %v5779 = vadd.f32 %v5618, %v5778
      %v5780 = vpop.f32.mrf.mxu0
      %v5781 = vadd.f32 %v5620, %v5780
      %v5782 = vpop.f32.mrf.mxu0
      %v5783 = vadd.f32 %v5622, %v5782
      %v5784 = vpop.f32.mrf.mxu0
      %v5785 = vadd.f32 %v5624, %v5784
      %5786 = vmatprep.mubr.bf16.mxu0 %v384
      %5787 = vmatmul.mubr.bf16.gmra.mxu0 %v383
      %v5788 = vpop.f32.mrf.mxu0
      %v5789 = vadd.f32 %v5628, %v5788
      %v5790 = vpop.f32.mrf.mxu0
      %v5791 = vadd.f32 %v5630, %v5790
      %v5792 = vpop.f32.mrf.mxu0
      %v5793 = vpop.f32.mrf.mxu0
      %5794 = vdwg.mxu0
      %5795 = vmatprep.subr.bf16.mxu0 %v2644
      %5796 = vmatpush1.bf16.msra.mxu0 %v2643
      %5797 = vmatprep.subr.bf16.mxu0 %v2628
      %5798 = vmatpush1.bf16.msra.mxu0 %v2627
      %5799 = vmatprep.subr.bf16.mxu0 %v2612
      %5800 = vmatpush1.bf16.msra.mxu0 %v2611
      %5801 = vmatprep.subr.bf16.mxu0 %v2596
      %5802 = vmatpush1.bf16.msra.mxu0 %v2595
      %5803 = vmatprep.subr.bf16.mxu0 %v2580
      %5804 = vmatpush1.bf16.msra.mxu0 %v2579
      %5805 = vmatprep.subr.bf16.mxu0 %v2564
      %5806 = vmatpush1.bf16.msra.mxu0 %v2563
      %5807 = vmatprep.subr.bf16.mxu0 %v2548
      %5808 = vmatpush1.bf16.msra.mxu0 %v2547
      %5809 = vmatprep.subr.bf16.mxu0 %v2532
      %5810 = vmatpush1.bf16.msra.mxu0 %v2531
      %5811 = vmatprep.subr.bf16.mxu0 %v2772
      %5812 = vmatpush2.bf16.msra.mxu0 %v2771
      %5813 = vmatprep.subr.bf16.mxu0 %v2756
      %5814 = vmatpush2.bf16.msra.mxu0 %v2755
      %5815 = vmatprep.subr.bf16.mxu0 %v2740
      %5816 = vmatpush2.bf16.msra.mxu0 %v2739
      %5817 = vmatprep.subr.bf16.mxu0 %v2724
      %5818 = vmatpush2.bf16.msra.mxu0 %v2723
      %5819 = vmatprep.subr.bf16.mxu0 %v2708
      %5820 = vmatpush2.bf16.msra.mxu0 %v2707
      %5821 = vmatprep.subr.bf16.mxu0 %v2692
      %5822 = vmatpush2.bf16.msra.mxu0 %v2691
      %5823 = vmatprep.subr.bf16.mxu0 %v2676
      %5824 = vmatpush2.bf16.msra.mxu0 %v2675
      %5825 = vmatprep.subr.bf16.mxu0 %v2660
      %5826 = vmatpush2.bf16.msra.mxu0 %v2659
      %5827 = vmatprep.mubr.bf16.mxu0 %v334
      %5828 = vmatmul.mubr.bf16.gmra.mxu0 %v333
      %v5829 = vpop.f32.mrf.mxu0
      %v5830 = vadd.f32 %v960, %v5829
      %v5831 = vpop.f32.mrf.mxu0
      %v5832 = vadd.f32 %v964, %v5831
      %v5833 = vpop.f32.mrf.mxu0
      %v5834 = vadd.f32 %v960, %v5833
      %v5835 = vpop.f32.mrf.mxu0
      %v5836 = vadd.f32 %v964, %v5835
      %5837 = vmatprep.mubr.bf16.mxu0 %v338
      %5838 = vmatmul.mubr.bf16.gmra.mxu0 %v337
      %v5839 = vpop.f32.mrf.mxu0
      %v5840 = vadd.f32 %v960, %v5839
      %v5841 = vpop.f32.mrf.mxu0
      %v5842 = vadd.f32 %v964, %v5841
      %v5843 = vpop.f32.mrf.mxu0
      %v5844 = vadd.f32 %v960, %v5843
      %v5845 = vpop.f32.mrf.mxu0
      %v5846 = vadd.f32 %v964, %v5845
      %5847 = vmatprep.mubr.bf16.mxu0 %v342
      %5848 = vmatmul.mubr.bf16.gmra.mxu0 %v341
      %v5849 = vpop.f32.mrf.mxu0
      %v5850 = vadd.f32 %v960, %v5849
      %v5851 = vpop.f32.mrf.mxu0
      %v5852 = vadd.f32 %v964, %v5851
      %v5853 = vpop.f32.mrf.mxu0
      %v5854 = vadd.f32 %v960, %v5853
      %v5855 = vpop.f32.mrf.mxu0
      %v5856 = vadd.f32 %v964, %v5855
      %5857 = vmatprep.mubr.bf16.mxu0 %v346
      %5858 = vmatmul.mubr.bf16.gmra.mxu0 %v345
      %v5859 = vpop.f32.mrf.mxu0
      %v5860 = vadd.f32 %v960, %v5859
      %v5861 = vpop.f32.mrf.mxu0
      %v5862 = vadd.f32 %v964, %v5861
      %v5863 = vpop.f32.mrf.mxu0
      %v5864 = vadd.f32 %v960, %v5863
      %v5865 = vpop.f32.mrf.mxu0
      %v5866 = vadd.f32 %v964, %v5865
      %5867 = vmatprep.mubr.bf16.mxu0 %v350
      %5868 = vmatmul.mubr.bf16.gmra.mxu0 %v349
      %v5869 = vpop.f32.mrf.mxu0
      %v5870 = vadd.f32 %v960, %v5869
      %v5871 = vpop.f32.mrf.mxu0
      %v5872 = vadd.f32 %v964, %v5871
      %v5873 = vpop.f32.mrf.mxu0
      %v5874 = vadd.f32 %v960, %v5873
      %v5875 = vpop.f32.mrf.mxu0
      %v5876 = vadd.f32 %v964, %v5875
      %5877 = vmatprep.mubr.bf16.mxu0 %v354
      %5878 = vmatmul.mubr.bf16.gmra.mxu0 %v353
      %v5879 = vpop.f32.mrf.mxu0
      %v5880 = vadd.f32 %v960, %v5879
      %v5881 = vpop.f32.mrf.mxu0
      %v5882 = vadd.f32 %v964, %v5881
      %v5883 = vpop.f32.mrf.mxu0
      %v5884 = vadd.f32 %v960, %v5883
      %v5885 = vpop.f32.mrf.mxu0
      %v5886 = vadd.f32 %v964, %v5885
      %5887 = vmatprep.mubr.bf16.mxu0 %v358
      %5888 = vmatmul.mubr.bf16.gmra.mxu0 %v357
      %v5889 = vpop.f32.mrf.mxu0
      %v5890 = vadd.f32 %v960, %v5889
      %v5891 = vpop.f32.mrf.mxu0
      %v5892 = vadd.f32 %v964, %v5891
      %v5893 = vpop.f32.mrf.mxu0
      %v5894 = vadd.f32 %v960, %v5893
      %v5895 = vpop.f32.mrf.mxu0
      %v5896 = vadd.f32 %v964, %v5895
      %5897 = vmatprep.mubr.bf16.mxu0 %v362
      %5898 = vmatmul.mubr.bf16.gmra.mxu0 %v361
      %v5899 = vpop.f32.mrf.mxu0
      %v5900 = vadd.f32 %v960, %v5899
      %v5901 = vpop.f32.mrf.mxu0
      %v5902 = vadd.f32 %v964, %v5901
      %v5903 = vpop.f32.mrf.mxu0
      %v5904 = vadd.f32 %v960, %v5903
      %v5905 = vpop.f32.mrf.mxu0
      %v5906 = vadd.f32 %v964, %v5905
      %5907 = vmatprep.mubr.bf16.mxu0 %v366
      %5908 = vmatmul.mubr.bf16.gmra.mxu0 %v365
      %v5909 = vpop.f32.mrf.mxu0
      %v5910 = vadd.f32 %v960, %v5909
      %v5911 = vpop.f32.mrf.mxu0
      %v5912 = vadd.f32 %v964, %v5911
      %v5913 = vpop.f32.mrf.mxu0
      %v5914 = vadd.f32 %v960, %v5913
      %v5915 = vpop.f32.mrf.mxu0
      %v5916 = vadd.f32 %v964, %v5915
      %5917 = vmatprep.mubr.bf16.mxu0 %v370
      %5918 = vmatmul.mubr.bf16.gmra.mxu0 %v369
      %v5919 = vpop.f32.mrf.mxu0
      %v5920 = vadd.f32 %v960, %v5919
      %v5921 = vpop.f32.mrf.mxu0
      %v5922 = vadd.f32 %v964, %v5921
      %v5923 = vpop.f32.mrf.mxu0
      %v5924 = vadd.f32 %v960, %v5923
      %v5925 = vpop.f32.mrf.mxu0
      %v5926 = vadd.f32 %v964, %v5925
      %5927 = vmatprep.mubr.bf16.mxu0 %v374
      %5928 = vmatmul.mubr.bf16.gmra.mxu0 %v373
      %v5929 = vpop.f32.mrf.mxu0
      %v5930 = vadd.f32 %v960, %v5929
      %v5931 = vpop.f32.mrf.mxu0
      %v5932 = vadd.f32 %v964, %v5931
      %v5933 = vpop.f32.mrf.mxu0
      %v5934 = vadd.f32 %v960, %v5933
      %v5935 = vpop.f32.mrf.mxu0
      %v5936 = vadd.f32 %v964, %v5935
      %5937 = vmatprep.mubr.bf16.mxu0 %v378
      %5938 = vmatmul.mubr.bf16.gmra.mxu0 %v377
      %v5939 = vpop.f32.mrf.mxu0
      %v5940 = vadd.f32 %v960, %v5939
      %v5941 = vpop.f32.mrf.mxu0
      %v5942 = vadd.f32 %v964, %v5941
      %v5943 = vpop.f32.mrf.mxu0
      %v5944 = vadd.f32 %v960, %v5943
      %v5945 = vpop.f32.mrf.mxu0
      %v5946 = vadd.f32 %v964, %v5945
      %5947 = vmatprep.mubr.bf16.mxu0 %v382
      %5948 = vmatmul.mubr.bf16.gmra.mxu0 %v381
      %v5949 = vpop.f32.mrf.mxu0
      %v5950 = vadd.f32 %v960, %v5949
      %v5951 = vpop.f32.mrf.mxu0
      %v5952 = vadd.f32 %v964, %v5951
      %v5953 = vpop.f32.mrf.mxu0
      %v5954 = vpop.f32.mrf.mxu0
      %5955 = vdwg.mxu0
      %5956 = vmatprep.subr.bf16.mxu0 %v2900
      %5957 = vmatpush1.bf16.msra.mxu0 %v2899
      %5958 = vmatprep.subr.bf16.mxu0 %v2884
      %5959 = vmatpush1.bf16.msra.mxu0 %v2883
      %5960 = vmatprep.subr.bf16.mxu0 %v2868
      %5961 = vmatpush1.bf16.msra.mxu0 %v2867
      %5962 = vmatprep.subr.bf16.mxu0 %v2852
      %5963 = vmatpush1.bf16.msra.mxu0 %v2851
      %5964 = vmatprep.subr.bf16.mxu0 %v2836
      %5965 = vmatpush1.bf16.msra.mxu0 %v2835
      %5966 = vmatprep.subr.bf16.mxu0 %v2820
      %5967 = vmatpush1.bf16.msra.mxu0 %v2819
      %5968 = vmatprep.subr.bf16.mxu0 %v2804
      %5969 = vmatpush1.bf16.msra.mxu0 %v2803
      %5970 = vmatprep.subr.bf16.mxu0 %v2788
      %5971 = vmatpush1.bf16.msra.mxu0 %v2787
      %5972 = vmatprep.subr.bf16.mxu0 %v3028
      %5973 = vmatpush2.bf16.msra.mxu0 %v3027
      %5974 = vmatprep.subr.bf16.mxu0 %v3012
      %5975 = vmatpush2.bf16.msra.mxu0 %v3011
      %5976 = vmatprep.subr.bf16.mxu0 %v2996
      %5977 = vmatpush2.bf16.msra.mxu0 %v2995
      %5978 = vmatprep.subr.bf16.mxu0 %v2980
      %5979 = vmatpush2.bf16.msra.mxu0 %v2979
      %5980 = vmatprep.subr.bf16.mxu0 %v2964
      %5981 = vmatpush2.bf16.msra.mxu0 %v2963
      %5982 = vmatprep.subr.bf16.mxu0 %v2948
      %5983 = vmatpush2.bf16.msra.mxu0 %v2947
      %5984 = vmatprep.subr.bf16.mxu0 %v2932
      %5985 = vmatpush2.bf16.msra.mxu0 %v2931
      %5986 = vmatprep.subr.bf16.mxu0 %v2916
      %5987 = vmatpush2.bf16.msra.mxu0 %v2915
      %5988 = vmatprep.mubr.bf16.mxu0 %v336
      %5989 = vmatmul.mubr.bf16.gmra.mxu0 %v335
      %v5990 = vpop.f32.mrf.mxu0
      %v5991 = vadd.f32 %v5830, %v5990
      %v5992 = vpop.f32.mrf.mxu0
      %v5993 = vadd.f32 %v5832, %v5992
      %v5994 = vpop.f32.mrf.mxu0
      %v5995 = vadd.f32 %v5834, %v5994
      %v5996 = vpop.f32.mrf.mxu0
      %v5997 = vadd.f32 %v5836, %v5996
      %5998 = vmatprep.mubr.bf16.mxu0 %v340
      %5999 = vmatmul.mubr.bf16.gmra.mxu0 %v339
      %v6000 = vpop.f32.mrf.mxu0
      %v6001 = vadd.f32 %v5840, %v6000
      %v6002 = vpop.f32.mrf.mxu0
      %v6003 = vadd.f32 %v5842, %v6002
      %v6004 = vpop.f32.mrf.mxu0
      %v6005 = vadd.f32 %v5844, %v6004
      %v6006 = vpop.f32.mrf.mxu0
      %v6007 = vadd.f32 %v5846, %v6006
      %6008 = vmatprep.mubr.bf16.mxu0 %v344
      %6009 = vmatmul.mubr.bf16.gmra.mxu0 %v343
      %v6010 = vpop.f32.mrf.mxu0
      %v6011 = vadd.f32 %v5850, %v6010
      %v6012 = vpop.f32.mrf.mxu0
      %v6013 = vadd.f32 %v5852, %v6012
      %v6014 = vpop.f32.mrf.mxu0
      %v6015 = vadd.f32 %v5854, %v6014
      %v6016 = vpop.f32.mrf.mxu0
      %v6017 = vadd.f32 %v5856, %v6016
      %6018 = vmatprep.mubr.bf16.mxu0 %v348
      %6019 = vmatmul.mubr.bf16.gmra.mxu0 %v347
      %v6020 = vpop.f32.mrf.mxu0
      %v6021 = vadd.f32 %v5860, %v6020
      %v6022 = vpop.f32.mrf.mxu0
      %v6023 = vadd.f32 %v5862, %v6022
      %v6024 = vpop.f32.mrf.mxu0
      %v6025 = vadd.f32 %v5864, %v6024
      %v6026 = vpop.f32.mrf.mxu0
      %v6027 = vadd.f32 %v5866, %v6026
      %6028 = vmatprep.mubr.bf16.mxu0 %v352
      %6029 = vmatmul.mubr.bf16.gmra.mxu0 %v351
      %v6030 = vpop.f32.mrf.mxu0
      %v6031 = vadd.f32 %v5870, %v6030
      %v6032 = vpop.f32.mrf.mxu0
      %v6033 = vadd.f32 %v5872, %v6032
      %v6034 = vpop.f32.mrf.mxu0
      %v6035 = vadd.f32 %v5874, %v6034
      %v6036 = vpop.f32.mrf.mxu0
      %v6037 = vadd.f32 %v5876, %v6036
      %6038 = vmatprep.mubr.bf16.mxu0 %v356
      %6039 = vmatmul.mubr.bf16.gmra.mxu0 %v355
      %v6040 = vpop.f32.mrf.mxu0
      %v6041 = vadd.f32 %v5880, %v6040
      %v6042 = vpop.f32.mrf.mxu0
      %v6043 = vadd.f32 %v5882, %v6042
      %v6044 = vpop.f32.mrf.mxu0
      %v6045 = vadd.f32 %v5884, %v6044
      %v6046 = vpop.f32.mrf.mxu0
      %v6047 = vadd.f32 %v5886, %v6046
      %6048 = vmatprep.mubr.bf16.mxu0 %v360
      %6049 = vmatmul.mubr.bf16.gmra.mxu0 %v359
      %v6050 = vpop.f32.mrf.mxu0
      %v6051 = vadd.f32 %v5890, %v6050
      %v6052 = vpop.f32.mrf.mxu0
      %v6053 = vadd.f32 %v5892, %v6052
      %v6054 = vpop.f32.mrf.mxu0
      %v6055 = vadd.f32 %v5894, %v6054
      %v6056 = vpop.f32.mrf.mxu0
      %v6057 = vadd.f32 %v5896, %v6056
      %6058 = vmatprep.mubr.bf16.mxu0 %v364
      %6059 = vmatmul.mubr.bf16.gmra.mxu0 %v363
      %v6060 = vpop.f32.mrf.mxu0
      %v6061 = vadd.f32 %v5900, %v6060
      %v6062 = vpop.f32.mrf.mxu0
      %v6063 = vadd.f32 %v5902, %v6062
      %v6064 = vpop.f32.mrf.mxu0
      %v6065 = vadd.f32 %v5904, %v6064
      %v6066 = vpop.f32.mrf.mxu0
      %v6067 = vadd.f32 %v5906, %v6066
      %6068 = vmatprep.mubr.bf16.mxu0 %v368
      %6069 = vmatmul.mubr.bf16.gmra.mxu0 %v367
      %v6070 = vpop.f32.mrf.mxu0
      %v6071 = vadd.f32 %v5910, %v6070
      %v6072 = vpop.f32.mrf.mxu0
      %v6073 = vadd.f32 %v5912, %v6072
      %v6074 = vpop.f32.mrf.mxu0
      %v6075 = vadd.f32 %v5914, %v6074
      %v6076 = vpop.f32.mrf.mxu0
      %v6077 = vadd.f32 %v5916, %v6076
      %6078 = vmatprep.mubr.bf16.mxu0 %v372
      %6079 = vmatmul.mubr.bf16.gmra.mxu0 %v371
      %v6080 = vpop.f32.mrf.mxu0
      %v6081 = vadd.f32 %v5920, %v6080
      %v6082 = vpop.f32.mrf.mxu0
      %v6083 = vadd.f32 %v5922, %v6082
      %v6084 = vpop.f32.mrf.mxu0
      %v6085 = vadd.f32 %v5924, %v6084
      %v6086 = vpop.f32.mrf.mxu0
      %v6087 = vadd.f32 %v5926, %v6086
      %6088 = vmatprep.mubr.bf16.mxu0 %v376
      %6089 = vmatmul.mubr.bf16.gmra.mxu0 %v375
      %v6090 = vpop.f32.mrf.mxu0
      %v6091 = vadd.f32 %v5930, %v6090
      %v6092 = vpop.f32.mrf.mxu0
      %v6093 = vadd.f32 %v5932, %v6092
      %v6094 = vpop.f32.mrf.mxu0
      %v6095 = vadd.f32 %v5934, %v6094
      %v6096 = vpop.f32.mrf.mxu0
      %v6097 = vadd.f32 %v5936, %v6096
      %6098 = vmatprep.mubr.bf16.mxu0 %v380
      %6099 = vmatmul.mubr.bf16.gmra.mxu0 %v379
      %v6100 = vpop.f32.mrf.mxu0
      %v6101 = vadd.f32 %v5940, %v6100
      %v6102 = vpop.f32.mrf.mxu0
      %v6103 = vadd.f32 %v5942, %v6102
      %v6104 = vpop.f32.mrf.mxu0
      %v6105 = vadd.f32 %v5944, %v6104
      %v6106 = vpop.f32.mrf.mxu0
      %v6107 = vadd.f32 %v5946, %v6106
      %6108 = vmatprep.mubr.bf16.mxu0 %v384
      %6109 = vmatmul.mubr.bf16.gmra.mxu0 %v383
      %v6110 = vpop.f32.mrf.mxu0
      %v6111 = vadd.f32 %v5950, %v6110
      %v6112 = vpop.f32.mrf.mxu0
      %v6113 = vadd.f32 %v5952, %v6112
      %v6114 = vpop.f32.mrf.mxu0
      %v6115 = vpop.f32.mrf.mxu0
      %6116 = vdwg.mxu0
      %v6117 = vmax.f32 %v3737, 0.0
      %v6118 = vmax.f32 %v3739, 0.0
      %v6119 = vmax.f32 %v4059, 0.0
      %v6120 = vmax.f32 %v4061, 0.0
      %v6121 = vmax.f32 %v4381, 0.0
      %v6122 = vmax.f32 %v4383, 0.0
      %v6123 = vmax.f32 %v4703, 0.0
      %v6124 = vmax.f32 %v4705, 0.0
      %v6125 = vmax.f32 %v5025, 0.0
      %v6126 = vmax.f32 %v5027, 0.0
      %v6127 = vmax.f32 %v5347, 0.0
      %v6128 = vmax.f32 %v5349, 0.0
      %v6129 = vmax.f32 %v5669, 0.0
      %v6130 = vmax.f32 %v5671, 0.0
      %v6131 = vmax.f32 %v5991, 0.0
      %v6132 = vmax.f32 %v5993, 0.0
      %v6133 = vmax.f32 %v3741, 0.0
      %v6134 = vmax.f32 %v3743, 0.0
      %v6135 = vmax.f32 %v4063, 0.0
      %v6136 = vmax.f32 %v4065, 0.0
      %v6137 = vmax.f32 %v4385, 0.0
      %v6138 = vmax.f32 %v4387, 0.0
      %v6139 = vmax.f32 %v4707, 0.0
      %v6140 = vmax.f32 %v4709, 0.0
      %v6141 = vmax.f32 %v5029, 0.0
      %v6142 = vmax.f32 %v5031, 0.0
      %v6143 = vmax.f32 %v5351, 0.0
      %v6144 = vmax.f32 %v5353, 0.0
      %v6145 = vmax.f32 %v5673, 0.0
      %v6146 = vmax.f32 %v5675, 0.0
      %v6147 = vmax.f32 %v5995, 0.0
      %v6148 = vmax.f32 %v5997, 0.0
      %v6149 = vmax.f32 %v3747, 0.0
      %v6150 = vmax.f32 %v3749, 0.0
      %v6151 = vmax.f32 %v4069, 0.0
      %v6152 = vmax.f32 %v4071, 0.0
      %v6153 = vmax.f32 %v4391, 0.0
      %v6154 = vmax.f32 %v4393, 0.0
      %v6155 = vmax.f32 %v4713, 0.0
      %v6156 = vmax.f32 %v4715, 0.0
      %v6157 = vmax.f32 %v5035, 0.0
      %v6158 = vmax.f32 %v5037, 0.0
      %v6159 = vmax.f32 %v5357, 0.0
      %v6160 = vmax.f32 %v5359, 0.0
      %v6161 = vmax.f32 %v5679, 0.0
      %v6162 = vmax.f32 %v5681, 0.0
      %v6163 = vmax.f32 %v6001, 0.0
      %v6164 = vmax.f32 %v6003, 0.0
      %v6165 = vmax.f32 %v3751, 0.0
      %v6166 = vmax.f32 %v3753, 0.0
      %v6167 = vmax.f32 %v4073, 0.0
      %v6168 = vmax.f32 %v4075, 0.0
      %v6169 = vmax.f32 %v4395, 0.0
      %v6170 = vmax.f32 %v4397, 0.0
      %v6171 = vmax.f32 %v4717, 0.0
      %v6172 = vmax.f32 %v4719, 0.0
      %v6173 = vmax.f32 %v5039, 0.0
      %v6174 = vmax.f32 %v5041, 0.0
      %v6175 = vmax.f32 %v5361, 0.0
      %v6176 = vmax.f32 %v5363, 0.0
      %v6177 = vmax.f32 %v5683, 0.0
      %v6178 = vmax.f32 %v5685, 0.0
      %v6179 = vmax.f32 %v6005, 0.0
      %v6180 = vmax.f32 %v6007, 0.0
      %v6181 = vmax.f32 %v3757, 0.0
      %v6182 = vmax.f32 %v3759, 0.0
      %v6183 = vmax.f32 %v4079, 0.0
      %v6184 = vmax.f32 %v4081, 0.0
      %v6185 = vmax.f32 %v4401, 0.0
      %v6186 = vmax.f32 %v4403, 0.0
      %v6187 = vmax.f32 %v4723, 0.0
      %v6188 = vmax.f32 %v4725, 0.0
      %v6189 = vmax.f32 %v5045, 0.0
      %v6190 = vmax.f32 %v5047, 0.0
      %v6191 = vmax.f32 %v5367, 0.0
      %v6192 = vmax.f32 %v5369, 0.0
      %v6193 = vmax.f32 %v5689, 0.0
      %v6194 = vmax.f32 %v5691, 0.0
      %v6195 = vmax.f32 %v6011, 0.0
      %v6196 = vmax.f32 %v6013, 0.0
      %v6197 = vmax.f32 %v3761, 0.0
      %v6198 = vmax.f32 %v3763, 0.0
      %v6199 = vmax.f32 %v4083, 0.0
      %v6200 = vmax.f32 %v4085, 0.0
      %v6201 = vmax.f32 %v4405, 0.0
      %v6202 = vmax.f32 %v4407, 0.0
      %v6203 = vmax.f32 %v4727, 0.0
      %v6204 = vmax.f32 %v4729, 0.0
      %v6205 = vmax.f32 %v5049, 0.0
      %v6206 = vmax.f32 %v5051, 0.0
      %v6207 = vmax.f32 %v5371, 0.0
      %v6208 = vmax.f32 %v5373, 0.0
      %v6209 = vmax.f32 %v5693, 0.0
      %v6210 = vmax.f32 %v5695, 0.0
      %v6211 = vmax.f32 %v6015, 0.0
      %v6212 = vmax.f32 %v6017, 0.0
      %v6213 = vmax.f32 %v3767, 0.0
      %v6214 = vmax.f32 %v3769, 0.0
      %v6215 = vmax.f32 %v4089, 0.0
      %v6216 = vmax.f32 %v4091, 0.0
      %v6217 = vmax.f32 %v4411, 0.0
      %v6218 = vmax.f32 %v4413, 0.0
      %v6219 = vmax.f32 %v4733, 0.0
      %v6220 = vmax.f32 %v4735, 0.0
      %v6221 = vmax.f32 %v5055, 0.0
      %v6222 = vmax.f32 %v5057, 0.0
      %v6223 = vmax.f32 %v5377, 0.0
      %v6224 = vmax.f32 %v5379, 0.0
      %v6225 = vmax.f32 %v5699, 0.0
      %v6226 = vmax.f32 %v5701, 0.0
      %v6227 = vmax.f32 %v6021, 0.0
      %v6228 = vmax.f32 %v6023, 0.0
      %v6229 = vmax.f32 %v3771, 0.0
      %v6230 = vmax.f32 %v3773, 0.0
      %v6231 = vmax.f32 %v4093, 0.0
      %v6232 = vmax.f32 %v4095, 0.0
      %v6233 = vmax.f32 %v4415, 0.0
      %v6234 = vmax.f32 %v4417, 0.0
      %v6235 = vmax.f32 %v4737, 0.0
      %v6236 = vmax.f32 %v4739, 0.0
      %v6237 = vmax.f32 %v5059, 0.0
      %v6238 = vmax.f32 %v5061, 0.0
      %v6239 = vmax.f32 %v5381, 0.0
      %v6240 = vmax.f32 %v5383, 0.0
      %v6241 = vmax.f32 %v5703, 0.0
      %v6242 = vmax.f32 %v5705, 0.0
      %v6243 = vmax.f32 %v6025, 0.0
      %v6244 = vmax.f32 %v6027, 0.0
      %v6245 = vmax.f32 %v3777, 0.0
      %v6246 = vmax.f32 %v3779, 0.0
      %v6247 = vmax.f32 %v4099, 0.0
      %v6248 = vmax.f32 %v4101, 0.0
      %v6249 = vmax.f32 %v4421, 0.0
      %v6250 = vmax.f32 %v4423, 0.0
      %v6251 = vmax.f32 %v4743, 0.0
      %v6252 = vmax.f32 %v4745, 0.0
      %v6253 = vmax.f32 %v5065, 0.0
      %v6254 = vmax.f32 %v5067, 0.0
      %v6255 = vmax.f32 %v5387, 0.0
      %v6256 = vmax.f32 %v5389, 0.0
      %v6257 = vmax.f32 %v5709, 0.0
      %v6258 = vmax.f32 %v5711, 0.0
      %v6259 = vmax.f32 %v6031, 0.0
      %v6260 = vmax.f32 %v6033, 0.0
      %v6261 = vmax.f32 %v3781, 0.0
      %v6262 = vmax.f32 %v3783, 0.0
      %v6263 = vmax.f32 %v4103, 0.0
      %v6264 = vmax.f32 %v4105, 0.0
      %v6265 = vmax.f32 %v4425, 0.0
      %v6266 = vmax.f32 %v4427, 0.0
      %v6267 = vmax.f32 %v4747, 0.0
      %v6268 = vmax.f32 %v4749, 0.0
      %v6269 = vmax.f32 %v5069, 0.0
      %v6270 = vmax.f32 %v5071, 0.0
      %v6271 = vmax.f32 %v5391, 0.0
      %v6272 = vmax.f32 %v5393, 0.0
      %v6273 = vmax.f32 %v5713, 0.0
      %v6274 = vmax.f32 %v5715, 0.0
      %v6275 = vmax.f32 %v6035, 0.0
      %v6276 = vmax.f32 %v6037, 0.0
      %v6277 = vmax.f32 %v3787, 0.0
      %v6278 = vmax.f32 %v3789, 0.0
      %v6279 = vmax.f32 %v4109, 0.0
      %v6280 = vmax.f32 %v4111, 0.0
      %v6281 = vmax.f32 %v4431, 0.0
      %v6282 = vmax.f32 %v4433, 0.0
      %v6283 = vmax.f32 %v4753, 0.0
      %v6284 = vmax.f32 %v4755, 0.0
      %v6285 = vmax.f32 %v5075, 0.0
      %v6286 = vmax.f32 %v5077, 0.0
      %v6287 = vmax.f32 %v5397, 0.0
      %v6288 = vmax.f32 %v5399, 0.0
      %v6289 = vmax.f32 %v5719, 0.0
      %v6290 = vmax.f32 %v5721, 0.0
      %v6291 = vmax.f32 %v6041, 0.0
      %v6292 = vmax.f32 %v6043, 0.0
      %v6293 = vmax.f32 %v3791, 0.0
      %v6294 = vmax.f32 %v3793, 0.0
      %v6295 = vmax.f32 %v4113, 0.0
      %v6296 = vmax.f32 %v4115, 0.0
      %v6297 = vmax.f32 %v4435, 0.0
      %v6298 = vmax.f32 %v4437, 0.0
      %v6299 = vmax.f32 %v4757, 0.0
      %v6300 = vmax.f32 %v4759, 0.0
      %v6301 = vmax.f32 %v5079, 0.0
      %v6302 = vmax.f32 %v5081, 0.0
      %v6303 = vmax.f32 %v5401, 0.0
      %v6304 = vmax.f32 %v5403, 0.0
      %v6305 = vmax.f32 %v5723, 0.0
      %v6306 = vmax.f32 %v5725, 0.0
      %v6307 = vmax.f32 %v6045, 0.0
      %v6308 = vmax.f32 %v6047, 0.0
      %v6309 = vmax.f32 %v3797, 0.0
      %v6310 = vmax.f32 %v3799, 0.0
      %v6311 = vmax.f32 %v4119, 0.0
      %v6312 = vmax.f32 %v4121, 0.0
      %v6313 = vmax.f32 %v4441, 0.0
      %v6314 = vmax.f32 %v4443, 0.0
      %v6315 = vmax.f32 %v4763, 0.0
      %v6316 = vmax.f32 %v4765, 0.0
      %v6317 = vmax.f32 %v5085, 0.0
      %v6318 = vmax.f32 %v5087, 0.0
      %v6319 = vmax.f32 %v5407, 0.0
      %v6320 = vmax.f32 %v5409, 0.0
      %v6321 = vmax.f32 %v5729, 0.0
      %v6322 = vmax.f32 %v5731, 0.0
      %v6323 = vmax.f32 %v6051, 0.0
      %v6324 = vmax.f32 %v6053, 0.0
      %v6325 = vmax.f32 %v3801, 0.0
      %v6326 = vmax.f32 %v3803, 0.0
      %v6327 = vmax.f32 %v4123, 0.0
      %v6328 = vmax.f32 %v4125, 0.0
      %v6329 = vmax.f32 %v4445, 0.0
      %v6330 = vmax.f32 %v4447, 0.0
      %v6331 = vmax.f32 %v4767, 0.0
      %v6332 = vmax.f32 %v4769, 0.0
      %v6333 = vmax.f32 %v5089, 0.0
      %v6334 = vmax.f32 %v5091, 0.0
      %v6335 = vmax.f32 %v5411, 0.0
      %v6336 = vmax.f32 %v5413, 0.0
      %v6337 = vmax.f32 %v5733, 0.0
      %v6338 = vmax.f32 %v5735, 0.0
      %v6339 = vmax.f32 %v6055, 0.0
      %v6340 = vmax.f32 %v6057, 0.0
      %v6341 = vmax.f32 %v3807, 0.0
      %v6342 = vmax.f32 %v3809, 0.0
      %v6343 = vmax.f32 %v4129, 0.0
      %v6344 = vmax.f32 %v4131, 0.0
      %v6345 = vmax.f32 %v4451, 0.0
      %v6346 = vmax.f32 %v4453, 0.0
      %v6347 = vmax.f32 %v4773, 0.0
      %v6348 = vmax.f32 %v4775, 0.0
      %v6349 = vmax.f32 %v5095, 0.0
      %v6350 = vmax.f32 %v5097, 0.0
      %v6351 = vmax.f32 %v5417, 0.0
      %v6352 = vmax.f32 %v5419, 0.0
      %v6353 = vmax.f32 %v5739, 0.0
      %v6354 = vmax.f32 %v5741, 0.0
      %v6355 = vmax.f32 %v6061, 0.0
      %v6356 = vmax.f32 %v6063, 0.0
      %v6357 = vmax.f32 %v3811, 0.0
      %v6358 = vmax.f32 %v3813, 0.0
      %v6359 = vmax.f32 %v4133, 0.0
      %v6360 = vmax.f32 %v4135, 0.0
      %v6361 = vmax.f32 %v4455, 0.0
      %v6362 = vmax.f32 %v4457, 0.0
      %v6363 = vmax.f32 %v4777, 0.0
      %v6364 = vmax.f32 %v4779, 0.0
      %v6365 = vmax.f32 %v5099, 0.0
      %v6366 = vmax.f32 %v5101, 0.0
      %v6367 = vmax.f32 %v5421, 0.0
      %v6368 = vmax.f32 %v5423, 0.0
      %v6369 = vmax.f32 %v5743, 0.0
      %v6370 = vmax.f32 %v5745, 0.0
      %v6371 = vmax.f32 %v6065, 0.0
      %v6372 = vmax.f32 %v6067, 0.0
      %v6373 = vmax.f32 %v3817, 0.0
      %v6374 = vmax.f32 %v3819, 0.0
      %v6375 = vmax.f32 %v4139, 0.0
      %v6376 = vmax.f32 %v4141, 0.0
      %v6377 = vmax.f32 %v4461, 0.0
      %v6378 = vmax.f32 %v4463, 0.0
      %v6379 = vmax.f32 %v4783, 0.0
      %v6380 = vmax.f32 %v4785, 0.0
      %v6381 = vmax.f32 %v5105, 0.0
      %v6382 = vmax.f32 %v5107, 0.0
      %v6383 = vmax.f32 %v5427, 0.0
      %v6384 = vmax.f32 %v5429, 0.0
      %v6385 = vmax.f32 %v5749, 0.0
      %v6386 = vmax.f32 %v5751, 0.0
      %v6387 = vmax.f32 %v6071, 0.0
      %v6388 = vmax.f32 %v6073, 0.0
      %v6389 = vmax.f32 %v3821, 0.0
      %v6390 = vmax.f32 %v3823, 0.0
      %v6391 = vmax.f32 %v4143, 0.0
      %v6392 = vmax.f32 %v4145, 0.0
      %v6393 = vmax.f32 %v4465, 0.0
      %v6394 = vmax.f32 %v4467, 0.0
      %v6395 = vmax.f32 %v4787, 0.0
      %v6396 = vmax.f32 %v4789, 0.0
      %v6397 = vmax.f32 %v5109, 0.0
      %v6398 = vmax.f32 %v5111, 0.0
      %v6399 = vmax.f32 %v5431, 0.0
      %v6400 = vmax.f32 %v5433, 0.0
      %v6401 = vmax.f32 %v5753, 0.0
      %v6402 = vmax.f32 %v5755, 0.0
      %v6403 = vmax.f32 %v6075, 0.0
      %v6404 = vmax.f32 %v6077, 0.0
      %v6405 = vmax.f32 %v3827, 0.0
      %v6406 = vmax.f32 %v3829, 0.0
      %v6407 = vmax.f32 %v4149, 0.0
      %v6408 = vmax.f32 %v4151, 0.0
      %v6409 = vmax.f32 %v4471, 0.0
      %v6410 = vmax.f32 %v4473, 0.0
      %v6411 = vmax.f32 %v4793, 0.0
      %v6412 = vmax.f32 %v4795, 0.0
      %v6413 = vmax.f32 %v5115, 0.0
      %v6414 = vmax.f32 %v5117, 0.0
      %v6415 = vmax.f32 %v5437, 0.0
      %v6416 = vmax.f32 %v5439, 0.0
      %v6417 = vmax.f32 %v5759, 0.0
      %v6418 = vmax.f32 %v5761, 0.0
      %v6419 = vmax.f32 %v6081, 0.0
      %v6420 = vmax.f32 %v6083, 0.0
      %v6421 = vmax.f32 %v3831, 0.0
      %v6422 = vmax.f32 %v3833, 0.0
      %v6423 = vmax.f32 %v4153, 0.0
      %v6424 = vmax.f32 %v4155, 0.0
      %v6425 = vmax.f32 %v4475, 0.0
      %v6426 = vmax.f32 %v4477, 0.0
      %v6427 = vmax.f32 %v4797, 0.0
      %v6428 = vmax.f32 %v4799, 0.0
      %v6429 = vmax.f32 %v5119, 0.0
      %v6430 = vmax.f32 %v5121, 0.0
      %v6431 = vmax.f32 %v5441, 0.0
      %v6432 = vmax.f32 %v5443, 0.0
      %v6433 = vmax.f32 %v5763, 0.0
      %v6434 = vmax.f32 %v5765, 0.0
      %v6435 = vmax.f32 %v6085, 0.0
      %v6436 = vmax.f32 %v6087, 0.0
      %v6437 = vmax.f32 %v3837, 0.0
      %v6438 = vmax.f32 %v3839, 0.0
      %v6439 = vmax.f32 %v4159, 0.0
      %v6440 = vmax.f32 %v4161, 0.0
      %v6441 = vmax.f32 %v4481, 0.0
      %v6442 = vmax.f32 %v4483, 0.0
      %v6443 = vmax.f32 %v4803, 0.0
      %v6444 = vmax.f32 %v4805, 0.0
      %v6445 = vmax.f32 %v5125, 0.0
      %v6446 = vmax.f32 %v5127, 0.0
      %v6447 = vmax.f32 %v5447, 0.0
      %v6448 = vmax.f32 %v5449, 0.0
      %v6449 = vmax.f32 %v5769, 0.0
      %v6450 = vmax.f32 %v5771, 0.0
      %v6451 = vmax.f32 %v6091, 0.0
      %v6452 = vmax.f32 %v6093, 0.0
      %v6453 = vmax.f32 %v3841, 0.0
      %v6454 = vmax.f32 %v3843, 0.0
      %v6455 = vmax.f32 %v4163, 0.0
      %v6456 = vmax.f32 %v4165, 0.0
      %v6457 = vmax.f32 %v4485, 0.0
      %v6458 = vmax.f32 %v4487, 0.0
      %v6459 = vmax.f32 %v4807, 0.0
      %v6460 = vmax.f32 %v4809, 0.0
      %v6461 = vmax.f32 %v5129, 0.0
      %v6462 = vmax.f32 %v5131, 0.0
      %v6463 = vmax.f32 %v5451, 0.0
      %v6464 = vmax.f32 %v5453, 0.0
      %v6465 = vmax.f32 %v5773, 0.0
      %v6466 = vmax.f32 %v5775, 0.0
      %v6467 = vmax.f32 %v6095, 0.0
      %v6468 = vmax.f32 %v6097, 0.0
      %v6469 = vmax.f32 %v3847, 0.0
      %v6470 = vmax.f32 %v3849, 0.0
      %v6471 = vmax.f32 %v4169, 0.0
      %v6472 = vmax.f32 %v4171, 0.0
      %v6473 = vmax.f32 %v4491, 0.0
      %v6474 = vmax.f32 %v4493, 0.0
      %v6475 = vmax.f32 %v4813, 0.0
      %v6476 = vmax.f32 %v4815, 0.0
      %v6477 = vmax.f32 %v5135, 0.0
      %v6478 = vmax.f32 %v5137, 0.0
      %v6479 = vmax.f32 %v5457, 0.0
      %v6480 = vmax.f32 %v5459, 0.0
      %v6481 = vmax.f32 %v5779, 0.0
      %v6482 = vmax.f32 %v5781, 0.0
      %v6483 = vmax.f32 %v6101, 0.0
      %v6484 = vmax.f32 %v6103, 0.0
      %v6485 = vmax.f32 %v3851, 0.0
      %v6486 = vmax.f32 %v3853, 0.0
      %v6487 = vmax.f32 %v4173, 0.0
      %v6488 = vmax.f32 %v4175, 0.0
      %v6489 = vmax.f32 %v4495, 0.0
      %v6490 = vmax.f32 %v4497, 0.0
      %v6491 = vmax.f32 %v4817, 0.0
      %v6492 = vmax.f32 %v4819, 0.0
      %v6493 = vmax.f32 %v5139, 0.0
      %v6494 = vmax.f32 %v5141, 0.0
      %v6495 = vmax.f32 %v5461, 0.0
      %v6496 = vmax.f32 %v5463, 0.0
      %v6497 = vmax.f32 %v5783, 0.0
      %v6498 = vmax.f32 %v5785, 0.0
      %v6499 = vmax.f32 %v6105, 0.0
      %v6500 = vmax.f32 %v6107, 0.0
      %v6501 = vmax.f32 %v3857, 0.0
      %v6502 = vmax.f32 %v3859, 0.0
      %v6503 = vmax.f32 %v4179, 0.0
      %v6504 = vmax.f32 %v4181, 0.0
      %v6505 = vmax.f32 %v4501, 0.0
      %v6506 = vmax.f32 %v4503, 0.0
      %v6507 = vmax.f32 %v4823, 0.0
      %v6508 = vmax.f32 %v4825, 0.0
      %v6509 = vmax.f32 %v5145, 0.0
      %v6510 = vmax.f32 %v5147, 0.0
      %v6511 = vmax.f32 %v5467, 0.0
      %v6512 = vmax.f32 %v5469, 0.0
      %v6513 = vmax.f32 %v5789, 0.0
      %v6514 = vmax.f32 %v5791, 0.0
      %v6515 = vmax.f32 %v6111, 0.0
      %v6516 = vmax.f32 %v6113, 0.0
      %v6517 = vpack.c.bf16 %v6133, %v6117
      %v6518 = vpack.c.bf16 %v6134, %v6118
      %v6519 = vpack.c.bf16 %v6135, %v6119
      %v6520 = vpack.c.bf16 %v6136, %v6120
      %v6521 = vpack.c.bf16 %v6137, %v6121
      %v6522 = vpack.c.bf16 %v6138, %v6122
      %v6523 = vpack.c.bf16 %v6139, %v6123
      %v6524 = vpack.c.bf16 %v6140, %v6124
      %v6525 = vpack.c.bf16 %v6141, %v6125
      %v6526 = vpack.c.bf16 %v6142, %v6126
      %v6527 = vpack.c.bf16 %v6143, %v6127
      %v6528 = vpack.c.bf16 %v6144, %v6128
      %v6529 = vpack.c.bf16 %v6145, %v6129
      %v6530 = vpack.c.bf16 %v6146, %v6130
      %v6531 = vpack.c.bf16 %v6147, %v6131
      %v6532 = vpack.c.bf16 %v6148, %v6132
      %v6533 = vpack.c.bf16 %v6165, %v6149
      %v6534 = vpack.c.bf16 %v6166, %v6150
      %v6535 = vpack.c.bf16 %v6167, %v6151
      %v6536 = vpack.c.bf16 %v6168, %v6152
      %v6537 = vpack.c.bf16 %v6169, %v6153
      %v6538 = vpack.c.bf16 %v6170, %v6154
      %v6539 = vpack.c.bf16 %v6171, %v6155
      %v6540 = vpack.c.bf16 %v6172, %v6156
      %v6541 = vpack.c.bf16 %v6173, %v6157
      %v6542 = vpack.c.bf16 %v6174, %v6158
      %v6543 = vpack.c.bf16 %v6175, %v6159
      %v6544 = vpack.c.bf16 %v6176, %v6160
      %v6545 = vpack.c.bf16 %v6177, %v6161
      %v6546 = vpack.c.bf16 %v6178, %v6162
      %v6547 = vpack.c.bf16 %v6179, %v6163
      %v6548 = vpack.c.bf16 %v6180, %v6164
      %v6549 = vpack.c.bf16 %v6197, %v6181
      %v6550 = vpack.c.bf16 %v6198, %v6182
      %v6551 = vpack.c.bf16 %v6199, %v6183
      %v6552 = vpack.c.bf16 %v6200, %v6184
      %v6553 = vpack.c.bf16 %v6201, %v6185
      %v6554 = vpack.c.bf16 %v6202, %v6186
      %v6555 = vpack.c.bf16 %v6203, %v6187
      %v6556 = vpack.c.bf16 %v6204, %v6188
      %v6557 = vpack.c.bf16 %v6205, %v6189
      %v6558 = vpack.c.bf16 %v6206, %v6190
      %v6559 = vpack.c.bf16 %v6207, %v6191
      %v6560 = vpack.c.bf16 %v6208, %v6192
      %v6561 = vpack.c.bf16 %v6209, %v6193
      %v6562 = vpack.c.bf16 %v6210, %v6194
      %v6563 = vpack.c.bf16 %v6211, %v6195
      %v6564 = vpack.c.bf16 %v6212, %v6196
      %v6565 = vpack.c.bf16 %v6229, %v6213
      %v6566 = vpack.c.bf16 %v6230, %v6214
      %v6567 = vpack.c.bf16 %v6231, %v6215
      %v6568 = vpack.c.bf16 %v6232, %v6216
      %v6569 = vpack.c.bf16 %v6233, %v6217
      %v6570 = vpack.c.bf16 %v6234, %v6218
      %v6571 = vpack.c.bf16 %v6235, %v6219
      %v6572 = vpack.c.bf16 %v6236, %v6220
      %v6573 = vpack.c.bf16 %v6237, %v6221
      %v6574 = vpack.c.bf16 %v6238, %v6222
      %v6575 = vpack.c.bf16 %v6239, %v6223
      %v6576 = vpack.c.bf16 %v6240, %v6224
      %v6577 = vpack.c.bf16 %v6241, %v6225
      %v6578 = vpack.c.bf16 %v6242, %v6226
      %v6579 = vpack.c.bf16 %v6243, %v6227
      %v6580 = vpack.c.bf16 %v6244, %v6228
      %v6581 = vpack.c.bf16 %v6261, %v6245
      %v6582 = vpack.c.bf16 %v6262, %v6246
      %v6583 = vpack.c.bf16 %v6263, %v6247
      %v6584 = vpack.c.bf16 %v6264, %v6248
      %v6585 = vpack.c.bf16 %v6265, %v6249
      %v6586 = vpack.c.bf16 %v6266, %v6250
      %v6587 = vpack.c.bf16 %v6267, %v6251
      %v6588 = vpack.c.bf16 %v6268, %v6252
      %v6589 = vpack.c.bf16 %v6269, %v6253
      %v6590 = vpack.c.bf16 %v6270, %v6254
      %v6591 = vpack.c.bf16 %v6271, %v6255
      %v6592 = vpack.c.bf16 %v6272, %v6256
      %v6593 = vpack.c.bf16 %v6273, %v6257
      %v6594 = vpack.c.bf16 %v6274, %v6258
      %v6595 = vpack.c.bf16 %v6275, %v6259
      %v6596 = vpack.c.bf16 %v6276, %v6260
      %v6597 = vpack.c.bf16 %v6293, %v6277
      %v6598 = vpack.c.bf16 %v6294, %v6278
      %v6599 = vpack.c.bf16 %v6295, %v6279
      %v6600 = vpack.c.bf16 %v6296, %v6280
      %v6601 = vpack.c.bf16 %v6297, %v6281
      %v6602 = vpack.c.bf16 %v6298, %v6282
      %v6603 = vpack.c.bf16 %v6299, %v6283
      %v6604 = vpack.c.bf16 %v6300, %v6284
      %v6605 = vpack.c.bf16 %v6301, %v6285
      %v6606 = vpack.c.bf16 %v6302, %v6286
      %v6607 = vpack.c.bf16 %v6303, %v6287
      %v6608 = vpack.c.bf16 %v6304, %v6288
      %v6609 = vpack.c.bf16 %v6305, %v6289
      %v6610 = vpack.c.bf16 %v6306, %v6290
      %v6611 = vpack.c.bf16 %v6307, %v6291
      %v6612 = vpack.c.bf16 %v6308, %v6292
      %v6613 = vpack.c.bf16 %v6325, %v6309
      %v6614 = vpack.c.bf16 %v6326, %v6310
      %v6615 = vpack.c.bf16 %v6327, %v6311
      %v6616 = vpack.c.bf16 %v6328, %v6312
      %v6617 = vpack.c.bf16 %v6329, %v6313
      %v6618 = vpack.c.bf16 %v6330, %v6314
      %v6619 = vpack.c.bf16 %v6331, %v6315
      %v6620 = vpack.c.bf16 %v6332, %v6316
      %v6621 = vpack.c.bf16 %v6333, %v6317
      %v6622 = vpack.c.bf16 %v6334, %v6318
      %v6623 = vpack.c.bf16 %v6335, %v6319
      %v6624 = vpack.c.bf16 %v6336, %v6320
      %v6625 = vpack.c.bf16 %v6337, %v6321
      %v6626 = vpack.c.bf16 %v6338, %v6322
      %v6627 = vpack.c.bf16 %v6339, %v6323
      %v6628 = vpack.c.bf16 %v6340, %v6324
      %v6629 = vpack.c.bf16 %v6357, %v6341
      %v6630 = vpack.c.bf16 %v6358, %v6342
      %v6631 = vpack.c.bf16 %v6359, %v6343
      %v6632 = vpack.c.bf16 %v6360, %v6344
      %v6633 = vpack.c.bf16 %v6361, %v6345
      %v6634 = vpack.c.bf16 %v6362, %v6346
      %v6635 = vpack.c.bf16 %v6363, %v6347
      %v6636 = vpack.c.bf16 %v6364, %v6348
      %v6637 = vpack.c.bf16 %v6365, %v6349
      %v6638 = vpack.c.bf16 %v6366, %v6350
      %v6639 = vpack.c.bf16 %v6367, %v6351
      %v6640 = vpack.c.bf16 %v6368, %v6352
      %v6641 = vpack.c.bf16 %v6369, %v6353
      %v6642 = vpack.c.bf16 %v6370, %v6354
      %v6643 = vpack.c.bf16 %v6371, %v6355
      %v6644 = vpack.c.bf16 %v6372, %v6356
      %v6645 = vpack.c.bf16 %v6389, %v6373
      %v6646 = vpack.c.bf16 %v6390, %v6374
      %v6647 = vpack.c.bf16 %v6391, %v6375
      %v6648 = vpack.c.bf16 %v6392, %v6376
      %v6649 = vpack.c.bf16 %v6393, %v6377
      %v6650 = vpack.c.bf16 %v6394, %v6378
      %v6651 = vpack.c.bf16 %v6395, %v6379
      %v6652 = vpack.c.bf16 %v6396, %v6380
      %v6653 = vpack.c.bf16 %v6397, %v6381
      %v6654 = vpack.c.bf16 %v6398, %v6382
      %v6655 = vpack.c.bf16 %v6399, %v6383
      %v6656 = vpack.c.bf16 %v6400, %v6384
      %v6657 = vpack.c.bf16 %v6401, %v6385
      %v6658 = vpack.c.bf16 %v6402, %v6386
      %v6659 = vpack.c.bf16 %v6403, %v6387
      %v6660 = vpack.c.bf16 %v6404, %v6388
      %v6661 = vpack.c.bf16 %v6421, %v6405
      %v6662 = vpack.c.bf16 %v6422, %v6406
      %v6663 = vpack.c.bf16 %v6423, %v6407
      %v6664 = vpack.c.bf16 %v6424, %v6408
      %v6665 = vpack.c.bf16 %v6425, %v6409
      %v6666 = vpack.c.bf16 %v6426, %v6410
      %v6667 = vpack.c.bf16 %v6427, %v6411
      %v6668 = vpack.c.bf16 %v6428, %v6412
      %v6669 = vpack.c.bf16 %v6429, %v6413
      %v6670 = vpack.c.bf16 %v6430, %v6414
      %v6671 = vpack.c.bf16 %v6431, %v6415
      %v6672 = vpack.c.bf16 %v6432, %v6416
      %v6673 = vpack.c.bf16 %v6433, %v6417
      %v6674 = vpack.c.bf16 %v6434, %v6418
      %v6675 = vpack.c.bf16 %v6435, %v6419
      %v6676 = vpack.c.bf16 %v6436, %v6420
      %v6677 = vpack.c.bf16 %v6453, %v6437
      %v6678 = vpack.c.bf16 %v6454, %v6438
      %v6679 = vpack.c.bf16 %v6455, %v6439
      %v6680 = vpack.c.bf16 %v6456, %v6440
      %v6681 = vpack.c.bf16 %v6457, %v6441
      %v6682 = vpack.c.bf16 %v6458, %v6442
      %v6683 = vpack.c.bf16 %v6459, %v6443
      %v6684 = vpack.c.bf16 %v6460, %v6444
      %v6685 = vpack.c.bf16 %v6461, %v6445
      %v6686 = vpack.c.bf16 %v6462, %v6446
      %v6687 = vpack.c.bf16 %v6463, %v6447
      %v6688 = vpack.c.bf16 %v6464, %v6448
      %v6689 = vpack.c.bf16 %v6465, %v6449
      %v6690 = vpack.c.bf16 %v6466, %v6450
      %v6691 = vpack.c.bf16 %v6467, %v6451
      %v6692 = vpack.c.bf16 %v6468, %v6452
      %v6693 = vpack.c.bf16 %v6485, %v6469
      %v6694 = vpack.c.bf16 %v6486, %v6470
      %v6695 = vpack.c.bf16 %v6487, %v6471
      %v6696 = vpack.c.bf16 %v6488, %v6472
      %v6697 = vpack.c.bf16 %v6489, %v6473
      %v6698 = vpack.c.bf16 %v6490, %v6474
      %v6699 = vpack.c.bf16 %v6491, %v6475
      %v6700 = vpack.c.bf16 %v6492, %v6476
      %v6701 = vpack.c.bf16 %v6493, %v6477
      %v6702 = vpack.c.bf16 %v6494, %v6478
      %v6703 = vpack.c.bf16 %v6495, %v6479
      %v6704 = vpack.c.bf16 %v6496, %v6480
      %v6705 = vpack.c.bf16 %v6497, %v6481
      %v6706 = vpack.c.bf16 %v6498, %v6482
      %v6707 = vpack.c.bf16 %v6499, %v6483
      %v6708 = vpack.c.bf16 %v6500, %v6484
      %v6709 = vpack.c.bf16 %v6501, %v6501
      %v6710 = vpack.c.bf16 %v6502, %v6502
      %v6711 = vpack.c.bf16 %v6503, %v6503
      %v6712 = vpack.c.bf16 %v6504, %v6504
      %v6713 = vpack.c.bf16 %v6505, %v6505
      %v6714 = vpack.c.bf16 %v6506, %v6506
      %v6715 = vpack.c.bf16 %v6507, %v6507
      %v6716 = vpack.c.bf16 %v6508, %v6508
      %v6717 = vpack.c.bf16 %v6509, %v6509
      %v6718 = vpack.c.bf16 %v6510, %v6510
      %v6719 = vpack.c.bf16 %v6511, %v6511
      %v6720 = vpack.c.bf16 %v6512, %v6512
      %v6721 = vpack.c.bf16 %v6513, %v6513
      %v6722 = vpack.c.bf16 %v6514, %v6514
      %v6723 = vpack.c.bf16 %v6515, %v6515
      %v6724 = vpack.c.bf16 %v6516, %v6516
      %v6725 = vld [vmem:[%s3] sm:$0xff]
      %v6726 = vld [vmem:[%s3 + $0x8] sm:$0xff]
      %v6727 = vld [vmem:[%s3 + $0x10] sm:$0xff]
      %v6728 = vld [vmem:[%s3 + $0x18] sm:$0xff]
      %v6729 = vld [vmem:[%s3 + $0x20] sm:$0xff]
      %v6730 = vld [vmem:[%s3 + $0x28] sm:$0xff]
      %v6731 = vld [vmem:[%s3 + $0x30] sm:$0xff]
      %v6732 = vld [vmem:[%s3 + $0x38] sm:$0xff]
      %v6733 = vld [vmem:[%s3 + $0x40] sm:$0xff]
      %v6734 = vld [vmem:[%s3 + $0x48] sm:$0xff]
      %v6735 = vld [vmem:[%s3 + $0x50] sm:$0xff]
      %v6736 = vld [vmem:[%s3 + $0x58] sm:$0xff]
      %v6737 = vld [vmem:[%s3 + $0x60] sm:$0xff]
      %v6738 = vld [vmem:[%s3 + $0x68] sm:$0xff]
      %v6739 = vld [vmem:[%s3 + $0x70] sm:$0xff]
      %v6740 = vld [vmem:[%s3 + $0x78] sm:$0xff]
      %v6741 = vld [vmem:[%s3 + $0x80] sm:$0xff]
      %v6742 = vld [vmem:[%s3 + $0x88] sm:$0xff]
      %v6743 = vld [vmem:[%s3 + $0x90] sm:$0xff]
      %v6744 = vld [vmem:[%s3 + $0x98] sm:$0xff]
      %v6745 = vld [vmem:[%s3 + $0xa0] sm:$0xff]
      %v6746 = vld [vmem:[%s3 + $0xa8] sm:$0xff]
      %v6747 = vld [vmem:[%s3 + $0xb0] sm:$0xff]
      %v6748 = vld [vmem:[%s3 + $0xb8] sm:$0xff]
      %v6749 = vld [vmem:[%s3 + $0xc0] sm:$0xff]
      %v6750 = vld [vmem:[%s3 + $0xc8] sm:$0xff]
      %v6751 = vld [vmem:[%s3 + $0xd0] sm:$0xff]
      %v6752 = vld [vmem:[%s3 + $0xd8] sm:$0xff]
      %v6753 = vld [vmem:[%s3 + $0xe0] sm:$0xff]
      %v6754 = vld [vmem:[%s3 + $0xe8] sm:$0xff]
      %v6755 = vld [vmem:[%s3 + $0xf0] sm:$0xff]
      %v6756 = vld [vmem:[%s3 + $0xf8] sm:$0xff]
      %v6757 = vld [vmem:[%s3 + $0x100] sm:$0xff]
      %v6758 = vld [vmem:[%s3 + $0x108] sm:$0xff]
      %v6759 = vld [vmem:[%s3 + $0x110] sm:$0xff]
      %v6760 = vld [vmem:[%s3 + $0x118] sm:$0xff]
      %v6761 = vld [vmem:[%s3 + $0x120] sm:$0xff]
      %v6762 = vld [vmem:[%s3 + $0x128] sm:$0xff]
      %v6763 = vld [vmem:[%s3 + $0x130] sm:$0xff]
      %v6764 = vld [vmem:[%s3 + $0x138] sm:$0xff]
      %v6765 = vld [vmem:[%s3 + $0x140] sm:$0xff]
      %v6766 = vld [vmem:[%s3 + $0x148] sm:$0xff]
      %v6767 = vld [vmem:[%s3 + $0x150] sm:$0xff]
      %v6768 = vld [vmem:[%s3 + $0x158] sm:$0xff]
      %v6769 = vld [vmem:[%s3 + $0x160] sm:$0xff]
      %v6770 = vld [vmem:[%s3 + $0x168] sm:$0xff]
      %v6771 = vld [vmem:[%s3 + $0x170] sm:$0xff]
      %v6772 = vld [vmem:[%s3 + $0x178] sm:$0xff]
      %v6773 = vld [vmem:[%s3 + $0x180] sm:$0xff]
      %v6774 = vld [vmem:[%s3 + $0x188] sm:$0xff]
      %v6775 = vld [vmem:[%s3 + $0x190] sm:$0xff]
      %v6776 = vld [vmem:[%s3 + $0x198] sm:$0xff]
      %v6777 = vld [vmem:[%s3 + $0x1a0] sm:$0xff]
      %v6778 = vld [vmem:[%s3 + $0x1a8] sm:$0xff]
      %v6779 = vld [vmem:[%s3 + $0x1b0] sm:$0xff]
      %v6780 = vld [vmem:[%s3 + $0x1b8] sm:$0xff]
      %v6781 = vld [vmem:[%s3 + $0x1c0] sm:$0xff]
      %v6782 = vld [vmem:[%s3 + $0x1c8] sm:$0xff]
      %v6783 = vld [vmem:[%s3 + $0x1d0] sm:$0xff]
      %v6784 = vld [vmem:[%s3 + $0x1d8] sm:$0xff]
      %v6785 = vld [vmem:[%s3 + $0x1e0] sm:$0xff]
      %v6786 = vld [vmem:[%s3 + $0x1e8] sm:$0xff]
      %v6787 = vld [vmem:[%s3 + $0x1f0] sm:$0xff]
      %v6788 = vld [vmem:[%s3 + $0x1f8] sm:$0xff]
      %v6789 = vld [vmem:[%s3 + $0x200] sm:$0xff]
      %v6790 = vld [vmem:[%s3 + $0x208] sm:$0xff]
      %v6791 = vld [vmem:[%s3 + $0x210] sm:$0xff]
      %v6792 = vld [vmem:[%s3 + $0x218] sm:$0xff]
      %v6793 = vld [vmem:[%s3 + $0x220] sm:$0xff]
      %v6794 = vld [vmem:[%s3 + $0x228] sm:$0xff]
      %v6795 = vld [vmem:[%s3 + $0x230] sm:$0xff]
      %v6796 = vld [vmem:[%s3 + $0x238] sm:$0xff]
      %v6797 = vld [vmem:[%s3 + $0x240] sm:$0xff]
      %v6798 = vld [vmem:[%s3 + $0x248] sm:$0xff]
      %v6799 = vld [vmem:[%s3 + $0x250] sm:$0xff]
      %v6800 = vld [vmem:[%s3 + $0x258] sm:$0xff]
      %v6801 = vld [vmem:[%s3 + $0x260] sm:$0xff]
      %v6802 = vld [vmem:[%s3 + $0x268] sm:$0xff]
      %v6803 = vld [vmem:[%s3 + $0x270] sm:$0xff]
      %v6804 = vld [vmem:[%s3 + $0x278] sm:$0xff]
      %v6805 = vld [vmem:[%s3 + $0x280] sm:$0xff]
      %v6806 = vld [vmem:[%s3 + $0x288] sm:$0xff]
      %v6807 = vld [vmem:[%s3 + $0x290] sm:$0xff]
      %v6808 = vld [vmem:[%s3 + $0x298] sm:$0xff]
      %v6809 = vld [vmem:[%s3 + $0x2a0] sm:$0xff]
      %v6810 = vld [vmem:[%s3 + $0x2a8] sm:$0xff]
      %v6811 = vld [vmem:[%s3 + $0x2b0] sm:$0xff]
      %v6812 = vld [vmem:[%s3 + $0x2b8] sm:$0xff]
      %v6813 = vld [vmem:[%s3 + $0x2c0] sm:$0xff]
      %v6814 = vld [vmem:[%s3 + $0x2c8] sm:$0xff]
      %v6815 = vld [vmem:[%s3 + $0x2d0] sm:$0xff]
      %v6816 = vld [vmem:[%s3 + $0x2d8] sm:$0xff]
      %v6817 = vld [vmem:[%s3 + $0x2e0] sm:$0xff]
      %v6818 = vld [vmem:[%s3 + $0x2e8] sm:$0xff]
      %v6819 = vld [vmem:[%s3 + $0x2f0] sm:$0xff]
      %v6820 = vld [vmem:[%s3 + $0x2f8] sm:$0xff]
      %v6821 = vld [vmem:[%s3 + $0x300] sm:$0xff]
      %v6822 = vld [vmem:[%s3 + $0x308] sm:$0xff]
      %v6823 = vld [vmem:[%s3 + $0x310] sm:$0xff]
      %v6824 = vld [vmem:[%s3 + $0x318] sm:$0xff]
      %v6825 = vld [vmem:[%s3 + $0x320] sm:$0xff]
      %v6826 = vld [vmem:[%s3 + $0x328] sm:$0xff]
      %v6827 = vld [vmem:[%s3 + $0x330] sm:$0xff]
      %v6828 = vld [vmem:[%s3 + $0x338] sm:$0xff]
      %v6829 = vld [vmem:[%s3 + $0x340] sm:$0xff]
      %v6830 = vld [vmem:[%s3 + $0x348] sm:$0xff]
      %v6831 = vld [vmem:[%s3 + $0x350] sm:$0xff]
      %v6832 = vld [vmem:[%s3 + $0x358] sm:$0xff]
      %v6833 = vld [vmem:[%s3 + $0x360] sm:$0xff]
      %v6834 = vld [vmem:[%s3 + $0x368] sm:$0xff]
      %v6835 = vld [vmem:[%s3 + $0x370] sm:$0xff]
      %v6836 = vld [vmem:[%s3 + $0x378] sm:$0xff]
      %v6837 = vld [vmem:[%s3 + $0x380] sm:$0xff]
      %v6838 = vld [vmem:[%s3 + $0x388] sm:$0xff]
      %v6839 = vld [vmem:[%s3 + $0x390] sm:$0xff]
      %v6840 = vld [vmem:[%s3 + $0x398] sm:$0xff]
      %v6841 = vld [vmem:[%s3 + $0x3a0] sm:$0xff]
      %v6842 = vld [vmem:[%s3 + $0x3a8] sm:$0xff]
      %v6843 = vld [vmem:[%s3 + $0x3b0] sm:$0xff]
      %v6844 = vld [vmem:[%s3 + $0x3b8] sm:$0xff]
      %v6845 = vld [vmem:[%s3 + $0x3c0] sm:$0xff]
      %v6846 = vld [vmem:[%s3 + $0x3c8] sm:$0xff]
      %v6847 = vld [vmem:[%s3 + $0x3d0] sm:$0xff]
      %v6848 = vld [vmem:[%s3 + $0x3d8] sm:$0xff]
      %v6849 = vld [vmem:[%s3 + $0x3e0] sm:$0xff]
      %v6850 = vld [vmem:[%s3 + $0x3e8] sm:$0xff]
      %v6851 = vld [vmem:[%s3 + $0x3f0] sm:$0xff]
      %v6852 = vld [vmem:[%s3 + $0x3f8] sm:$0xff]
      %v6853 = vld [vmem:[%s3 + $0x400] sm:$0xff]
      %v6854 = vld [vmem:[%s3 + $0x408] sm:$0xff]
      %v6855 = vld [vmem:[%s3 + $0x410] sm:$0xff]
      %v6856 = vld [vmem:[%s3 + $0x418] sm:$0xff]
      %v6857 = vld [vmem:[%s3 + $0x420] sm:$0xff]
      %v6858 = vld [vmem:[%s3 + $0x428] sm:$0xff]
      %v6859 = vld [vmem:[%s3 + $0x430] sm:$0xff]
      %v6860 = vld [vmem:[%s3 + $0x438] sm:$0xff]
      %v6861 = vld [vmem:[%s3 + $0x440] sm:$0xff]
      %v6862 = vld [vmem:[%s3 + $0x448] sm:$0xff]
      %v6863 = vld [vmem:[%s3 + $0x450] sm:$0xff]
      %v6864 = vld [vmem:[%s3 + $0x458] sm:$0xff]
      %v6865 = vld [vmem:[%s3 + $0x460] sm:$0xff]
      %v6866 = vld [vmem:[%s3 + $0x468] sm:$0xff]
      %v6867 = vld [vmem:[%s3 + $0x470] sm:$0xff]
      %v6868 = vld [vmem:[%s3 + $0x478] sm:$0xff]
      %v6869 = vld [vmem:[%s3 + $0x480] sm:$0xff]
      %v6870 = vld [vmem:[%s3 + $0x488] sm:$0xff]
      %v6871 = vld [vmem:[%s3 + $0x490] sm:$0xff]
      %v6872 = vld [vmem:[%s3 + $0x498] sm:$0xff]
      %v6873 = vld [vmem:[%s3 + $0x4a0] sm:$0xff]
      %v6874 = vld [vmem:[%s3 + $0x4a8] sm:$0xff]
      %v6875 = vld [vmem:[%s3 + $0x4b0] sm:$0xff]
      %v6876 = vld [vmem:[%s3 + $0x4b8] sm:$0xff]
      %v6877 = vld [vmem:[%s3 + $0x4c0] sm:$0xff]
      %v6878 = vld [vmem:[%s3 + $0x4c8] sm:$0xff]
      %v6879 = vld [vmem:[%s3 + $0x4d0] sm:$0xff]
      %v6880 = vld [vmem:[%s3 + $0x4d8] sm:$0xff]
      %v6881 = vld [vmem:[%s3 + $0x4e0] sm:$0xff]
      %v6882 = vld [vmem:[%s3 + $0x4e8] sm:$0xff]
      %v6883 = vld [vmem:[%s3 + $0x4f0] sm:$0xff]
      %v6884 = vld [vmem:[%s3 + $0x4f8] sm:$0xff]
      %v6885 = vld [vmem:[%s3 + $0x500] sm:$0xff]
      %v6886 = vld [vmem:[%s3 + $0x508] sm:$0xff]
      %v6887 = vld [vmem:[%s3 + $0x510] sm:$0xff]
      %v6888 = vld [vmem:[%s3 + $0x518] sm:$0xff]
      %v6889 = vld [vmem:[%s3 + $0x520] sm:$0xff]
      %v6890 = vld [vmem:[%s3 + $0x528] sm:$0xff]
      %v6891 = vld [vmem:[%s3 + $0x530] sm:$0xff]
      %v6892 = vld [vmem:[%s3 + $0x538] sm:$0xff]
      %v6893 = vld [vmem:[%s3 + $0x540] sm:$0xff]
      %v6894 = vld [vmem:[%s3 + $0x548] sm:$0xff]
      %v6895 = vld [vmem:[%s3 + $0x550] sm:$0xff]
      %v6896 = vld [vmem:[%s3 + $0x558] sm:$0xff]
      %v6897 = vld [vmem:[%s3 + $0x560] sm:$0xff]
      %v6898 = vld [vmem:[%s3 + $0x568] sm:$0xff]
      %v6899 = vld [vmem:[%s3 + $0x570] sm:$0xff]
      %v6900 = vld [vmem:[%s3 + $0x578] sm:$0xff]
      %v6901 = vld [vmem:[%s3 + $0x580] sm:$0xff]
      %v6902 = vld [vmem:[%s3 + $0x588] sm:$0xff]
      %v6903 = vld [vmem:[%s3 + $0x590] sm:$0xff]
      %v6904 = vld [vmem:[%s3 + $0x598] sm:$0xff]
      %v6905 = vld [vmem:[%s3 + $0x5a0] sm:$0xff]
      %v6906 = vld [vmem:[%s3 + $0x5a8] sm:$0xff]
      %v6907 = vld [vmem:[%s3 + $0x5b0] sm:$0xff]
      %v6908 = vld [vmem:[%s3 + $0x5b8] sm:$0xff]
      %v6909 = vld [vmem:[%s3 + $0x5c0] sm:$0xff]
      %v6910 = vld [vmem:[%s3 + $0x5c8] sm:$0xff]
      %v6911 = vld [vmem:[%s3 + $0x5d0] sm:$0xff]
      %v6912 = vld [vmem:[%s3 + $0x5d8] sm:$0xff]
      %v6913 = vld [vmem:[%s3 + $0x5e0] sm:$0xff]
      %v6914 = vld [vmem:[%s3 + $0x5e8] sm:$0xff]
      %v6915 = vld [vmem:[%s3 + $0x5f0] sm:$0xff]
      %v6916 = vld [vmem:[%s3 + $0x5f8] sm:$0xff]
      %v6917 = vld [vmem:[%s3 + $0x600] sm:$0xff]
      %v6918 = vld [vmem:[%s3 + $0x608] sm:$0xff]
      %v6919 = vld [vmem:[%s3 + $0x610] sm:$0xff]
      %v6920 = vld [vmem:[%s3 + $0x618] sm:$0xff]
      %v6921 = vld [vmem:[%s3 + $0x620] sm:$0xff]
      %v6922 = vld [vmem:[%s3 + $0x628] sm:$0xff]
      %v6923 = vld [vmem:[%s3 + $0x630] sm:$0xff]
      %v6924 = vld [vmem:[%s3 + $0x638] sm:$0xff]
      %v6925 = vld [vmem:[%s3 + $0x640] sm:$0xff]
      %v6926 = vld [vmem:[%s3 + $0x648] sm:$0xff]
      %v6927 = vld [vmem:[%s3 + $0x650] sm:$0xff]
      %v6928 = vld [vmem:[%s3 + $0x658] sm:$0xff]
      %v6929 = vld [vmem:[%s3 + $0x660] sm:$0xff]
      %v6930 = vld [vmem:[%s3 + $0x668] sm:$0xff]
      %v6931 = vld [vmem:[%s3 + $0x670] sm:$0xff]
      %v6932 = vld [vmem:[%s3 + $0x678] sm:$0xff]
      %v6933 = vld [vmem:[%s3 + $0x680] sm:$0xff]
      %v6934 = vld [vmem:[%s3 + $0x688] sm:$0xff]
      %v6935 = vld [vmem:[%s3 + $0x690] sm:$0xff]
      %v6936 = vld [vmem:[%s3 + $0x698] sm:$0xff]
      %v6937 = vld [vmem:[%s3 + $0x6a0] sm:$0xff]
      %v6938 = vld [vmem:[%s3 + $0x6a8] sm:$0xff]
      %v6939 = vld [vmem:[%s3 + $0x6b0] sm:$0xff]
      %v6940 = vld [vmem:[%s3 + $0x6b8] sm:$0xff]
      %v6941 = vld [vmem:[%s3 + $0x6c0] sm:$0xff]
      %v6942 = vld [vmem:[%s3 + $0x6c8] sm:$0xff]
      %v6943 = vld [vmem:[%s3 + $0x6d0] sm:$0xff]
      %v6944 = vld [vmem:[%s3 + $0x6d8] sm:$0xff]
      %v6945 = vld [vmem:[%s3 + $0x6e0] sm:$0xff]
      %v6946 = vld [vmem:[%s3 + $0x6e8] sm:$0xff]
      %v6947 = vld [vmem:[%s3 + $0x6f0] sm:$0xff]
      %v6948 = vld [vmem:[%s3 + $0x6f8] sm:$0xff]
      %v6949 = vld [vmem:[%s3 + $0x700] sm:$0xff]
      %v6950 = vld [vmem:[%s3 + $0x708] sm:$0xff]
      %v6951 = vld [vmem:[%s3 + $0x710] sm:$0xff]
      %v6952 = vld [vmem:[%s3 + $0x718] sm:$0xff]
      %v6953 = vld [vmem:[%s3 + $0x720] sm:$0xff]
      %v6954 = vld [vmem:[%s3 + $0x728] sm:$0xff]
      %v6955 = vld [vmem:[%s3 + $0x730] sm:$0xff]
      %v6956 = vld [vmem:[%s3 + $0x738] sm:$0xff]
      %v6957 = vld [vmem:[%s3 + $0x740] sm:$0xff]
      %v6958 = vld [vmem:[%s3 + $0x748] sm:$0xff]
      %v6959 = vld [vmem:[%s3 + $0x750] sm:$0xff]
      %v6960 = vld [vmem:[%s3 + $0x758] sm:$0xff]
      %v6961 = vld [vmem:[%s3 + $0x760] sm:$0xff]
      %v6962 = vld [vmem:[%s3 + $0x768] sm:$0xff]
      %v6963 = vld [vmem:[%s3 + $0x770] sm:$0xff]
      %v6964 = vld [vmem:[%s3 + $0x778] sm:$0xff]
      %v6965 = vld [vmem:[%s3 + $0x780] sm:$0xff]
      %v6966 = vld [vmem:[%s3 + $0x788] sm:$0xff]
      %v6967 = vld [vmem:[%s3 + $0x790] sm:$0xff]
      %v6968 = vld [vmem:[%s3 + $0x798] sm:$0xff]
      %v6969 = vld [vmem:[%s3 + $0x7a0] sm:$0xff]
      %v6970 = vld [vmem:[%s3 + $0x7a8] sm:$0xff]
      %v6971 = vld [vmem:[%s3 + $0x7b0] sm:$0xff]
      %v6972 = vld [vmem:[%s3 + $0x7b8] sm:$0xff]
      %v6973 = vld [vmem:[%s3 + $0x7c0] sm:$0xff]
      %v6974 = vld [vmem:[%s3 + $0x7c8] sm:$0xff]
      %v6975 = vld [vmem:[%s3 + $0x7d0] sm:$0xff]
      %v6976 = vld [vmem:[%s3 + $0x7d8] sm:$0xff]
      %v6977 = vld [vmem:[%s3 + $0x7e0] sm:$0xff]
      %v6978 = vld [vmem:[%s3 + $0x7e8] sm:$0xff]
      %v6979 = vld [vmem:[%s3 + $0x7f0] sm:$0xff]
      %v6980 = vld [vmem:[%s3 + $0x7f8] sm:$0xff]
      %v6981 = vld [vmem:[%s3 + $0x800] sm:$0xff]
      %v6982 = vld [vmem:[%s3 + $0x808] sm:$0xff]
      %v6983 = vld [vmem:[%s3 + $0x810] sm:$0xff]
      %v6984 = vld [vmem:[%s3 + $0x818] sm:$0xff]
      %v6985 = vld [vmem:[%s3 + $0x820] sm:$0xff]
      %v6986 = vld [vmem:[%s3 + $0x828] sm:$0xff]
      %v6987 = vld [vmem:[%s3 + $0x830] sm:$0xff]
      %v6988 = vld [vmem:[%s3 + $0x838] sm:$0xff]
      %v6989 = vld [vmem:[%s3 + $0x840] sm:$0xff]
      %v6990 = vld [vmem:[%s3 + $0x848] sm:$0xff]
      %v6991 = vld [vmem:[%s3 + $0x850] sm:$0xff]
      %v6992 = vld [vmem:[%s3 + $0x858] sm:$0xff]
      %v6993 = vld [vmem:[%s3 + $0x860] sm:$0xff]
      %v6994 = vld [vmem:[%s3 + $0x868] sm:$0xff]
      %v6995 = vld [vmem:[%s3 + $0x870] sm:$0xff]
      %v6996 = vld [vmem:[%s3 + $0x878] sm:$0xff]
      %v6997 = vld [vmem:[%s3 + $0x880] sm:$0xff]
      %v6998 = vld [vmem:[%s3 + $0x888] sm:$0xff]
      %v6999 = vld [vmem:[%s3 + $0x890] sm:$0xff]
      %v7000 = vld [vmem:[%s3 + $0x898] sm:$0xff]
      %v7001 = vld [vmem:[%s3 + $0x8a0] sm:$0xff]
      %v7002 = vld [vmem:[%s3 + $0x8a8] sm:$0xff]
      %v7003 = vld [vmem:[%s3 + $0x8b0] sm:$0xff]
      %v7004 = vld [vmem:[%s3 + $0x8b8] sm:$0xff]
      %v7005 = vld [vmem:[%s3 + $0x8c0] sm:$0xff]
      %v7006 = vld [vmem:[%s3 + $0x8c8] sm:$0xff]
      %v7007 = vld [vmem:[%s3 + $0x8d0] sm:$0xff]
      %v7008 = vld [vmem:[%s3 + $0x8d8] sm:$0xff]
      %v7009 = vld [vmem:[%s3 + $0x8e0] sm:$0xff]
      %v7010 = vld [vmem:[%s3 + $0x8e8] sm:$0xff]
      %v7011 = vld [vmem:[%s3 + $0x8f0] sm:$0xff]
      %v7012 = vld [vmem:[%s3 + $0x8f8] sm:$0xff]
      %v7013 = vld [vmem:[%s3 + $0x900] sm:$0xff]
      %v7014 = vld [vmem:[%s3 + $0x908] sm:$0xff]
      %v7015 = vld [vmem:[%s3 + $0x910] sm:$0xff]
      %v7016 = vld [vmem:[%s3 + $0x918] sm:$0xff]
      %v7017 = vld [vmem:[%s3 + $0x920] sm:$0xff]
      %v7018 = vld [vmem:[%s3 + $0x928] sm:$0xff]
      %v7019 = vld [vmem:[%s3 + $0x930] sm:$0xff]
      %v7020 = vld [vmem:[%s3 + $0x938] sm:$0xff]
      %v7021 = vld [vmem:[%s3 + $0x940] sm:$0xff]
      %v7022 = vld [vmem:[%s3 + $0x948] sm:$0xff]
      %v7023 = vld [vmem:[%s3 + $0x950] sm:$0xff]
      %v7024 = vld [vmem:[%s3 + $0x958] sm:$0xff]
      %v7025 = vld [vmem:[%s3 + $0x960] sm:$0xff]
      %v7026 = vld [vmem:[%s3 + $0x968] sm:$0xff]
      %v7027 = vld [vmem:[%s3 + $0x970] sm:$0xff]
      %v7028 = vld [vmem:[%s3 + $0x978] sm:$0xff]
      %v7029 = vld [vmem:[%s3 + $0x980] sm:$0xff]
      %v7030 = vld [vmem:[%s3 + $0x988] sm:$0xff]
      %v7031 = vld [vmem:[%s3 + $0x990] sm:$0xff]
      %v7032 = vld [vmem:[%s3 + $0x998] sm:$0xff]
      %v7033 = vld [vmem:[%s3 + $0x9a0] sm:$0xff]
      %v7034 = vld [vmem:[%s3 + $0x9a8] sm:$0xff]
      %v7035 = vld [vmem:[%s3 + $0x9b0] sm:$0xff]
      %v7036 = vld [vmem:[%s3 + $0x9b8] sm:$0xff]
      %v7037 = vld [vmem:[%s3 + $0x9c0] sm:$0xff]
      %v7038 = vld [vmem:[%s3 + $0x9c8] sm:$0xff]
      %v7039 = vld [vmem:[%s3 + $0x9d0] sm:$0xff]
      %v7040 = vld [vmem:[%s3 + $0x9d8] sm:$0xff]
      %v7041 = vld [vmem:[%s3 + $0x9e0] sm:$0xff]
      %v7042 = vld [vmem:[%s3 + $0x9e8] sm:$0xff]
      %v7043 = vld [vmem:[%s3 + $0x9f0] sm:$0xff]
      %v7044 = vld [vmem:[%s3 + $0x9f8] sm:$0xff]
      %v7045 = vld [vmem:[%s3 + $0xa00] sm:$0xff]
      %v7046 = vld [vmem:[%s3 + $0xa08] sm:$0xff]
      %v7047 = vld [vmem:[%s3 + $0xa10] sm:$0xff]
      %v7048 = vld [vmem:[%s3 + $0xa18] sm:$0xff]
      %v7049 = vld [vmem:[%s3 + $0xa20] sm:$0xff]
      %v7050 = vld [vmem:[%s3 + $0xa28] sm:$0xff]
      %v7051 = vld [vmem:[%s3 + $0xa30] sm:$0xff]
      %v7052 = vld [vmem:[%s3 + $0xa38] sm:$0xff]
      %v7053 = vld [vmem:[%s3 + $0xa40] sm:$0xff]
      %v7054 = vld [vmem:[%s3 + $0xa48] sm:$0xff]
      %v7055 = vld [vmem:[%s3 + $0xa50] sm:$0xff]
      %v7056 = vld [vmem:[%s3 + $0xa58] sm:$0xff]
      %v7057 = vld [vmem:[%s3 + $0xa60] sm:$0xff]
      %v7058 = vld [vmem:[%s3 + $0xa68] sm:$0xff]
      %v7059 = vld [vmem:[%s3 + $0xa70] sm:$0xff]
      %v7060 = vld [vmem:[%s3 + $0xa78] sm:$0xff]
      %v7061 = vld [vmem:[%s3 + $0xa80] sm:$0xff]
      %v7062 = vld [vmem:[%s3 + $0xa88] sm:$0xff]
      %v7063 = vld [vmem:[%s3 + $0xa90] sm:$0xff]
      %v7064 = vld [vmem:[%s3 + $0xa98] sm:$0xff]
      %v7065 = vld [vmem:[%s3 + $0xaa0] sm:$0xff]
      %v7066 = vld [vmem:[%s3 + $0xaa8] sm:$0xff]
      %v7067 = vld [vmem:[%s3 + $0xab0] sm:$0xff]
      %v7068 = vld [vmem:[%s3 + $0xab8] sm:$0xff]
      %v7069 = vld [vmem:[%s3 + $0xac0] sm:$0xff]
      %v7070 = vld [vmem:[%s3 + $0xac8] sm:$0xff]
      %v7071 = vld [vmem:[%s3 + $0xad0] sm:$0xff]
      %v7072 = vld [vmem:[%s3 + $0xad8] sm:$0xff]
      %v7073 = vld [vmem:[%s3 + $0xae0] sm:$0xff]
      %v7074 = vld [vmem:[%s3 + $0xae8] sm:$0xff]
      %v7075 = vld [vmem:[%s3 + $0xaf0] sm:$0xff]
      %v7076 = vld [vmem:[%s3 + $0xaf8] sm:$0xff]
      %v7077 = vld [vmem:[%s3 + $0xb00] sm:$0xff]
      %v7078 = vld [vmem:[%s3 + $0xb08] sm:$0xff]
      %v7079 = vld [vmem:[%s3 + $0xb10] sm:$0xff]
      %v7080 = vld [vmem:[%s3 + $0xb18] sm:$0xff]
      %v7081 = vld [vmem:[%s3 + $0xb20] sm:$0xff]
      %v7082 = vld [vmem:[%s3 + $0xb28] sm:$0xff]
      %v7083 = vld [vmem:[%s3 + $0xb30] sm:$0xff]
      %v7084 = vld [vmem:[%s3 + $0xb38] sm:$0xff]
      %v7085 = vld [vmem:[%s3 + $0xb40] sm:$0xff]
      %v7086 = vld [vmem:[%s3 + $0xb48] sm:$0xff]
      %v7087 = vld [vmem:[%s3 + $0xb50] sm:$0xff]
      %v7088 = vld [vmem:[%s3 + $0xb58] sm:$0xff]
      %v7089 = vld [vmem:[%s3 + $0xb60] sm:$0xff]
      %v7090 = vld [vmem:[%s3 + $0xb68] sm:$0xff]
      %v7091 = vld [vmem:[%s3 + $0xb70] sm:$0xff]
      %v7092 = vld [vmem:[%s3 + $0xb78] sm:$0xff]
      %v7093 = vld [vmem:[%s3 + $0xb80] sm:$0xff]
      %v7094 = vld [vmem:[%s3 + $0xb88] sm:$0xff]
      %v7095 = vld [vmem:[%s3 + $0xb90] sm:$0xff]
      %v7096 = vld [vmem:[%s3 + $0xb98] sm:$0xff]
      %v7097 = vld [vmem:[%s3 + $0xba0] sm:$0xff]
      %v7098 = vld [vmem:[%s3 + $0xba8] sm:$0xff]
      %v7099 = vld [vmem:[%s3 + $0xbb0] sm:$0xff]
      %v7100 = vld [vmem:[%s3 + $0xbb8] sm:$0xff]
      %v7101 = vld [vmem:[%s3 + $0xbc0] sm:$0xff]
      %v7102 = vld [vmem:[%s3 + $0xbc8] sm:$0xff]
      %v7103 = vld [vmem:[%s3 + $0xbd0] sm:$0xff]
      %v7104 = vld [vmem:[%s3 + $0xbd8] sm:$0xff]
      %v7105 = vld [vmem:[%s3 + $0xbe0] sm:$0xff]
      %v7106 = vld [vmem:[%s3 + $0xbe8] sm:$0xff]
      %v7107 = vld [vmem:[%s3 + $0xbf0] sm:$0xff]
      %v7108 = vld [vmem:[%s3 + $0xbf8] sm:$0xff]
      %v7109 = vld [vmem:[%s3 + $0xc00] sm:$0xff]
      %v7110 = vld [vmem:[%s3 + $0xc08] sm:$0xff]
      %v7111 = vld [vmem:[%s3 + $0xc10] sm:$0xff]
      %v7112 = vld [vmem:[%s3 + $0xc18] sm:$0xff]
      %v7113 = vld [vmem:[%s3 + $0xc20] sm:$0xff]
      %v7114 = vld [vmem:[%s3 + $0xc28] sm:$0xff]
      %v7115 = vld [vmem:[%s3 + $0xc30] sm:$0xff]
      %v7116 = vld [vmem:[%s3 + $0xc38] sm:$0xff]
      %v7117 = vld [vmem:[%s3 + $0xc40] sm:$0xff]
      %v7118 = vld [vmem:[%s3 + $0xc48] sm:$0xff]
      %v7119 = vld [vmem:[%s3 + $0xc50] sm:$0xff]
      %v7120 = vld [vmem:[%s3 + $0xc58] sm:$0xff]
      %v7121 = vld [vmem:[%s3 + $0xc60] sm:$0xff]
      %v7122 = vld [vmem:[%s3 + $0xc68] sm:$0xff]
      %v7123 = vld [vmem:[%s3 + $0xc70] sm:$0xff]
      %v7124 = vld [vmem:[%s3 + $0xc78] sm:$0xff]
      %v7125 = vld [vmem:[%s3 + $0xc80] sm:$0xff]
      %v7126 = vld [vmem:[%s3 + $0xc88] sm:$0xff]
      %v7127 = vld [vmem:[%s3 + $0xc90] sm:$0xff]
      %v7128 = vld [vmem:[%s3 + $0xc98] sm:$0xff]
      %v7129 = vld [vmem:[%s3 + $0xca0] sm:$0xff]
      %v7130 = vld [vmem:[%s3 + $0xca8] sm:$0xff]
      %v7131 = vld [vmem:[%s3 + $0xcb0] sm:$0xff]
      %v7132 = vld [vmem:[%s3 + $0xcb8] sm:$0xff]
      %v7133 = vld [vmem:[%s3 + $0xcc0] sm:$0xff]
      %v7134 = vld [vmem:[%s3 + $0xcc8] sm:$0xff]
      %v7135 = vld [vmem:[%s3 + $0xcd0] sm:$0xff]
      %v7136 = vld [vmem:[%s3 + $0xcd8] sm:$0xff]
      %v7137 = vld [vmem:[%s3 + $0xce0] sm:$0xff]
      %v7138 = vld [vmem:[%s3 + $0xce8] sm:$0xff]
      %v7139 = vld [vmem:[%s3 + $0xcf0] sm:$0xff]
      %v7140 = vld [vmem:[%s3 + $0xcf8] sm:$0xff]
      %v7141 = vld [vmem:[%s3 + $0xd00] sm:$0xff]
      %v7142 = vld [vmem:[%s3 + $0xd08] sm:$0xff]
      %v7143 = vld [vmem:[%s3 + $0xd10] sm:$0xff]
      %v7144 = vld [vmem:[%s3 + $0xd18] sm:$0xff]
      %v7145 = vld [vmem:[%s3 + $0xd20] sm:$0xff]
      %v7146 = vld [vmem:[%s3 + $0xd28] sm:$0xff]
      %v7147 = vld [vmem:[%s3 + $0xd30] sm:$0xff]
      %v7148 = vld [vmem:[%s3 + $0xd38] sm:$0xff]
      %v7149 = vld [vmem:[%s3 + $0xd40] sm:$0xff]
      %v7150 = vld [vmem:[%s3 + $0xd48] sm:$0xff]
      %v7151 = vld [vmem:[%s3 + $0xd50] sm:$0xff]
      %v7152 = vld [vmem:[%s3 + $0xd58] sm:$0xff]
      %v7153 = vld [vmem:[%s3 + $0xd60] sm:$0xff]
      %v7154 = vld [vmem:[%s3 + $0xd68] sm:$0xff]
      %v7155 = vld [vmem:[%s3 + $0xd70] sm:$0xff]
      %v7156 = vld [vmem:[%s3 + $0xd78] sm:$0xff]
      %v7157 = vld [vmem:[%s3 + $0xd80] sm:$0xff]
      %v7158 = vld [vmem:[%s3 + $0xd88] sm:$0xff]
      %v7159 = vld [vmem:[%s3 + $0xd90] sm:$0xff]
      %v7160 = vld [vmem:[%s3 + $0xd98] sm:$0xff]
      %v7161 = vld [vmem:[%s3 + $0xda0] sm:$0xff]
      %v7162 = vld [vmem:[%s3 + $0xda8] sm:$0xff]
      %v7163 = vld [vmem:[%s3 + $0xdb0] sm:$0xff]
      %v7164 = vld [vmem:[%s3 + $0xdb8] sm:$0xff]
      %v7165 = vld [vmem:[%s3 + $0xdc0] sm:$0xff]
      %v7166 = vld [vmem:[%s3 + $0xdc8] sm:$0xff]
      %v7167 = vld [vmem:[%s3 + $0xdd0] sm:$0xff]
      %v7168 = vld [vmem:[%s3 + $0xdd8] sm:$0xff]
      %v7169 = vld [vmem:[%s3 + $0xde0] sm:$0xff]
      %v7170 = vld [vmem:[%s3 + $0xde8] sm:$0xff]
      %v7171 = vld [vmem:[%s3 + $0xdf0] sm:$0xff]
      %v7172 = vld [vmem:[%s3 + $0xdf8] sm:$0xff]
      %v7173 = vld [vmem:[%s3 + $0xe00] sm:$0xff]
      %v7174 = vld [vmem:[%s3 + $0xe08] sm:$0xff]
      %v7175 = vld [vmem:[%s3 + $0xe10] sm:$0xff]
      %v7176 = vld [vmem:[%s3 + $0xe18] sm:$0xff]
      %v7177 = vld [vmem:[%s3 + $0xe20] sm:$0xff]
      %v7178 = vld [vmem:[%s3 + $0xe28] sm:$0xff]
      %v7179 = vld [vmem:[%s3 + $0xe30] sm:$0xff]
      %v7180 = vld [vmem:[%s3 + $0xe38] sm:$0xff]
      %v7181 = vld [vmem:[%s3 + $0xe40] sm:$0xff]
      %v7182 = vld [vmem:[%s3 + $0xe48] sm:$0xff]
      %v7183 = vld [vmem:[%s3 + $0xe50] sm:$0xff]
      %v7184 = vld [vmem:[%s3 + $0xe58] sm:$0xff]
      %v7185 = vld [vmem:[%s3 + $0xe60] sm:$0xff]
      %v7186 = vld [vmem:[%s3 + $0xe68] sm:$0xff]
      %v7187 = vld [vmem:[%s3 + $0xe70] sm:$0xff]
      %v7188 = vld [vmem:[%s3 + $0xe78] sm:$0xff]
      %v7189 = vld [vmem:[%s3 + $0xe80] sm:$0xff]
      %v7190 = vld [vmem:[%s3 + $0xe88] sm:$0xff]
      %v7191 = vld [vmem:[%s3 + $0xe90] sm:$0xff]
      %v7192 = vld [vmem:[%s3 + $0xe98] sm:$0xff]
      %v7193 = vld [vmem:[%s3 + $0xea0] sm:$0xff]
      %v7194 = vld [vmem:[%s3 + $0xea8] sm:$0xff]
      %v7195 = vld [vmem:[%s3 + $0xeb0] sm:$0xff]
      %v7196 = vld [vmem:[%s3 + $0xeb8] sm:$0xff]
      %v7197 = vld [vmem:[%s3 + $0xec0] sm:$0xff]
      %v7198 = vld [vmem:[%s3 + $0xec8] sm:$0xff]
      %v7199 = vld [vmem:[%s3 + $0xed0] sm:$0xff]
      %v7200 = vld [vmem:[%s3 + $0xed8] sm:$0xff]
      %v7201 = vld [vmem:[%s3 + $0xee0] sm:$0xff]
      %v7202 = vld [vmem:[%s3 + $0xee8] sm:$0xff]
      %v7203 = vld [vmem:[%s3 + $0xef0] sm:$0xff]
      %v7204 = vld [vmem:[%s3 + $0xef8] sm:$0xff]
      %v7205 = vld [vmem:[%s3 + $0xf00] sm:$0xff]
      %v7206 = vld [vmem:[%s3 + $0xf08] sm:$0xff]
      %v7207 = vld [vmem:[%s3 + $0xf10] sm:$0xff]
      %v7208 = vld [vmem:[%s3 + $0xf18] sm:$0xff]
      %v7209 = vld [vmem:[%s3 + $0xf20] sm:$0xff]
      %v7210 = vld [vmem:[%s3 + $0xf28] sm:$0xff]
      %v7211 = vld [vmem:[%s3 + $0xf30] sm:$0xff]
      %v7212 = vld [vmem:[%s3 + $0xf38] sm:$0xff]
      %v7213 = vld [vmem:[%s3 + $0xf40] sm:$0xff]
      %v7214 = vld [vmem:[%s3 + $0xf48] sm:$0xff]
      %v7215 = vld [vmem:[%s3 + $0xf50] sm:$0xff]
      %v7216 = vld [vmem:[%s3 + $0xf58] sm:$0xff]
      %v7217 = vld [vmem:[%s3 + $0xf60] sm:$0xff]
      %v7218 = vld [vmem:[%s3 + $0xf68] sm:$0xff]
      %v7219 = vld [vmem:[%s3 + $0xf70] sm:$0xff]
      %v7220 = vld [vmem:[%s3 + $0xf78] sm:$0xff]
      %v7221 = vld [vmem:[%s3 + $0xf80] sm:$0xff]
      %v7222 = vld [vmem:[%s3 + $0xf88] sm:$0xff]
      %v7223 = vld [vmem:[%s3 + $0xf90] sm:$0xff]
      %v7224 = vld [vmem:[%s3 + $0xf98] sm:$0xff]
      %v7225 = vld [vmem:[%s3 + $0xfa0] sm:$0xff]
      %v7226 = vld [vmem:[%s3 + $0xfa8] sm:$0xff]
      %v7227 = vld [vmem:[%s3 + $0xfb0] sm:$0xff]
      %v7228 = vld [vmem:[%s3 + $0xfb8] sm:$0xff]
      %v7229 = vld [vmem:[%s3 + $0xfc0] sm:$0xff]
      %v7230 = vld [vmem:[%s3 + $0xfc8] sm:$0xff]
      %v7231 = vld [vmem:[%s3 + $0xfd0] sm:$0xff]
      %v7232 = vld [vmem:[%s3 + $0xfd8] sm:$0xff]
      %v7233 = vld [vmem:[%s3 + $0xfe0] sm:$0xff]
      %v7234 = vld [vmem:[%s3 + $0xfe8] sm:$0xff]
      %v7235 = vld [vmem:[%s3 + $0xff0] sm:$0xff]
      %v7236 = vld [vmem:[%s3 + $0xff8] sm:$0xff]
      %v7237 = vld [vmem:[%s4] sm:$0xf]
      %v7239 = vlaneseq
      %v7240 = vshrl.u32 %v7239, 7
      %v7241 = vsub.s32 0, %v7240
      %v7242 = vrot.slane %v7237, %v7241
      %v7243 = vlaneseq
      %v7244 = vshrl.u32 %v7243, 7
      %v7245 = vsub.s32 1, %v7244
      %v7246 = vrot.slane %v7237, %v7245
      %v7247 = vlaneseq
      %v7248 = vshrl.u32 %v7247, 7
      %v7249 = vsub.s32 2, %v7248
      %v7250 = vrot.slane %v7237, %v7249
      %v7251 = vlaneseq
      %v7252 = vshrl.u32 %v7251, 7
      %v7253 = vsub.s32 3, %v7252
      %v7254 = vrot.slane %v7237, %v7253
      %v7771 = vunpack.c.l.b16 %v6725
      %v7772 = vunpack.c.h.b16 %v6725
      %v7773 = vunpack.c.l.b16 %v6726
      %v7774 = vunpack.c.h.b16 %v6726
      %v7775 = vunpack.c.l.b16 %v6727
      %v7776 = vunpack.c.h.b16 %v6727
      %v7777 = vunpack.c.l.b16 %v6728
      %v7778 = vunpack.c.h.b16 %v6728
      %v7779 = vunpack.c.l.b16 %v6729
      %v7780 = vunpack.c.h.b16 %v6729
      %v7781 = vunpack.c.l.b16 %v6730
      %v7782 = vunpack.c.h.b16 %v6730
      %v7783 = vunpack.c.l.b16 %v6731
      %v7784 = vunpack.c.h.b16 %v6731
      %v7785 = vunpack.c.l.b16 %v6732
      %v7786 = vunpack.c.h.b16 %v6732
      %v7787 = vunpack.c.l.b16 %v6733
      %v7788 = vunpack.c.h.b16 %v6733
      %v7789 = vunpack.c.l.b16 %v6734
      %v7790 = vunpack.c.h.b16 %v6734
      %v7791 = vunpack.c.l.b16 %v6735
      %v7792 = vunpack.c.h.b16 %v6735
      %v7793 = vunpack.c.l.b16 %v6736
      %v7794 = vunpack.c.h.b16 %v6736
      %v7795 = vunpack.c.l.b16 %v6737
      %v7796 = vunpack.c.h.b16 %v6737
      %v7797 = vunpack.c.l.b16 %v6738
      %v7798 = vunpack.c.h.b16 %v6738
      %v7799 = vunpack.c.l.b16 %v6739
      %v7800 = vunpack.c.h.b16 %v6739
      %v7801 = vunpack.c.l.b16 %v6740
      %v7802 = vunpack.c.h.b16 %v6740
      %v7803 = vunpack.c.l.b16 %v6741
      %v7804 = vunpack.c.h.b16 %v6741
      %v7805 = vunpack.c.l.b16 %v6742
      %v7806 = vunpack.c.h.b16 %v6742
      %v7807 = vunpack.c.l.b16 %v6743
      %v7808 = vunpack.c.h.b16 %v6743
      %v7809 = vunpack.c.l.b16 %v6744
      %v7810 = vunpack.c.h.b16 %v6744
      %v7811 = vunpack.c.l.b16 %v6745
      %v7812 = vunpack.c.h.b16 %v6745
      %v7813 = vunpack.c.l.b16 %v6746
      %v7814 = vunpack.c.h.b16 %v6746
      %v7815 = vunpack.c.l.b16 %v6747
      %v7816 = vunpack.c.h.b16 %v6747
      %v7817 = vunpack.c.l.b16 %v6748
      %v7818 = vunpack.c.h.b16 %v6748
      %v7819 = vunpack.c.l.b16 %v6749
      %v7820 = vunpack.c.h.b16 %v6749
      %v7821 = vunpack.c.l.b16 %v6750
      %v7822 = vunpack.c.h.b16 %v6750
      %v7823 = vunpack.c.l.b16 %v6751
      %v7824 = vunpack.c.h.b16 %v6751
      %v7825 = vunpack.c.l.b16 %v6752
      %v7826 = vunpack.c.h.b16 %v6752
      %v7827 = vunpack.c.l.b16 %v6753
      %v7828 = vunpack.c.h.b16 %v6753
      %v7829 = vunpack.c.l.b16 %v6754
      %v7830 = vunpack.c.h.b16 %v6754
      %v7831 = vunpack.c.l.b16 %v6755
      %v7832 = vunpack.c.h.b16 %v6755
      %v7833 = vunpack.c.l.b16 %v6756
      %v7834 = vunpack.c.h.b16 %v6756
      %v7835 = vunpack.c.l.b16 %v6757
      %v7836 = vunpack.c.h.b16 %v6757
      %v7837 = vunpack.c.l.b16 %v6758
      %v7838 = vunpack.c.h.b16 %v6758
      %v7839 = vunpack.c.l.b16 %v6759
      %v7840 = vunpack.c.h.b16 %v6759
      %v7841 = vunpack.c.l.b16 %v6760
      %v7842 = vunpack.c.h.b16 %v6760
      %v7843 = vunpack.c.l.b16 %v6761
      %v7844 = vunpack.c.h.b16 %v6761
      %v7845 = vunpack.c.l.b16 %v6762
      %v7846 = vunpack.c.h.b16 %v6762
      %v7847 = vunpack.c.l.b16 %v6763
      %v7848 = vunpack.c.h.b16 %v6763
      %v7849 = vunpack.c.l.b16 %v6764
      %v7850 = vunpack.c.h.b16 %v6764
      %v7851 = vunpack.c.l.b16 %v6765
      %v7852 = vunpack.c.h.b16 %v6765
      %v7853 = vunpack.c.l.b16 %v6766
      %v7854 = vunpack.c.h.b16 %v6766
      %v7855 = vunpack.c.l.b16 %v6767
      %v7856 = vunpack.c.h.b16 %v6767
      %v7857 = vunpack.c.l.b16 %v6768
      %v7858 = vunpack.c.h.b16 %v6768
      %v7859 = vunpack.c.l.b16 %v6769
      %v7860 = vunpack.c.h.b16 %v6769
      %v7861 = vunpack.c.l.b16 %v6770
      %v7862 = vunpack.c.h.b16 %v6770
      %v7863 = vunpack.c.l.b16 %v6771
      %v7864 = vunpack.c.h.b16 %v6771
      %v7865 = vunpack.c.l.b16 %v6772
      %v7866 = vunpack.c.h.b16 %v6772
      %v7867 = vunpack.c.l.b16 %v6773
      %v7868 = vunpack.c.h.b16 %v6773
      %v7869 = vunpack.c.l.b16 %v6774
      %v7870 = vunpack.c.h.b16 %v6774
      %v7871 = vunpack.c.l.b16 %v6775
      %v7872 = vunpack.c.h.b16 %v6775
      %v7873 = vunpack.c.l.b16 %v6776
      %v7874 = vunpack.c.h.b16 %v6776
      %v7875 = vunpack.c.l.b16 %v6777
      %v7876 = vunpack.c.h.b16 %v6777
      %v7877 = vunpack.c.l.b16 %v6778
      %v7878 = vunpack.c.h.b16 %v6778
      %v7879 = vunpack.c.l.b16 %v6779
      %v7880 = vunpack.c.h.b16 %v6779
      %v7881 = vunpack.c.l.b16 %v6780
      %v7882 = vunpack.c.h.b16 %v6780
      %v7883 = vunpack.c.l.b16 %v6781
      %v7884 = vunpack.c.h.b16 %v6781
      %v7885 = vunpack.c.l.b16 %v6782
      %v7886 = vunpack.c.h.b16 %v6782
      %v7887 = vunpack.c.l.b16 %v6783
      %v7888 = vunpack.c.h.b16 %v6783
      %v7889 = vunpack.c.l.b16 %v6784
      %v7890 = vunpack.c.h.b16 %v6784
      %v7891 = vunpack.c.l.b16 %v6785
      %v7892 = vunpack.c.h.b16 %v6785
      %v7893 = vunpack.c.l.b16 %v6786
      %v7894 = vunpack.c.h.b16 %v6786
      %v7895 = vunpack.c.l.b16 %v6787
      %v7896 = vunpack.c.h.b16 %v6787
      %v7897 = vunpack.c.l.b16 %v6788
      %v7898 = vunpack.c.h.b16 %v6788
      %v7899 = vunpack.c.l.b16 %v6789
      %v7900 = vunpack.c.h.b16 %v6789
      %v7901 = vunpack.c.l.b16 %v6790
      %v7902 = vunpack.c.h.b16 %v6790
      %v7903 = vunpack.c.l.b16 %v6791
      %v7904 = vunpack.c.h.b16 %v6791
      %v7905 = vunpack.c.l.b16 %v6792
      %v7906 = vunpack.c.h.b16 %v6792
      %v7907 = vunpack.c.l.b16 %v6793
      %v7908 = vunpack.c.h.b16 %v6793
      %v7909 = vunpack.c.l.b16 %v6794
      %v7910 = vunpack.c.h.b16 %v6794
      %v7911 = vunpack.c.l.b16 %v6795
      %v7912 = vunpack.c.h.b16 %v6795
      %v7913 = vunpack.c.l.b16 %v6796
      %v7914 = vunpack.c.h.b16 %v6796
      %v7915 = vunpack.c.l.b16 %v6797
      %v7916 = vunpack.c.h.b16 %v6797
      %v7917 = vunpack.c.l.b16 %v6798
      %v7918 = vunpack.c.h.b16 %v6798
      %v7919 = vunpack.c.l.b16 %v6799
      %v7920 = vunpack.c.h.b16 %v6799
      %v7921 = vunpack.c.l.b16 %v6800
      %v7922 = vunpack.c.h.b16 %v6800
      %v7923 = vunpack.c.l.b16 %v6801
      %v7924 = vunpack.c.h.b16 %v6801
      %v7925 = vunpack.c.l.b16 %v6802
      %v7926 = vunpack.c.h.b16 %v6802
      %v7927 = vunpack.c.l.b16 %v6803
      %v7928 = vunpack.c.h.b16 %v6803
      %v7929 = vunpack.c.l.b16 %v6804
      %v7930 = vunpack.c.h.b16 %v6804
      %v7931 = vunpack.c.l.b16 %v6805
      %v7932 = vunpack.c.h.b16 %v6805
      %v7933 = vunpack.c.l.b16 %v6806
      %v7934 = vunpack.c.h.b16 %v6806
      %v7935 = vunpack.c.l.b16 %v6807
      %v7936 = vunpack.c.h.b16 %v6807
      %v7937 = vunpack.c.l.b16 %v6808
      %v7938 = vunpack.c.h.b16 %v6808
      %v7939 = vunpack.c.l.b16 %v6809
      %v7940 = vunpack.c.h.b16 %v6809
      %v7941 = vunpack.c.l.b16 %v6810
      %v7942 = vunpack.c.h.b16 %v6810
      %v7943 = vunpack.c.l.b16 %v6811
      %v7944 = vunpack.c.h.b16 %v6811
      %v7945 = vunpack.c.l.b16 %v6812
      %v7946 = vunpack.c.h.b16 %v6812
      %v7947 = vunpack.c.l.b16 %v6813
      %v7948 = vunpack.c.h.b16 %v6813
      %v7949 = vunpack.c.l.b16 %v6814
      %v7950 = vunpack.c.h.b16 %v6814
      %v7951 = vunpack.c.l.b16 %v6815
      %v7952 = vunpack.c.h.b16 %v6815
      %v7953 = vunpack.c.l.b16 %v6816
      %v7954 = vunpack.c.h.b16 %v6816
      %v7955 = vunpack.c.l.b16 %v6817
      %v7956 = vunpack.c.h.b16 %v6817
      %v7957 = vunpack.c.l.b16 %v6818
      %v7958 = vunpack.c.h.b16 %v6818
      %v7959 = vunpack.c.l.b16 %v6819
      %v7960 = vunpack.c.h.b16 %v6819
      %v7961 = vunpack.c.l.b16 %v6820
      %v7962 = vunpack.c.h.b16 %v6820
      %v7963 = vunpack.c.l.b16 %v6821
      %v7964 = vunpack.c.h.b16 %v6821
      %v7965 = vunpack.c.l.b16 %v6822
      %v7966 = vunpack.c.h.b16 %v6822
      %v7967 = vunpack.c.l.b16 %v6823
      %v7968 = vunpack.c.h.b16 %v6823
      %v7969 = vunpack.c.l.b16 %v6824
      %v7970 = vunpack.c.h.b16 %v6824
      %v7971 = vunpack.c.l.b16 %v6825
      %v7972 = vunpack.c.h.b16 %v6825
      %v7973 = vunpack.c.l.b16 %v6826
      %v7974 = vunpack.c.h.b16 %v6826
      %v7975 = vunpack.c.l.b16 %v6827
      %v7976 = vunpack.c.h.b16 %v6827
      %v7977 = vunpack.c.l.b16 %v6828
      %v7978 = vunpack.c.h.b16 %v6828
      %v7979 = vunpack.c.l.b16 %v6829
      %v7980 = vunpack.c.h.b16 %v6829
      %v7981 = vunpack.c.l.b16 %v6830
      %v7982 = vunpack.c.h.b16 %v6830
      %v7983 = vunpack.c.l.b16 %v6831
      %v7984 = vunpack.c.h.b16 %v6831
      %v7985 = vunpack.c.l.b16 %v6832
      %v7986 = vunpack.c.h.b16 %v6832
      %v7987 = vunpack.c.l.b16 %v6833
      %v7988 = vunpack.c.h.b16 %v6833
      %v7989 = vunpack.c.l.b16 %v6834
      %v7990 = vunpack.c.h.b16 %v6834
      %v7991 = vunpack.c.l.b16 %v6835
      %v7992 = vunpack.c.h.b16 %v6835
      %v7993 = vunpack.c.l.b16 %v6836
      %v7994 = vunpack.c.h.b16 %v6836
      %v7995 = vunpack.c.l.b16 %v6837
      %v7996 = vunpack.c.h.b16 %v6837
      %v7997 = vunpack.c.l.b16 %v6838
      %v7998 = vunpack.c.h.b16 %v6838
      %v7999 = vunpack.c.l.b16 %v6839
      %v8000 = vunpack.c.h.b16 %v6839
      %v8001 = vunpack.c.l.b16 %v6840
      %v8002 = vunpack.c.h.b16 %v6840
      %v8003 = vunpack.c.l.b16 %v6841
      %v8004 = vunpack.c.h.b16 %v6841
      %v8005 = vunpack.c.l.b16 %v6842
      %v8006 = vunpack.c.h.b16 %v6842
      %v8007 = vunpack.c.l.b16 %v6843
      %v8008 = vunpack.c.h.b16 %v6843
      %v8009 = vunpack.c.l.b16 %v6844
      %v8010 = vunpack.c.h.b16 %v6844
      %v8011 = vunpack.c.l.b16 %v6845
      %v8012 = vunpack.c.h.b16 %v6845
      %v8013 = vunpack.c.l.b16 %v6846
      %v8014 = vunpack.c.h.b16 %v6846
      %v8015 = vunpack.c.l.b16 %v6847
      %v8016 = vunpack.c.h.b16 %v6847
      %v8017 = vunpack.c.l.b16 %v6848
      %v8018 = vunpack.c.h.b16 %v6848
      %v8019 = vunpack.c.l.b16 %v6849
      %v8020 = vunpack.c.h.b16 %v6849
      %v8021 = vunpack.c.l.b16 %v6850
      %v8022 = vunpack.c.h.b16 %v6850
      %v8023 = vunpack.c.l.b16 %v6851
      %v8024 = vunpack.c.h.b16 %v6851
      %v8025 = vunpack.c.l.b16 %v6852
      %v8026 = vunpack.c.h.b16 %v6852
      %v8027 = vunpack.c.l.b16 %v6853
      %v8028 = vunpack.c.h.b16 %v6853
      %v8029 = vunpack.c.l.b16 %v6854
      %v8030 = vunpack.c.h.b16 %v6854
      %v8031 = vunpack.c.l.b16 %v6855
      %v8032 = vunpack.c.h.b16 %v6855
      %v8033 = vunpack.c.l.b16 %v6856
      %v8034 = vunpack.c.h.b16 %v6856
      %v8035 = vunpack.c.l.b16 %v6857
      %v8036 = vunpack.c.h.b16 %v6857
      %v8037 = vunpack.c.l.b16 %v6858
      %v8038 = vunpack.c.h.b16 %v6858
      %v8039 = vunpack.c.l.b16 %v6859
      %v8040 = vunpack.c.h.b16 %v6859
      %v8041 = vunpack.c.l.b16 %v6860
      %v8042 = vunpack.c.h.b16 %v6860
      %v8043 = vunpack.c.l.b16 %v6861
      %v8044 = vunpack.c.h.b16 %v6861
      %v8045 = vunpack.c.l.b16 %v6862
      %v8046 = vunpack.c.h.b16 %v6862
      %v8047 = vunpack.c.l.b16 %v6863
      %v8048 = vunpack.c.h.b16 %v6863
      %v8049 = vunpack.c.l.b16 %v6864
      %v8050 = vunpack.c.h.b16 %v6864
      %v8051 = vunpack.c.l.b16 %v6865
      %v8052 = vunpack.c.h.b16 %v6865
      %v8053 = vunpack.c.l.b16 %v6866
      %v8054 = vunpack.c.h.b16 %v6866
      %v8055 = vunpack.c.l.b16 %v6867
      %v8056 = vunpack.c.h.b16 %v6867
      %v8057 = vunpack.c.l.b16 %v6868
      %v8058 = vunpack.c.h.b16 %v6868
      %v8059 = vunpack.c.l.b16 %v6869
      %v8060 = vunpack.c.h.b16 %v6869
      %v8061 = vunpack.c.l.b16 %v6870
      %v8062 = vunpack.c.h.b16 %v6870
      %v8063 = vunpack.c.l.b16 %v6871
      %v8064 = vunpack.c.h.b16 %v6871
      %v8065 = vunpack.c.l.b16 %v6872
      %v8066 = vunpack.c.h.b16 %v6872
      %v8067 = vunpack.c.l.b16 %v6873
      %v8068 = vunpack.c.h.b16 %v6873
      %v8069 = vunpack.c.l.b16 %v6874
      %v8070 = vunpack.c.h.b16 %v6874
      %v8071 = vunpack.c.l.b16 %v6875
      %v8072 = vunpack.c.h.b16 %v6875
      %v8073 = vunpack.c.l.b16 %v6876
      %v8074 = vunpack.c.h.b16 %v6876
      %v8075 = vunpack.c.l.b16 %v6877
      %v8076 = vunpack.c.h.b16 %v6877
      %v8077 = vunpack.c.l.b16 %v6878
      %v8078 = vunpack.c.h.b16 %v6878
      %v8079 = vunpack.c.l.b16 %v6879
      %v8080 = vunpack.c.h.b16 %v6879
      %v8081 = vunpack.c.l.b16 %v6880
      %v8082 = vunpack.c.h.b16 %v6880
      %v8083 = vunpack.c.l.b16 %v6881
      %v8084 = vunpack.c.h.b16 %v6881
      %v8085 = vunpack.c.l.b16 %v6882
      %v8086 = vunpack.c.h.b16 %v6882
      %v8087 = vunpack.c.l.b16 %v6883
      %v8088 = vunpack.c.h.b16 %v6883
      %v8089 = vunpack.c.l.b16 %v6884
      %v8090 = vunpack.c.h.b16 %v6884
      %v8091 = vunpack.c.l.b16 %v6885
      %v8092 = vunpack.c.h.b16 %v6885
      %v8093 = vunpack.c.l.b16 %v6886
      %v8094 = vunpack.c.h.b16 %v6886
      %v8095 = vunpack.c.l.b16 %v6887
      %v8096 = vunpack.c.h.b16 %v6887
      %v8097 = vunpack.c.l.b16 %v6888
      %v8098 = vunpack.c.h.b16 %v6888
      %v8099 = vunpack.c.l.b16 %v6889
      %v8100 = vunpack.c.h.b16 %v6889
      %v8101 = vunpack.c.l.b16 %v6890
      %v8102 = vunpack.c.h.b16 %v6890
      %v8103 = vunpack.c.l.b16 %v6891
      %v8104 = vunpack.c.h.b16 %v6891
      %v8105 = vunpack.c.l.b16 %v6892
      %v8106 = vunpack.c.h.b16 %v6892
      %v8107 = vunpack.c.l.b16 %v6893
      %v8108 = vunpack.c.h.b16 %v6893
      %v8109 = vunpack.c.l.b16 %v6894
      %v8110 = vunpack.c.h.b16 %v6894
      %v8111 = vunpack.c.l.b16 %v6895
      %v8112 = vunpack.c.h.b16 %v6895
      %v8113 = vunpack.c.l.b16 %v6896
      %v8114 = vunpack.c.h.b16 %v6896
      %v8115 = vunpack.c.l.b16 %v6897
      %v8116 = vunpack.c.h.b16 %v6897
      %v8117 = vunpack.c.l.b16 %v6898
      %v8118 = vunpack.c.h.b16 %v6898
      %v8119 = vunpack.c.l.b16 %v6899
      %v8120 = vunpack.c.h.b16 %v6899
      %v8121 = vunpack.c.l.b16 %v6900
      %v8122 = vunpack.c.h.b16 %v6900
      %v8123 = vunpack.c.l.b16 %v6901
      %v8124 = vunpack.c.h.b16 %v6901
      %v8125 = vunpack.c.l.b16 %v6902
      %v8126 = vunpack.c.h.b16 %v6902
      %v8127 = vunpack.c.l.b16 %v6903
      %v8128 = vunpack.c.h.b16 %v6903
      %v8129 = vunpack.c.l.b16 %v6904
      %v8130 = vunpack.c.h.b16 %v6904
      %v8131 = vunpack.c.l.b16 %v6905
      %v8132 = vunpack.c.h.b16 %v6905
      %v8133 = vunpack.c.l.b16 %v6906
      %v8134 = vunpack.c.h.b16 %v6906
      %v8135 = vunpack.c.l.b16 %v6907
      %v8136 = vunpack.c.h.b16 %v6907
      %v8137 = vunpack.c.l.b16 %v6908
      %v8138 = vunpack.c.h.b16 %v6908
      %v8139 = vunpack.c.l.b16 %v6909
      %v8140 = vunpack.c.h.b16 %v6909
      %v8141 = vunpack.c.l.b16 %v6910
      %v8142 = vunpack.c.h.b16 %v6910
      %v8143 = vunpack.c.l.b16 %v6911
      %v8144 = vunpack.c.h.b16 %v6911
      %v8145 = vunpack.c.l.b16 %v6912
      %v8146 = vunpack.c.h.b16 %v6912
      %v8147 = vunpack.c.l.b16 %v6913
      %v8148 = vunpack.c.h.b16 %v6913
      %v8149 = vunpack.c.l.b16 %v6914
      %v8150 = vunpack.c.h.b16 %v6914
      %v8151 = vunpack.c.l.b16 %v6915
      %v8152 = vunpack.c.h.b16 %v6915
      %v8153 = vunpack.c.l.b16 %v6916
      %v8154 = vunpack.c.h.b16 %v6916
      %v8155 = vunpack.c.l.b16 %v6917
      %v8156 = vunpack.c.h.b16 %v6917
      %v8157 = vunpack.c.l.b16 %v6918
      %v8158 = vunpack.c.h.b16 %v6918
      %v8159 = vunpack.c.l.b16 %v6919
      %v8160 = vunpack.c.h.b16 %v6919
      %v8161 = vunpack.c.l.b16 %v6920
      %v8162 = vunpack.c.h.b16 %v6920
      %v8163 = vunpack.c.l.b16 %v6921
      %v8164 = vunpack.c.h.b16 %v6921
      %v8165 = vunpack.c.l.b16 %v6922
      %v8166 = vunpack.c.h.b16 %v6922
      %v8167 = vunpack.c.l.b16 %v6923
      %v8168 = vunpack.c.h.b16 %v6923
      %v8169 = vunpack.c.l.b16 %v6924
      %v8170 = vunpack.c.h.b16 %v6924
      %v8171 = vunpack.c.l.b16 %v6925
      %v8172 = vunpack.c.h.b16 %v6925
      %v8173 = vunpack.c.l.b16 %v6926
      %v8174 = vunpack.c.h.b16 %v6926
      %v8175 = vunpack.c.l.b16 %v6927
      %v8176 = vunpack.c.h.b16 %v6927
      %v8177 = vunpack.c.l.b16 %v6928
      %v8178 = vunpack.c.h.b16 %v6928
      %v8179 = vunpack.c.l.b16 %v6929
      %v8180 = vunpack.c.h.b16 %v6929
      %v8181 = vunpack.c.l.b16 %v6930
      %v8182 = vunpack.c.h.b16 %v6930
      %v8183 = vunpack.c.l.b16 %v6931
      %v8184 = vunpack.c.h.b16 %v6931
      %v8185 = vunpack.c.l.b16 %v6932
      %v8186 = vunpack.c.h.b16 %v6932
      %v8187 = vunpack.c.l.b16 %v6933
      %v8188 = vunpack.c.h.b16 %v6933
      %v8189 = vunpack.c.l.b16 %v6934
      %v8190 = vunpack.c.h.b16 %v6934
      %v8191 = vunpack.c.l.b16 %v6935
      %v8192 = vunpack.c.h.b16 %v6935
      %v8193 = vunpack.c.l.b16 %v6936
      %v8194 = vunpack.c.h.b16 %v6936
      %v8195 = vunpack.c.l.b16 %v6937
      %v8196 = vunpack.c.h.b16 %v6937
      %v8197 = vunpack.c.l.b16 %v6938
      %v8198 = vunpack.c.h.b16 %v6938
      %v8199 = vunpack.c.l.b16 %v6939
      %v8200 = vunpack.c.h.b16 %v6939
      %v8201 = vunpack.c.l.b16 %v6940
      %v8202 = vunpack.c.h.b16 %v6940
      %v8203 = vunpack.c.l.b16 %v6941
      %v8204 = vunpack.c.h.b16 %v6941
      %v8205 = vunpack.c.l.b16 %v6942
      %v8206 = vunpack.c.h.b16 %v6942
      %v8207 = vunpack.c.l.b16 %v6943
      %v8208 = vunpack.c.h.b16 %v6943
      %v8209 = vunpack.c.l.b16 %v6944
      %v8210 = vunpack.c.h.b16 %v6944
      %v8211 = vunpack.c.l.b16 %v6945
      %v8212 = vunpack.c.h.b16 %v6945
      %v8213 = vunpack.c.l.b16 %v6946
      %v8214 = vunpack.c.h.b16 %v6946
      %v8215 = vunpack.c.l.b16 %v6947
      %v8216 = vunpack.c.h.b16 %v6947
      %v8217 = vunpack.c.l.b16 %v6948
      %v8218 = vunpack.c.h.b16 %v6948
      %v8219 = vunpack.c.l.b16 %v6949
      %v8220 = vunpack.c.h.b16 %v6949
      %v8221 = vunpack.c.l.b16 %v6950
      %v8222 = vunpack.c.h.b16 %v6950
      %v8223 = vunpack.c.l.b16 %v6951
      %v8224 = vunpack.c.h.b16 %v6951
      %v8225 = vunpack.c.l.b16 %v6952
      %v8226 = vunpack.c.h.b16 %v6952
      %v8227 = vunpack.c.l.b16 %v6953
      %v8228 = vunpack.c.h.b16 %v6953
      %v8229 = vunpack.c.l.b16 %v6954
      %v8230 = vunpack.c.h.b16 %v6954
      %v8231 = vunpack.c.l.b16 %v6955
      %v8232 = vunpack.c.h.b16 %v6955
      %v8233 = vunpack.c.l.b16 %v6956
      %v8234 = vunpack.c.h.b16 %v6956
      %v8235 = vunpack.c.l.b16 %v6957
      %v8236 = vunpack.c.h.b16 %v6957
      %v8237 = vunpack.c.l.b16 %v6958
      %v8238 = vunpack.c.h.b16 %v6958
      %v8239 = vunpack.c.l.b16 %v6959
      %v8240 = vunpack.c.h.b16 %v6959
      %v8241 = vunpack.c.l.b16 %v6960
      %v8242 = vunpack.c.h.b16 %v6960
      %v8243 = vunpack.c.l.b16 %v6961
      %v8244 = vunpack.c.h.b16 %v6961
      %v8245 = vunpack.c.l.b16 %v6962
      %v8246 = vunpack.c.h.b16 %v6962
      %v8247 = vunpack.c.l.b16 %v6963
      %v8248 = vunpack.c.h.b16 %v6963
      %v8249 = vunpack.c.l.b16 %v6964
      %v8250 = vunpack.c.h.b16 %v6964
      %v8251 = vunpack.c.l.b16 %v6965
      %v8252 = vunpack.c.h.b16 %v6965
      %v8253 = vunpack.c.l.b16 %v6966
      %v8254 = vunpack.c.h.b16 %v6966
      %v8255 = vunpack.c.l.b16 %v6967
      %v8256 = vunpack.c.h.b16 %v6967
      %v8257 = vunpack.c.l.b16 %v6968
      %v8258 = vunpack.c.h.b16 %v6968
      %v8259 = vunpack.c.l.b16 %v6969
      %v8260 = vunpack.c.h.b16 %v6969
      %v8261 = vunpack.c.l.b16 %v6970
      %v8262 = vunpack.c.h.b16 %v6970
      %v8263 = vunpack.c.l.b16 %v6971
      %v8264 = vunpack.c.h.b16 %v6971
      %v8265 = vunpack.c.l.b16 %v6972
      %v8266 = vunpack.c.h.b16 %v6972
      %v8267 = vunpack.c.l.b16 %v6973
      %v8268 = vunpack.c.h.b16 %v6973
      %v8269 = vunpack.c.l.b16 %v6974
      %v8270 = vunpack.c.h.b16 %v6974
      %v8271 = vunpack.c.l.b16 %v6975
      %v8272 = vunpack.c.h.b16 %v6975
      %v8273 = vunpack.c.l.b16 %v6976
      %v8274 = vunpack.c.h.b16 %v6976
      %v8275 = vunpack.c.l.b16 %v6977
      %v8276 = vunpack.c.h.b16 %v6977
      %v8277 = vunpack.c.l.b16 %v6978
      %v8278 = vunpack.c.h.b16 %v6978
      %v8279 = vunpack.c.l.b16 %v6979
      %v8280 = vunpack.c.h.b16 %v6979
      %v8281 = vunpack.c.l.b16 %v6980
      %v8282 = vunpack.c.h.b16 %v6980
      %v8283 = vunpack.c.l.b16 %v6981
      %v8284 = vunpack.c.h.b16 %v6981
      %v8285 = vunpack.c.l.b16 %v6982
      %v8286 = vunpack.c.h.b16 %v6982
      %v8287 = vunpack.c.l.b16 %v6983
      %v8288 = vunpack.c.h.b16 %v6983
      %v8289 = vunpack.c.l.b16 %v6984
      %v8290 = vunpack.c.h.b16 %v6984
      %v8291 = vunpack.c.l.b16 %v6985
      %v8292 = vunpack.c.h.b16 %v6985
      %v8293 = vunpack.c.l.b16 %v6986
      %v8294 = vunpack.c.h.b16 %v6986
      %v8295 = vunpack.c.l.b16 %v6987
      %v8296 = vunpack.c.h.b16 %v6987
      %v8297 = vunpack.c.l.b16 %v6988
      %v8298 = vunpack.c.h.b16 %v6988
      %v8299 = vunpack.c.l.b16 %v6989
      %v8300 = vunpack.c.h.b16 %v6989
      %v8301 = vunpack.c.l.b16 %v6990
      %v8302 = vunpack.c.h.b16 %v6990
      %v8303 = vunpack.c.l.b16 %v6991
      %v8304 = vunpack.c.h.b16 %v6991
      %v8305 = vunpack.c.l.b16 %v6992
      %v8306 = vunpack.c.h.b16 %v6992
      %v8307 = vunpack.c.l.b16 %v6993
      %v8308 = vunpack.c.h.b16 %v6993
      %v8309 = vunpack.c.l.b16 %v6994
      %v8310 = vunpack.c.h.b16 %v6994
      %v8311 = vunpack.c.l.b16 %v6995
      %v8312 = vunpack.c.h.b16 %v6995
      %v8313 = vunpack.c.l.b16 %v6996
      %v8314 = vunpack.c.h.b16 %v6996
      %v8315 = vunpack.c.l.b16 %v6997
      %v8316 = vunpack.c.h.b16 %v6997
      %v8317 = vunpack.c.l.b16 %v6998
      %v8318 = vunpack.c.h.b16 %v6998
      %v8319 = vunpack.c.l.b16 %v6999
      %v8320 = vunpack.c.h.b16 %v6999
      %v8321 = vunpack.c.l.b16 %v7000
      %v8322 = vunpack.c.h.b16 %v7000
      %v8323 = vunpack.c.l.b16 %v7001
      %v8324 = vunpack.c.h.b16 %v7001
      %v8325 = vunpack.c.l.b16 %v7002
      %v8326 = vunpack.c.h.b16 %v7002
      %v8327 = vunpack.c.l.b16 %v7003
      %v8328 = vunpack.c.h.b16 %v7003
      %v8329 = vunpack.c.l.b16 %v7004
      %v8330 = vunpack.c.h.b16 %v7004
      %v8331 = vunpack.c.l.b16 %v7005
      %v8332 = vunpack.c.h.b16 %v7005
      %v8333 = vunpack.c.l.b16 %v7006
      %v8334 = vunpack.c.h.b16 %v7006
      %v8335 = vunpack.c.l.b16 %v7007
      %v8336 = vunpack.c.h.b16 %v7007
      %v8337 = vunpack.c.l.b16 %v7008
      %v8338 = vunpack.c.h.b16 %v7008
      %v8339 = vunpack.c.l.b16 %v7009
      %v8340 = vunpack.c.h.b16 %v7009
      %v8341 = vunpack.c.l.b16 %v7010
      %v8342 = vunpack.c.h.b16 %v7010
      %v8343 = vunpack.c.l.b16 %v7011
      %v8344 = vunpack.c.h.b16 %v7011
      %v8345 = vunpack.c.l.b16 %v7012
      %v8346 = vunpack.c.h.b16 %v7012
      %v8347 = vunpack.c.l.b16 %v7013
      %v8348 = vunpack.c.h.b16 %v7013
      %v8349 = vunpack.c.l.b16 %v7014
      %v8350 = vunpack.c.h.b16 %v7014
      %v8351 = vunpack.c.l.b16 %v7015
      %v8352 = vunpack.c.h.b16 %v7015
      %v8353 = vunpack.c.l.b16 %v7016
      %v8354 = vunpack.c.h.b16 %v7016
      %v8355 = vunpack.c.l.b16 %v7017
      %v8356 = vunpack.c.h.b16 %v7017
      %v8357 = vunpack.c.l.b16 %v7018
      %v8358 = vunpack.c.h.b16 %v7018
      %v8359 = vunpack.c.l.b16 %v7019
      %v8360 = vunpack.c.h.b16 %v7019
      %v8361 = vunpack.c.l.b16 %v7020
      %v8362 = vunpack.c.h.b16 %v7020
      %v8363 = vunpack.c.l.b16 %v7021
      %v8364 = vunpack.c.h.b16 %v7021
      %v8365 = vunpack.c.l.b16 %v7022
      %v8366 = vunpack.c.h.b16 %v7022
      %v8367 = vunpack.c.l.b16 %v7023
      %v8368 = vunpack.c.h.b16 %v7023
      %v8369 = vunpack.c.l.b16 %v7024
      %v8370 = vunpack.c.h.b16 %v7024
      %v8371 = vunpack.c.l.b16 %v7025
      %v8372 = vunpack.c.h.b16 %v7025
      %v8373 = vunpack.c.l.b16 %v7026
      %v8374 = vunpack.c.h.b16 %v7026
      %v8375 = vunpack.c.l.b16 %v7027
      %v8376 = vunpack.c.h.b16 %v7027
      %v8377 = vunpack.c.l.b16 %v7028
      %v8378 = vunpack.c.h.b16 %v7028
      %v8379 = vunpack.c.l.b16 %v7029
      %v8380 = vunpack.c.h.b16 %v7029
      %v8381 = vunpack.c.l.b16 %v7030
      %v8382 = vunpack.c.h.b16 %v7030
      %v8383 = vunpack.c.l.b16 %v7031
      %v8384 = vunpack.c.h.b16 %v7031
      %v8385 = vunpack.c.l.b16 %v7032
      %v8386 = vunpack.c.h.b16 %v7032
      %v8387 = vunpack.c.l.b16 %v7033
      %v8388 = vunpack.c.h.b16 %v7033
      %v8389 = vunpack.c.l.b16 %v7034
      %v8390 = vunpack.c.h.b16 %v7034
      %v8391 = vunpack.c.l.b16 %v7035
      %v8392 = vunpack.c.h.b16 %v7035
      %v8393 = vunpack.c.l.b16 %v7036
      %v8394 = vunpack.c.h.b16 %v7036
      %v8395 = vunpack.c.l.b16 %v7037
      %v8396 = vunpack.c.h.b16 %v7037
      %v8397 = vunpack.c.l.b16 %v7038
      %v8398 = vunpack.c.h.b16 %v7038
      %v8399 = vunpack.c.l.b16 %v7039
      %v8400 = vunpack.c.h.b16 %v7039
      %v8401 = vunpack.c.l.b16 %v7040
      %v8402 = vunpack.c.h.b16 %v7040
      %v8403 = vunpack.c.l.b16 %v7041
      %v8404 = vunpack.c.h.b16 %v7041
      %v8405 = vunpack.c.l.b16 %v7042
      %v8406 = vunpack.c.h.b16 %v7042
      %v8407 = vunpack.c.l.b16 %v7043
      %v8408 = vunpack.c.h.b16 %v7043
      %v8409 = vunpack.c.l.b16 %v7044
      %v8410 = vunpack.c.h.b16 %v7044
      %v8411 = vunpack.c.l.b16 %v7045
      %v8412 = vunpack.c.h.b16 %v7045
      %v8413 = vunpack.c.l.b16 %v7046
      %v8414 = vunpack.c.h.b16 %v7046
      %v8415 = vunpack.c.l.b16 %v7047
      %v8416 = vunpack.c.h.b16 %v7047
      %v8417 = vunpack.c.l.b16 %v7048
      %v8418 = vunpack.c.h.b16 %v7048
      %v8419 = vunpack.c.l.b16 %v7049
      %v8420 = vunpack.c.h.b16 %v7049
      %v8421 = vunpack.c.l.b16 %v7050
      %v8422 = vunpack.c.h.b16 %v7050
      %v8423 = vunpack.c.l.b16 %v7051
      %v8424 = vunpack.c.h.b16 %v7051
      %v8425 = vunpack.c.l.b16 %v7052
      %v8426 = vunpack.c.h.b16 %v7052
      %v8427 = vunpack.c.l.b16 %v7053
      %v8428 = vunpack.c.h.b16 %v7053
      %v8429 = vunpack.c.l.b16 %v7054
      %v8430 = vunpack.c.h.b16 %v7054
      %v8431 = vunpack.c.l.b16 %v7055
      %v8432 = vunpack.c.h.b16 %v7055
      %v8433 = vunpack.c.l.b16 %v7056
      %v8434 = vunpack.c.h.b16 %v7056
      %v8435 = vunpack.c.l.b16 %v7057
      %v8436 = vunpack.c.h.b16 %v7057
      %v8437 = vunpack.c.l.b16 %v7058
      %v8438 = vunpack.c.h.b16 %v7058
      %v8439 = vunpack.c.l.b16 %v7059
      %v8440 = vunpack.c.h.b16 %v7059
      %v8441 = vunpack.c.l.b16 %v7060
      %v8442 = vunpack.c.h.b16 %v7060
      %v8443 = vunpack.c.l.b16 %v7061
      %v8444 = vunpack.c.h.b16 %v7061
      %v8445 = vunpack.c.l.b16 %v7062
      %v8446 = vunpack.c.h.b16 %v7062
      %v8447 = vunpack.c.l.b16 %v7063
      %v8448 = vunpack.c.h.b16 %v7063
      %v8449 = vunpack.c.l.b16 %v7064
      %v8450 = vunpack.c.h.b16 %v7064
      %v8451 = vunpack.c.l.b16 %v7065
      %v8452 = vunpack.c.h.b16 %v7065
      %v8453 = vunpack.c.l.b16 %v7066
      %v8454 = vunpack.c.h.b16 %v7066
      %v8455 = vunpack.c.l.b16 %v7067
      %v8456 = vunpack.c.h.b16 %v7067
      %v8457 = vunpack.c.l.b16 %v7068
      %v8458 = vunpack.c.h.b16 %v7068
      %v8459 = vunpack.c.l.b16 %v7069
      %v8460 = vunpack.c.h.b16 %v7069
      %v8461 = vunpack.c.l.b16 %v7070
      %v8462 = vunpack.c.h.b16 %v7070
      %v8463 = vunpack.c.l.b16 %v7071
      %v8464 = vunpack.c.h.b16 %v7071
      %v8465 = vunpack.c.l.b16 %v7072
      %v8466 = vunpack.c.h.b16 %v7072
      %v8467 = vunpack.c.l.b16 %v7073
      %v8468 = vunpack.c.h.b16 %v7073
      %v8469 = vunpack.c.l.b16 %v7074
      %v8470 = vunpack.c.h.b16 %v7074
      %v8471 = vunpack.c.l.b16 %v7075
      %v8472 = vunpack.c.h.b16 %v7075
      %v8473 = vunpack.c.l.b16 %v7076
      %v8474 = vunpack.c.h.b16 %v7076
      %v8475 = vunpack.c.l.b16 %v7077
      %v8476 = vunpack.c.h.b16 %v7077
      %v8477 = vunpack.c.l.b16 %v7078
      %v8478 = vunpack.c.h.b16 %v7078
      %v8479 = vunpack.c.l.b16 %v7079
      %v8480 = vunpack.c.h.b16 %v7079
      %v8481 = vunpack.c.l.b16 %v7080
      %v8482 = vunpack.c.h.b16 %v7080
      %v8483 = vunpack.c.l.b16 %v7081
      %v8484 = vunpack.c.h.b16 %v7081
      %v8485 = vunpack.c.l.b16 %v7082
      %v8486 = vunpack.c.h.b16 %v7082
      %v8487 = vunpack.c.l.b16 %v7083
      %v8488 = vunpack.c.h.b16 %v7083
      %v8489 = vunpack.c.l.b16 %v7084
      %v8490 = vunpack.c.h.b16 %v7084
      %v8491 = vunpack.c.l.b16 %v7085
      %v8492 = vunpack.c.h.b16 %v7085
      %v8493 = vunpack.c.l.b16 %v7086
      %v8494 = vunpack.c.h.b16 %v7086
      %v8495 = vunpack.c.l.b16 %v7087
      %v8496 = vunpack.c.h.b16 %v7087
      %v8497 = vunpack.c.l.b16 %v7088
      %v8498 = vunpack.c.h.b16 %v7088
      %v8499 = vunpack.c.l.b16 %v7089
      %v8500 = vunpack.c.h.b16 %v7089
      %v8501 = vunpack.c.l.b16 %v7090
      %v8502 = vunpack.c.h.b16 %v7090
      %v8503 = vunpack.c.l.b16 %v7091
      %v8504 = vunpack.c.h.b16 %v7091
      %v8505 = vunpack.c.l.b16 %v7092
      %v8506 = vunpack.c.h.b16 %v7092
      %v8507 = vunpack.c.l.b16 %v7093
      %v8508 = vunpack.c.h.b16 %v7093
      %v8509 = vunpack.c.l.b16 %v7094
      %v8510 = vunpack.c.h.b16 %v7094
      %v8511 = vunpack.c.l.b16 %v7095
      %v8512 = vunpack.c.h.b16 %v7095
      %v8513 = vunpack.c.l.b16 %v7096
      %v8514 = vunpack.c.h.b16 %v7096
      %v8515 = vunpack.c.l.b16 %v7097
      %v8516 = vunpack.c.h.b16 %v7097
      %v8517 = vunpack.c.l.b16 %v7098
      %v8518 = vunpack.c.h.b16 %v7098
      %v8519 = vunpack.c.l.b16 %v7099
      %v8520 = vunpack.c.h.b16 %v7099
      %v8521 = vunpack.c.l.b16 %v7100
      %v8522 = vunpack.c.h.b16 %v7100
      %v8523 = vunpack.c.l.b16 %v7101
      %v8524 = vunpack.c.h.b16 %v7101
      %v8525 = vunpack.c.l.b16 %v7102
      %v8526 = vunpack.c.h.b16 %v7102
      %v8527 = vunpack.c.l.b16 %v7103
      %v8528 = vunpack.c.h.b16 %v7103
      %v8529 = vunpack.c.l.b16 %v7104
      %v8530 = vunpack.c.h.b16 %v7104
      %v8531 = vunpack.c.l.b16 %v7105
      %v8532 = vunpack.c.h.b16 %v7105
      %v8533 = vunpack.c.l.b16 %v7106
      %v8534 = vunpack.c.h.b16 %v7106
      %v8535 = vunpack.c.l.b16 %v7107
      %v8536 = vunpack.c.h.b16 %v7107
      %v8537 = vunpack.c.l.b16 %v7108
      %v8538 = vunpack.c.h.b16 %v7108
      %v8539 = vunpack.c.l.b16 %v7109
      %v8540 = vunpack.c.h.b16 %v7109
      %v8541 = vunpack.c.l.b16 %v7110
      %v8542 = vunpack.c.h.b16 %v7110
      %v8543 = vunpack.c.l.b16 %v7111
      %v8544 = vunpack.c.h.b16 %v7111
      %v8545 = vunpack.c.l.b16 %v7112
      %v8546 = vunpack.c.h.b16 %v7112
      %v8547 = vunpack.c.l.b16 %v7113
      %v8548 = vunpack.c.h.b16 %v7113
      %v8549 = vunpack.c.l.b16 %v7114
      %v8550 = vunpack.c.h.b16 %v7114
      %v8551 = vunpack.c.l.b16 %v7115
      %v8552 = vunpack.c.h.b16 %v7115
      %v8553 = vunpack.c.l.b16 %v7116
      %v8554 = vunpack.c.h.b16 %v7116
      %v8555 = vunpack.c.l.b16 %v7117
      %v8556 = vunpack.c.h.b16 %v7117
      %v8557 = vunpack.c.l.b16 %v7118
      %v8558 = vunpack.c.h.b16 %v7118
      %v8559 = vunpack.c.l.b16 %v7119
      %v8560 = vunpack.c.h.b16 %v7119
      %v8561 = vunpack.c.l.b16 %v7120
      %v8562 = vunpack.c.h.b16 %v7120
      %v8563 = vunpack.c.l.b16 %v7121
      %v8564 = vunpack.c.h.b16 %v7121
      %v8565 = vunpack.c.l.b16 %v7122
      %v8566 = vunpack.c.h.b16 %v7122
      %v8567 = vunpack.c.l.b16 %v7123
      %v8568 = vunpack.c.h.b16 %v7123
      %v8569 = vunpack.c.l.b16 %v7124
      %v8570 = vunpack.c.h.b16 %v7124
      %v8571 = vunpack.c.l.b16 %v7125
      %v8572 = vunpack.c.h.b16 %v7125
      %v8573 = vunpack.c.l.b16 %v7126
      %v8574 = vunpack.c.h.b16 %v7126
      %v8575 = vunpack.c.l.b16 %v7127
      %v8576 = vunpack.c.h.b16 %v7127
      %v8577 = vunpack.c.l.b16 %v7128
      %v8578 = vunpack.c.h.b16 %v7128
      %v8579 = vunpack.c.l.b16 %v7129
      %v8580 = vunpack.c.h.b16 %v7129
      %v8581 = vunpack.c.l.b16 %v7130
      %v8582 = vunpack.c.h.b16 %v7130
      %v8583 = vunpack.c.l.b16 %v7131
      %v8584 = vunpack.c.h.b16 %v7131
      %v8585 = vunpack.c.l.b16 %v7132
      %v8586 = vunpack.c.h.b16 %v7132
      %v8587 = vunpack.c.l.b16 %v7133
      %v8588 = vunpack.c.h.b16 %v7133
      %v8589 = vunpack.c.l.b16 %v7134
      %v8590 = vunpack.c.h.b16 %v7134
      %v8591 = vunpack.c.l.b16 %v7135
      %v8592 = vunpack.c.h.b16 %v7135
      %v8593 = vunpack.c.l.b16 %v7136
      %v8594 = vunpack.c.h.b16 %v7136
      %v8595 = vunpack.c.l.b16 %v7137
      %v8596 = vunpack.c.h.b16 %v7137
      %v8597 = vunpack.c.l.b16 %v7138
      %v8598 = vunpack.c.h.b16 %v7138
      %v8599 = vunpack.c.l.b16 %v7139
      %v8600 = vunpack.c.h.b16 %v7139
      %v8601 = vunpack.c.l.b16 %v7140
      %v8602 = vunpack.c.h.b16 %v7140
      %v8603 = vunpack.c.l.b16 %v7141
      %v8604 = vunpack.c.h.b16 %v7141
      %v8605 = vunpack.c.l.b16 %v7142
      %v8606 = vunpack.c.h.b16 %v7142
      %v8607 = vunpack.c.l.b16 %v7143
      %v8608 = vunpack.c.h.b16 %v7143
      %v8609 = vunpack.c.l.b16 %v7144
      %v8610 = vunpack.c.h.b16 %v7144
      %v8611 = vunpack.c.l.b16 %v7145
      %v8612 = vunpack.c.h.b16 %v7145
      %v8613 = vunpack.c.l.b16 %v7146
      %v8614 = vunpack.c.h.b16 %v7146
      %v8615 = vunpack.c.l.b16 %v7147
      %v8616 = vunpack.c.h.b16 %v7147
      %v8617 = vunpack.c.l.b16 %v7148
      %v8618 = vunpack.c.h.b16 %v7148
      %v8619 = vunpack.c.l.b16 %v7149
      %v8620 = vunpack.c.h.b16 %v7149
      %v8621 = vunpack.c.l.b16 %v7150
      %v8622 = vunpack.c.h.b16 %v7150
      %v8623 = vunpack.c.l.b16 %v7151
      %v8624 = vunpack.c.h.b16 %v7151
      %v8625 = vunpack.c.l.b16 %v7152
      %v8626 = vunpack.c.h.b16 %v7152
      %v8627 = vunpack.c.l.b16 %v7153
      %v8628 = vunpack.c.h.b16 %v7153
      %v8629 = vunpack.c.l.b16 %v7154
      %v8630 = vunpack.c.h.b16 %v7154
      %v8631 = vunpack.c.l.b16 %v7155
      %v8632 = vunpack.c.h.b16 %v7155
      %v8633 = vunpack.c.l.b16 %v7156
      %v8634 = vunpack.c.h.b16 %v7156
      %v8635 = vunpack.c.l.b16 %v7157
      %v8636 = vunpack.c.h.b16 %v7157
      %v8637 = vunpack.c.l.b16 %v7158
      %v8638 = vunpack.c.h.b16 %v7158
      %v8639 = vunpack.c.l.b16 %v7159
      %v8640 = vunpack.c.h.b16 %v7159
      %v8641 = vunpack.c.l.b16 %v7160
      %v8642 = vunpack.c.h.b16 %v7160
      %v8643 = vunpack.c.l.b16 %v7161
      %v8644 = vunpack.c.h.b16 %v7161
      %v8645 = vunpack.c.l.b16 %v7162
      %v8646 = vunpack.c.h.b16 %v7162
      %v8647 = vunpack.c.l.b16 %v7163
      %v8648 = vunpack.c.h.b16 %v7163
      %v8649 = vunpack.c.l.b16 %v7164
      %v8650 = vunpack.c.h.b16 %v7164
      %v8651 = vunpack.c.l.b16 %v7165
      %v8652 = vunpack.c.h.b16 %v7165
      %v8653 = vunpack.c.l.b16 %v7166
      %v8654 = vunpack.c.h.b16 %v7166
      %v8655 = vunpack.c.l.b16 %v7167
      %v8656 = vunpack.c.h.b16 %v7167
      %v8657 = vunpack.c.l.b16 %v7168
      %v8658 = vunpack.c.h.b16 %v7168
      %v8659 = vunpack.c.l.b16 %v7169
      %v8660 = vunpack.c.h.b16 %v7169
      %v8661 = vunpack.c.l.b16 %v7170
      %v8662 = vunpack.c.h.b16 %v7170
      %v8663 = vunpack.c.l.b16 %v7171
      %v8664 = vunpack.c.h.b16 %v7171
      %v8665 = vunpack.c.l.b16 %v7172
      %v8666 = vunpack.c.h.b16 %v7172
      %v8667 = vunpack.c.l.b16 %v7173
      %v8668 = vunpack.c.h.b16 %v7173
      %v8669 = vunpack.c.l.b16 %v7174
      %v8670 = vunpack.c.h.b16 %v7174
      %v8671 = vunpack.c.l.b16 %v7175
      %v8672 = vunpack.c.h.b16 %v7175
      %v8673 = vunpack.c.l.b16 %v7176
      %v8674 = vunpack.c.h.b16 %v7176
      %v8675 = vunpack.c.l.b16 %v7177
      %v8676 = vunpack.c.h.b16 %v7177
      %v8677 = vunpack.c.l.b16 %v7178
      %v8678 = vunpack.c.h.b16 %v7178
      %v8679 = vunpack.c.l.b16 %v7179
      %v8680 = vunpack.c.h.b16 %v7179
      %v8681 = vunpack.c.l.b16 %v7180
      %v8682 = vunpack.c.h.b16 %v7180
      %v8683 = vunpack.c.l.b16 %v7181
      %v8684 = vunpack.c.h.b16 %v7181
      %v8685 = vunpack.c.l.b16 %v7182
      %v8686 = vunpack.c.h.b16 %v7182
      %v8687 = vunpack.c.l.b16 %v7183
      %v8688 = vunpack.c.h.b16 %v7183
      %v8689 = vunpack.c.l.b16 %v7184
      %v8690 = vunpack.c.h.b16 %v7184
      %v8691 = vunpack.c.l.b16 %v7185
      %v8692 = vunpack.c.h.b16 %v7185
      %v8693 = vunpack.c.l.b16 %v7186
      %v8694 = vunpack.c.h.b16 %v7186
      %v8695 = vunpack.c.l.b16 %v7187
      %v8696 = vunpack.c.h.b16 %v7187
      %v8697 = vunpack.c.l.b16 %v7188
      %v8698 = vunpack.c.h.b16 %v7188
      %v8699 = vunpack.c.l.b16 %v7189
      %v8700 = vunpack.c.h.b16 %v7189
      %v8701 = vunpack.c.l.b16 %v7190
      %v8702 = vunpack.c.h.b16 %v7190
      %v8703 = vunpack.c.l.b16 %v7191
      %v8704 = vunpack.c.h.b16 %v7191
      %v8705 = vunpack.c.l.b16 %v7192
      %v8706 = vunpack.c.h.b16 %v7192
      %v8707 = vunpack.c.l.b16 %v7193
      %v8708 = vunpack.c.h.b16 %v7193
      %v8709 = vunpack.c.l.b16 %v7194
      %v8710 = vunpack.c.h.b16 %v7194
      %v8711 = vunpack.c.l.b16 %v7195
      %v8712 = vunpack.c.h.b16 %v7195
      %v8713 = vunpack.c.l.b16 %v7196
      %v8714 = vunpack.c.h.b16 %v7196
      %v8715 = vunpack.c.l.b16 %v7197
      %v8716 = vunpack.c.h.b16 %v7197
      %v8717 = vunpack.c.l.b16 %v7198
      %v8718 = vunpack.c.h.b16 %v7198
      %v8719 = vunpack.c.l.b16 %v7199
      %v8720 = vunpack.c.h.b16 %v7199
      %v8721 = vunpack.c.l.b16 %v7200
      %v8722 = vunpack.c.h.b16 %v7200
      %v8723 = vunpack.c.l.b16 %v7201
      %v8724 = vunpack.c.h.b16 %v7201
      %v8725 = vunpack.c.l.b16 %v7202
      %v8726 = vunpack.c.h.b16 %v7202
      %v8727 = vunpack.c.l.b16 %v7203
      %v8728 = vunpack.c.h.b16 %v7203
      %v8729 = vunpack.c.l.b16 %v7204
      %v8730 = vunpack.c.h.b16 %v7204
      %v8731 = vunpack.c.l.b16 %v7205
      %v8732 = vunpack.c.h.b16 %v7205
      %v8733 = vunpack.c.l.b16 %v7206
      %v8734 = vunpack.c.h.b16 %v7206
      %v8735 = vunpack.c.l.b16 %v7207
      %v8736 = vunpack.c.h.b16 %v7207
      %v8737 = vunpack.c.l.b16 %v7208
      %v8738 = vunpack.c.h.b16 %v7208
      %v8739 = vunpack.c.l.b16 %v7209
      %v8740 = vunpack.c.h.b16 %v7209
      %v8741 = vunpack.c.l.b16 %v7210
      %v8742 = vunpack.c.h.b16 %v7210
      %v8743 = vunpack.c.l.b16 %v7211
      %v8744 = vunpack.c.h.b16 %v7211
      %v8745 = vunpack.c.l.b16 %v7212
      %v8746 = vunpack.c.h.b16 %v7212
      %v8747 = vunpack.c.l.b16 %v7213
      %v8748 = vunpack.c.h.b16 %v7213
      %v8749 = vunpack.c.l.b16 %v7214
      %v8750 = vunpack.c.h.b16 %v7214
      %v8751 = vunpack.c.l.b16 %v7215
      %v8752 = vunpack.c.h.b16 %v7215
      %v8753 = vunpack.c.l.b16 %v7216
      %v8754 = vunpack.c.h.b16 %v7216
      %v8755 = vunpack.c.l.b16 %v7217
      %v8756 = vunpack.c.h.b16 %v7217
      %v8757 = vunpack.c.l.b16 %v7218
      %v8758 = vunpack.c.h.b16 %v7218
      %v8759 = vunpack.c.l.b16 %v7219
      %v8760 = vunpack.c.h.b16 %v7219
      %v8761 = vunpack.c.l.b16 %v7220
      %v8762 = vunpack.c.h.b16 %v7220
      %v8763 = vunpack.c.l.b16 %v7221
      %v8764 = vunpack.c.h.b16 %v7221
      %v8765 = vunpack.c.l.b16 %v7222
      %v8766 = vunpack.c.h.b16 %v7222
      %v8767 = vunpack.c.l.b16 %v7223
      %v8768 = vunpack.c.h.b16 %v7223
      %v8769 = vunpack.c.l.b16 %v7224
      %v8770 = vunpack.c.h.b16 %v7224
      %v8771 = vunpack.c.l.b16 %v7225
      %v8772 = vunpack.c.h.b16 %v7225
      %v8773 = vunpack.c.l.b16 %v7226
      %v8774 = vunpack.c.h.b16 %v7226
      %v8775 = vunpack.c.l.b16 %v7227
      %v8776 = vunpack.c.h.b16 %v7227
      %v8777 = vunpack.c.l.b16 %v7228
      %v8778 = vunpack.c.h.b16 %v7228
      %v8779 = vunpack.c.l.b16 %v7229
      %v8780 = vunpack.c.h.b16 %v7229
      %v8781 = vunpack.c.l.b16 %v7230
      %v8782 = vunpack.c.h.b16 %v7230
      %v8783 = vunpack.c.l.b16 %v7231
      %v8784 = vunpack.c.h.b16 %v7231
      %v8785 = vunpack.c.l.b16 %v7232
      %v8786 = vunpack.c.h.b16 %v7232
      %v8787 = vunpack.c.l.b16 %v7233
      %v8788 = vunpack.c.h.b16 %v7233
      %v8789 = vunpack.c.l.b16 %v7234
      %v8790 = vunpack.c.h.b16 %v7234
      %v8791 = vunpack.c.l.b16 %v7235
      %v8792 = vunpack.c.h.b16 %v7235
      %v8793 = vunpack.c.l.b16 %v7236
      %v8794 = vunpack.c.h.b16 %v7236
      %v8795 = vpack.c.b16 %v7775, %v7771
      %v8796 = vpack.c.b16 %v7776, %v7772
      %v8797 = vpack.c.b16 %v7777, %v7773
      %v8798 = vpack.c.b16 %v7778, %v7774
      %v8799 = vpack.c.b16 %v7783, %v7779
      %v8800 = vpack.c.b16 %v7784, %v7780
      %v8801 = vpack.c.b16 %v7785, %v7781
      %v8802 = vpack.c.b16 %v7786, %v7782
      %v8803 = vpack.c.b16 %v7791, %v7787
      %v8804 = vpack.c.b16 %v7792, %v7788
      %v8805 = vpack.c.b16 %v7793, %v7789
      %v8806 = vpack.c.b16 %v7794, %v7790
      %v8807 = vpack.c.b16 %v7799, %v7795
      %v8808 = vpack.c.b16 %v7800, %v7796
      %v8809 = vpack.c.b16 %v7801, %v7797
      %v8810 = vpack.c.b16 %v7802, %v7798
      %v8811 = vpack.c.b16 %v7807, %v7803
      %v8812 = vpack.c.b16 %v7808, %v7804
      %v8813 = vpack.c.b16 %v7809, %v7805
      %v8814 = vpack.c.b16 %v7810, %v7806
      %v8815 = vpack.c.b16 %v7815, %v7811
      %v8816 = vpack.c.b16 %v7816, %v7812
      %v8817 = vpack.c.b16 %v7817, %v7813
      %v8818 = vpack.c.b16 %v7818, %v7814
      %v8819 = vpack.c.b16 %v7823, %v7819
      %v8820 = vpack.c.b16 %v7824, %v7820
      %v8821 = vpack.c.b16 %v7825, %v7821
      %v8822 = vpack.c.b16 %v7826, %v7822
      %v8823 = vpack.c.b16 %v7831, %v7827
      %v8824 = vpack.c.b16 %v7832, %v7828
      %v8825 = vpack.c.b16 %v7833, %v7829
      %v8826 = vpack.c.b16 %v7834, %v7830
      %v8827 = vpack.c.b16 %v7839, %v7835
      %v8828 = vpack.c.b16 %v7840, %v7836
      %v8829 = vpack.c.b16 %v7841, %v7837
      %v8830 = vpack.c.b16 %v7842, %v7838
      %v8831 = vpack.c.b16 %v7847, %v7843
      %v8832 = vpack.c.b16 %v7848, %v7844
      %v8833 = vpack.c.b16 %v7849, %v7845
      %v8834 = vpack.c.b16 %v7850, %v7846
      %v8835 = vpack.c.b16 %v7855, %v7851
      %v8836 = vpack.c.b16 %v7856, %v7852
      %v8837 = vpack.c.b16 %v7857, %v7853
      %v8838 = vpack.c.b16 %v7858, %v7854
      %v8839 = vpack.c.b16 %v7863, %v7859
      %v8840 = vpack.c.b16 %v7864, %v7860
      %v8841 = vpack.c.b16 %v7865, %v7861
      %v8842 = vpack.c.b16 %v7866, %v7862
      %v8843 = vpack.c.b16 %v7871, %v7867
      %v8844 = vpack.c.b16 %v7872, %v7868
      %v8845 = vpack.c.b16 %v7873, %v7869
      %v8846 = vpack.c.b16 %v7874, %v7870
      %v8847 = vpack.c.b16 %v7879, %v7875
      %v8848 = vpack.c.b16 %v7880, %v7876
      %v8849 = vpack.c.b16 %v7881, %v7877
      %v8850 = vpack.c.b16 %v7882, %v7878
      %v8851 = vpack.c.b16 %v7887, %v7883
      %v8852 = vpack.c.b16 %v7888, %v7884
      %v8853 = vpack.c.b16 %v7889, %v7885
      %v8854 = vpack.c.b16 %v7890, %v7886
      %v8855 = vpack.c.b16 %v7895, %v7891
      %v8856 = vpack.c.b16 %v7896, %v7892
      %v8857 = vpack.c.b16 %v7897, %v7893
      %v8858 = vpack.c.b16 %v7898, %v7894
      %v8859 = vpack.c.b16 %v7903, %v7899
      %v8860 = vpack.c.b16 %v7904, %v7900
      %v8861 = vpack.c.b16 %v7905, %v7901
      %v8862 = vpack.c.b16 %v7906, %v7902
      %v8863 = vpack.c.b16 %v7911, %v7907
      %v8864 = vpack.c.b16 %v7912, %v7908
      %v8865 = vpack.c.b16 %v7913, %v7909
      %v8866 = vpack.c.b16 %v7914, %v7910
      %v8867 = vpack.c.b16 %v7919, %v7915
      %v8868 = vpack.c.b16 %v7920, %v7916
      %v8869 = vpack.c.b16 %v7921, %v7917
      %v8870 = vpack.c.b16 %v7922, %v7918
      %v8871 = vpack.c.b16 %v7927, %v7923
      %v8872 = vpack.c.b16 %v7928, %v7924
      %v8873 = vpack.c.b16 %v7929, %v7925
      %v8874 = vpack.c.b16 %v7930, %v7926
      %v8875 = vpack.c.b16 %v7935, %v7931
      %v8876 = vpack.c.b16 %v7936, %v7932
      %v8877 = vpack.c.b16 %v7937, %v7933
      %v8878 = vpack.c.b16 %v7938, %v7934
      %v8879 = vpack.c.b16 %v7943, %v7939
      %v8880 = vpack.c.b16 %v7944, %v7940
      %v8881 = vpack.c.b16 %v7945, %v7941
      %v8882 = vpack.c.b16 %v7946, %v7942
      %v8883 = vpack.c.b16 %v7951, %v7947
      %v8884 = vpack.c.b16 %v7952, %v7948
      %v8885 = vpack.c.b16 %v7953, %v7949
      %v8886 = vpack.c.b16 %v7954, %v7950
      %v8887 = vpack.c.b16 %v7959, %v7955
      %v8888 = vpack.c.b16 %v7960, %v7956
      %v8889 = vpack.c.b16 %v7961, %v7957
      %v8890 = vpack.c.b16 %v7962, %v7958
      %v8891 = vpack.c.b16 %v7967, %v7963
      %v8892 = vpack.c.b16 %v7968, %v7964
      %v8893 = vpack.c.b16 %v7969, %v7965
      %v8894 = vpack.c.b16 %v7970, %v7966
      %v8895 = vpack.c.b16 %v7975, %v7971
      %v8896 = vpack.c.b16 %v7976, %v7972
      %v8897 = vpack.c.b16 %v7977, %v7973
      %v8898 = vpack.c.b16 %v7978, %v7974
      %v8899 = vpack.c.b16 %v7983, %v7979
      %v8900 = vpack.c.b16 %v7984, %v7980
      %v8901 = vpack.c.b16 %v7985, %v7981
      %v8902 = vpack.c.b16 %v7986, %v7982
      %v8903 = vpack.c.b16 %v7991, %v7987
      %v8904 = vpack.c.b16 %v7992, %v7988
      %v8905 = vpack.c.b16 %v7993, %v7989
      %v8906 = vpack.c.b16 %v7994, %v7990
      %v8907 = vpack.c.b16 %v7999, %v7995
      %v8908 = vpack.c.b16 %v8000, %v7996
      %v8909 = vpack.c.b16 %v8001, %v7997
      %v8910 = vpack.c.b16 %v8002, %v7998
      %v8911 = vpack.c.b16 %v8007, %v8003
      %v8912 = vpack.c.b16 %v8008, %v8004
      %v8913 = vpack.c.b16 %v8009, %v8005
      %v8914 = vpack.c.b16 %v8010, %v8006
      %v8915 = vpack.c.b16 %v8015, %v8011
      %v8916 = vpack.c.b16 %v8016, %v8012
      %v8917 = vpack.c.b16 %v8017, %v8013
      %v8918 = vpack.c.b16 %v8018, %v8014
      %v8919 = vpack.c.b16 %v8023, %v8019
      %v8920 = vpack.c.b16 %v8024, %v8020
      %v8921 = vpack.c.b16 %v8025, %v8021
      %v8922 = vpack.c.b16 %v8026, %v8022
      %v8923 = vpack.c.b16 %v8031, %v8027
      %v8924 = vpack.c.b16 %v8032, %v8028
      %v8925 = vpack.c.b16 %v8033, %v8029
      %v8926 = vpack.c.b16 %v8034, %v8030
      %v8927 = vpack.c.b16 %v8039, %v8035
      %v8928 = vpack.c.b16 %v8040, %v8036
      %v8929 = vpack.c.b16 %v8041, %v8037
      %v8930 = vpack.c.b16 %v8042, %v8038
      %v8931 = vpack.c.b16 %v8047, %v8043
      %v8932 = vpack.c.b16 %v8048, %v8044
      %v8933 = vpack.c.b16 %v8049, %v8045
      %v8934 = vpack.c.b16 %v8050, %v8046
      %v8935 = vpack.c.b16 %v8055, %v8051
      %v8936 = vpack.c.b16 %v8056, %v8052
      %v8937 = vpack.c.b16 %v8057, %v8053
      %v8938 = vpack.c.b16 %v8058, %v8054
      %v8939 = vpack.c.b16 %v8063, %v8059
      %v8940 = vpack.c.b16 %v8064, %v8060
      %v8941 = vpack.c.b16 %v8065, %v8061
      %v8942 = vpack.c.b16 %v8066, %v8062
      %v8943 = vpack.c.b16 %v8071, %v8067
      %v8944 = vpack.c.b16 %v8072, %v8068
      %v8945 = vpack.c.b16 %v8073, %v8069
      %v8946 = vpack.c.b16 %v8074, %v8070
      %v8947 = vpack.c.b16 %v8079, %v8075
      %v8948 = vpack.c.b16 %v8080, %v8076
      %v8949 = vpack.c.b16 %v8081, %v8077
      %v8950 = vpack.c.b16 %v8082, %v8078
      %v8951 = vpack.c.b16 %v8087, %v8083
      %v8952 = vpack.c.b16 %v8088, %v8084
      %v8953 = vpack.c.b16 %v8089, %v8085
      %v8954 = vpack.c.b16 %v8090, %v8086
      %v8955 = vpack.c.b16 %v8095, %v8091
      %v8956 = vpack.c.b16 %v8096, %v8092
      %v8957 = vpack.c.b16 %v8097, %v8093
      %v8958 = vpack.c.b16 %v8098, %v8094
      %v8959 = vpack.c.b16 %v8103, %v8099
      %v8960 = vpack.c.b16 %v8104, %v8100
      %v8961 = vpack.c.b16 %v8105, %v8101
      %v8962 = vpack.c.b16 %v8106, %v8102
      %v8963 = vpack.c.b16 %v8111, %v8107
      %v8964 = vpack.c.b16 %v8112, %v8108
      %v8965 = vpack.c.b16 %v8113, %v8109
      %v8966 = vpack.c.b16 %v8114, %v8110
      %v8967 = vpack.c.b16 %v8119, %v8115
      %v8968 = vpack.c.b16 %v8120, %v8116
      %v8969 = vpack.c.b16 %v8121, %v8117
      %v8970 = vpack.c.b16 %v8122, %v8118
      %v8971 = vpack.c.b16 %v8127, %v8123
      %v8972 = vpack.c.b16 %v8128, %v8124
      %v8973 = vpack.c.b16 %v8129, %v8125
      %v8974 = vpack.c.b16 %v8130, %v8126
      %v8975 = vpack.c.b16 %v8135, %v8131
      %v8976 = vpack.c.b16 %v8136, %v8132
      %v8977 = vpack.c.b16 %v8137, %v8133
      %v8978 = vpack.c.b16 %v8138, %v8134
      %v8979 = vpack.c.b16 %v8143, %v8139
      %v8980 = vpack.c.b16 %v8144, %v8140
      %v8981 = vpack.c.b16 %v8145, %v8141
      %v8982 = vpack.c.b16 %v8146, %v8142
      %v8983 = vpack.c.b16 %v8151, %v8147
      %v8984 = vpack.c.b16 %v8152, %v8148
      %v8985 = vpack.c.b16 %v8153, %v8149
      %v8986 = vpack.c.b16 %v8154, %v8150
      %v8987 = vpack.c.b16 %v8159, %v8155
      %v8988 = vpack.c.b16 %v8160, %v8156
      %v8989 = vpack.c.b16 %v8161, %v8157
      %v8990 = vpack.c.b16 %v8162, %v8158
      %v8991 = vpack.c.b16 %v8167, %v8163
      %v8992 = vpack.c.b16 %v8168, %v8164
      %v8993 = vpack.c.b16 %v8169, %v8165
      %v8994 = vpack.c.b16 %v8170, %v8166
      %v8995 = vpack.c.b16 %v8175, %v8171
      %v8996 = vpack.c.b16 %v8176, %v8172
      %v8997 = vpack.c.b16 %v8177, %v8173
      %v8998 = vpack.c.b16 %v8178, %v8174
      %v8999 = vpack.c.b16 %v8183, %v8179
      %v9000 = vpack.c.b16 %v8184, %v8180
      %v9001 = vpack.c.b16 %v8185, %v8181
      %v9002 = vpack.c.b16 %v8186, %v8182
      %v9003 = vpack.c.b16 %v8191, %v8187
      %v9004 = vpack.c.b16 %v8192, %v8188
      %v9005 = vpack.c.b16 %v8193, %v8189
      %v9006 = vpack.c.b16 %v8194, %v8190
      %v9007 = vpack.c.b16 %v8199, %v8195
      %v9008 = vpack.c.b16 %v8200, %v8196
      %v9009 = vpack.c.b16 %v8201, %v8197
      %v9010 = vpack.c.b16 %v8202, %v8198
      %v9011 = vpack.c.b16 %v8207, %v8203
      %v9012 = vpack.c.b16 %v8208, %v8204
      %v9013 = vpack.c.b16 %v8209, %v8205
      %v9014 = vpack.c.b16 %v8210, %v8206
      %v9015 = vpack.c.b16 %v8215, %v8211
      %v9016 = vpack.c.b16 %v8216, %v8212
      %v9017 = vpack.c.b16 %v8217, %v8213
      %v9018 = vpack.c.b16 %v8218, %v8214
      %v9019 = vpack.c.b16 %v8223, %v8219
      %v9020 = vpack.c.b16 %v8224, %v8220
      %v9021 = vpack.c.b16 %v8225, %v8221
      %v9022 = vpack.c.b16 %v8226, %v8222
      %v9023 = vpack.c.b16 %v8231, %v8227
      %v9024 = vpack.c.b16 %v8232, %v8228
      %v9025 = vpack.c.b16 %v8233, %v8229
      %v9026 = vpack.c.b16 %v8234, %v8230
      %v9027 = vpack.c.b16 %v8239, %v8235
      %v9028 = vpack.c.b16 %v8240, %v8236
      %v9029 = vpack.c.b16 %v8241, %v8237
      %v9030 = vpack.c.b16 %v8242, %v8238
      %v9031 = vpack.c.b16 %v8247, %v8243
      %v9032 = vpack.c.b16 %v8248, %v8244
      %v9033 = vpack.c.b16 %v8249, %v8245
      %v9034 = vpack.c.b16 %v8250, %v8246
      %v9035 = vpack.c.b16 %v8255, %v8251
      %v9036 = vpack.c.b16 %v8256, %v8252
      %v9037 = vpack.c.b16 %v8257, %v8253
      %v9038 = vpack.c.b16 %v8258, %v8254
      %v9039 = vpack.c.b16 %v8263, %v8259
      %v9040 = vpack.c.b16 %v8264, %v8260
      %v9041 = vpack.c.b16 %v8265, %v8261
      %v9042 = vpack.c.b16 %v8266, %v8262
      %v9043 = vpack.c.b16 %v8271, %v8267
      %v9044 = vpack.c.b16 %v8272, %v8268
      %v9045 = vpack.c.b16 %v8273, %v8269
      %v9046 = vpack.c.b16 %v8274, %v8270
      %v9047 = vpack.c.b16 %v8279, %v8275
      %v9048 = vpack.c.b16 %v8280, %v8276
      %v9049 = vpack.c.b16 %v8281, %v8277
      %v9050 = vpack.c.b16 %v8282, %v8278
      %v9051 = vpack.c.b16 %v8287, %v8283
      %v9052 = vpack.c.b16 %v8288, %v8284
      %v9053 = vpack.c.b16 %v8289, %v8285
      %v9054 = vpack.c.b16 %v8290, %v8286
      %v9055 = vpack.c.b16 %v8295, %v8291
      %v9056 = vpack.c.b16 %v8296, %v8292
      %v9057 = vpack.c.b16 %v8297, %v8293
      %v9058 = vpack.c.b16 %v8298, %v8294
      %v9059 = vpack.c.b16 %v8303, %v8299
      %v9060 = vpack.c.b16 %v8304, %v8300
      %v9061 = vpack.c.b16 %v8305, %v8301
      %v9062 = vpack.c.b16 %v8306, %v8302
      %v9063 = vpack.c.b16 %v8311, %v8307
      %v9064 = vpack.c.b16 %v8312, %v8308
      %v9065 = vpack.c.b16 %v8313, %v8309
      %v9066 = vpack.c.b16 %v8314, %v8310
      %v9067 = vpack.c.b16 %v8319, %v8315
      %v9068 = vpack.c.b16 %v8320, %v8316
      %v9069 = vpack.c.b16 %v8321, %v8317
      %v9070 = vpack.c.b16 %v8322, %v8318
      %v9071 = vpack.c.b16 %v8327, %v8323
      %v9072 = vpack.c.b16 %v8328, %v8324
      %v9073 = vpack.c.b16 %v8329, %v8325
      %v9074 = vpack.c.b16 %v8330, %v8326
      %v9075 = vpack.c.b16 %v8335, %v8331
      %v9076 = vpack.c.b16 %v8336, %v8332
      %v9077 = vpack.c.b16 %v8337, %v8333
      %v9078 = vpack.c.b16 %v8338, %v8334
      %v9079 = vpack.c.b16 %v8343, %v8339
      %v9080 = vpack.c.b16 %v8344, %v8340
      %v9081 = vpack.c.b16 %v8345, %v8341
      %v9082 = vpack.c.b16 %v8346, %v8342
      %v9083 = vpack.c.b16 %v8351, %v8347
      %v9084 = vpack.c.b16 %v8352, %v8348
      %v9085 = vpack.c.b16 %v8353, %v8349
      %v9086 = vpack.c.b16 %v8354, %v8350
      %v9087 = vpack.c.b16 %v8359, %v8355
      %v9088 = vpack.c.b16 %v8360, %v8356
      %v9089 = vpack.c.b16 %v8361, %v8357
      %v9090 = vpack.c.b16 %v8362, %v8358
      %v9091 = vpack.c.b16 %v8367, %v8363
      %v9092 = vpack.c.b16 %v8368, %v8364
      %v9093 = vpack.c.b16 %v8369, %v8365
      %v9094 = vpack.c.b16 %v8370, %v8366
      %v9095 = vpack.c.b16 %v8375, %v8371
      %v9096 = vpack.c.b16 %v8376, %v8372
      %v9097 = vpack.c.b16 %v8377, %v8373
      %v9098 = vpack.c.b16 %v8378, %v8374
      %v9099 = vpack.c.b16 %v8383, %v8379
      %v9100 = vpack.c.b16 %v8384, %v8380
      %v9101 = vpack.c.b16 %v8385, %v8381
      %v9102 = vpack.c.b16 %v8386, %v8382
      %v9103 = vpack.c.b16 %v8391, %v8387
      %v9104 = vpack.c.b16 %v8392, %v8388
      %v9105 = vpack.c.b16 %v8393, %v8389
      %v9106 = vpack.c.b16 %v8394, %v8390
      %v9107 = vpack.c.b16 %v8399, %v8395
      %v9108 = vpack.c.b16 %v8400, %v8396
      %v9109 = vpack.c.b16 %v8401, %v8397
      %v9110 = vpack.c.b16 %v8402, %v8398
      %v9111 = vpack.c.b16 %v8407, %v8403
      %v9112 = vpack.c.b16 %v8408, %v8404
      %v9113 = vpack.c.b16 %v8409, %v8405
      %v9114 = vpack.c.b16 %v8410, %v8406
      %v9115 = vpack.c.b16 %v8415, %v8411
      %v9116 = vpack.c.b16 %v8416, %v8412
      %v9117 = vpack.c.b16 %v8417, %v8413
      %v9118 = vpack.c.b16 %v8418, %v8414
      %v9119 = vpack.c.b16 %v8423, %v8419
      %v9120 = vpack.c.b16 %v8424, %v8420
      %v9121 = vpack.c.b16 %v8425, %v8421
      %v9122 = vpack.c.b16 %v8426, %v8422
      %v9123 = vpack.c.b16 %v8431, %v8427
      %v9124 = vpack.c.b16 %v8432, %v8428
      %v9125 = vpack.c.b16 %v8433, %v8429
      %v9126 = vpack.c.b16 %v8434, %v8430
      %v9127 = vpack.c.b16 %v8439, %v8435
      %v9128 = vpack.c.b16 %v8440, %v8436
      %v9129 = vpack.c.b16 %v8441, %v8437
      %v9130 = vpack.c.b16 %v8442, %v8438
      %v9131 = vpack.c.b16 %v8447, %v8443
      %v9132 = vpack.c.b16 %v8448, %v8444
      %v9133 = vpack.c.b16 %v8449, %v8445
      %v9134 = vpack.c.b16 %v8450, %v8446
      %v9135 = vpack.c.b16 %v8455, %v8451
      %v9136 = vpack.c.b16 %v8456, %v8452
      %v9137 = vpack.c.b16 %v8457, %v8453
      %v9138 = vpack.c.b16 %v8458, %v8454
      %v9139 = vpack.c.b16 %v8463, %v8459
      %v9140 = vpack.c.b16 %v8464, %v8460
      %v9141 = vpack.c.b16 %v8465, %v8461
      %v9142 = vpack.c.b16 %v8466, %v8462
      %v9143 = vpack.c.b16 %v8471, %v8467
      %v9144 = vpack.c.b16 %v8472, %v8468
      %v9145 = vpack.c.b16 %v8473, %v8469
      %v9146 = vpack.c.b16 %v8474, %v8470
      %v9147 = vpack.c.b16 %v8479, %v8475
      %v9148 = vpack.c.b16 %v8480, %v8476
      %v9149 = vpack.c.b16 %v8481, %v8477
      %v9150 = vpack.c.b16 %v8482, %v8478
      %v9151 = vpack.c.b16 %v8487, %v8483
      %v9152 = vpack.c.b16 %v8488, %v8484
      %v9153 = vpack.c.b16 %v8489, %v8485
      %v9154 = vpack.c.b16 %v8490, %v8486
      %v9155 = vpack.c.b16 %v8495, %v8491
      %v9156 = vpack.c.b16 %v8496, %v8492
      %v9157 = vpack.c.b16 %v8497, %v8493
      %v9158 = vpack.c.b16 %v8498, %v8494
      %v9159 = vpack.c.b16 %v8503, %v8499
      %v9160 = vpack.c.b16 %v8504, %v8500
      %v9161 = vpack.c.b16 %v8505, %v8501
      %v9162 = vpack.c.b16 %v8506, %v8502
      %v9163 = vpack.c.b16 %v8511, %v8507
      %v9164 = vpack.c.b16 %v8512, %v8508
      %v9165 = vpack.c.b16 %v8513, %v8509
      %v9166 = vpack.c.b16 %v8514, %v8510
      %v9167 = vpack.c.b16 %v8519, %v8515
      %v9168 = vpack.c.b16 %v8520, %v8516
      %v9169 = vpack.c.b16 %v8521, %v8517
      %v9170 = vpack.c.b16 %v8522, %v8518
      %v9171 = vpack.c.b16 %v8527, %v8523
      %v9172 = vpack.c.b16 %v8528, %v8524
      %v9173 = vpack.c.b16 %v8529, %v8525
      %v9174 = vpack.c.b16 %v8530, %v8526
      %v9175 = vpack.c.b16 %v8535, %v8531
      %v9176 = vpack.c.b16 %v8536, %v8532
      %v9177 = vpack.c.b16 %v8537, %v8533
      %v9178 = vpack.c.b16 %v8538, %v8534
      %v9179 = vpack.c.b16 %v8543, %v8539
      %v9180 = vpack.c.b16 %v8544, %v8540
      %v9181 = vpack.c.b16 %v8545, %v8541
      %v9182 = vpack.c.b16 %v8546, %v8542
      %v9183 = vpack.c.b16 %v8551, %v8547
      %v9184 = vpack.c.b16 %v8552, %v8548
      %v9185 = vpack.c.b16 %v8553, %v8549
      %v9186 = vpack.c.b16 %v8554, %v8550
      %v9187 = vpack.c.b16 %v8559, %v8555
      %v9188 = vpack.c.b16 %v8560, %v8556
      %v9189 = vpack.c.b16 %v8561, %v8557
      %v9190 = vpack.c.b16 %v8562, %v8558
      %v9191 = vpack.c.b16 %v8567, %v8563
      %v9192 = vpack.c.b16 %v8568, %v8564
      %v9193 = vpack.c.b16 %v8569, %v8565
      %v9194 = vpack.c.b16 %v8570, %v8566
      %v9195 = vpack.c.b16 %v8575, %v8571
      %v9196 = vpack.c.b16 %v8576, %v8572
      %v9197 = vpack.c.b16 %v8577, %v8573
      %v9198 = vpack.c.b16 %v8578, %v8574
      %v9199 = vpack.c.b16 %v8583, %v8579
      %v9200 = vpack.c.b16 %v8584, %v8580
      %v9201 = vpack.c.b16 %v8585, %v8581
      %v9202 = vpack.c.b16 %v8586, %v8582
      %v9203 = vpack.c.b16 %v8591, %v8587
      %v9204 = vpack.c.b16 %v8592, %v8588
      %v9205 = vpack.c.b16 %v8593, %v8589
      %v9206 = vpack.c.b16 %v8594, %v8590
      %v9207 = vpack.c.b16 %v8599, %v8595
      %v9208 = vpack.c.b16 %v8600, %v8596
      %v9209 = vpack.c.b16 %v8601, %v8597
      %v9210 = vpack.c.b16 %v8602, %v8598
      %v9211 = vpack.c.b16 %v8607, %v8603
      %v9212 = vpack.c.b16 %v8608, %v8604
      %v9213 = vpack.c.b16 %v8609, %v8605
      %v9214 = vpack.c.b16 %v8610, %v8606
      %v9215 = vpack.c.b16 %v8615, %v8611
      %v9216 = vpack.c.b16 %v8616, %v8612
      %v9217 = vpack.c.b16 %v8617, %v8613
      %v9218 = vpack.c.b16 %v8618, %v8614
      %v9219 = vpack.c.b16 %v8623, %v8619
      %v9220 = vpack.c.b16 %v8624, %v8620
      %v9221 = vpack.c.b16 %v8625, %v8621
      %v9222 = vpack.c.b16 %v8626, %v8622
      %v9223 = vpack.c.b16 %v8631, %v8627
      %v9224 = vpack.c.b16 %v8632, %v8628
      %v9225 = vpack.c.b16 %v8633, %v8629
      %v9226 = vpack.c.b16 %v8634, %v8630
      %v9227 = vpack.c.b16 %v8639, %v8635
      %v9228 = vpack.c.b16 %v8640, %v8636
      %v9229 = vpack.c.b16 %v8641, %v8637
      %v9230 = vpack.c.b16 %v8642, %v8638
      %v9231 = vpack.c.b16 %v8647, %v8643
      %v9232 = vpack.c.b16 %v8648, %v8644
      %v9233 = vpack.c.b16 %v8649, %v8645
      %v9234 = vpack.c.b16 %v8650, %v8646
      %v9235 = vpack.c.b16 %v8655, %v8651
      %v9236 = vpack.c.b16 %v8656, %v8652
      %v9237 = vpack.c.b16 %v8657, %v8653
      %v9238 = vpack.c.b16 %v8658, %v8654
      %v9239 = vpack.c.b16 %v8663, %v8659
      %v9240 = vpack.c.b16 %v8664, %v8660
      %v9241 = vpack.c.b16 %v8665, %v8661
      %v9242 = vpack.c.b16 %v8666, %v8662
      %v9243 = vpack.c.b16 %v8671, %v8667
      %v9244 = vpack.c.b16 %v8672, %v8668
      %v9245 = vpack.c.b16 %v8673, %v8669
      %v9246 = vpack.c.b16 %v8674, %v8670
      %v9247 = vpack.c.b16 %v8679, %v8675
      %v9248 = vpack.c.b16 %v8680, %v8676
      %v9249 = vpack.c.b16 %v8681, %v8677
      %v9250 = vpack.c.b16 %v8682, %v8678
      %v9251 = vpack.c.b16 %v8687, %v8683
      %v9252 = vpack.c.b16 %v8688, %v8684
      %v9253 = vpack.c.b16 %v8689, %v8685
      %v9254 = vpack.c.b16 %v8690, %v8686
      %v9255 = vpack.c.b16 %v8695, %v8691
      %v9256 = vpack.c.b16 %v8696, %v8692
      %v9257 = vpack.c.b16 %v8697, %v8693
      %v9258 = vpack.c.b16 %v8698, %v8694
      %v9259 = vpack.c.b16 %v8703, %v8699
      %v9260 = vpack.c.b16 %v8704, %v8700
      %v9261 = vpack.c.b16 %v8705, %v8701
      %v9262 = vpack.c.b16 %v8706, %v8702
      %v9263 = vpack.c.b16 %v8711, %v8707
      %v9264 = vpack.c.b16 %v8712, %v8708
      %v9265 = vpack.c.b16 %v8713, %v8709
      %v9266 = vpack.c.b16 %v8714, %v8710
      %v9267 = vpack.c.b16 %v8719, %v8715
      %v9268 = vpack.c.b16 %v8720, %v8716
      %v9269 = vpack.c.b16 %v8721, %v8717
      %v9270 = vpack.c.b16 %v8722, %v8718
      %v9271 = vpack.c.b16 %v8727, %v8723
      %v9272 = vpack.c.b16 %v8728, %v8724
      %v9273 = vpack.c.b16 %v8729, %v8725
      %v9274 = vpack.c.b16 %v8730, %v8726
      %v9275 = vpack.c.b16 %v8735, %v8731
      %v9276 = vpack.c.b16 %v8736, %v8732
      %v9277 = vpack.c.b16 %v8737, %v8733
      %v9278 = vpack.c.b16 %v8738, %v8734
      %v9279 = vpack.c.b16 %v8743, %v8739
      %v9280 = vpack.c.b16 %v8744, %v8740
      %v9281 = vpack.c.b16 %v8745, %v8741
      %v9282 = vpack.c.b16 %v8746, %v8742
      %v9283 = vpack.c.b16 %v8751, %v8747
      %v9284 = vpack.c.b16 %v8752, %v8748
      %v9285 = vpack.c.b16 %v8753, %v8749
      %v9286 = vpack.c.b16 %v8754, %v8750
      %v9287 = vpack.c.b16 %v8759, %v8755
      %v9288 = vpack.c.b16 %v8760, %v8756
      %v9289 = vpack.c.b16 %v8761, %v8757
      %v9290 = vpack.c.b16 %v8762, %v8758
      %v9291 = vpack.c.b16 %v8767, %v8763
      %v9292 = vpack.c.b16 %v8768, %v8764
      %v9293 = vpack.c.b16 %v8769, %v8765
      %v9294 = vpack.c.b16 %v8770, %v8766
      %v9295 = vpack.c.b16 %v8775, %v8771
      %v9296 = vpack.c.b16 %v8776, %v8772
      %v9297 = vpack.c.b16 %v8777, %v8773
      %v9298 = vpack.c.b16 %v8778, %v8774
      %v9299 = vpack.c.b16 %v8783, %v8779
      %v9300 = vpack.c.b16 %v8784, %v8780
      %v9301 = vpack.c.b16 %v8785, %v8781
      %v9302 = vpack.c.b16 %v8786, %v8782
      %v9303 = vpack.c.b16 %v8791, %v8787
      %v9304 = vpack.c.b16 %v8792, %v8788
      %v9305 = vpack.c.b16 %v8793, %v8789
      %v9306 = vpack.c.b16 %v8794, %v8790
      %9819 = vmatprep.subr.bf16.mxu0 %v8824
      %9820 = vmatpush1.bf16.msra.mxu0 %v8823
      %9821 = vmatprep.subr.bf16.mxu0 %v8820
      %9822 = vmatpush1.bf16.msra.mxu0 %v8819
      %9823 = vmatprep.subr.bf16.mxu0 %v8816
      %9824 = vmatpush1.bf16.msra.mxu0 %v8815
      %9825 = vmatprep.subr.bf16.mxu0 %v8812
      %9826 = vmatpush1.bf16.msra.mxu0 %v8811
      %9827 = vmatprep.subr.bf16.mxu0 %v8808
      %9828 = vmatpush1.bf16.msra.mxu0 %v8807
      %9829 = vmatprep.subr.bf16.mxu0 %v8804
      %9830 = vmatpush1.bf16.msra.mxu0 %v8803
      %9831 = vmatprep.subr.bf16.mxu0 %v8800
      %9832 = vmatpush1.bf16.msra.mxu0 %v8799
      %9833 = vmatprep.subr.bf16.mxu0 %v8796
      %9834 = vmatpush1.bf16.msra.mxu0 %v8795
      %9835 = vmatprep.subr.bf16.mxu0 %v8856
      %9836 = vmatpush2.bf16.msra.mxu0 %v8855
      %9837 = vmatprep.subr.bf16.mxu0 %v8852
      %9838 = vmatpush2.bf16.msra.mxu0 %v8851
      %9839 = vmatprep.subr.bf16.mxu0 %v8848
      %9840 = vmatpush2.bf16.msra.mxu0 %v8847
      %9841 = vmatprep.subr.bf16.mxu0 %v8844
      %9842 = vmatpush2.bf16.msra.mxu0 %v8843
      %9843 = vmatprep.subr.bf16.mxu0 %v8840
      %9844 = vmatpush2.bf16.msra.mxu0 %v8839
      %9845 = vmatprep.subr.bf16.mxu0 %v8836
      %9846 = vmatpush2.bf16.msra.mxu0 %v8835
      %9847 = vmatprep.subr.bf16.mxu0 %v8832
      %9848 = vmatpush2.bf16.msra.mxu0 %v8831
      %9849 = vmatprep.subr.bf16.mxu0 %v8828
      %9850 = vmatpush2.bf16.msra.mxu0 %v8827
      %9851 = vmatprep.mubr.bf16.mxu0 %v6518
      %9852 = vmatmul.mubr.bf16.gmra.mxu0 %v6517
      %v9853 = vpop.f32.mrf.mxu0
      %v9854 = vadd.f32 %v7242, %v9853
      %v9855 = vpop.f32.mrf.mxu0
      %v9856 = vadd.f32 %v7246, %v9855
      %v9857 = vpop.f32.mrf.mxu0
      %v9858 = vadd.f32 %v7242, %v9857
      %v9859 = vpop.f32.mrf.mxu0
      %v9860 = vadd.f32 %v7246, %v9859
      %9861 = vmatprep.mubr.bf16.mxu0 %v6534
      %9862 = vmatmul.mubr.bf16.gmra.mxu0 %v6533
      %v9863 = vpop.f32.mrf.mxu0
      %v9864 = vadd.f32 %v7242, %v9863
      %v9865 = vpop.f32.mrf.mxu0
      %v9866 = vadd.f32 %v7246, %v9865
      %v9867 = vpop.f32.mrf.mxu0
      %v9868 = vadd.f32 %v7242, %v9867
      %v9869 = vpop.f32.mrf.mxu0
      %v9870 = vadd.f32 %v7246, %v9869
      %9871 = vmatprep.mubr.bf16.mxu0 %v6550
      %9872 = vmatmul.mubr.bf16.gmra.mxu0 %v6549
      %v9873 = vpop.f32.mrf.mxu0
      %v9874 = vadd.f32 %v7242, %v9873
      %v9875 = vpop.f32.mrf.mxu0
      %v9876 = vadd.f32 %v7246, %v9875
      %v9877 = vpop.f32.mrf.mxu0
      %v9878 = vadd.f32 %v7242, %v9877
      %v9879 = vpop.f32.mrf.mxu0
      %v9880 = vadd.f32 %v7246, %v9879
      %9881 = vmatprep.mubr.bf16.mxu0 %v6566
      %9882 = vmatmul.mubr.bf16.gmra.mxu0 %v6565
      %v9883 = vpop.f32.mrf.mxu0
      %v9884 = vadd.f32 %v7242, %v9883
      %v9885 = vpop.f32.mrf.mxu0
      %v9886 = vadd.f32 %v7246, %v9885
      %v9887 = vpop.f32.mrf.mxu0
      %v9888 = vadd.f32 %v7242, %v9887
      %v9889 = vpop.f32.mrf.mxu0
      %v9890 = vadd.f32 %v7246, %v9889
      %9891 = vmatprep.mubr.bf16.mxu0 %v6582
      %9892 = vmatmul.mubr.bf16.gmra.mxu0 %v6581
      %v9893 = vpop.f32.mrf.mxu0
      %v9894 = vadd.f32 %v7242, %v9893
      %v9895 = vpop.f32.mrf.mxu0
      %v9896 = vadd.f32 %v7246, %v9895
      %v9897 = vpop.f32.mrf.mxu0
      %v9898 = vadd.f32 %v7242, %v9897
      %v9899 = vpop.f32.mrf.mxu0
      %v9900 = vadd.f32 %v7246, %v9899
      %9901 = vmatprep.mubr.bf16.mxu0 %v6598
      %9902 = vmatmul.mubr.bf16.gmra.mxu0 %v6597
      %v9903 = vpop.f32.mrf.mxu0
      %v9904 = vadd.f32 %v7242, %v9903
      %v9905 = vpop.f32.mrf.mxu0
      %v9906 = vadd.f32 %v7246, %v9905
      %v9907 = vpop.f32.mrf.mxu0
      %v9908 = vadd.f32 %v7242, %v9907
      %v9909 = vpop.f32.mrf.mxu0
      %v9910 = vadd.f32 %v7246, %v9909
      %9911 = vmatprep.mubr.bf16.mxu0 %v6614
      %9912 = vmatmul.mubr.bf16.gmra.mxu0 %v6613
      %v9913 = vpop.f32.mrf.mxu0
      %v9914 = vadd.f32 %v7242, %v9913
      %v9915 = vpop.f32.mrf.mxu0
      %v9916 = vadd.f32 %v7246, %v9915
      %v9917 = vpop.f32.mrf.mxu0
      %v9918 = vadd.f32 %v7242, %v9917
      %v9919 = vpop.f32.mrf.mxu0
      %v9920 = vadd.f32 %v7246, %v9919
      %9921 = vmatprep.mubr.bf16.mxu0 %v6630
      %9922 = vmatmul.mubr.bf16.gmra.mxu0 %v6629
      %v9923 = vpop.f32.mrf.mxu0
      %v9924 = vadd.f32 %v7242, %v9923
      %v9925 = vpop.f32.mrf.mxu0
      %v9926 = vadd.f32 %v7246, %v9925
      %v9927 = vpop.f32.mrf.mxu0
      %v9928 = vadd.f32 %v7242, %v9927
      %v9929 = vpop.f32.mrf.mxu0
      %v9930 = vadd.f32 %v7246, %v9929
      %9931 = vmatprep.mubr.bf16.mxu0 %v6646
      %9932 = vmatmul.mubr.bf16.gmra.mxu0 %v6645
      %v9933 = vpop.f32.mrf.mxu0
      %v9934 = vadd.f32 %v7242, %v9933
      %v9935 = vpop.f32.mrf.mxu0
      %v9936 = vadd.f32 %v7246, %v9935
      %v9937 = vpop.f32.mrf.mxu0
      %v9938 = vadd.f32 %v7242, %v9937
      %v9939 = vpop.f32.mrf.mxu0
      %v9940 = vadd.f32 %v7246, %v9939
      %9941 = vmatprep.mubr.bf16.mxu0 %v6662
      %9942 = vmatmul.mubr.bf16.gmra.mxu0 %v6661
      %v9943 = vpop.f32.mrf.mxu0
      %v9944 = vadd.f32 %v7242, %v9943
      %v9945 = vpop.f32.mrf.mxu0
      %v9946 = vadd.f32 %v7246, %v9945
      %v9947 = vpop.f32.mrf.mxu0
      %v9948 = vadd.f32 %v7242, %v9947
      %v9949 = vpop.f32.mrf.mxu0
      %v9950 = vadd.f32 %v7246, %v9949
      %9951 = vmatprep.mubr.bf16.mxu0 %v6678
      %9952 = vmatmul.mubr.bf16.gmra.mxu0 %v6677
      %v9953 = vpop.f32.mrf.mxu0
      %v9954 = vadd.f32 %v7242, %v9953
      %v9955 = vpop.f32.mrf.mxu0
      %v9956 = vadd.f32 %v7246, %v9955
      %v9957 = vpop.f32.mrf.mxu0
      %v9958 = vadd.f32 %v7242, %v9957
      %v9959 = vpop.f32.mrf.mxu0
      %v9960 = vadd.f32 %v7246, %v9959
      %9961 = vmatprep.mubr.bf16.mxu0 %v6694
      %9962 = vmatmul.mubr.bf16.gmra.mxu0 %v6693
      %v9963 = vpop.f32.mrf.mxu0
      %v9964 = vadd.f32 %v7242, %v9963
      %v9965 = vpop.f32.mrf.mxu0
      %v9966 = vadd.f32 %v7246, %v9965
      %v9967 = vpop.f32.mrf.mxu0
      %v9968 = vadd.f32 %v7242, %v9967
      %v9969 = vpop.f32.mrf.mxu0
      %v9970 = vadd.f32 %v7246, %v9969
      %9971 = vmatprep.mubr.bf16.mxu0 %v6710
      %9972 = vmatmul.mubr.bf16.gmra.mxu0 %v6709
      %v9973 = vpop.f32.mrf.mxu0
      %v9974 = vadd.f32 %v7242, %v9973
      %v9975 = vpop.f32.mrf.mxu0
      %v9976 = vadd.f32 %v7246, %v9975
      %v9977 = vpop.f32.mrf.mxu0
      %v9978 = vpop.f32.mrf.mxu0
      %9979 = vdwg.mxu0
      %9980 = vmatprep.subr.bf16.mxu0 %v8888
      %9981 = vmatpush1.bf16.msra.mxu0 %v8887
      %9982 = vmatprep.subr.bf16.mxu0 %v8884
      %9983 = vmatpush1.bf16.msra.mxu0 %v8883
      %9984 = vmatprep.subr.bf16.mxu0 %v8880
      %9985 = vmatpush1.bf16.msra.mxu0 %v8879
      %9986 = vmatprep.subr.bf16.mxu0 %v8876
      %9987 = vmatpush1.bf16.msra.mxu0 %v8875
      %9988 = vmatprep.subr.bf16.mxu0 %v8872
      %9989 = vmatpush1.bf16.msra.mxu0 %v8871
      %9990 = vmatprep.subr.bf16.mxu0 %v8868
      %9991 = vmatpush1.bf16.msra.mxu0 %v8867
      %9992 = vmatprep.subr.bf16.mxu0 %v8864
      %9993 = vmatpush1.bf16.msra.mxu0 %v8863
      %9994 = vmatprep.subr.bf16.mxu0 %v8860
      %9995 = vmatpush1.bf16.msra.mxu0 %v8859
      %9996 = vmatprep.subr.bf16.mxu0 %v8920
      %9997 = vmatpush2.bf16.msra.mxu0 %v8919
      %9998 = vmatprep.subr.bf16.mxu0 %v8916
      %9999 = vmatpush2.bf16.msra.mxu0 %v8915
      %10000 = vmatprep.subr.bf16.mxu0 %v8912
      %10001 = vmatpush2.bf16.msra.mxu0 %v8911
      %10002 = vmatprep.subr.bf16.mxu0 %v8908
      %10003 = vmatpush2.bf16.msra.mxu0 %v8907
      %10004 = vmatprep.subr.bf16.mxu0 %v8904
      %10005 = vmatpush2.bf16.msra.mxu0 %v8903
      %10006 = vmatprep.subr.bf16.mxu0 %v8900
      %10007 = vmatpush2.bf16.msra.mxu0 %v8899
      %10008 = vmatprep.subr.bf16.mxu0 %v8896
      %10009 = vmatpush2.bf16.msra.mxu0 %v8895
      %10010 = vmatprep.subr.bf16.mxu0 %v8892
      %10011 = vmatpush2.bf16.msra.mxu0 %v8891
      %10012 = vmatprep.mubr.bf16.mxu0 %v6520
      %10013 = vmatmul.mubr.bf16.gmra.mxu0 %v6519
      %v10014 = vpop.f32.mrf.mxu0
      %v10015 = vadd.f32 %v9854, %v10014
      %v10016 = vpop.f32.mrf.mxu0
      %v10017 = vadd.f32 %v9856, %v10016
      %v10018 = vpop.f32.mrf.mxu0
      %v10019 = vadd.f32 %v9858, %v10018
      %v10020 = vpop.f32.mrf.mxu0
      %v10021 = vadd.f32 %v9860, %v10020
      %10022 = vmatprep.mubr.bf16.mxu0 %v6536
      %10023 = vmatmul.mubr.bf16.gmra.mxu0 %v6535
      %v10024 = vpop.f32.mrf.mxu0
      %v10025 = vadd.f32 %v9864, %v10024
      %v10026 = vpop.f32.mrf.mxu0
      %v10027 = vadd.f32 %v9866, %v10026
      %v10028 = vpop.f32.mrf.mxu0
      %v10029 = vadd.f32 %v9868, %v10028
      %v10030 = vpop.f32.mrf.mxu0
      %v10031 = vadd.f32 %v9870, %v10030
      %10032 = vmatprep.mubr.bf16.mxu0 %v6552
      %10033 = vmatmul.mubr.bf16.gmra.mxu0 %v6551
      %v10034 = vpop.f32.mrf.mxu0
      %v10035 = vadd.f32 %v9874, %v10034
      %v10036 = vpop.f32.mrf.mxu0
      %v10037 = vadd.f32 %v9876, %v10036
      %v10038 = vpop.f32.mrf.mxu0
      %v10039 = vadd.f32 %v9878, %v10038
      %v10040 = vpop.f32.mrf.mxu0
      %v10041 = vadd.f32 %v9880, %v10040
      %10042 = vmatprep.mubr.bf16.mxu0 %v6568
      %10043 = vmatmul.mubr.bf16.gmra.mxu0 %v6567
      %v10044 = vpop.f32.mrf.mxu0
      %v10045 = vadd.f32 %v9884, %v10044
      %v10046 = vpop.f32.mrf.mxu0
      %v10047 = vadd.f32 %v9886, %v10046
      %v10048 = vpop.f32.mrf.mxu0
      %v10049 = vadd.f32 %v9888, %v10048
      %v10050 = vpop.f32.mrf.mxu0
      %v10051 = vadd.f32 %v9890, %v10050
      %10052 = vmatprep.mubr.bf16.mxu0 %v6584
      %10053 = vmatmul.mubr.bf16.gmra.mxu0 %v6583
      %v10054 = vpop.f32.mrf.mxu0
      %v10055 = vadd.f32 %v9894, %v10054
      %v10056 = vpop.f32.mrf.mxu0
      %v10057 = vadd.f32 %v9896, %v10056
      %v10058 = vpop.f32.mrf.mxu0
      %v10059 = vadd.f32 %v9898, %v10058
      %v10060 = vpop.f32.mrf.mxu0
      %v10061 = vadd.f32 %v9900, %v10060
      %10062 = vmatprep.mubr.bf16.mxu0 %v6600
      %10063 = vmatmul.mubr.bf16.gmra.mxu0 %v6599
      %v10064 = vpop.f32.mrf.mxu0
      %v10065 = vadd.f32 %v9904, %v10064
      %v10066 = vpop.f32.mrf.mxu0
      %v10067 = vadd.f32 %v9906, %v10066
      %v10068 = vpop.f32.mrf.mxu0
      %v10069 = vadd.f32 %v9908, %v10068
      %v10070 = vpop.f32.mrf.mxu0
      %v10071 = vadd.f32 %v9910, %v10070
      %10072 = vmatprep.mubr.bf16.mxu0 %v6616
      %10073 = vmatmul.mubr.bf16.gmra.mxu0 %v6615
      %v10074 = vpop.f32.mrf.mxu0
      %v10075 = vadd.f32 %v9914, %v10074
      %v10076 = vpop.f32.mrf.mxu0
      %v10077 = vadd.f32 %v9916, %v10076
      %v10078 = vpop.f32.mrf.mxu0
      %v10079 = vadd.f32 %v9918, %v10078
      %v10080 = vpop.f32.mrf.mxu0
      %v10081 = vadd.f32 %v9920, %v10080
      %10082 = vmatprep.mubr.bf16.mxu0 %v6632
      %10083 = vmatmul.mubr.bf16.gmra.mxu0 %v6631
      %v10084 = vpop.f32.mrf.mxu0
      %v10085 = vadd.f32 %v9924, %v10084
      %v10086 = vpop.f32.mrf.mxu0
      %v10087 = vadd.f32 %v9926, %v10086
      %v10088 = vpop.f32.mrf.mxu0
      %v10089 = vadd.f32 %v9928, %v10088
      %v10090 = vpop.f32.mrf.mxu0
      %v10091 = vadd.f32 %v9930, %v10090
      %10092 = vmatprep.mubr.bf16.mxu0 %v6648
      %10093 = vmatmul.mubr.bf16.gmra.mxu0 %v6647
      %v10094 = vpop.f32.mrf.mxu0
      %v10095 = vadd.f32 %v9934, %v10094
      %v10096 = vpop.f32.mrf.mxu0
      %v10097 = vadd.f32 %v9936, %v10096
      %v10098 = vpop.f32.mrf.mxu0
      %v10099 = vadd.f32 %v9938, %v10098
      %v10100 = vpop.f32.mrf.mxu0
      %v10101 = vadd.f32 %v9940, %v10100
      %10102 = vmatprep.mubr.bf16.mxu0 %v6664
      %10103 = vmatmul.mubr.bf16.gmra.mxu0 %v6663
      %v10104 = vpop.f32.mrf.mxu0
      %v10105 = vadd.f32 %v9944, %v10104
      %v10106 = vpop.f32.mrf.mxu0
      %v10107 = vadd.f32 %v9946, %v10106
      %v10108 = vpop.f32.mrf.mxu0
      %v10109 = vadd.f32 %v9948, %v10108
      %v10110 = vpop.f32.mrf.mxu0
      %v10111 = vadd.f32 %v9950, %v10110
      %10112 = vmatprep.mubr.bf16.mxu0 %v6680
      %10113 = vmatmul.mubr.bf16.gmra.mxu0 %v6679
      %v10114 = vpop.f32.mrf.mxu0
      %v10115 = vadd.f32 %v9954, %v10114
      %v10116 = vpop.f32.mrf.mxu0
      %v10117 = vadd.f32 %v9956, %v10116
      %v10118 = vpop.f32.mrf.mxu0
      %v10119 = vadd.f32 %v9958, %v10118
      %v10120 = vpop.f32.mrf.mxu0
      %v10121 = vadd.f32 %v9960, %v10120
      %10122 = vmatprep.mubr.bf16.mxu0 %v6696
      %10123 = vmatmul.mubr.bf16.gmra.mxu0 %v6695
      %v10124 = vpop.f32.mrf.mxu0
      %v10125 = vadd.f32 %v9964, %v10124
      %v10126 = vpop.f32.mrf.mxu0
      %v10127 = vadd.f32 %v9966, %v10126
      %v10128 = vpop.f32.mrf.mxu0
      %v10129 = vadd.f32 %v9968, %v10128
      %v10130 = vpop.f32.mrf.mxu0
      %v10131 = vadd.f32 %v9970, %v10130
      %10132 = vmatprep.mubr.bf16.mxu0 %v6712
      %10133 = vmatmul.mubr.bf16.gmra.mxu0 %v6711
      %v10134 = vpop.f32.mrf.mxu0
      %v10135 = vadd.f32 %v9974, %v10134
      %v10136 = vpop.f32.mrf.mxu0
      %v10137 = vadd.f32 %v9976, %v10136
      %v10138 = vpop.f32.mrf.mxu0
      %v10139 = vpop.f32.mrf.mxu0
      %10140 = vdwg.mxu0
      %10141 = vmatprep.subr.bf16.mxu0 %v8952
      %10142 = vmatpush1.bf16.msra.mxu0 %v8951
      %10143 = vmatprep.subr.bf16.mxu0 %v8948
      %10144 = vmatpush1.bf16.msra.mxu0 %v8947
      %10145 = vmatprep.subr.bf16.mxu0 %v8944
      %10146 = vmatpush1.bf16.msra.mxu0 %v8943
      %10147 = vmatprep.subr.bf16.mxu0 %v8940
      %10148 = vmatpush1.bf16.msra.mxu0 %v8939
      %10149 = vmatprep.subr.bf16.mxu0 %v8936
      %10150 = vmatpush1.bf16.msra.mxu0 %v8935
      %10151 = vmatprep.subr.bf16.mxu0 %v8932
      %10152 = vmatpush1.bf16.msra.mxu0 %v8931
      %10153 = vmatprep.subr.bf16.mxu0 %v8928
      %10154 = vmatpush1.bf16.msra.mxu0 %v8927
      %10155 = vmatprep.subr.bf16.mxu0 %v8924
      %10156 = vmatpush1.bf16.msra.mxu0 %v8923
      %10157 = vmatprep.subr.bf16.mxu0 %v8984
      %10158 = vmatpush2.bf16.msra.mxu0 %v8983
      %10159 = vmatprep.subr.bf16.mxu0 %v8980
      %10160 = vmatpush2.bf16.msra.mxu0 %v8979
      %10161 = vmatprep.subr.bf16.mxu0 %v8976
      %10162 = vmatpush2.bf16.msra.mxu0 %v8975
      %10163 = vmatprep.subr.bf16.mxu0 %v8972
      %10164 = vmatpush2.bf16.msra.mxu0 %v8971
      %10165 = vmatprep.subr.bf16.mxu0 %v8968
      %10166 = vmatpush2.bf16.msra.mxu0 %v8967
      %10167 = vmatprep.subr.bf16.mxu0 %v8964
      %10168 = vmatpush2.bf16.msra.mxu0 %v8963
      %10169 = vmatprep.subr.bf16.mxu0 %v8960
      %10170 = vmatpush2.bf16.msra.mxu0 %v8959
      %10171 = vmatprep.subr.bf16.mxu0 %v8956
      %10172 = vmatpush2.bf16.msra.mxu0 %v8955
      %10173 = vmatprep.mubr.bf16.mxu0 %v6522
      %10174 = vmatmul.mubr.bf16.gmra.mxu0 %v6521
      %v10175 = vpop.f32.mrf.mxu0
      %v10176 = vadd.f32 %v10015, %v10175
      %v10177 = vpop.f32.mrf.mxu0
      %v10178 = vadd.f32 %v10017, %v10177
      %v10179 = vpop.f32.mrf.mxu0
      %v10180 = vadd.f32 %v10019, %v10179
      %v10181 = vpop.f32.mrf.mxu0
      %v10182 = vadd.f32 %v10021, %v10181
      %10183 = vmatprep.mubr.bf16.mxu0 %v6538
      %10184 = vmatmul.mubr.bf16.gmra.mxu0 %v6537
      %v10185 = vpop.f32.mrf.mxu0
      %v10186 = vadd.f32 %v10025, %v10185
      %v10187 = vpop.f32.mrf.mxu0
      %v10188 = vadd.f32 %v10027, %v10187
      %v10189 = vpop.f32.mrf.mxu0
      %v10190 = vadd.f32 %v10029, %v10189
      %v10191 = vpop.f32.mrf.mxu0
      %v10192 = vadd.f32 %v10031, %v10191
      %10193 = vmatprep.mubr.bf16.mxu0 %v6554
      %10194 = vmatmul.mubr.bf16.gmra.mxu0 %v6553
      %v10195 = vpop.f32.mrf.mxu0
      %v10196 = vadd.f32 %v10035, %v10195
      %v10197 = vpop.f32.mrf.mxu0
      %v10198 = vadd.f32 %v10037, %v10197
      %v10199 = vpop.f32.mrf.mxu0
      %v10200 = vadd.f32 %v10039, %v10199
      %v10201 = vpop.f32.mrf.mxu0
      %v10202 = vadd.f32 %v10041, %v10201
      %10203 = vmatprep.mubr.bf16.mxu0 %v6570
      %10204 = vmatmul.mubr.bf16.gmra.mxu0 %v6569
      %v10205 = vpop.f32.mrf.mxu0
      %v10206 = vadd.f32 %v10045, %v10205
      %v10207 = vpop.f32.mrf.mxu0
      %v10208 = vadd.f32 %v10047, %v10207
      %v10209 = vpop.f32.mrf.mxu0
      %v10210 = vadd.f32 %v10049, %v10209
      %v10211 = vpop.f32.mrf.mxu0
      %v10212 = vadd.f32 %v10051, %v10211
      %10213 = vmatprep.mubr.bf16.mxu0 %v6586
      %10214 = vmatmul.mubr.bf16.gmra.mxu0 %v6585
      %v10215 = vpop.f32.mrf.mxu0
      %v10216 = vadd.f32 %v10055, %v10215
      %v10217 = vpop.f32.mrf.mxu0
      %v10218 = vadd.f32 %v10057, %v10217
      %v10219 = vpop.f32.mrf.mxu0
      %v10220 = vadd.f32 %v10059, %v10219
      %v10221 = vpop.f32.mrf.mxu0
      %v10222 = vadd.f32 %v10061, %v10221
      %10223 = vmatprep.mubr.bf16.mxu0 %v6602
      %10224 = vmatmul.mubr.bf16.gmra.mxu0 %v6601
      %v10225 = vpop.f32.mrf.mxu0
      %v10226 = vadd.f32 %v10065, %v10225
      %v10227 = vpop.f32.mrf.mxu0
      %v10228 = vadd.f32 %v10067, %v10227
      %v10229 = vpop.f32.mrf.mxu0
      %v10230 = vadd.f32 %v10069, %v10229
      %v10231 = vpop.f32.mrf.mxu0
      %v10232 = vadd.f32 %v10071, %v10231
      %10233 = vmatprep.mubr.bf16.mxu0 %v6618
      %10234 = vmatmul.mubr.bf16.gmra.mxu0 %v6617
      %v10235 = vpop.f32.mrf.mxu0
      %v10236 = vadd.f32 %v10075, %v10235
      %v10237 = vpop.f32.mrf.mxu0
      %v10238 = vadd.f32 %v10077, %v10237
      %v10239 = vpop.f32.mrf.mxu0
      %v10240 = vadd.f32 %v10079, %v10239
      %v10241 = vpop.f32.mrf.mxu0
      %v10242 = vadd.f32 %v10081, %v10241
      %10243 = vmatprep.mubr.bf16.mxu0 %v6634
      %10244 = vmatmul.mubr.bf16.gmra.mxu0 %v6633
      %v10245 = vpop.f32.mrf.mxu0
      %v10246 = vadd.f32 %v10085, %v10245
      %v10247 = vpop.f32.mrf.mxu0
      %v10248 = vadd.f32 %v10087, %v10247
      %v10249 = vpop.f32.mrf.mxu0
      %v10250 = vadd.f32 %v10089, %v10249
      %v10251 = vpop.f32.mrf.mxu0
      %v10252 = vadd.f32 %v10091, %v10251
      %10253 = vmatprep.mubr.bf16.mxu0 %v6650
      %10254 = vmatmul.mubr.bf16.gmra.mxu0 %v6649
      %v10255 = vpop.f32.mrf.mxu0
      %v10256 = vadd.f32 %v10095, %v10255
      %v10257 = vpop.f32.mrf.mxu0
      %v10258 = vadd.f32 %v10097, %v10257
      %v10259 = vpop.f32.mrf.mxu0
      %v10260 = vadd.f32 %v10099, %v10259
      %v10261 = vpop.f32.mrf.mxu0
      %v10262 = vadd.f32 %v10101, %v10261
      %10263 = vmatprep.mubr.bf16.mxu0 %v6666
      %10264 = vmatmul.mubr.bf16.gmra.mxu0 %v6665
      %v10265 = vpop.f32.mrf.mxu0
      %v10266 = vadd.f32 %v10105, %v10265
      %v10267 = vpop.f32.mrf.mxu0
      %v10268 = vadd.f32 %v10107, %v10267
      %v10269 = vpop.f32.mrf.mxu0
      %v10270 = vadd.f32 %v10109, %v10269
      %v10271 = vpop.f32.mrf.mxu0
      %v10272 = vadd.f32 %v10111, %v10271
      %10273 = vmatprep.mubr.bf16.mxu0 %v6682
      %10274 = vmatmul.mubr.bf16.gmra.mxu0 %v6681
      %v10275 = vpop.f32.mrf.mxu0
      %v10276 = vadd.f32 %v10115, %v10275
      %v10277 = vpop.f32.mrf.mxu0
      %v10278 = vadd.f32 %v10117, %v10277
      %v10279 = vpop.f32.mrf.mxu0
      %v10280 = vadd.f32 %v10119, %v10279
      %v10281 = vpop.f32.mrf.mxu0
      %v10282 = vadd.f32 %v10121, %v10281
      %10283 = vmatprep.mubr.bf16.mxu0 %v6698
      %10284 = vmatmul.mubr.bf16.gmra.mxu0 %v6697
      %v10285 = vpop.f32.mrf.mxu0
      %v10286 = vadd.f32 %v10125, %v10285
      %v10287 = vpop.f32.mrf.mxu0
      %v10288 = vadd.f32 %v10127, %v10287
      %v10289 = vpop.f32.mrf.mxu0
      %v10290 = vadd.f32 %v10129, %v10289
      %v10291 = vpop.f32.mrf.mxu0
      %v10292 = vadd.f32 %v10131, %v10291
      %10293 = vmatprep.mubr.bf16.mxu0 %v6714
      %10294 = vmatmul.mubr.bf16.gmra.mxu0 %v6713
      %v10295 = vpop.f32.mrf.mxu0
      %v10296 = vadd.f32 %v10135, %v10295
      %v10297 = vpop.f32.mrf.mxu0
      %v10298 = vadd.f32 %v10137, %v10297
      %v10299 = vpop.f32.mrf.mxu0
      %v10300 = vpop.f32.mrf.mxu0
      %10301 = vdwg.mxu0
      %10302 = vmatprep.subr.bf16.mxu0 %v9016
      %10303 = vmatpush1.bf16.msra.mxu0 %v9015
      %10304 = vmatprep.subr.bf16.mxu0 %v9012
      %10305 = vmatpush1.bf16.msra.mxu0 %v9011
      %10306 = vmatprep.subr.bf16.mxu0 %v9008
      %10307 = vmatpush1.bf16.msra.mxu0 %v9007
      %10308 = vmatprep.subr.bf16.mxu0 %v9004
      %10309 = vmatpush1.bf16.msra.mxu0 %v9003
      %10310 = vmatprep.subr.bf16.mxu0 %v9000
      %10311 = vmatpush1.bf16.msra.mxu0 %v8999
      %10312 = vmatprep.subr.bf16.mxu0 %v8996
      %10313 = vmatpush1.bf16.msra.mxu0 %v8995
      %10314 = vmatprep.subr.bf16.mxu0 %v8992
      %10315 = vmatpush1.bf16.msra.mxu0 %v8991
      %10316 = vmatprep.subr.bf16.mxu0 %v8988
      %10317 = vmatpush1.bf16.msra.mxu0 %v8987
      %10318 = vmatprep.subr.bf16.mxu0 %v9048
      %10319 = vmatpush2.bf16.msra.mxu0 %v9047
      %10320 = vmatprep.subr.bf16.mxu0 %v9044
      %10321 = vmatpush2.bf16.msra.mxu0 %v9043
      %10322 = vmatprep.subr.bf16.mxu0 %v9040
      %10323 = vmatpush2.bf16.msra.mxu0 %v9039
      %10324 = vmatprep.subr.bf16.mxu0 %v9036
      %10325 = vmatpush2.bf16.msra.mxu0 %v9035
      %10326 = vmatprep.subr.bf16.mxu0 %v9032
      %10327 = vmatpush2.bf16.msra.mxu0 %v9031
      %10328 = vmatprep.subr.bf16.mxu0 %v9028
      %10329 = vmatpush2.bf16.msra.mxu0 %v9027
      %10330 = vmatprep.subr.bf16.mxu0 %v9024
      %10331 = vmatpush2.bf16.msra.mxu0 %v9023
      %10332 = vmatprep.subr.bf16.mxu0 %v9020
      %10333 = vmatpush2.bf16.msra.mxu0 %v9019
      %10334 = vmatprep.mubr.bf16.mxu0 %v6524
      %10335 = vmatmul.mubr.bf16.gmra.mxu0 %v6523
      %v10336 = vpop.f32.mrf.mxu0
      %v10337 = vadd.f32 %v10176, %v10336
      %v10338 = vpop.f32.mrf.mxu0
      %v10339 = vadd.f32 %v10178, %v10338
      %v10340 = vpop.f32.mrf.mxu0
      %v10341 = vadd.f32 %v10180, %v10340
      %v10342 = vpop.f32.mrf.mxu0
      %v10343 = vadd.f32 %v10182, %v10342
      %10344 = vmatprep.mubr.bf16.mxu0 %v6540
      %10345 = vmatmul.mubr.bf16.gmra.mxu0 %v6539
      %v10346 = vpop.f32.mrf.mxu0
      %v10347 = vadd.f32 %v10186, %v10346
      %v10348 = vpop.f32.mrf.mxu0
      %v10349 = vadd.f32 %v10188, %v10348
      %v10350 = vpop.f32.mrf.mxu0
      %v10351 = vadd.f32 %v10190, %v10350
      %v10352 = vpop.f32.mrf.mxu0
      %v10353 = vadd.f32 %v10192, %v10352
      %10354 = vmatprep.mubr.bf16.mxu0 %v6556
      %10355 = vmatmul.mubr.bf16.gmra.mxu0 %v6555
      %v10356 = vpop.f32.mrf.mxu0
      %v10357 = vadd.f32 %v10196, %v10356
      %v10358 = vpop.f32.mrf.mxu0
      %v10359 = vadd.f32 %v10198, %v10358
      %v10360 = vpop.f32.mrf.mxu0
      %v10361 = vadd.f32 %v10200, %v10360
      %v10362 = vpop.f32.mrf.mxu0
      %v10363 = vadd.f32 %v10202, %v10362
      %10364 = vmatprep.mubr.bf16.mxu0 %v6572
      %10365 = vmatmul.mubr.bf16.gmra.mxu0 %v6571
      %v10366 = vpop.f32.mrf.mxu0
      %v10367 = vadd.f32 %v10206, %v10366
      %v10368 = vpop.f32.mrf.mxu0
      %v10369 = vadd.f32 %v10208, %v10368
      %v10370 = vpop.f32.mrf.mxu0
      %v10371 = vadd.f32 %v10210, %v10370
      %v10372 = vpop.f32.mrf.mxu0
      %v10373 = vadd.f32 %v10212, %v10372
      %10374 = vmatprep.mubr.bf16.mxu0 %v6588
      %10375 = vmatmul.mubr.bf16.gmra.mxu0 %v6587
      %v10376 = vpop.f32.mrf.mxu0
      %v10377 = vadd.f32 %v10216, %v10376
      %v10378 = vpop.f32.mrf.mxu0
      %v10379 = vadd.f32 %v10218, %v10378
      %v10380 = vpop.f32.mrf.mxu0
      %v10381 = vadd.f32 %v10220, %v10380
      %v10382 = vpop.f32.mrf.mxu0
      %v10383 = vadd.f32 %v10222, %v10382
      %10384 = vmatprep.mubr.bf16.mxu0 %v6604
      %10385 = vmatmul.mubr.bf16.gmra.mxu0 %v6603
      %v10386 = vpop.f32.mrf.mxu0
      %v10387 = vadd.f32 %v10226, %v10386
      %v10388 = vpop.f32.mrf.mxu0
      %v10389 = vadd.f32 %v10228, %v10388
      %v10390 = vpop.f32.mrf.mxu0
      %v10391 = vadd.f32 %v10230, %v10390
      %v10392 = vpop.f32.mrf.mxu0
      %v10393 = vadd.f32 %v10232, %v10392
      %10394 = vmatprep.mubr.bf16.mxu0 %v6620
      %10395 = vmatmul.mubr.bf16.gmra.mxu0 %v6619
      %v10396 = vpop.f32.mrf.mxu0
      %v10397 = vadd.f32 %v10236, %v10396
      %v10398 = vpop.f32.mrf.mxu0
      %v10399 = vadd.f32 %v10238, %v10398
      %v10400 = vpop.f32.mrf.mxu0
      %v10401 = vadd.f32 %v10240, %v10400
      %v10402 = vpop.f32.mrf.mxu0
      %v10403 = vadd.f32 %v10242, %v10402
      %10404 = vmatprep.mubr.bf16.mxu0 %v6636
      %10405 = vmatmul.mubr.bf16.gmra.mxu0 %v6635
      %v10406 = vpop.f32.mrf.mxu0
      %v10407 = vadd.f32 %v10246, %v10406
      %v10408 = vpop.f32.mrf.mxu0
      %v10409 = vadd.f32 %v10248, %v10408
      %v10410 = vpop.f32.mrf.mxu0
      %v10411 = vadd.f32 %v10250, %v10410
      %v10412 = vpop.f32.mrf.mxu0
      %v10413 = vadd.f32 %v10252, %v10412
      %10414 = vmatprep.mubr.bf16.mxu0 %v6652
      %10415 = vmatmul.mubr.bf16.gmra.mxu0 %v6651
      %v10416 = vpop.f32.mrf.mxu0
      %v10417 = vadd.f32 %v10256, %v10416
      %v10418 = vpop.f32.mrf.mxu0
      %v10419 = vadd.f32 %v10258, %v10418
      %v10420 = vpop.f32.mrf.mxu0
      %v10421 = vadd.f32 %v10260, %v10420
      %v10422 = vpop.f32.mrf.mxu0
      %v10423 = vadd.f32 %v10262, %v10422
      %10424 = vmatprep.mubr.bf16.mxu0 %v6668
      %10425 = vmatmul.mubr.bf16.gmra.mxu0 %v6667
      %v10426 = vpop.f32.mrf.mxu0
      %v10427 = vadd.f32 %v10266, %v10426
      %v10428 = vpop.f32.mrf.mxu0
      %v10429 = vadd.f32 %v10268, %v10428
      %v10430 = vpop.f32.mrf.mxu0
      %v10431 = vadd.f32 %v10270, %v10430
      %v10432 = vpop.f32.mrf.mxu0
      %v10433 = vadd.f32 %v10272, %v10432
      %10434 = vmatprep.mubr.bf16.mxu0 %v6684
      %10435 = vmatmul.mubr.bf16.gmra.mxu0 %v6683
      %v10436 = vpop.f32.mrf.mxu0
      %v10437 = vadd.f32 %v10276, %v10436
      %v10438 = vpop.f32.mrf.mxu0
      %v10439 = vadd.f32 %v10278, %v10438
      %v10440 = vpop.f32.mrf.mxu0
      %v10441 = vadd.f32 %v10280, %v10440
      %v10442 = vpop.f32.mrf.mxu0
      %v10443 = vadd.f32 %v10282, %v10442
      %10444 = vmatprep.mubr.bf16.mxu0 %v6700
      %10445 = vmatmul.mubr.bf16.gmra.mxu0 %v6699
      %v10446 = vpop.f32.mrf.mxu0
      %v10447 = vadd.f32 %v10286, %v10446
      %v10448 = vpop.f32.mrf.mxu0
      %v10449 = vadd.f32 %v10288, %v10448
      %v10450 = vpop.f32.mrf.mxu0
      %v10451 = vadd.f32 %v10290, %v10450
      %v10452 = vpop.f32.mrf.mxu0
      %v10453 = vadd.f32 %v10292, %v10452
      %10454 = vmatprep.mubr.bf16.mxu0 %v6716
      %10455 = vmatmul.mubr.bf16.gmra.mxu0 %v6715
      %v10456 = vpop.f32.mrf.mxu0
      %v10457 = vadd.f32 %v10296, %v10456
      %v10458 = vpop.f32.mrf.mxu0
      %v10459 = vadd.f32 %v10298, %v10458
      %v10460 = vpop.f32.mrf.mxu0
      %v10461 = vpop.f32.mrf.mxu0
      %10462 = vdwg.mxu0
      %10463 = vmatprep.subr.bf16.mxu0 %v9080
      %10464 = vmatpush1.bf16.msra.mxu0 %v9079
      %10465 = vmatprep.subr.bf16.mxu0 %v9076
      %10466 = vmatpush1.bf16.msra.mxu0 %v9075
      %10467 = vmatprep.subr.bf16.mxu0 %v9072
      %10468 = vmatpush1.bf16.msra.mxu0 %v9071
      %10469 = vmatprep.subr.bf16.mxu0 %v9068
      %10470 = vmatpush1.bf16.msra.mxu0 %v9067
      %10471 = vmatprep.subr.bf16.mxu0 %v9064
      %10472 = vmatpush1.bf16.msra.mxu0 %v9063
      %10473 = vmatprep.subr.bf16.mxu0 %v9060
      %10474 = vmatpush1.bf16.msra.mxu0 %v9059
      %10475 = vmatprep.subr.bf16.mxu0 %v9056
      %10476 = vmatpush1.bf16.msra.mxu0 %v9055
      %10477 = vmatprep.subr.bf16.mxu0 %v9052
      %10478 = vmatpush1.bf16.msra.mxu0 %v9051
      %10479 = vmatprep.subr.bf16.mxu0 %v9112
      %10480 = vmatpush2.bf16.msra.mxu0 %v9111
      %10481 = vmatprep.subr.bf16.mxu0 %v9108
      %10482 = vmatpush2.bf16.msra.mxu0 %v9107
      %10483 = vmatprep.subr.bf16.mxu0 %v9104
      %10484 = vmatpush2.bf16.msra.mxu0 %v9103
      %10485 = vmatprep.subr.bf16.mxu0 %v9100
      %10486 = vmatpush2.bf16.msra.mxu0 %v9099
      %10487 = vmatprep.subr.bf16.mxu0 %v9096
      %10488 = vmatpush2.bf16.msra.mxu0 %v9095
      %10489 = vmatprep.subr.bf16.mxu0 %v9092
      %10490 = vmatpush2.bf16.msra.mxu0 %v9091
      %10491 = vmatprep.subr.bf16.mxu0 %v9088
      %10492 = vmatpush2.bf16.msra.mxu0 %v9087
      %10493 = vmatprep.subr.bf16.mxu0 %v9084
      %10494 = vmatpush2.bf16.msra.mxu0 %v9083
      %10495 = vmatprep.mubr.bf16.mxu0 %v6526
      %10496 = vmatmul.mubr.bf16.gmra.mxu0 %v6525
      %v10497 = vpop.f32.mrf.mxu0
      %v10498 = vadd.f32 %v10337, %v10497
      %v10499 = vpop.f32.mrf.mxu0
      %v10500 = vadd.f32 %v10339, %v10499
      %v10501 = vpop.f32.mrf.mxu0
      %v10502 = vadd.f32 %v10341, %v10501
      %v10503 = vpop.f32.mrf.mxu0
      %v10504 = vadd.f32 %v10343, %v10503
      %10505 = vmatprep.mubr.bf16.mxu0 %v6542
      %10506 = vmatmul.mubr.bf16.gmra.mxu0 %v6541
      %v10507 = vpop.f32.mrf.mxu0
      %v10508 = vadd.f32 %v10347, %v10507
      %v10509 = vpop.f32.mrf.mxu0
      %v10510 = vadd.f32 %v10349, %v10509
      %v10511 = vpop.f32.mrf.mxu0
      %v10512 = vadd.f32 %v10351, %v10511
      %v10513 = vpop.f32.mrf.mxu0
      %v10514 = vadd.f32 %v10353, %v10513
      %10515 = vmatprep.mubr.bf16.mxu0 %v6558
      %10516 = vmatmul.mubr.bf16.gmra.mxu0 %v6557
      %v10517 = vpop.f32.mrf.mxu0
      %v10518 = vadd.f32 %v10357, %v10517
      %v10519 = vpop.f32.mrf.mxu0
      %v10520 = vadd.f32 %v10359, %v10519
      %v10521 = vpop.f32.mrf.mxu0
      %v10522 = vadd.f32 %v10361, %v10521
      %v10523 = vpop.f32.mrf.mxu0
      %v10524 = vadd.f32 %v10363, %v10523
      %10525 = vmatprep.mubr.bf16.mxu0 %v6574
      %10526 = vmatmul.mubr.bf16.gmra.mxu0 %v6573
      %v10527 = vpop.f32.mrf.mxu0
      %v10528 = vadd.f32 %v10367, %v10527
      %v10529 = vpop.f32.mrf.mxu0
      %v10530 = vadd.f32 %v10369, %v10529
      %v10531 = vpop.f32.mrf.mxu0
      %v10532 = vadd.f32 %v10371, %v10531
      %v10533 = vpop.f32.mrf.mxu0
      %v10534 = vadd.f32 %v10373, %v10533
      %10535 = vmatprep.mubr.bf16.mxu0 %v6590
      %10536 = vmatmul.mubr.bf16.gmra.mxu0 %v6589
      %v10537 = vpop.f32.mrf.mxu0
      %v10538 = vadd.f32 %v10377, %v10537
      %v10539 = vpop.f32.mrf.mxu0
      %v10540 = vadd.f32 %v10379, %v10539
      %v10541 = vpop.f32.mrf.mxu0
      %v10542 = vadd.f32 %v10381, %v10541
      %v10543 = vpop.f32.mrf.mxu0
      %v10544 = vadd.f32 %v10383, %v10543
      %10545 = vmatprep.mubr.bf16.mxu0 %v6606
      %10546 = vmatmul.mubr.bf16.gmra.mxu0 %v6605
      %v10547 = vpop.f32.mrf.mxu0
      %v10548 = vadd.f32 %v10387, %v10547
      %v10549 = vpop.f32.mrf.mxu0
      %v10550 = vadd.f32 %v10389, %v10549
      %v10551 = vpop.f32.mrf.mxu0
      %v10552 = vadd.f32 %v10391, %v10551
      %v10553 = vpop.f32.mrf.mxu0
      %v10554 = vadd.f32 %v10393, %v10553
      %10555 = vmatprep.mubr.bf16.mxu0 %v6622
      %10556 = vmatmul.mubr.bf16.gmra.mxu0 %v6621
      %v10557 = vpop.f32.mrf.mxu0
      %v10558 = vadd.f32 %v10397, %v10557
      %v10559 = vpop.f32.mrf.mxu0
      %v10560 = vadd.f32 %v10399, %v10559
      %v10561 = vpop.f32.mrf.mxu0
      %v10562 = vadd.f32 %v10401, %v10561
      %v10563 = vpop.f32.mrf.mxu0
      %v10564 = vadd.f32 %v10403, %v10563
      %10565 = vmatprep.mubr.bf16.mxu0 %v6638
      %10566 = vmatmul.mubr.bf16.gmra.mxu0 %v6637
      %v10567 = vpop.f32.mrf.mxu0
      %v10568 = vadd.f32 %v10407, %v10567
      %v10569 = vpop.f32.mrf.mxu0
      %v10570 = vadd.f32 %v10409, %v10569
      %v10571 = vpop.f32.mrf.mxu0
      %v10572 = vadd.f32 %v10411, %v10571
      %v10573 = vpop.f32.mrf.mxu0
      %v10574 = vadd.f32 %v10413, %v10573
      %10575 = vmatprep.mubr.bf16.mxu0 %v6654
      %10576 = vmatmul.mubr.bf16.gmra.mxu0 %v6653
      %v10577 = vpop.f32.mrf.mxu0
      %v10578 = vadd.f32 %v10417, %v10577
      %v10579 = vpop.f32.mrf.mxu0
      %v10580 = vadd.f32 %v10419, %v10579
      %v10581 = vpop.f32.mrf.mxu0
      %v10582 = vadd.f32 %v10421, %v10581
      %v10583 = vpop.f32.mrf.mxu0
      %v10584 = vadd.f32 %v10423, %v10583
      %10585 = vmatprep.mubr.bf16.mxu0 %v6670
      %10586 = vmatmul.mubr.bf16.gmra.mxu0 %v6669
      %v10587 = vpop.f32.mrf.mxu0
      %v10588 = vadd.f32 %v10427, %v10587
      %v10589 = vpop.f32.mrf.mxu0
      %v10590 = vadd.f32 %v10429, %v10589
      %v10591 = vpop.f32.mrf.mxu0
      %v10592 = vadd.f32 %v10431, %v10591
      %v10593 = vpop.f32.mrf.mxu0
      %v10594 = vadd.f32 %v10433, %v10593
      %10595 = vmatprep.mubr.bf16.mxu0 %v6686
      %10596 = vmatmul.mubr.bf16.gmra.mxu0 %v6685
      %v10597 = vpop.f32.mrf.mxu0
      %v10598 = vadd.f32 %v10437, %v10597
      %v10599 = vpop.f32.mrf.mxu0
      %v10600 = vadd.f32 %v10439, %v10599
      %v10601 = vpop.f32.mrf.mxu0
      %v10602 = vadd.f32 %v10441, %v10601
      %v10603 = vpop.f32.mrf.mxu0
      %v10604 = vadd.f32 %v10443, %v10603
      %10605 = vmatprep.mubr.bf16.mxu0 %v6702
      %10606 = vmatmul.mubr.bf16.gmra.mxu0 %v6701
      %v10607 = vpop.f32.mrf.mxu0
      %v10608 = vadd.f32 %v10447, %v10607
      %v10609 = vpop.f32.mrf.mxu0
      %v10610 = vadd.f32 %v10449, %v10609
      %v10611 = vpop.f32.mrf.mxu0
      %v10612 = vadd.f32 %v10451, %v10611
      %v10613 = vpop.f32.mrf.mxu0
      %v10614 = vadd.f32 %v10453, %v10613
      %10615 = vmatprep.mubr.bf16.mxu0 %v6718
      %10616 = vmatmul.mubr.bf16.gmra.mxu0 %v6717
      %v10617 = vpop.f32.mrf.mxu0
      %v10618 = vadd.f32 %v10457, %v10617
      %v10619 = vpop.f32.mrf.mxu0
      %v10620 = vadd.f32 %v10459, %v10619
      %v10621 = vpop.f32.mrf.mxu0
      %v10622 = vpop.f32.mrf.mxu0
      %10623 = vdwg.mxu0
      %10624 = vmatprep.subr.bf16.mxu0 %v9144
      %10625 = vmatpush1.bf16.msra.mxu0 %v9143
      %10626 = vmatprep.subr.bf16.mxu0 %v9140
      %10627 = vmatpush1.bf16.msra.mxu0 %v9139
      %10628 = vmatprep.subr.bf16.mxu0 %v9136
      %10629 = vmatpush1.bf16.msra.mxu0 %v9135
      %10630 = vmatprep.subr.bf16.mxu0 %v9132
      %10631 = vmatpush1.bf16.msra.mxu0 %v9131
      %10632 = vmatprep.subr.bf16.mxu0 %v9128
      %10633 = vmatpush1.bf16.msra.mxu0 %v9127
      %10634 = vmatprep.subr.bf16.mxu0 %v9124
      %10635 = vmatpush1.bf16.msra.mxu0 %v9123
      %10636 = vmatprep.subr.bf16.mxu0 %v9120
      %10637 = vmatpush1.bf16.msra.mxu0 %v9119
      %10638 = vmatprep.subr.bf16.mxu0 %v9116
      %10639 = vmatpush1.bf16.msra.mxu0 %v9115
      %10640 = vmatprep.subr.bf16.mxu0 %v9176
      %10641 = vmatpush2.bf16.msra.mxu0 %v9175
      %10642 = vmatprep.subr.bf16.mxu0 %v9172
      %10643 = vmatpush2.bf16.msra.mxu0 %v9171
      %10644 = vmatprep.subr.bf16.mxu0 %v9168
      %10645 = vmatpush2.bf16.msra.mxu0 %v9167
      %10646 = vmatprep.subr.bf16.mxu0 %v9164
      %10647 = vmatpush2.bf16.msra.mxu0 %v9163
      %10648 = vmatprep.subr.bf16.mxu0 %v9160
      %10649 = vmatpush2.bf16.msra.mxu0 %v9159
      %10650 = vmatprep.subr.bf16.mxu0 %v9156
      %10651 = vmatpush2.bf16.msra.mxu0 %v9155
      %10652 = vmatprep.subr.bf16.mxu0 %v9152
      %10653 = vmatpush2.bf16.msra.mxu0 %v9151
      %10654 = vmatprep.subr.bf16.mxu0 %v9148
      %10655 = vmatpush2.bf16.msra.mxu0 %v9147
      %10656 = vmatprep.mubr.bf16.mxu0 %v6528
      %10657 = vmatmul.mubr.bf16.gmra.mxu0 %v6527
      %v10658 = vpop.f32.mrf.mxu0
      %v10659 = vadd.f32 %v10498, %v10658
      %v10660 = vpop.f32.mrf.mxu0
      %v10661 = vadd.f32 %v10500, %v10660
      %v10662 = vpop.f32.mrf.mxu0
      %v10663 = vadd.f32 %v10502, %v10662
      %v10664 = vpop.f32.mrf.mxu0
      %v10665 = vadd.f32 %v10504, %v10664
      %10666 = vmatprep.mubr.bf16.mxu0 %v6544
      %10667 = vmatmul.mubr.bf16.gmra.mxu0 %v6543
      %v10668 = vpop.f32.mrf.mxu0
      %v10669 = vadd.f32 %v10508, %v10668
      %v10670 = vpop.f32.mrf.mxu0
      %v10671 = vadd.f32 %v10510, %v10670
      %v10672 = vpop.f32.mrf.mxu0
      %v10673 = vadd.f32 %v10512, %v10672
      %v10674 = vpop.f32.mrf.mxu0
      %v10675 = vadd.f32 %v10514, %v10674
      %10676 = vmatprep.mubr.bf16.mxu0 %v6560
      %10677 = vmatmul.mubr.bf16.gmra.mxu0 %v6559
      %v10678 = vpop.f32.mrf.mxu0
      %v10679 = vadd.f32 %v10518, %v10678
      %v10680 = vpop.f32.mrf.mxu0
      %v10681 = vadd.f32 %v10520, %v10680
      %v10682 = vpop.f32.mrf.mxu0
      %v10683 = vadd.f32 %v10522, %v10682
      %v10684 = vpop.f32.mrf.mxu0
      %v10685 = vadd.f32 %v10524, %v10684
      %10686 = vmatprep.mubr.bf16.mxu0 %v6576
      %10687 = vmatmul.mubr.bf16.gmra.mxu0 %v6575
      %v10688 = vpop.f32.mrf.mxu0
      %v10689 = vadd.f32 %v10528, %v10688
      %v10690 = vpop.f32.mrf.mxu0
      %v10691 = vadd.f32 %v10530, %v10690
      %v10692 = vpop.f32.mrf.mxu0
      %v10693 = vadd.f32 %v10532, %v10692
      %v10694 = vpop.f32.mrf.mxu0
      %v10695 = vadd.f32 %v10534, %v10694
      %10696 = vmatprep.mubr.bf16.mxu0 %v6592
      %10697 = vmatmul.mubr.bf16.gmra.mxu0 %v6591
      %v10698 = vpop.f32.mrf.mxu0
      %v10699 = vadd.f32 %v10538, %v10698
      %v10700 = vpop.f32.mrf.mxu0
      %v10701 = vadd.f32 %v10540, %v10700
      %v10702 = vpop.f32.mrf.mxu0
      %v10703 = vadd.f32 %v10542, %v10702
      %v10704 = vpop.f32.mrf.mxu0
      %v10705 = vadd.f32 %v10544, %v10704
      %10706 = vmatprep.mubr.bf16.mxu0 %v6608
      %10707 = vmatmul.mubr.bf16.gmra.mxu0 %v6607
      %v10708 = vpop.f32.mrf.mxu0
      %v10709 = vadd.f32 %v10548, %v10708
      %v10710 = vpop.f32.mrf.mxu0
      %v10711 = vadd.f32 %v10550, %v10710
      %v10712 = vpop.f32.mrf.mxu0
      %v10713 = vadd.f32 %v10552, %v10712
      %v10714 = vpop.f32.mrf.mxu0
      %v10715 = vadd.f32 %v10554, %v10714
      %10716 = vmatprep.mubr.bf16.mxu0 %v6624
      %10717 = vmatmul.mubr.bf16.gmra.mxu0 %v6623
      %v10718 = vpop.f32.mrf.mxu0
      %v10719 = vadd.f32 %v10558, %v10718
      %v10720 = vpop.f32.mrf.mxu0
      %v10721 = vadd.f32 %v10560, %v10720
      %v10722 = vpop.f32.mrf.mxu0
      %v10723 = vadd.f32 %v10562, %v10722
      %v10724 = vpop.f32.mrf.mxu0
      %v10725 = vadd.f32 %v10564, %v10724
      %10726 = vmatprep.mubr.bf16.mxu0 %v6640
      %10727 = vmatmul.mubr.bf16.gmra.mxu0 %v6639
      %v10728 = vpop.f32.mrf.mxu0
      %v10729 = vadd.f32 %v10568, %v10728
      %v10730 = vpop.f32.mrf.mxu0
      %v10731 = vadd.f32 %v10570, %v10730
      %v10732 = vpop.f32.mrf.mxu0
      %v10733 = vadd.f32 %v10572, %v10732
      %v10734 = vpop.f32.mrf.mxu0
      %v10735 = vadd.f32 %v10574, %v10734
      %10736 = vmatprep.mubr.bf16.mxu0 %v6656
      %10737 = vmatmul.mubr.bf16.gmra.mxu0 %v6655
      %v10738 = vpop.f32.mrf.mxu0
      %v10739 = vadd.f32 %v10578, %v10738
      %v10740 = vpop.f32.mrf.mxu0
      %v10741 = vadd.f32 %v10580, %v10740
      %v10742 = vpop.f32.mrf.mxu0
      %v10743 = vadd.f32 %v10582, %v10742
      %v10744 = vpop.f32.mrf.mxu0
      %v10745 = vadd.f32 %v10584, %v10744
      %10746 = vmatprep.mubr.bf16.mxu0 %v6672
      %10747 = vmatmul.mubr.bf16.gmra.mxu0 %v6671
      %v10748 = vpop.f32.mrf.mxu0
      %v10749 = vadd.f32 %v10588, %v10748
      %v10750 = vpop.f32.mrf.mxu0
      %v10751 = vadd.f32 %v10590, %v10750
      %v10752 = vpop.f32.mrf.mxu0
      %v10753 = vadd.f32 %v10592, %v10752
      %v10754 = vpop.f32.mrf.mxu0
      %v10755 = vadd.f32 %v10594, %v10754
      %10756 = vmatprep.mubr.bf16.mxu0 %v6688
      %10757 = vmatmul.mubr.bf16.gmra.mxu0 %v6687
      %v10758 = vpop.f32.mrf.mxu0
      %v10759 = vadd.f32 %v10598, %v10758
      %v10760 = vpop.f32.mrf.mxu0
      %v10761 = vadd.f32 %v10600, %v10760
      %v10762 = vpop.f32.mrf.mxu0
      %v10763 = vadd.f32 %v10602, %v10762
      %v10764 = vpop.f32.mrf.mxu0
      %v10765 = vadd.f32 %v10604, %v10764
      %10766 = vmatprep.mubr.bf16.mxu0 %v6704
      %10767 = vmatmul.mubr.bf16.gmra.mxu0 %v6703
      %v10768 = vpop.f32.mrf.mxu0
      %v10769 = vadd.f32 %v10608, %v10768
      %v10770 = vpop.f32.mrf.mxu0
      %v10771 = vadd.f32 %v10610, %v10770
      %v10772 = vpop.f32.mrf.mxu0
      %v10773 = vadd.f32 %v10612, %v10772
      %v10774 = vpop.f32.mrf.mxu0
      %v10775 = vadd.f32 %v10614, %v10774
      %10776 = vmatprep.mubr.bf16.mxu0 %v6720
      %10777 = vmatmul.mubr.bf16.gmra.mxu0 %v6719
      %v10778 = vpop.f32.mrf.mxu0
      %v10779 = vadd.f32 %v10618, %v10778
      %v10780 = vpop.f32.mrf.mxu0
      %v10781 = vadd.f32 %v10620, %v10780
      %v10782 = vpop.f32.mrf.mxu0
      %v10783 = vpop.f32.mrf.mxu0
      %10784 = vdwg.mxu0
      %10785 = vmatprep.subr.bf16.mxu0 %v9208
      %10786 = vmatpush1.bf16.msra.mxu0 %v9207
      %10787 = vmatprep.subr.bf16.mxu0 %v9204
      %10788 = vmatpush1.bf16.msra.mxu0 %v9203
      %10789 = vmatprep.subr.bf16.mxu0 %v9200
      %10790 = vmatpush1.bf16.msra.mxu0 %v9199
      %10791 = vmatprep.subr.bf16.mxu0 %v9196
      %10792 = vmatpush1.bf16.msra.mxu0 %v9195
      %10793 = vmatprep.subr.bf16.mxu0 %v9192
      %10794 = vmatpush1.bf16.msra.mxu0 %v9191
      %10795 = vmatprep.subr.bf16.mxu0 %v9188
      %10796 = vmatpush1.bf16.msra.mxu0 %v9187
      %10797 = vmatprep.subr.bf16.mxu0 %v9184
      %10798 = vmatpush1.bf16.msra.mxu0 %v9183
      %10799 = vmatprep.subr.bf16.mxu0 %v9180
      %10800 = vmatpush1.bf16.msra.mxu0 %v9179
      %10801 = vmatprep.subr.bf16.mxu0 %v9240
      %10802 = vmatpush2.bf16.msra.mxu0 %v9239
      %10803 = vmatprep.subr.bf16.mxu0 %v9236
      %10804 = vmatpush2.bf16.msra.mxu0 %v9235
      %10805 = vmatprep.subr.bf16.mxu0 %v9232
      %10806 = vmatpush2.bf16.msra.mxu0 %v9231
      %10807 = vmatprep.subr.bf16.mxu0 %v9228
      %10808 = vmatpush2.bf16.msra.mxu0 %v9227
      %10809 = vmatprep.subr.bf16.mxu0 %v9224
      %10810 = vmatpush2.bf16.msra.mxu0 %v9223
      %10811 = vmatprep.subr.bf16.mxu0 %v9220
      %10812 = vmatpush2.bf16.msra.mxu0 %v9219
      %10813 = vmatprep.subr.bf16.mxu0 %v9216
      %10814 = vmatpush2.bf16.msra.mxu0 %v9215
      %10815 = vmatprep.subr.bf16.mxu0 %v9212
      %10816 = vmatpush2.bf16.msra.mxu0 %v9211
      %10817 = vmatprep.mubr.bf16.mxu0 %v6530
      %10818 = vmatmul.mubr.bf16.gmra.mxu0 %v6529
      %v10819 = vpop.f32.mrf.mxu0
      %v10820 = vadd.f32 %v10659, %v10819
      %v10821 = vpop.f32.mrf.mxu0
      %v10822 = vadd.f32 %v10661, %v10821
      %v10823 = vpop.f32.mrf.mxu0
      %v10824 = vadd.f32 %v10663, %v10823
      %v10825 = vpop.f32.mrf.mxu0
      %v10826 = vadd.f32 %v10665, %v10825
      %10827 = vmatprep.mubr.bf16.mxu0 %v6546
      %10828 = vmatmul.mubr.bf16.gmra.mxu0 %v6545
      %v10829 = vpop.f32.mrf.mxu0
      %v10830 = vadd.f32 %v10669, %v10829
      %v10831 = vpop.f32.mrf.mxu0
      %v10832 = vadd.f32 %v10671, %v10831
      %v10833 = vpop.f32.mrf.mxu0
      %v10834 = vadd.f32 %v10673, %v10833
      %v10835 = vpop.f32.mrf.mxu0
      %v10836 = vadd.f32 %v10675, %v10835
      %10837 = vmatprep.mubr.bf16.mxu0 %v6562
      %10838 = vmatmul.mubr.bf16.gmra.mxu0 %v6561
      %v10839 = vpop.f32.mrf.mxu0
      %v10840 = vadd.f32 %v10679, %v10839
      %v10841 = vpop.f32.mrf.mxu0
      %v10842 = vadd.f32 %v10681, %v10841
      %v10843 = vpop.f32.mrf.mxu0
      %v10844 = vadd.f32 %v10683, %v10843
      %v10845 = vpop.f32.mrf.mxu0
      %v10846 = vadd.f32 %v10685, %v10845
      %10847 = vmatprep.mubr.bf16.mxu0 %v6578
      %10848 = vmatmul.mubr.bf16.gmra.mxu0 %v6577
      %v10849 = vpop.f32.mrf.mxu0
      %v10850 = vadd.f32 %v10689, %v10849
      %v10851 = vpop.f32.mrf.mxu0
      %v10852 = vadd.f32 %v10691, %v10851
      %v10853 = vpop.f32.mrf.mxu0
      %v10854 = vadd.f32 %v10693, %v10853
      %v10855 = vpop.f32.mrf.mxu0
      %v10856 = vadd.f32 %v10695, %v10855
      %10857 = vmatprep.mubr.bf16.mxu0 %v6594
      %10858 = vmatmul.mubr.bf16.gmra.mxu0 %v6593
      %v10859 = vpop.f32.mrf.mxu0
      %v10860 = vadd.f32 %v10699, %v10859
      %v10861 = vpop.f32.mrf.mxu0
      %v10862 = vadd.f32 %v10701, %v10861
      %v10863 = vpop.f32.mrf.mxu0
      %v10864 = vadd.f32 %v10703, %v10863
      %v10865 = vpop.f32.mrf.mxu0
      %v10866 = vadd.f32 %v10705, %v10865
      %10867 = vmatprep.mubr.bf16.mxu0 %v6610
      %10868 = vmatmul.mubr.bf16.gmra.mxu0 %v6609
      %v10869 = vpop.f32.mrf.mxu0
      %v10870 = vadd.f32 %v10709, %v10869
      %v10871 = vpop.f32.mrf.mxu0
      %v10872 = vadd.f32 %v10711, %v10871
      %v10873 = vpop.f32.mrf.mxu0
      %v10874 = vadd.f32 %v10713, %v10873
      %v10875 = vpop.f32.mrf.mxu0
      %v10876 = vadd.f32 %v10715, %v10875
      %10877 = vmatprep.mubr.bf16.mxu0 %v6626
      %10878 = vmatmul.mubr.bf16.gmra.mxu0 %v6625
      %v10879 = vpop.f32.mrf.mxu0
      %v10880 = vadd.f32 %v10719, %v10879
      %v10881 = vpop.f32.mrf.mxu0
      %v10882 = vadd.f32 %v10721, %v10881
      %v10883 = vpop.f32.mrf.mxu0
      %v10884 = vadd.f32 %v10723, %v10883
      %v10885 = vpop.f32.mrf.mxu0
      %v10886 = vadd.f32 %v10725, %v10885
      %10887 = vmatprep.mubr.bf16.mxu0 %v6642
      %10888 = vmatmul.mubr.bf16.gmra.mxu0 %v6641
      %v10889 = vpop.f32.mrf.mxu0
      %v10890 = vadd.f32 %v10729, %v10889
      %v10891 = vpop.f32.mrf.mxu0
      %v10892 = vadd.f32 %v10731, %v10891
      %v10893 = vpop.f32.mrf.mxu0
      %v10894 = vadd.f32 %v10733, %v10893
      %v10895 = vpop.f32.mrf.mxu0
      %v10896 = vadd.f32 %v10735, %v10895
      %10897 = vmatprep.mubr.bf16.mxu0 %v6658
      %10898 = vmatmul.mubr.bf16.gmra.mxu0 %v6657
      %v10899 = vpop.f32.mrf.mxu0
      %v10900 = vadd.f32 %v10739, %v10899
      %v10901 = vpop.f32.mrf.mxu0
      %v10902 = vadd.f32 %v10741, %v10901
      %v10903 = vpop.f32.mrf.mxu0
      %v10904 = vadd.f32 %v10743, %v10903
      %v10905 = vpop.f32.mrf.mxu0
      %v10906 = vadd.f32 %v10745, %v10905
      %10907 = vmatprep.mubr.bf16.mxu0 %v6674
      %10908 = vmatmul.mubr.bf16.gmra.mxu0 %v6673
      %v10909 = vpop.f32.mrf.mxu0
      %v10910 = vadd.f32 %v10749, %v10909
      %v10911 = vpop.f32.mrf.mxu0
      %v10912 = vadd.f32 %v10751, %v10911
      %v10913 = vpop.f32.mrf.mxu0
      %v10914 = vadd.f32 %v10753, %v10913
      %v10915 = vpop.f32.mrf.mxu0
      %v10916 = vadd.f32 %v10755, %v10915
      %10917 = vmatprep.mubr.bf16.mxu0 %v6690
      %10918 = vmatmul.mubr.bf16.gmra.mxu0 %v6689
      %v10919 = vpop.f32.mrf.mxu0
      %v10920 = vadd.f32 %v10759, %v10919
      %v10921 = vpop.f32.mrf.mxu0
      %v10922 = vadd.f32 %v10761, %v10921
      %v10923 = vpop.f32.mrf.mxu0
      %v10924 = vadd.f32 %v10763, %v10923
      %v10925 = vpop.f32.mrf.mxu0
      %v10926 = vadd.f32 %v10765, %v10925
      %10927 = vmatprep.mubr.bf16.mxu0 %v6706
      %10928 = vmatmul.mubr.bf16.gmra.mxu0 %v6705
      %v10929 = vpop.f32.mrf.mxu0
      %v10930 = vadd.f32 %v10769, %v10929
      %v10931 = vpop.f32.mrf.mxu0
      %v10932 = vadd.f32 %v10771, %v10931
      %v10933 = vpop.f32.mrf.mxu0
      %v10934 = vadd.f32 %v10773, %v10933
      %v10935 = vpop.f32.mrf.mxu0
      %v10936 = vadd.f32 %v10775, %v10935
      %10937 = vmatprep.mubr.bf16.mxu0 %v6722
      %10938 = vmatmul.mubr.bf16.gmra.mxu0 %v6721
      %v10939 = vpop.f32.mrf.mxu0
      %v10940 = vadd.f32 %v10779, %v10939
      %v10941 = vpop.f32.mrf.mxu0
      %v10942 = vadd.f32 %v10781, %v10941
      %v10943 = vpop.f32.mrf.mxu0
      %v10944 = vpop.f32.mrf.mxu0
      %10945 = vdwg.mxu0
      %10946 = vmatprep.subr.bf16.mxu0 %v9272
      %10947 = vmatpush1.bf16.msra.mxu0 %v9271
      %10948 = vmatprep.subr.bf16.mxu0 %v9268
      %10949 = vmatpush1.bf16.msra.mxu0 %v9267
      %10950 = vmatprep.subr.bf16.mxu0 %v9264
      %10951 = vmatpush1.bf16.msra.mxu0 %v9263
      %10952 = vmatprep.subr.bf16.mxu0 %v9260
      %10953 = vmatpush1.bf16.msra.mxu0 %v9259
      %10954 = vmatprep.subr.bf16.mxu0 %v9256
      %10955 = vmatpush1.bf16.msra.mxu0 %v9255
      %10956 = vmatprep.subr.bf16.mxu0 %v9252
      %10957 = vmatpush1.bf16.msra.mxu0 %v9251
      %10958 = vmatprep.subr.bf16.mxu0 %v9248
      %10959 = vmatpush1.bf16.msra.mxu0 %v9247
      %10960 = vmatprep.subr.bf16.mxu0 %v9244
      %10961 = vmatpush1.bf16.msra.mxu0 %v9243
      %10962 = vmatprep.subr.bf16.mxu0 %v9304
      %10963 = vmatpush2.bf16.msra.mxu0 %v9303
      %10964 = vmatprep.subr.bf16.mxu0 %v9300
      %10965 = vmatpush2.bf16.msra.mxu0 %v9299
      %10966 = vmatprep.subr.bf16.mxu0 %v9296
      %10967 = vmatpush2.bf16.msra.mxu0 %v9295
      %10968 = vmatprep.subr.bf16.mxu0 %v9292
      %10969 = vmatpush2.bf16.msra.mxu0 %v9291
      %10970 = vmatprep.subr.bf16.mxu0 %v9288
      %10971 = vmatpush2.bf16.msra.mxu0 %v9287
      %10972 = vmatprep.subr.bf16.mxu0 %v9284
      %10973 = vmatpush2.bf16.msra.mxu0 %v9283
      %10974 = vmatprep.subr.bf16.mxu0 %v9280
      %10975 = vmatpush2.bf16.msra.mxu0 %v9279
      %10976 = vmatprep.subr.bf16.mxu0 %v9276
      %10977 = vmatpush2.bf16.msra.mxu0 %v9275
      %10978 = vmatprep.mubr.bf16.mxu0 %v6532
      %10979 = vmatmul.mubr.bf16.gmra.mxu0 %v6531
      %v10980 = vpop.f32.mrf.mxu0
      %v10981 = vadd.f32 %v10820, %v10980
      %v10982 = vpop.f32.mrf.mxu0
      %v10983 = vadd.f32 %v10822, %v10982
      %v10984 = vpop.f32.mrf.mxu0
      %v10985 = vadd.f32 %v10824, %v10984
      %v10986 = vpop.f32.mrf.mxu0
      %v10987 = vadd.f32 %v10826, %v10986
      %10988 = vmatprep.mubr.bf16.mxu0 %v6548
      %10989 = vmatmul.mubr.bf16.gmra.mxu0 %v6547
      %v10990 = vpop.f32.mrf.mxu0
      %v10991 = vadd.f32 %v10830, %v10990
      %v10992 = vpop.f32.mrf.mxu0
      %v10993 = vadd.f32 %v10832, %v10992
      %v10994 = vpop.f32.mrf.mxu0
      %v10995 = vadd.f32 %v10834, %v10994
      %v10996 = vpop.f32.mrf.mxu0
      %v10997 = vadd.f32 %v10836, %v10996
      %10998 = vmatprep.mubr.bf16.mxu0 %v6564
      %10999 = vmatmul.mubr.bf16.gmra.mxu0 %v6563
      %v11000 = vpop.f32.mrf.mxu0
      %v11001 = vadd.f32 %v10840, %v11000
      %v11002 = vpop.f32.mrf.mxu0
      %v11003 = vadd.f32 %v10842, %v11002
      %v11004 = vpop.f32.mrf.mxu0
      %v11005 = vadd.f32 %v10844, %v11004
      %v11006 = vpop.f32.mrf.mxu0
      %v11007 = vadd.f32 %v10846, %v11006
      %11008 = vmatprep.mubr.bf16.mxu0 %v6580
      %11009 = vmatmul.mubr.bf16.gmra.mxu0 %v6579
      %v11010 = vpop.f32.mrf.mxu0
      %v11011 = vadd.f32 %v10850, %v11010
      %v11012 = vpop.f32.mrf.mxu0
      %v11013 = vadd.f32 %v10852, %v11012
      %v11014 = vpop.f32.mrf.mxu0
      %v11015 = vadd.f32 %v10854, %v11014
      %v11016 = vpop.f32.mrf.mxu0
      %v11017 = vadd.f32 %v10856, %v11016
      %11018 = vmatprep.mubr.bf16.mxu0 %v6596
      %11019 = vmatmul.mubr.bf16.gmra.mxu0 %v6595
      %v11020 = vpop.f32.mrf.mxu0
      %v11021 = vadd.f32 %v10860, %v11020
      %v11022 = vpop.f32.mrf.mxu0
      %v11023 = vadd.f32 %v10862, %v11022
      %v11024 = vpop.f32.mrf.mxu0
      %v11025 = vadd.f32 %v10864, %v11024
      %v11026 = vpop.f32.mrf.mxu0
      %v11027 = vadd.f32 %v10866, %v11026
      %11028 = vmatprep.mubr.bf16.mxu0 %v6612
      %11029 = vmatmul.mubr.bf16.gmra.mxu0 %v6611
      %v11030 = vpop.f32.mrf.mxu0
      %v11031 = vadd.f32 %v10870, %v11030
      %v11032 = vpop.f32.mrf.mxu0
      %v11033 = vadd.f32 %v10872, %v11032
      %v11034 = vpop.f32.mrf.mxu0
      %v11035 = vadd.f32 %v10874, %v11034
      %v11036 = vpop.f32.mrf.mxu0
      %v11037 = vadd.f32 %v10876, %v11036
      %11038 = vmatprep.mubr.bf16.mxu0 %v6628
      %11039 = vmatmul.mubr.bf16.gmra.mxu0 %v6627
      %v11040 = vpop.f32.mrf.mxu0
      %v11041 = vadd.f32 %v10880, %v11040
      %v11042 = vpop.f32.mrf.mxu0
      %v11043 = vadd.f32 %v10882, %v11042
      %v11044 = vpop.f32.mrf.mxu0
      %v11045 = vadd.f32 %v10884, %v11044
      %v11046 = vpop.f32.mrf.mxu0
      %v11047 = vadd.f32 %v10886, %v11046
      %11048 = vmatprep.mubr.bf16.mxu0 %v6644
      %11049 = vmatmul.mubr.bf16.gmra.mxu0 %v6643
      %v11050 = vpop.f32.mrf.mxu0
      %v11051 = vadd.f32 %v10890, %v11050
      %v11052 = vpop.f32.mrf.mxu0
      %v11053 = vadd.f32 %v10892, %v11052
      %v11054 = vpop.f32.mrf.mxu0
      %v11055 = vadd.f32 %v10894, %v11054
      %v11056 = vpop.f32.mrf.mxu0
      %v11057 = vadd.f32 %v10896, %v11056
      %11058 = vmatprep.mubr.bf16.mxu0 %v6660
      %11059 = vmatmul.mubr.bf16.gmra.mxu0 %v6659
      %v11060 = vpop.f32.mrf.mxu0
      %v11061 = vadd.f32 %v10900, %v11060
      %v11062 = vpop.f32.mrf.mxu0
      %v11063 = vadd.f32 %v10902, %v11062
      %v11064 = vpop.f32.mrf.mxu0
      %v11065 = vadd.f32 %v10904, %v11064
      %v11066 = vpop.f32.mrf.mxu0
      %v11067 = vadd.f32 %v10906, %v11066
      %11068 = vmatprep.mubr.bf16.mxu0 %v6676
      %11069 = vmatmul.mubr.bf16.gmra.mxu0 %v6675
      %v11070 = vpop.f32.mrf.mxu0
      %v11071 = vadd.f32 %v10910, %v11070
      %v11072 = vpop.f32.mrf.mxu0
      %v11073 = vadd.f32 %v10912, %v11072
      %v11074 = vpop.f32.mrf.mxu0
      %v11075 = vadd.f32 %v10914, %v11074
      %v11076 = vpop.f32.mrf.mxu0
      %v11077 = vadd.f32 %v10916, %v11076
      %11078 = vmatprep.mubr.bf16.mxu0 %v6692
      %11079 = vmatmul.mubr.bf16.gmra.mxu0 %v6691
      %v11080 = vpop.f32.mrf.mxu0
      %v11081 = vadd.f32 %v10920, %v11080
      %v11082 = vpop.f32.mrf.mxu0
      %v11083 = vadd.f32 %v10922, %v11082
      %v11084 = vpop.f32.mrf.mxu0
      %v11085 = vadd.f32 %v10924, %v11084
      %v11086 = vpop.f32.mrf.mxu0
      %v11087 = vadd.f32 %v10926, %v11086
      %11088 = vmatprep.mubr.bf16.mxu0 %v6708
      %11089 = vmatmul.mubr.bf16.gmra.mxu0 %v6707
      %v11090 = vpop.f32.mrf.mxu0
      %v11091 = vadd.f32 %v10930, %v11090
      %v11092 = vpop.f32.mrf.mxu0
      %v11093 = vadd.f32 %v10932, %v11092
      %v11094 = vpop.f32.mrf.mxu0
      %v11095 = vadd.f32 %v10934, %v11094
      %v11096 = vpop.f32.mrf.mxu0
      %v11097 = vadd.f32 %v10936, %v11096
      %11098 = vmatprep.mubr.bf16.mxu0 %v6724
      %11099 = vmatmul.mubr.bf16.gmra.mxu0 %v6723
      %v11100 = vpop.f32.mrf.mxu0
      %v11101 = vadd.f32 %v10940, %v11100
      %v11102 = vpop.f32.mrf.mxu0
      %v11103 = vadd.f32 %v10942, %v11102
      %v11104 = vpop.f32.mrf.mxu0
      %v11105 = vpop.f32.mrf.mxu0
      %11106 = vdwg.mxu0
      %11107 = vmatprep.subr.bf16.mxu0 %v8826
      %11108 = vmatpush1.bf16.msra.mxu0 %v8825
      %11109 = vmatprep.subr.bf16.mxu0 %v8822
      %11110 = vmatpush1.bf16.msra.mxu0 %v8821
      %11111 = vmatprep.subr.bf16.mxu0 %v8818
      %11112 = vmatpush1.bf16.msra.mxu0 %v8817
      %11113 = vmatprep.subr.bf16.mxu0 %v8814
      %11114 = vmatpush1.bf16.msra.mxu0 %v8813
      %11115 = vmatprep.subr.bf16.mxu0 %v8810
      %11116 = vmatpush1.bf16.msra.mxu0 %v8809
      %11117 = vmatprep.subr.bf16.mxu0 %v8806
      %11118 = vmatpush1.bf16.msra.mxu0 %v8805
      %11119 = vmatprep.subr.bf16.mxu0 %v8802
      %11120 = vmatpush1.bf16.msra.mxu0 %v8801
      %11121 = vmatprep.subr.bf16.mxu0 %v8798
      %11122 = vmatpush1.bf16.msra.mxu0 %v8797
      %11123 = vmatprep.subr.bf16.mxu0 %v8858
      %11124 = vmatpush2.bf16.msra.mxu0 %v8857
      %11125 = vmatprep.subr.bf16.mxu0 %v8854
      %11126 = vmatpush2.bf16.msra.mxu0 %v8853
      %11127 = vmatprep.subr.bf16.mxu0 %v8850
      %11128 = vmatpush2.bf16.msra.mxu0 %v8849
      %11129 = vmatprep.subr.bf16.mxu0 %v8846
      %11130 = vmatpush2.bf16.msra.mxu0 %v8845
      %11131 = vmatprep.subr.bf16.mxu0 %v8842
      %11132 = vmatpush2.bf16.msra.mxu0 %v8841
      %11133 = vmatprep.subr.bf16.mxu0 %v8838
      %11134 = vmatpush2.bf16.msra.mxu0 %v8837
      %11135 = vmatprep.subr.bf16.mxu0 %v8834
      %11136 = vmatpush2.bf16.msra.mxu0 %v8833
      %11137 = vmatprep.subr.bf16.mxu0 %v8830
      %11138 = vmatpush2.bf16.msra.mxu0 %v8829
      %11139 = vmatprep.mubr.bf16.mxu0 %v6518
      %11140 = vmatmul.mubr.bf16.gmra.mxu0 %v6517
      %v11141 = vpop.f32.mrf.mxu0
      %v11142 = vadd.f32 %v7250, %v11141
      %v11143 = vpop.f32.mrf.mxu0
      %v11144 = vadd.f32 %v7254, %v11143
      %v11145 = vpop.f32.mrf.mxu0
      %v11146 = vadd.f32 %v7250, %v11145
      %v11147 = vpop.f32.mrf.mxu0
      %v11148 = vadd.f32 %v7254, %v11147
      %11149 = vmatprep.mubr.bf16.mxu0 %v6534
      %11150 = vmatmul.mubr.bf16.gmra.mxu0 %v6533
      %v11151 = vpop.f32.mrf.mxu0
      %v11152 = vadd.f32 %v7250, %v11151
      %v11153 = vpop.f32.mrf.mxu0
      %v11154 = vadd.f32 %v7254, %v11153
      %v11155 = vpop.f32.mrf.mxu0
      %v11156 = vadd.f32 %v7250, %v11155
      %v11157 = vpop.f32.mrf.mxu0
      %v11158 = vadd.f32 %v7254, %v11157
      %11159 = vmatprep.mubr.bf16.mxu0 %v6550
      %11160 = vmatmul.mubr.bf16.gmra.mxu0 %v6549
      %v11161 = vpop.f32.mrf.mxu0
      %v11162 = vadd.f32 %v7250, %v11161
      %v11163 = vpop.f32.mrf.mxu0
      %v11164 = vadd.f32 %v7254, %v11163
      %v11165 = vpop.f32.mrf.mxu0
      %v11166 = vadd.f32 %v7250, %v11165
      %v11167 = vpop.f32.mrf.mxu0
      %v11168 = vadd.f32 %v7254, %v11167
      %11169 = vmatprep.mubr.bf16.mxu0 %v6566
      %11170 = vmatmul.mubr.bf16.gmra.mxu0 %v6565
      %v11171 = vpop.f32.mrf.mxu0
      %v11172 = vadd.f32 %v7250, %v11171
      %v11173 = vpop.f32.mrf.mxu0
      %v11174 = vadd.f32 %v7254, %v11173
      %v11175 = vpop.f32.mrf.mxu0
      %v11176 = vadd.f32 %v7250, %v11175
      %v11177 = vpop.f32.mrf.mxu0
      %v11178 = vadd.f32 %v7254, %v11177
      %11179 = vmatprep.mubr.bf16.mxu0 %v6582
      %11180 = vmatmul.mubr.bf16.gmra.mxu0 %v6581
      %v11181 = vpop.f32.mrf.mxu0
      %v11182 = vadd.f32 %v7250, %v11181
      %v11183 = vpop.f32.mrf.mxu0
      %v11184 = vadd.f32 %v7254, %v11183
      %v11185 = vpop.f32.mrf.mxu0
      %v11186 = vadd.f32 %v7250, %v11185
      %v11187 = vpop.f32.mrf.mxu0
      %v11188 = vadd.f32 %v7254, %v11187
      %11189 = vmatprep.mubr.bf16.mxu0 %v6598
      %11190 = vmatmul.mubr.bf16.gmra.mxu0 %v6597
      %v11191 = vpop.f32.mrf.mxu0
      %v11192 = vadd.f32 %v7250, %v11191
      %v11193 = vpop.f32.mrf.mxu0
      %v11194 = vadd.f32 %v7254, %v11193
      %v11195 = vpop.f32.mrf.mxu0
      %v11196 = vadd.f32 %v7250, %v11195
      %v11197 = vpop.f32.mrf.mxu0
      %v11198 = vadd.f32 %v7254, %v11197
      %11199 = vmatprep.mubr.bf16.mxu0 %v6614
      %11200 = vmatmul.mubr.bf16.gmra.mxu0 %v6613
      %v11201 = vpop.f32.mrf.mxu0
      %v11202 = vadd.f32 %v7250, %v11201
      %v11203 = vpop.f32.mrf.mxu0
      %v11204 = vadd.f32 %v7254, %v11203
      %v11205 = vpop.f32.mrf.mxu0
      %v11206 = vadd.f32 %v7250, %v11205
      %v11207 = vpop.f32.mrf.mxu0
      %v11208 = vadd.f32 %v7254, %v11207
      %11209 = vmatprep.mubr.bf16.mxu0 %v6630
      %11210 = vmatmul.mubr.bf16.gmra.mxu0 %v6629
      %v11211 = vpop.f32.mrf.mxu0
      %v11212 = vadd.f32 %v7250, %v11211
      %v11213 = vpop.f32.mrf.mxu0
      %v11214 = vadd.f32 %v7254, %v11213
      %v11215 = vpop.f32.mrf.mxu0
      %v11216 = vadd.f32 %v7250, %v11215
      %v11217 = vpop.f32.mrf.mxu0
      %v11218 = vadd.f32 %v7254, %v11217
      %11219 = vmatprep.mubr.bf16.mxu0 %v6646
      %11220 = vmatmul.mubr.bf16.gmra.mxu0 %v6645
      %v11221 = vpop.f32.mrf.mxu0
      %v11222 = vadd.f32 %v7250, %v11221
      %v11223 = vpop.f32.mrf.mxu0
      %v11224 = vadd.f32 %v7254, %v11223
      %v11225 = vpop.f32.mrf.mxu0
      %v11226 = vadd.f32 %v7250, %v11225
      %v11227 = vpop.f32.mrf.mxu0
      %v11228 = vadd.f32 %v7254, %v11227
      %11229 = vmatprep.mubr.bf16.mxu0 %v6662
      %11230 = vmatmul.mubr.bf16.gmra.mxu0 %v6661
      %v11231 = vpop.f32.mrf.mxu0
      %v11232 = vadd.f32 %v7250, %v11231
      %v11233 = vpop.f32.mrf.mxu0
      %v11234 = vadd.f32 %v7254, %v11233
      %v11235 = vpop.f32.mrf.mxu0
      %v11236 = vadd.f32 %v7250, %v11235
      %v11237 = vpop.f32.mrf.mxu0
      %v11238 = vadd.f32 %v7254, %v11237
      %11239 = vmatprep.mubr.bf16.mxu0 %v6678
      %11240 = vmatmul.mubr.bf16.gmra.mxu0 %v6677
      %v11241 = vpop.f32.mrf.mxu0
      %v11242 = vadd.f32 %v7250, %v11241
      %v11243 = vpop.f32.mrf.mxu0
      %v11244 = vadd.f32 %v7254, %v11243
      %v11245 = vpop.f32.mrf.mxu0
      %v11246 = vadd.f32 %v7250, %v11245
      %v11247 = vpop.f32.mrf.mxu0
      %v11248 = vadd.f32 %v7254, %v11247
      %11249 = vmatprep.mubr.bf16.mxu0 %v6694
      %11250 = vmatmul.mubr.bf16.gmra.mxu0 %v6693
      %v11251 = vpop.f32.mrf.mxu0
      %v11252 = vadd.f32 %v7250, %v11251
      %v11253 = vpop.f32.mrf.mxu0
      %v11254 = vadd.f32 %v7254, %v11253
      %v11255 = vpop.f32.mrf.mxu0
      %v11256 = vadd.f32 %v7250, %v11255
      %v11257 = vpop.f32.mrf.mxu0
      %v11258 = vadd.f32 %v7254, %v11257
      %11259 = vmatprep.mubr.bf16.mxu0 %v6710
      %11260 = vmatmul.mubr.bf16.gmra.mxu0 %v6709
      %v11261 = vpop.f32.mrf.mxu0
      %v11262 = vadd.f32 %v7250, %v11261
      %v11263 = vpop.f32.mrf.mxu0
      %v11264 = vadd.f32 %v7254, %v11263
      %v11265 = vpop.f32.mrf.mxu0
      %v11266 = vpop.f32.mrf.mxu0
      %11267 = vdwg.mxu0
      %11268 = vmatprep.subr.bf16.mxu0 %v8890
      %11269 = vmatpush1.bf16.msra.mxu0 %v8889
      %11270 = vmatprep.subr.bf16.mxu0 %v8886
      %11271 = vmatpush1.bf16.msra.mxu0 %v8885
      %11272 = vmatprep.subr.bf16.mxu0 %v8882
      %11273 = vmatpush1.bf16.msra.mxu0 %v8881
      %11274 = vmatprep.subr.bf16.mxu0 %v8878
      %11275 = vmatpush1.bf16.msra.mxu0 %v8877
      %11276 = vmatprep.subr.bf16.mxu0 %v8874
      %11277 = vmatpush1.bf16.msra.mxu0 %v8873
      %11278 = vmatprep.subr.bf16.mxu0 %v8870
      %11279 = vmatpush1.bf16.msra.mxu0 %v8869
      %11280 = vmatprep.subr.bf16.mxu0 %v8866
      %11281 = vmatpush1.bf16.msra.mxu0 %v8865
      %11282 = vmatprep.subr.bf16.mxu0 %v8862
      %11283 = vmatpush1.bf16.msra.mxu0 %v8861
      %11284 = vmatprep.subr.bf16.mxu0 %v8922
      %11285 = vmatpush2.bf16.msra.mxu0 %v8921
      %11286 = vmatprep.subr.bf16.mxu0 %v8918
      %11287 = vmatpush2.bf16.msra.mxu0 %v8917
      %11288 = vmatprep.subr.bf16.mxu0 %v8914
      %11289 = vmatpush2.bf16.msra.mxu0 %v8913
      %11290 = vmatprep.subr.bf16.mxu0 %v8910
      %11291 = vmatpush2.bf16.msra.mxu0 %v8909
      %11292 = vmatprep.subr.bf16.mxu0 %v8906
      %11293 = vmatpush2.bf16.msra.mxu0 %v8905
      %11294 = vmatprep.subr.bf16.mxu0 %v8902
      %11295 = vmatpush2.bf16.msra.mxu0 %v8901
      %11296 = vmatprep.subr.bf16.mxu0 %v8898
      %11297 = vmatpush2.bf16.msra.mxu0 %v8897
      %11298 = vmatprep.subr.bf16.mxu0 %v8894
      %11299 = vmatpush2.bf16.msra.mxu0 %v8893
      %11300 = vmatprep.mubr.bf16.mxu0 %v6520
      %11301 = vmatmul.mubr.bf16.gmra.mxu0 %v6519
      %v11302 = vpop.f32.mrf.mxu0
      %v11303 = vadd.f32 %v11142, %v11302
      %v11304 = vpop.f32.mrf.mxu0
      %v11305 = vadd.f32 %v11144, %v11304
      %v11306 = vpop.f32.mrf.mxu0
      %v11307 = vadd.f32 %v11146, %v11306
      %v11308 = vpop.f32.mrf.mxu0
      %v11309 = vadd.f32 %v11148, %v11308
      %11310 = vmatprep.mubr.bf16.mxu0 %v6536
      %11311 = vmatmul.mubr.bf16.gmra.mxu0 %v6535
      %v11312 = vpop.f32.mrf.mxu0
      %v11313 = vadd.f32 %v11152, %v11312
      %v11314 = vpop.f32.mrf.mxu0
      %v11315 = vadd.f32 %v11154, %v11314
      %v11316 = vpop.f32.mrf.mxu0
      %v11317 = vadd.f32 %v11156, %v11316
      %v11318 = vpop.f32.mrf.mxu0
      %v11319 = vadd.f32 %v11158, %v11318
      %11320 = vmatprep.mubr.bf16.mxu0 %v6552
      %11321 = vmatmul.mubr.bf16.gmra.mxu0 %v6551
      %v11322 = vpop.f32.mrf.mxu0
      %v11323 = vadd.f32 %v11162, %v11322
      %v11324 = vpop.f32.mrf.mxu0
      %v11325 = vadd.f32 %v11164, %v11324
      %v11326 = vpop.f32.mrf.mxu0
      %v11327 = vadd.f32 %v11166, %v11326
      %v11328 = vpop.f32.mrf.mxu0
      %v11329 = vadd.f32 %v11168, %v11328
      %11330 = vmatprep.mubr.bf16.mxu0 %v6568
      %11331 = vmatmul.mubr.bf16.gmra.mxu0 %v6567
      %v11332 = vpop.f32.mrf.mxu0
      %v11333 = vadd.f32 %v11172, %v11332
      %v11334 = vpop.f32.mrf.mxu0
      %v11335 = vadd.f32 %v11174, %v11334
      %v11336 = vpop.f32.mrf.mxu0
      %v11337 = vadd.f32 %v11176, %v11336
      %v11338 = vpop.f32.mrf.mxu0
      %v11339 = vadd.f32 %v11178, %v11338
      %11340 = vmatprep.mubr.bf16.mxu0 %v6584
      %11341 = vmatmul.mubr.bf16.gmra.mxu0 %v6583
      %v11342 = vpop.f32.mrf.mxu0
      %v11343 = vadd.f32 %v11182, %v11342
      %v11344 = vpop.f32.mrf.mxu0
      %v11345 = vadd.f32 %v11184, %v11344
      %v11346 = vpop.f32.mrf.mxu0
      %v11347 = vadd.f32 %v11186, %v11346
      %v11348 = vpop.f32.mrf.mxu0
      %v11349 = vadd.f32 %v11188, %v11348
      %11350 = vmatprep.mubr.bf16.mxu0 %v6600
      %11351 = vmatmul.mubr.bf16.gmra.mxu0 %v6599
      %v11352 = vpop.f32.mrf.mxu0
      %v11353 = vadd.f32 %v11192, %v11352
      %v11354 = vpop.f32.mrf.mxu0
      %v11355 = vadd.f32 %v11194, %v11354
      %v11356 = vpop.f32.mrf.mxu0
      %v11357 = vadd.f32 %v11196, %v11356
      %v11358 = vpop.f32.mrf.mxu0
      %v11359 = vadd.f32 %v11198, %v11358
      %11360 = vmatprep.mubr.bf16.mxu0 %v6616
      %11361 = vmatmul.mubr.bf16.gmra.mxu0 %v6615
      %v11362 = vpop.f32.mrf.mxu0
      %v11363 = vadd.f32 %v11202, %v11362
      %v11364 = vpop.f32.mrf.mxu0
      %v11365 = vadd.f32 %v11204, %v11364
      %v11366 = vpop.f32.mrf.mxu0
      %v11367 = vadd.f32 %v11206, %v11366
      %v11368 = vpop.f32.mrf.mxu0
      %v11369 = vadd.f32 %v11208, %v11368
      %11370 = vmatprep.mubr.bf16.mxu0 %v6632
      %11371 = vmatmul.mubr.bf16.gmra.mxu0 %v6631
      %v11372 = vpop.f32.mrf.mxu0
      %v11373 = vadd.f32 %v11212, %v11372
      %v11374 = vpop.f32.mrf.mxu0
      %v11375 = vadd.f32 %v11214, %v11374
      %v11376 = vpop.f32.mrf.mxu0
      %v11377 = vadd.f32 %v11216, %v11376
      %v11378 = vpop.f32.mrf.mxu0
      %v11379 = vadd.f32 %v11218, %v11378
      %11380 = vmatprep.mubr.bf16.mxu0 %v6648
      %11381 = vmatmul.mubr.bf16.gmra.mxu0 %v6647
      %v11382 = vpop.f32.mrf.mxu0
      %v11383 = vadd.f32 %v11222, %v11382
      %v11384 = vpop.f32.mrf.mxu0
      %v11385 = vadd.f32 %v11224, %v11384
      %v11386 = vpop.f32.mrf.mxu0
      %v11387 = vadd.f32 %v11226, %v11386
      %v11388 = vpop.f32.mrf.mxu0
      %v11389 = vadd.f32 %v11228, %v11388
      %11390 = vmatprep.mubr.bf16.mxu0 %v6664
      %11391 = vmatmul.mubr.bf16.gmra.mxu0 %v6663
      %v11392 = vpop.f32.mrf.mxu0
      %v11393 = vadd.f32 %v11232, %v11392
      %v11394 = vpop.f32.mrf.mxu0
      %v11395 = vadd.f32 %v11234, %v11394
      %v11396 = vpop.f32.mrf.mxu0
      %v11397 = vadd.f32 %v11236, %v11396
      %v11398 = vpop.f32.mrf.mxu0
      %v11399 = vadd.f32 %v11238, %v11398
      %11400 = vmatprep.mubr.bf16.mxu0 %v6680
      %11401 = vmatmul.mubr.bf16.gmra.mxu0 %v6679
      %v11402 = vpop.f32.mrf.mxu0
      %v11403 = vadd.f32 %v11242, %v11402
      %v11404 = vpop.f32.mrf.mxu0
      %v11405 = vadd.f32 %v11244, %v11404
      %v11406 = vpop.f32.mrf.mxu0
      %v11407 = vadd.f32 %v11246, %v11406
      %v11408 = vpop.f32.mrf.mxu0
      %v11409 = vadd.f32 %v11248, %v11408
      %11410 = vmatprep.mubr.bf16.mxu0 %v6696
      %11411 = vmatmul.mubr.bf16.gmra.mxu0 %v6695
      %v11412 = vpop.f32.mrf.mxu0
      %v11413 = vadd.f32 %v11252, %v11412
      %v11414 = vpop.f32.mrf.mxu0
      %v11415 = vadd.f32 %v11254, %v11414
      %v11416 = vpop.f32.mrf.mxu0
      %v11417 = vadd.f32 %v11256, %v11416
      %v11418 = vpop.f32.mrf.mxu0
      %v11419 = vadd.f32 %v11258, %v11418
      %11420 = vmatprep.mubr.bf16.mxu0 %v6712
      %11421 = vmatmul.mubr.bf16.gmra.mxu0 %v6711
      %v11422 = vpop.f32.mrf.mxu0
      %v11423 = vadd.f32 %v11262, %v11422
      %v11424 = vpop.f32.mrf.mxu0
      %v11425 = vadd.f32 %v11264, %v11424
      %v11426 = vpop.f32.mrf.mxu0
      %v11427 = vpop.f32.mrf.mxu0
      %11428 = vdwg.mxu0
      %11429 = vmatprep.subr.bf16.mxu0 %v8954
      %11430 = vmatpush1.bf16.msra.mxu0 %v8953
      %11431 = vmatprep.subr.bf16.mxu0 %v8950
      %11432 = vmatpush1.bf16.msra.mxu0 %v8949
      %11433 = vmatprep.subr.bf16.mxu0 %v8946
      %11434 = vmatpush1.bf16.msra.mxu0 %v8945
      %11435 = vmatprep.subr.bf16.mxu0 %v8942
      %11436 = vmatpush1.bf16.msra.mxu0 %v8941
      %11437 = vmatprep.subr.bf16.mxu0 %v8938
      %11438 = vmatpush1.bf16.msra.mxu0 %v8937
      %11439 = vmatprep.subr.bf16.mxu0 %v8934
      %11440 = vmatpush1.bf16.msra.mxu0 %v8933
      %11441 = vmatprep.subr.bf16.mxu0 %v8930
      %11442 = vmatpush1.bf16.msra.mxu0 %v8929
      %11443 = vmatprep.subr.bf16.mxu0 %v8926
      %11444 = vmatpush1.bf16.msra.mxu0 %v8925
      %11445 = vmatprep.subr.bf16.mxu0 %v8986
      %11446 = vmatpush2.bf16.msra.mxu0 %v8985
      %11447 = vmatprep.subr.bf16.mxu0 %v8982
      %11448 = vmatpush2.bf16.msra.mxu0 %v8981
      %11449 = vmatprep.subr.bf16.mxu0 %v8978
      %11450 = vmatpush2.bf16.msra.mxu0 %v8977
      %11451 = vmatprep.subr.bf16.mxu0 %v8974
      %11452 = vmatpush2.bf16.msra.mxu0 %v8973
      %11453 = vmatprep.subr.bf16.mxu0 %v8970
      %11454 = vmatpush2.bf16.msra.mxu0 %v8969
      %11455 = vmatprep.subr.bf16.mxu0 %v8966
      %11456 = vmatpush2.bf16.msra.mxu0 %v8965
      %11457 = vmatprep.subr.bf16.mxu0 %v8962
      %11458 = vmatpush2.bf16.msra.mxu0 %v8961
      %11459 = vmatprep.subr.bf16.mxu0 %v8958
      %11460 = vmatpush2.bf16.msra.mxu0 %v8957
      %11461 = vmatprep.mubr.bf16.mxu0 %v6522
      %11462 = vmatmul.mubr.bf16.gmra.mxu0 %v6521
      %v11463 = vpop.f32.mrf.mxu0
      %v11464 = vadd.f32 %v11303, %v11463
      %v11465 = vpop.f32.mrf.mxu0
      %v11466 = vadd.f32 %v11305, %v11465
      %v11467 = vpop.f32.mrf.mxu0
      %v11468 = vadd.f32 %v11307, %v11467
      %v11469 = vpop.f32.mrf.mxu0
      %v11470 = vadd.f32 %v11309, %v11469
      %11471 = vmatprep.mubr.bf16.mxu0 %v6538
      %11472 = vmatmul.mubr.bf16.gmra.mxu0 %v6537
      %v11473 = vpop.f32.mrf.mxu0
      %v11474 = vadd.f32 %v11313, %v11473
      %v11475 = vpop.f32.mrf.mxu0
      %v11476 = vadd.f32 %v11315, %v11475
      %v11477 = vpop.f32.mrf.mxu0
      %v11478 = vadd.f32 %v11317, %v11477
      %v11479 = vpop.f32.mrf.mxu0
      %v11480 = vadd.f32 %v11319, %v11479
      %11481 = vmatprep.mubr.bf16.mxu0 %v6554
      %11482 = vmatmul.mubr.bf16.gmra.mxu0 %v6553
      %v11483 = vpop.f32.mrf.mxu0
      %v11484 = vadd.f32 %v11323, %v11483
      %v11485 = vpop.f32.mrf.mxu0
      %v11486 = vadd.f32 %v11325, %v11485
      %v11487 = vpop.f32.mrf.mxu0
      %v11488 = vadd.f32 %v11327, %v11487
      %v11489 = vpop.f32.mrf.mxu0
      %v11490 = vadd.f32 %v11329, %v11489
      %11491 = vmatprep.mubr.bf16.mxu0 %v6570
      %11492 = vmatmul.mubr.bf16.gmra.mxu0 %v6569
      %v11493 = vpop.f32.mrf.mxu0
      %v11494 = vadd.f32 %v11333, %v11493
      %v11495 = vpop.f32.mrf.mxu0
      %v11496 = vadd.f32 %v11335, %v11495
      %v11497 = vpop.f32.mrf.mxu0
      %v11498 = vadd.f32 %v11337, %v11497
      %v11499 = vpop.f32.mrf.mxu0
      %v11500 = vadd.f32 %v11339, %v11499
      %11501 = vmatprep.mubr.bf16.mxu0 %v6586
      %11502 = vmatmul.mubr.bf16.gmra.mxu0 %v6585
      %v11503 = vpop.f32.mrf.mxu0
      %v11504 = vadd.f32 %v11343, %v11503
      %v11505 = vpop.f32.mrf.mxu0
      %v11506 = vadd.f32 %v11345, %v11505
      %v11507 = vpop.f32.mrf.mxu0
      %v11508 = vadd.f32 %v11347, %v11507
      %v11509 = vpop.f32.mrf.mxu0
      %v11510 = vadd.f32 %v11349, %v11509
      %11511 = vmatprep.mubr.bf16.mxu0 %v6602
      %11512 = vmatmul.mubr.bf16.gmra.mxu0 %v6601
      %v11513 = vpop.f32.mrf.mxu0
      %v11514 = vadd.f32 %v11353, %v11513
      %v11515 = vpop.f32.mrf.mxu0
      %v11516 = vadd.f32 %v11355, %v11515
      %v11517 = vpop.f32.mrf.mxu0
      %v11518 = vadd.f32 %v11357, %v11517
      %v11519 = vpop.f32.mrf.mxu0
      %v11520 = vadd.f32 %v11359, %v11519
      %11521 = vmatprep.mubr.bf16.mxu0 %v6618
      %11522 = vmatmul.mubr.bf16.gmra.mxu0 %v6617
      %v11523 = vpop.f32.mrf.mxu0
      %v11524 = vadd.f32 %v11363, %v11523
      %v11525 = vpop.f32.mrf.mxu0
      %v11526 = vadd.f32 %v11365, %v11525
      %v11527 = vpop.f32.mrf.mxu0
      %v11528 = vadd.f32 %v11367, %v11527
      %v11529 = vpop.f32.mrf.mxu0
      %v11530 = vadd.f32 %v11369, %v11529
      %11531 = vmatprep.mubr.bf16.mxu0 %v6634
      %11532 = vmatmul.mubr.bf16.gmra.mxu0 %v6633
      %v11533 = vpop.f32.mrf.mxu0
      %v11534 = vadd.f32 %v11373, %v11533
      %v11535 = vpop.f32.mrf.mxu0
      %v11536 = vadd.f32 %v11375, %v11535
      %v11537 = vpop.f32.mrf.mxu0
      %v11538 = vadd.f32 %v11377, %v11537
      %v11539 = vpop.f32.mrf.mxu0
      %v11540 = vadd.f32 %v11379, %v11539
      %11541 = vmatprep.mubr.bf16.mxu0 %v6650
      %11542 = vmatmul.mubr.bf16.gmra.mxu0 %v6649
      %v11543 = vpop.f32.mrf.mxu0
      %v11544 = vadd.f32 %v11383, %v11543
      %v11545 = vpop.f32.mrf.mxu0
      %v11546 = vadd.f32 %v11385, %v11545
      %v11547 = vpop.f32.mrf.mxu0
      %v11548 = vadd.f32 %v11387, %v11547
      %v11549 = vpop.f32.mrf.mxu0
      %v11550 = vadd.f32 %v11389, %v11549
      %11551 = vmatprep.mubr.bf16.mxu0 %v6666
      %11552 = vmatmul.mubr.bf16.gmra.mxu0 %v6665
      %v11553 = vpop.f32.mrf.mxu0
      %v11554 = vadd.f32 %v11393, %v11553
      %v11555 = vpop.f32.mrf.mxu0
      %v11556 = vadd.f32 %v11395, %v11555
      %v11557 = vpop.f32.mrf.mxu0
      %v11558 = vadd.f32 %v11397, %v11557
      %v11559 = vpop.f32.mrf.mxu0
      %v11560 = vadd.f32 %v11399, %v11559
      %11561 = vmatprep.mubr.bf16.mxu0 %v6682
      %11562 = vmatmul.mubr.bf16.gmra.mxu0 %v6681
      %v11563 = vpop.f32.mrf.mxu0
      %v11564 = vadd.f32 %v11403, %v11563
      %v11565 = vpop.f32.mrf.mxu0
      %v11566 = vadd.f32 %v11405, %v11565
      %v11567 = vpop.f32.mrf.mxu0
      %v11568 = vadd.f32 %v11407, %v11567
      %v11569 = vpop.f32.mrf.mxu0
      %v11570 = vadd.f32 %v11409, %v11569
      %11571 = vmatprep.mubr.bf16.mxu0 %v6698
      %11572 = vmatmul.mubr.bf16.gmra.mxu0 %v6697
      %v11573 = vpop.f32.mrf.mxu0
      %v11574 = vadd.f32 %v11413, %v11573
      %v11575 = vpop.f32.mrf.mxu0
      %v11576 = vadd.f32 %v11415, %v11575
      %v11577 = vpop.f32.mrf.mxu0
      %v11578 = vadd.f32 %v11417, %v11577
      %v11579 = vpop.f32.mrf.mxu0
      %v11580 = vadd.f32 %v11419, %v11579
      %11581 = vmatprep.mubr.bf16.mxu0 %v6714
      %11582 = vmatmul.mubr.bf16.gmra.mxu0 %v6713
      %v11583 = vpop.f32.mrf.mxu0
      %v11584 = vadd.f32 %v11423, %v11583
      %v11585 = vpop.f32.mrf.mxu0
      %v11586 = vadd.f32 %v11425, %v11585
      %v11587 = vpop.f32.mrf.mxu0
      %v11588 = vpop.f32.mrf.mxu0
      %11589 = vdwg.mxu0
      %11590 = vmatprep.subr.bf16.mxu0 %v9018
      %11591 = vmatpush1.bf16.msra.mxu0 %v9017
      %11592 = vmatprep.subr.bf16.mxu0 %v9014
      %11593 = vmatpush1.bf16.msra.mxu0 %v9013
      %11594 = vmatprep.subr.bf16.mxu0 %v9010
      %11595 = vmatpush1.bf16.msra.mxu0 %v9009
      %11596 = vmatprep.subr.bf16.mxu0 %v9006
      %11597 = vmatpush1.bf16.msra.mxu0 %v9005
      %11598 = vmatprep.subr.bf16.mxu0 %v9002
      %11599 = vmatpush1.bf16.msra.mxu0 %v9001
      %11600 = vmatprep.subr.bf16.mxu0 %v8998
      %11601 = vmatpush1.bf16.msra.mxu0 %v8997
      %11602 = vmatprep.subr.bf16.mxu0 %v8994
      %11603 = vmatpush1.bf16.msra.mxu0 %v8993
      %11604 = vmatprep.subr.bf16.mxu0 %v8990
      %11605 = vmatpush1.bf16.msra.mxu0 %v8989
      %11606 = vmatprep.subr.bf16.mxu0 %v9050
      %11607 = vmatpush2.bf16.msra.mxu0 %v9049
      %11608 = vmatprep.subr.bf16.mxu0 %v9046
      %11609 = vmatpush2.bf16.msra.mxu0 %v9045
      %11610 = vmatprep.subr.bf16.mxu0 %v9042
      %11611 = vmatpush2.bf16.msra.mxu0 %v9041
      %11612 = vmatprep.subr.bf16.mxu0 %v9038
      %11613 = vmatpush2.bf16.msra.mxu0 %v9037
      %11614 = vmatprep.subr.bf16.mxu0 %v9034
      %11615 = vmatpush2.bf16.msra.mxu0 %v9033
      %11616 = vmatprep.subr.bf16.mxu0 %v9030
      %11617 = vmatpush2.bf16.msra.mxu0 %v9029
      %11618 = vmatprep.subr.bf16.mxu0 %v9026
      %11619 = vmatpush2.bf16.msra.mxu0 %v9025
      %11620 = vmatprep.subr.bf16.mxu0 %v9022
      %11621 = vmatpush2.bf16.msra.mxu0 %v9021
      %11622 = vmatprep.mubr.bf16.mxu0 %v6524
      %11623 = vmatmul.mubr.bf16.gmra.mxu0 %v6523
      %v11624 = vpop.f32.mrf.mxu0
      %v11625 = vadd.f32 %v11464, %v11624
      %v11626 = vpop.f32.mrf.mxu0
      %v11627 = vadd.f32 %v11466, %v11626
      %v11628 = vpop.f32.mrf.mxu0
      %v11629 = vadd.f32 %v11468, %v11628
      %v11630 = vpop.f32.mrf.mxu0
      %v11631 = vadd.f32 %v11470, %v11630
      %11632 = vmatprep.mubr.bf16.mxu0 %v6540
      %11633 = vmatmul.mubr.bf16.gmra.mxu0 %v6539
      %v11634 = vpop.f32.mrf.mxu0
      %v11635 = vadd.f32 %v11474, %v11634
      %v11636 = vpop.f32.mrf.mxu0
      %v11637 = vadd.f32 %v11476, %v11636
      %v11638 = vpop.f32.mrf.mxu0
      %v11639 = vadd.f32 %v11478, %v11638
      %v11640 = vpop.f32.mrf.mxu0
      %v11641 = vadd.f32 %v11480, %v11640
      %11642 = vmatprep.mubr.bf16.mxu0 %v6556
      %11643 = vmatmul.mubr.bf16.gmra.mxu0 %v6555
      %v11644 = vpop.f32.mrf.mxu0
      %v11645 = vadd.f32 %v11484, %v11644
      %v11646 = vpop.f32.mrf.mxu0
      %v11647 = vadd.f32 %v11486, %v11646
      %v11648 = vpop.f32.mrf.mxu0
      %v11649 = vadd.f32 %v11488, %v11648
      %v11650 = vpop.f32.mrf.mxu0
      %v11651 = vadd.f32 %v11490, %v11650
      %11652 = vmatprep.mubr.bf16.mxu0 %v6572
      %11653 = vmatmul.mubr.bf16.gmra.mxu0 %v6571
      %v11654 = vpop.f32.mrf.mxu0
      %v11655 = vadd.f32 %v11494, %v11654
      %v11656 = vpop.f32.mrf.mxu0
      %v11657 = vadd.f32 %v11496, %v11656
      %v11658 = vpop.f32.mrf.mxu0
      %v11659 = vadd.f32 %v11498, %v11658
      %v11660 = vpop.f32.mrf.mxu0
      %v11661 = vadd.f32 %v11500, %v11660
      %11662 = vmatprep.mubr.bf16.mxu0 %v6588
      %11663 = vmatmul.mubr.bf16.gmra.mxu0 %v6587
      %v11664 = vpop.f32.mrf.mxu0
      %v11665 = vadd.f32 %v11504, %v11664
      %v11666 = vpop.f32.mrf.mxu0
      %v11667 = vadd.f32 %v11506, %v11666
      %v11668 = vpop.f32.mrf.mxu0
      %v11669 = vadd.f32 %v11508, %v11668
      %v11670 = vpop.f32.mrf.mxu0
      %v11671 = vadd.f32 %v11510, %v11670
      %11672 = vmatprep.mubr.bf16.mxu0 %v6604
      %11673 = vmatmul.mubr.bf16.gmra.mxu0 %v6603
      %v11674 = vpop.f32.mrf.mxu0
      %v11675 = vadd.f32 %v11514, %v11674
      %v11676 = vpop.f32.mrf.mxu0
      %v11677 = vadd.f32 %v11516, %v11676
      %v11678 = vpop.f32.mrf.mxu0
      %v11679 = vadd.f32 %v11518, %v11678
      %v11680 = vpop.f32.mrf.mxu0
      %v11681 = vadd.f32 %v11520, %v11680
      %11682 = vmatprep.mubr.bf16.mxu0 %v6620
      %11683 = vmatmul.mubr.bf16.gmra.mxu0 %v6619
      %v11684 = vpop.f32.mrf.mxu0
      %v11685 = vadd.f32 %v11524, %v11684
      %v11686 = vpop.f32.mrf.mxu0
      %v11687 = vadd.f32 %v11526, %v11686
      %v11688 = vpop.f32.mrf.mxu0
      %v11689 = vadd.f32 %v11528, %v11688
      %v11690 = vpop.f32.mrf.mxu0
      %v11691 = vadd.f32 %v11530, %v11690
      %11692 = vmatprep.mubr.bf16.mxu0 %v6636
      %11693 = vmatmul.mubr.bf16.gmra.mxu0 %v6635
      %v11694 = vpop.f32.mrf.mxu0
      %v11695 = vadd.f32 %v11534, %v11694
      %v11696 = vpop.f32.mrf.mxu0
      %v11697 = vadd.f32 %v11536, %v11696
      %v11698 = vpop.f32.mrf.mxu0
      %v11699 = vadd.f32 %v11538, %v11698
      %v11700 = vpop.f32.mrf.mxu0
      %v11701 = vadd.f32 %v11540, %v11700
      %11702 = vmatprep.mubr.bf16.mxu0 %v6652
      %11703 = vmatmul.mubr.bf16.gmra.mxu0 %v6651
      %v11704 = vpop.f32.mrf.mxu0
      %v11705 = vadd.f32 %v11544, %v11704
      %v11706 = vpop.f32.mrf.mxu0
      %v11707 = vadd.f32 %v11546, %v11706
      %v11708 = vpop.f32.mrf.mxu0
      %v11709 = vadd.f32 %v11548, %v11708
      %v11710 = vpop.f32.mrf.mxu0
      %v11711 = vadd.f32 %v11550, %v11710
      %11712 = vmatprep.mubr.bf16.mxu0 %v6668
      %11713 = vmatmul.mubr.bf16.gmra.mxu0 %v6667
      %v11714 = vpop.f32.mrf.mxu0
      %v11715 = vadd.f32 %v11554, %v11714
      %v11716 = vpop.f32.mrf.mxu0
      %v11717 = vadd.f32 %v11556, %v11716
      %v11718 = vpop.f32.mrf.mxu0
      %v11719 = vadd.f32 %v11558, %v11718
      %v11720 = vpop.f32.mrf.mxu0
      %v11721 = vadd.f32 %v11560, %v11720
      %11722 = vmatprep.mubr.bf16.mxu0 %v6684
      %11723 = vmatmul.mubr.bf16.gmra.mxu0 %v6683
      %v11724 = vpop.f32.mrf.mxu0
      %v11725 = vadd.f32 %v11564, %v11724
      %v11726 = vpop.f32.mrf.mxu0
      %v11727 = vadd.f32 %v11566, %v11726
      %v11728 = vpop.f32.mrf.mxu0
      %v11729 = vadd.f32 %v11568, %v11728
      %v11730 = vpop.f32.mrf.mxu0
      %v11731 = vadd.f32 %v11570, %v11730
      %11732 = vmatprep.mubr.bf16.mxu0 %v6700
      %11733 = vmatmul.mubr.bf16.gmra.mxu0 %v6699
      %v11734 = vpop.f32.mrf.mxu0
      %v11735 = vadd.f32 %v11574, %v11734
      %v11736 = vpop.f32.mrf.mxu0
      %v11737 = vadd.f32 %v11576, %v11736
      %v11738 = vpop.f32.mrf.mxu0
      %v11739 = vadd.f32 %v11578, %v11738
      %v11740 = vpop.f32.mrf.mxu0
      %v11741 = vadd.f32 %v11580, %v11740
      %11742 = vmatprep.mubr.bf16.mxu0 %v6716
      %11743 = vmatmul.mubr.bf16.gmra.mxu0 %v6715
      %v11744 = vpop.f32.mrf.mxu0
      %v11745 = vadd.f32 %v11584, %v11744
      %v11746 = vpop.f32.mrf.mxu0
      %v11747 = vadd.f32 %v11586, %v11746
      %v11748 = vpop.f32.mrf.mxu0
      %v11749 = vpop.f32.mrf.mxu0
      %11750 = vdwg.mxu0
      %11751 = vmatprep.subr.bf16.mxu0 %v9082
      %11752 = vmatpush1.bf16.msra.mxu0 %v9081
      %11753 = vmatprep.subr.bf16.mxu0 %v9078
      %11754 = vmatpush1.bf16.msra.mxu0 %v9077
      %11755 = vmatprep.subr.bf16.mxu0 %v9074
      %11756 = vmatpush1.bf16.msra.mxu0 %v9073
      %11757 = vmatprep.subr.bf16.mxu0 %v9070
      %11758 = vmatpush1.bf16.msra.mxu0 %v9069
      %11759 = vmatprep.subr.bf16.mxu0 %v9066
      %11760 = vmatpush1.bf16.msra.mxu0 %v9065
      %11761 = vmatprep.subr.bf16.mxu0 %v9062
      %11762 = vmatpush1.bf16.msra.mxu0 %v9061
      %11763 = vmatprep.subr.bf16.mxu0 %v9058
      %11764 = vmatpush1.bf16.msra.mxu0 %v9057
      %11765 = vmatprep.subr.bf16.mxu0 %v9054
      %11766 = vmatpush1.bf16.msra.mxu0 %v9053
      %11767 = vmatprep.subr.bf16.mxu0 %v9114
      %11768 = vmatpush2.bf16.msra.mxu0 %v9113
      %11769 = vmatprep.subr.bf16.mxu0 %v9110
      %11770 = vmatpush2.bf16.msra.mxu0 %v9109
      %11771 = vmatprep.subr.bf16.mxu0 %v9106
      %11772 = vmatpush2.bf16.msra.mxu0 %v9105
      %11773 = vmatprep.subr.bf16.mxu0 %v9102
      %11774 = vmatpush2.bf16.msra.mxu0 %v9101
      %11775 = vmatprep.subr.bf16.mxu0 %v9098
      %11776 = vmatpush2.bf16.msra.mxu0 %v9097
      %11777 = vmatprep.subr.bf16.mxu0 %v9094
      %11778 = vmatpush2.bf16.msra.mxu0 %v9093
      %11779 = vmatprep.subr.bf16.mxu0 %v9090
      %11780 = vmatpush2.bf16.msra.mxu0 %v9089
      %11781 = vmatprep.subr.bf16.mxu0 %v9086
      %11782 = vmatpush2.bf16.msra.mxu0 %v9085
      %11783 = vmatprep.mubr.bf16.mxu0 %v6526
      %11784 = vmatmul.mubr.bf16.gmra.mxu0 %v6525
      %v11785 = vpop.f32.mrf.mxu0
      %v11786 = vadd.f32 %v11625, %v11785
      %v11787 = vpop.f32.mrf.mxu0
      %v11788 = vadd.f32 %v11627, %v11787
      %v11789 = vpop.f32.mrf.mxu0
      %v11790 = vadd.f32 %v11629, %v11789
      %v11791 = vpop.f32.mrf.mxu0
      %v11792 = vadd.f32 %v11631, %v11791
      %11793 = vmatprep.mubr.bf16.mxu0 %v6542
      %11794 = vmatmul.mubr.bf16.gmra.mxu0 %v6541
      %v11795 = vpop.f32.mrf.mxu0
      %v11796 = vadd.f32 %v11635, %v11795
      %v11797 = vpop.f32.mrf.mxu0
      %v11798 = vadd.f32 %v11637, %v11797
      %v11799 = vpop.f32.mrf.mxu0
      %v11800 = vadd.f32 %v11639, %v11799
      %v11801 = vpop.f32.mrf.mxu0
      %v11802 = vadd.f32 %v11641, %v11801
      %11803 = vmatprep.mubr.bf16.mxu0 %v6558
      %11804 = vmatmul.mubr.bf16.gmra.mxu0 %v6557
      %v11805 = vpop.f32.mrf.mxu0
      %v11806 = vadd.f32 %v11645, %v11805
      %v11807 = vpop.f32.mrf.mxu0
      %v11808 = vadd.f32 %v11647, %v11807
      %v11809 = vpop.f32.mrf.mxu0
      %v11810 = vadd.f32 %v11649, %v11809
      %v11811 = vpop.f32.mrf.mxu0
      %v11812 = vadd.f32 %v11651, %v11811
      %11813 = vmatprep.mubr.bf16.mxu0 %v6574
      %11814 = vmatmul.mubr.bf16.gmra.mxu0 %v6573
      %v11815 = vpop.f32.mrf.mxu0
      %v11816 = vadd.f32 %v11655, %v11815
      %v11817 = vpop.f32.mrf.mxu0
      %v11818 = vadd.f32 %v11657, %v11817
      %v11819 = vpop.f32.mrf.mxu0
      %v11820 = vadd.f32 %v11659, %v11819
      %v11821 = vpop.f32.mrf.mxu0
      %v11822 = vadd.f32 %v11661, %v11821
      %11823 = vmatprep.mubr.bf16.mxu0 %v6590
      %11824 = vmatmul.mubr.bf16.gmra.mxu0 %v6589
      %v11825 = vpop.f32.mrf.mxu0
      %v11826 = vadd.f32 %v11665, %v11825
      %v11827 = vpop.f32.mrf.mxu0
      %v11828 = vadd.f32 %v11667, %v11827
      %v11829 = vpop.f32.mrf.mxu0
      %v11830 = vadd.f32 %v11669, %v11829
      %v11831 = vpop.f32.mrf.mxu0
      %v11832 = vadd.f32 %v11671, %v11831
      %11833 = vmatprep.mubr.bf16.mxu0 %v6606
      %11834 = vmatmul.mubr.bf16.gmra.mxu0 %v6605
      %v11835 = vpop.f32.mrf.mxu0
      %v11836 = vadd.f32 %v11675, %v11835
      %v11837 = vpop.f32.mrf.mxu0
      %v11838 = vadd.f32 %v11677, %v11837
      %v11839 = vpop.f32.mrf.mxu0
      %v11840 = vadd.f32 %v11679, %v11839
      %v11841 = vpop.f32.mrf.mxu0
      %v11842 = vadd.f32 %v11681, %v11841
      %11843 = vmatprep.mubr.bf16.mxu0 %v6622
      %11844 = vmatmul.mubr.bf16.gmra.mxu0 %v6621
      %v11845 = vpop.f32.mrf.mxu0
      %v11846 = vadd.f32 %v11685, %v11845
      %v11847 = vpop.f32.mrf.mxu0
      %v11848 = vadd.f32 %v11687, %v11847
      %v11849 = vpop.f32.mrf.mxu0
      %v11850 = vadd.f32 %v11689, %v11849
      %v11851 = vpop.f32.mrf.mxu0
      %v11852 = vadd.f32 %v11691, %v11851
      %11853 = vmatprep.mubr.bf16.mxu0 %v6638
      %11854 = vmatmul.mubr.bf16.gmra.mxu0 %v6637
      %v11855 = vpop.f32.mrf.mxu0
      %v11856 = vadd.f32 %v11695, %v11855
      %v11857 = vpop.f32.mrf.mxu0
      %v11858 = vadd.f32 %v11697, %v11857
      %v11859 = vpop.f32.mrf.mxu0
      %v11860 = vadd.f32 %v11699, %v11859
      %v11861 = vpop.f32.mrf.mxu0
      %v11862 = vadd.f32 %v11701, %v11861
      %11863 = vmatprep.mubr.bf16.mxu0 %v6654
      %11864 = vmatmul.mubr.bf16.gmra.mxu0 %v6653
      %v11865 = vpop.f32.mrf.mxu0
      %v11866 = vadd.f32 %v11705, %v11865
      %v11867 = vpop.f32.mrf.mxu0
      %v11868 = vadd.f32 %v11707, %v11867
      %v11869 = vpop.f32.mrf.mxu0
      %v11870 = vadd.f32 %v11709, %v11869
      %v11871 = vpop.f32.mrf.mxu0
      %v11872 = vadd.f32 %v11711, %v11871
      %11873 = vmatprep.mubr.bf16.mxu0 %v6670
      %11874 = vmatmul.mubr.bf16.gmra.mxu0 %v6669
      %v11875 = vpop.f32.mrf.mxu0
      %v11876 = vadd.f32 %v11715, %v11875
      %v11877 = vpop.f32.mrf.mxu0
      %v11878 = vadd.f32 %v11717, %v11877
      %v11879 = vpop.f32.mrf.mxu0
      %v11880 = vadd.f32 %v11719, %v11879
      %v11881 = vpop.f32.mrf.mxu0
      %v11882 = vadd.f32 %v11721, %v11881
      %11883 = vmatprep.mubr.bf16.mxu0 %v6686
      %11884 = vmatmul.mubr.bf16.gmra.mxu0 %v6685
      %v11885 = vpop.f32.mrf.mxu0
      %v11886 = vadd.f32 %v11725, %v11885
      %v11887 = vpop.f32.mrf.mxu0
      %v11888 = vadd.f32 %v11727, %v11887
      %v11889 = vpop.f32.mrf.mxu0
      %v11890 = vadd.f32 %v11729, %v11889
      %v11891 = vpop.f32.mrf.mxu0
      %v11892 = vadd.f32 %v11731, %v11891
      %11893 = vmatprep.mubr.bf16.mxu0 %v6702
      %11894 = vmatmul.mubr.bf16.gmra.mxu0 %v6701
      %v11895 = vpop.f32.mrf.mxu0
      %v11896 = vadd.f32 %v11735, %v11895
      %v11897 = vpop.f32.mrf.mxu0
      %v11898 = vadd.f32 %v11737, %v11897
      %v11899 = vpop.f32.mrf.mxu0
      %v11900 = vadd.f32 %v11739, %v11899
      %v11901 = vpop.f32.mrf.mxu0
      %v11902 = vadd.f32 %v11741, %v11901
      %11903 = vmatprep.mubr.bf16.mxu0 %v6718
      %11904 = vmatmul.mubr.bf16.gmra.mxu0 %v6717
      %v11905 = vpop.f32.mrf.mxu0
      %v11906 = vadd.f32 %v11745, %v11905
      %v11907 = vpop.f32.mrf.mxu0
      %v11908 = vadd.f32 %v11747, %v11907
      %v11909 = vpop.f32.mrf.mxu0
      %v11910 = vpop.f32.mrf.mxu0
      %11911 = vdwg.mxu0
      %11912 = vmatprep.subr.bf16.mxu0 %v9146
      %11913 = vmatpush1.bf16.msra.mxu0 %v9145
      %11914 = vmatprep.subr.bf16.mxu0 %v9142
      %11915 = vmatpush1.bf16.msra.mxu0 %v9141
      %11916 = vmatprep.subr.bf16.mxu0 %v9138
      %11917 = vmatpush1.bf16.msra.mxu0 %v9137
      %11918 = vmatprep.subr.bf16.mxu0 %v9134
      %11919 = vmatpush1.bf16.msra.mxu0 %v9133
      %11920 = vmatprep.subr.bf16.mxu0 %v9130
      %11921 = vmatpush1.bf16.msra.mxu0 %v9129
      %11922 = vmatprep.subr.bf16.mxu0 %v9126
      %11923 = vmatpush1.bf16.msra.mxu0 %v9125
      %11924 = vmatprep.subr.bf16.mxu0 %v9122
      %11925 = vmatpush1.bf16.msra.mxu0 %v9121
      %11926 = vmatprep.subr.bf16.mxu0 %v9118
      %11927 = vmatpush1.bf16.msra.mxu0 %v9117
      %11928 = vmatprep.subr.bf16.mxu0 %v9178
      %11929 = vmatpush2.bf16.msra.mxu0 %v9177
      %11930 = vmatprep.subr.bf16.mxu0 %v9174
      %11931 = vmatpush2.bf16.msra.mxu0 %v9173
      %11932 = vmatprep.subr.bf16.mxu0 %v9170
      %11933 = vmatpush2.bf16.msra.mxu0 %v9169
      %11934 = vmatprep.subr.bf16.mxu0 %v9166
      %11935 = vmatpush2.bf16.msra.mxu0 %v9165
      %11936 = vmatprep.subr.bf16.mxu0 %v9162
      %11937 = vmatpush2.bf16.msra.mxu0 %v9161
      %11938 = vmatprep.subr.bf16.mxu0 %v9158
      %11939 = vmatpush2.bf16.msra.mxu0 %v9157
      %11940 = vmatprep.subr.bf16.mxu0 %v9154
      %11941 = vmatpush2.bf16.msra.mxu0 %v9153
      %11942 = vmatprep.subr.bf16.mxu0 %v9150
      %11943 = vmatpush2.bf16.msra.mxu0 %v9149
      %11944 = vmatprep.mubr.bf16.mxu0 %v6528
      %11945 = vmatmul.mubr.bf16.gmra.mxu0 %v6527
      %v11946 = vpop.f32.mrf.mxu0
      %v11947 = vadd.f32 %v11786, %v11946
      %v11948 = vpop.f32.mrf.mxu0
      %v11949 = vadd.f32 %v11788, %v11948
      %v11950 = vpop.f32.mrf.mxu0
      %v11951 = vadd.f32 %v11790, %v11950
      %v11952 = vpop.f32.mrf.mxu0
      %v11953 = vadd.f32 %v11792, %v11952
      %11954 = vmatprep.mubr.bf16.mxu0 %v6544
      %11955 = vmatmul.mubr.bf16.gmra.mxu0 %v6543
      %v11956 = vpop.f32.mrf.mxu0
      %v11957 = vadd.f32 %v11796, %v11956
      %v11958 = vpop.f32.mrf.mxu0
      %v11959 = vadd.f32 %v11798, %v11958
      %v11960 = vpop.f32.mrf.mxu0
      %v11961 = vadd.f32 %v11800, %v11960
      %v11962 = vpop.f32.mrf.mxu0
      %v11963 = vadd.f32 %v11802, %v11962
      %11964 = vmatprep.mubr.bf16.mxu0 %v6560
      %11965 = vmatmul.mubr.bf16.gmra.mxu0 %v6559
      %v11966 = vpop.f32.mrf.mxu0
      %v11967 = vadd.f32 %v11806, %v11966
      %v11968 = vpop.f32.mrf.mxu0
      %v11969 = vadd.f32 %v11808, %v11968
      %v11970 = vpop.f32.mrf.mxu0
      %v11971 = vadd.f32 %v11810, %v11970
      %v11972 = vpop.f32.mrf.mxu0
      %v11973 = vadd.f32 %v11812, %v11972
      %11974 = vmatprep.mubr.bf16.mxu0 %v6576
      %11975 = vmatmul.mubr.bf16.gmra.mxu0 %v6575
      %v11976 = vpop.f32.mrf.mxu0
      %v11977 = vadd.f32 %v11816, %v11976
      %v11978 = vpop.f32.mrf.mxu0
      %v11979 = vadd.f32 %v11818, %v11978
      %v11980 = vpop.f32.mrf.mxu0
      %v11981 = vadd.f32 %v11820, %v11980
      %v11982 = vpop.f32.mrf.mxu0
      %v11983 = vadd.f32 %v11822, %v11982
      %11984 = vmatprep.mubr.bf16.mxu0 %v6592
      %11985 = vmatmul.mubr.bf16.gmra.mxu0 %v6591
      %v11986 = vpop.f32.mrf.mxu0
      %v11987 = vadd.f32 %v11826, %v11986
      %v11988 = vpop.f32.mrf.mxu0
      %v11989 = vadd.f32 %v11828, %v11988
      %v11990 = vpop.f32.mrf.mxu0
      %v11991 = vadd.f32 %v11830, %v11990
      %v11992 = vpop.f32.mrf.mxu0
      %v11993 = vadd.f32 %v11832, %v11992
      %11994 = vmatprep.mubr.bf16.mxu0 %v6608
      %11995 = vmatmul.mubr.bf16.gmra.mxu0 %v6607
      %v11996 = vpop.f32.mrf.mxu0
      %v11997 = vadd.f32 %v11836, %v11996
      %v11998 = vpop.f32.mrf.mxu0
      %v11999 = vadd.f32 %v11838, %v11998
      %v12000 = vpop.f32.mrf.mxu0
      %v12001 = vadd.f32 %v11840, %v12000
      %v12002 = vpop.f32.mrf.mxu0
      %v12003 = vadd.f32 %v11842, %v12002
      %12004 = vmatprep.mubr.bf16.mxu0 %v6624
      %12005 = vmatmul.mubr.bf16.gmra.mxu0 %v6623
      %v12006 = vpop.f32.mrf.mxu0
      %v12007 = vadd.f32 %v11846, %v12006
      %v12008 = vpop.f32.mrf.mxu0
      %v12009 = vadd.f32 %v11848, %v12008
      %v12010 = vpop.f32.mrf.mxu0
      %v12011 = vadd.f32 %v11850, %v12010
      %v12012 = vpop.f32.mrf.mxu0
      %v12013 = vadd.f32 %v11852, %v12012
      %12014 = vmatprep.mubr.bf16.mxu0 %v6640
      %12015 = vmatmul.mubr.bf16.gmra.mxu0 %v6639
      %v12016 = vpop.f32.mrf.mxu0
      %v12017 = vadd.f32 %v11856, %v12016
      %v12018 = vpop.f32.mrf.mxu0
      %v12019 = vadd.f32 %v11858, %v12018
      %v12020 = vpop.f32.mrf.mxu0
      %v12021 = vadd.f32 %v11860, %v12020
      %v12022 = vpop.f32.mrf.mxu0
      %v12023 = vadd.f32 %v11862, %v12022
      %12024 = vmatprep.mubr.bf16.mxu0 %v6656
      %12025 = vmatmul.mubr.bf16.gmra.mxu0 %v6655
      %v12026 = vpop.f32.mrf.mxu0
      %v12027 = vadd.f32 %v11866, %v12026
      %v12028 = vpop.f32.mrf.mxu0
      %v12029 = vadd.f32 %v11868, %v12028
      %v12030 = vpop.f32.mrf.mxu0
      %v12031 = vadd.f32 %v11870, %v12030
      %v12032 = vpop.f32.mrf.mxu0
      %v12033 = vadd.f32 %v11872, %v12032
      %12034 = vmatprep.mubr.bf16.mxu0 %v6672
      %12035 = vmatmul.mubr.bf16.gmra.mxu0 %v6671
      %v12036 = vpop.f32.mrf.mxu0
      %v12037 = vadd.f32 %v11876, %v12036
      %v12038 = vpop.f32.mrf.mxu0
      %v12039 = vadd.f32 %v11878, %v12038
      %v12040 = vpop.f32.mrf.mxu0
      %v12041 = vadd.f32 %v11880, %v12040
      %v12042 = vpop.f32.mrf.mxu0
      %v12043 = vadd.f32 %v11882, %v12042
      %12044 = vmatprep.mubr.bf16.mxu0 %v6688
      %12045 = vmatmul.mubr.bf16.gmra.mxu0 %v6687
      %v12046 = vpop.f32.mrf.mxu0
      %v12047 = vadd.f32 %v11886, %v12046
      %v12048 = vpop.f32.mrf.mxu0
      %v12049 = vadd.f32 %v11888, %v12048
      %v12050 = vpop.f32.mrf.mxu0
      %v12051 = vadd.f32 %v11890, %v12050
      %v12052 = vpop.f32.mrf.mxu0
      %v12053 = vadd.f32 %v11892, %v12052
      %12054 = vmatprep.mubr.bf16.mxu0 %v6704
      %12055 = vmatmul.mubr.bf16.gmra.mxu0 %v6703
      %v12056 = vpop.f32.mrf.mxu0
      %v12057 = vadd.f32 %v11896, %v12056
      %v12058 = vpop.f32.mrf.mxu0
      %v12059 = vadd.f32 %v11898, %v12058
      %v12060 = vpop.f32.mrf.mxu0
      %v12061 = vadd.f32 %v11900, %v12060
      %v12062 = vpop.f32.mrf.mxu0
      %v12063 = vadd.f32 %v11902, %v12062
      %12064 = vmatprep.mubr.bf16.mxu0 %v6720
      %12065 = vmatmul.mubr.bf16.gmra.mxu0 %v6719
      %v12066 = vpop.f32.mrf.mxu0
      %v12067 = vadd.f32 %v11906, %v12066
      %v12068 = vpop.f32.mrf.mxu0
      %v12069 = vadd.f32 %v11908, %v12068
      %v12070 = vpop.f32.mrf.mxu0
      %v12071 = vpop.f32.mrf.mxu0
      %12072 = vdwg.mxu0
      %12073 = vmatprep.subr.bf16.mxu0 %v9210
      %12074 = vmatpush1.bf16.msra.mxu0 %v9209
      %12075 = vmatprep.subr.bf16.mxu0 %v9206
      %12076 = vmatpush1.bf16.msra.mxu0 %v9205
      %12077 = vmatprep.subr.bf16.mxu0 %v9202
      %12078 = vmatpush1.bf16.msra.mxu0 %v9201
      %12079 = vmatprep.subr.bf16.mxu0 %v9198
      %12080 = vmatpush1.bf16.msra.mxu0 %v9197
      %12081 = vmatprep.subr.bf16.mxu0 %v9194
      %12082 = vmatpush1.bf16.msra.mxu0 %v9193
      %12083 = vmatprep.subr.bf16.mxu0 %v9190
      %12084 = vmatpush1.bf16.msra.mxu0 %v9189
      %12085 = vmatprep.subr.bf16.mxu0 %v9186
      %12086 = vmatpush1.bf16.msra.mxu0 %v9185
      %12087 = vmatprep.subr.bf16.mxu0 %v9182
      %12088 = vmatpush1.bf16.msra.mxu0 %v9181
      %12089 = vmatprep.subr.bf16.mxu0 %v9242
      %12090 = vmatpush2.bf16.msra.mxu0 %v9241
      %12091 = vmatprep.subr.bf16.mxu0 %v9238
      %12092 = vmatpush2.bf16.msra.mxu0 %v9237
      %12093 = vmatprep.subr.bf16.mxu0 %v9234
      %12094 = vmatpush2.bf16.msra.mxu0 %v9233
      %12095 = vmatprep.subr.bf16.mxu0 %v9230
      %12096 = vmatpush2.bf16.msra.mxu0 %v9229
      %12097 = vmatprep.subr.bf16.mxu0 %v9226
      %12098 = vmatpush2.bf16.msra.mxu0 %v9225
      %12099 = vmatprep.subr.bf16.mxu0 %v9222
      %12100 = vmatpush2.bf16.msra.mxu0 %v9221
      %12101 = vmatprep.subr.bf16.mxu0 %v9218
      %12102 = vmatpush2.bf16.msra.mxu0 %v9217
      %12103 = vmatprep.subr.bf16.mxu0 %v9214
      %12104 = vmatpush2.bf16.msra.mxu0 %v9213
      %12105 = vmatprep.mubr.bf16.mxu0 %v6530
      %12106 = vmatmul.mubr.bf16.gmra.mxu0 %v6529
      %v12107 = vpop.f32.mrf.mxu0
      %v12108 = vadd.f32 %v11947, %v12107
      %v12109 = vpop.f32.mrf.mxu0
      %v12110 = vadd.f32 %v11949, %v12109
      %v12111 = vpop.f32.mrf.mxu0
      %v12112 = vadd.f32 %v11951, %v12111
      %v12113 = vpop.f32.mrf.mxu0
      %v12114 = vadd.f32 %v11953, %v12113
      %12115 = vmatprep.mubr.bf16.mxu0 %v6546
      %12116 = vmatmul.mubr.bf16.gmra.mxu0 %v6545
      %v12117 = vpop.f32.mrf.mxu0
      %v12118 = vadd.f32 %v11957, %v12117
      %v12119 = vpop.f32.mrf.mxu0
      %v12120 = vadd.f32 %v11959, %v12119
      %v12121 = vpop.f32.mrf.mxu0
      %v12122 = vadd.f32 %v11961, %v12121
      %v12123 = vpop.f32.mrf.mxu0
      %v12124 = vadd.f32 %v11963, %v12123
      %12125 = vmatprep.mubr.bf16.mxu0 %v6562
      %12126 = vmatmul.mubr.bf16.gmra.mxu0 %v6561
      %v12127 = vpop.f32.mrf.mxu0
      %v12128 = vadd.f32 %v11967, %v12127
      %v12129 = vpop.f32.mrf.mxu0
      %v12130 = vadd.f32 %v11969, %v12129
      %v12131 = vpop.f32.mrf.mxu0
      %v12132 = vadd.f32 %v11971, %v12131
      %v12133 = vpop.f32.mrf.mxu0
      %v12134 = vadd.f32 %v11973, %v12133
      %12135 = vmatprep.mubr.bf16.mxu0 %v6578
      %12136 = vmatmul.mubr.bf16.gmra.mxu0 %v6577
      %v12137 = vpop.f32.mrf.mxu0
      %v12138 = vadd.f32 %v11977, %v12137
      %v12139 = vpop.f32.mrf.mxu0
      %v12140 = vadd.f32 %v11979, %v12139
      %v12141 = vpop.f32.mrf.mxu0
      %v12142 = vadd.f32 %v11981, %v12141
      %v12143 = vpop.f32.mrf.mxu0
      %v12144 = vadd.f32 %v11983, %v12143
      %12145 = vmatprep.mubr.bf16.mxu0 %v6594
      %12146 = vmatmul.mubr.bf16.gmra.mxu0 %v6593
      %v12147 = vpop.f32.mrf.mxu0
      %v12148 = vadd.f32 %v11987, %v12147
      %v12149 = vpop.f32.mrf.mxu0
      %v12150 = vadd.f32 %v11989, %v12149
      %v12151 = vpop.f32.mrf.mxu0
      %v12152 = vadd.f32 %v11991, %v12151
      %v12153 = vpop.f32.mrf.mxu0
      %v12154 = vadd.f32 %v11993, %v12153
      %12155 = vmatprep.mubr.bf16.mxu0 %v6610
      %12156 = vmatmul.mubr.bf16.gmra.mxu0 %v6609
      %v12157 = vpop.f32.mrf.mxu0
      %v12158 = vadd.f32 %v11997, %v12157
      %v12159 = vpop.f32.mrf.mxu0
      %v12160 = vadd.f32 %v11999, %v12159
      %v12161 = vpop.f32.mrf.mxu0
      %v12162 = vadd.f32 %v12001, %v12161
      %v12163 = vpop.f32.mrf.mxu0
      %v12164 = vadd.f32 %v12003, %v12163
      %12165 = vmatprep.mubr.bf16.mxu0 %v6626
      %12166 = vmatmul.mubr.bf16.gmra.mxu0 %v6625
      %v12167 = vpop.f32.mrf.mxu0
      %v12168 = vadd.f32 %v12007, %v12167
      %v12169 = vpop.f32.mrf.mxu0
      %v12170 = vadd.f32 %v12009, %v12169
      %v12171 = vpop.f32.mrf.mxu0
      %v12172 = vadd.f32 %v12011, %v12171
      %v12173 = vpop.f32.mrf.mxu0
      %v12174 = vadd.f32 %v12013, %v12173
      %12175 = vmatprep.mubr.bf16.mxu0 %v6642
      %12176 = vmatmul.mubr.bf16.gmra.mxu0 %v6641
      %v12177 = vpop.f32.mrf.mxu0
      %v12178 = vadd.f32 %v12017, %v12177
      %v12179 = vpop.f32.mrf.mxu0
      %v12180 = vadd.f32 %v12019, %v12179
      %v12181 = vpop.f32.mrf.mxu0
      %v12182 = vadd.f32 %v12021, %v12181
      %v12183 = vpop.f32.mrf.mxu0
      %v12184 = vadd.f32 %v12023, %v12183
      %12185 = vmatprep.mubr.bf16.mxu0 %v6658
      %12186 = vmatmul.mubr.bf16.gmra.mxu0 %v6657
      %v12187 = vpop.f32.mrf.mxu0
      %v12188 = vadd.f32 %v12027, %v12187
      %v12189 = vpop.f32.mrf.mxu0
      %v12190 = vadd.f32 %v12029, %v12189
      %v12191 = vpop.f32.mrf.mxu0
      %v12192 = vadd.f32 %v12031, %v12191
      %v12193 = vpop.f32.mrf.mxu0
      %v12194 = vadd.f32 %v12033, %v12193
      %12195 = vmatprep.mubr.bf16.mxu0 %v6674
      %12196 = vmatmul.mubr.bf16.gmra.mxu0 %v6673
      %v12197 = vpop.f32.mrf.mxu0
      %v12198 = vadd.f32 %v12037, %v12197
      %v12199 = vpop.f32.mrf.mxu0
      %v12200 = vadd.f32 %v12039, %v12199
      %v12201 = vpop.f32.mrf.mxu0
      %v12202 = vadd.f32 %v12041, %v12201
      %v12203 = vpop.f32.mrf.mxu0
      %v12204 = vadd.f32 %v12043, %v12203
      %12205 = vmatprep.mubr.bf16.mxu0 %v6690
      %12206 = vmatmul.mubr.bf16.gmra.mxu0 %v6689
      %v12207 = vpop.f32.mrf.mxu0
      %v12208 = vadd.f32 %v12047, %v12207
      %v12209 = vpop.f32.mrf.mxu0
      %v12210 = vadd.f32 %v12049, %v12209
      %v12211 = vpop.f32.mrf.mxu0
      %v12212 = vadd.f32 %v12051, %v12211
      %v12213 = vpop.f32.mrf.mxu0
      %v12214 = vadd.f32 %v12053, %v12213
      %12215 = vmatprep.mubr.bf16.mxu0 %v6706
      %12216 = vmatmul.mubr.bf16.gmra.mxu0 %v6705
      %v12217 = vpop.f32.mrf.mxu0
      %v12218 = vadd.f32 %v12057, %v12217
      %v12219 = vpop.f32.mrf.mxu0
      %v12220 = vadd.f32 %v12059, %v12219
      %v12221 = vpop.f32.mrf.mxu0
      %v12222 = vadd.f32 %v12061, %v12221
      %v12223 = vpop.f32.mrf.mxu0
      %v12224 = vadd.f32 %v12063, %v12223
      %12225 = vmatprep.mubr.bf16.mxu0 %v6722
      %12226 = vmatmul.mubr.bf16.gmra.mxu0 %v6721
      %v12227 = vpop.f32.mrf.mxu0
      %v12228 = vadd.f32 %v12067, %v12227
      %v12229 = vpop.f32.mrf.mxu0
      %v12230 = vadd.f32 %v12069, %v12229
      %v12231 = vpop.f32.mrf.mxu0
      %v12232 = vpop.f32.mrf.mxu0
      %12233 = vdwg.mxu0
      %12234 = vmatprep.subr.bf16.mxu0 %v9274
      %12235 = vmatpush1.bf16.msra.mxu0 %v9273
      %12236 = vmatprep.subr.bf16.mxu0 %v9270
      %12237 = vmatpush1.bf16.msra.mxu0 %v9269
      %12238 = vmatprep.subr.bf16.mxu0 %v9266
      %12239 = vmatpush1.bf16.msra.mxu0 %v9265
      %12240 = vmatprep.subr.bf16.mxu0 %v9262
      %12241 = vmatpush1.bf16.msra.mxu0 %v9261
      %12242 = vmatprep.subr.bf16.mxu0 %v9258
      %12243 = vmatpush1.bf16.msra.mxu0 %v9257
      %12244 = vmatprep.subr.bf16.mxu0 %v9254
      %12245 = vmatpush1.bf16.msra.mxu0 %v9253
      %12246 = vmatprep.subr.bf16.mxu0 %v9250
      %12247 = vmatpush1.bf16.msra.mxu0 %v9249
      %12248 = vmatprep.subr.bf16.mxu0 %v9246
      %12249 = vmatpush1.bf16.msra.mxu0 %v9245
      %12250 = vmatprep.subr.bf16.mxu0 %v9306
      %12251 = vmatpush2.bf16.msra.mxu0 %v9305
      %12252 = vmatprep.subr.bf16.mxu0 %v9302
      %12253 = vmatpush2.bf16.msra.mxu0 %v9301
      %12254 = vmatprep.subr.bf16.mxu0 %v9298
      %12255 = vmatpush2.bf16.msra.mxu0 %v9297
      %12256 = vmatprep.subr.bf16.mxu0 %v9294
      %12257 = vmatpush2.bf16.msra.mxu0 %v9293
      %12258 = vmatprep.subr.bf16.mxu0 %v9290
      %12259 = vmatpush2.bf16.msra.mxu0 %v9289
      %12260 = vmatprep.subr.bf16.mxu0 %v9286
      %12261 = vmatpush2.bf16.msra.mxu0 %v9285
      %12262 = vmatprep.subr.bf16.mxu0 %v9282
      %12263 = vmatpush2.bf16.msra.mxu0 %v9281
      %12264 = vmatprep.subr.bf16.mxu0 %v9278
      %12265 = vmatpush2.bf16.msra.mxu0 %v9277
      %12266 = vmatprep.mubr.bf16.mxu0 %v6532
      %12267 = vmatmul.mubr.bf16.gmra.mxu0 %v6531
      %v12268 = vpop.f32.mrf.mxu0
      %v12269 = vadd.f32 %v12108, %v12268
      %v12270 = vpop.f32.mrf.mxu0
      %v12271 = vadd.f32 %v12110, %v12270
      %v12272 = vpop.f32.mrf.mxu0
      %v12273 = vadd.f32 %v12112, %v12272
      %v12274 = vpop.f32.mrf.mxu0
      %v12275 = vadd.f32 %v12114, %v12274
      %12276 = vmatprep.mubr.bf16.mxu0 %v6548
      %12277 = vmatmul.mubr.bf16.gmra.mxu0 %v6547
      %v12278 = vpop.f32.mrf.mxu0
      %v12279 = vadd.f32 %v12118, %v12278
      %v12280 = vpop.f32.mrf.mxu0
      %v12281 = vadd.f32 %v12120, %v12280
      %v12282 = vpop.f32.mrf.mxu0
      %v12283 = vadd.f32 %v12122, %v12282
      %v12284 = vpop.f32.mrf.mxu0
      %v12285 = vadd.f32 %v12124, %v12284
      %12286 = vmatprep.mubr.bf16.mxu0 %v6564
      %12287 = vmatmul.mubr.bf16.gmra.mxu0 %v6563
      %v12288 = vpop.f32.mrf.mxu0
      %v12289 = vadd.f32 %v12128, %v12288
      %v12290 = vpop.f32.mrf.mxu0
      %v12291 = vadd.f32 %v12130, %v12290
      %v12292 = vpop.f32.mrf.mxu0
      %v12293 = vadd.f32 %v12132, %v12292
      %v12294 = vpop.f32.mrf.mxu0
      %v12295 = vadd.f32 %v12134, %v12294
      %12296 = vmatprep.mubr.bf16.mxu0 %v6580
      %12297 = vmatmul.mubr.bf16.gmra.mxu0 %v6579
      %v12298 = vpop.f32.mrf.mxu0
      %v12299 = vadd.f32 %v12138, %v12298
      %v12300 = vpop.f32.mrf.mxu0
      %v12301 = vadd.f32 %v12140, %v12300
      %v12302 = vpop.f32.mrf.mxu0
      %v12303 = vadd.f32 %v12142, %v12302
      %v12304 = vpop.f32.mrf.mxu0
      %v12305 = vadd.f32 %v12144, %v12304
      %12306 = vmatprep.mubr.bf16.mxu0 %v6596
      %12307 = vmatmul.mubr.bf16.gmra.mxu0 %v6595
      %v12308 = vpop.f32.mrf.mxu0
      %v12309 = vadd.f32 %v12148, %v12308
      %v12310 = vpop.f32.mrf.mxu0
      %v12311 = vadd.f32 %v12150, %v12310
      %v12312 = vpop.f32.mrf.mxu0
      %v12313 = vadd.f32 %v12152, %v12312
      %v12314 = vpop.f32.mrf.mxu0
      %v12315 = vadd.f32 %v12154, %v12314
      %12316 = vmatprep.mubr.bf16.mxu0 %v6612
      %12317 = vmatmul.mubr.bf16.gmra.mxu0 %v6611
      %v12318 = vpop.f32.mrf.mxu0
      %v12319 = vadd.f32 %v12158, %v12318
      %v12320 = vpop.f32.mrf.mxu0
      %v12321 = vadd.f32 %v12160, %v12320
      %v12322 = vpop.f32.mrf.mxu0
      %v12323 = vadd.f32 %v12162, %v12322
      %v12324 = vpop.f32.mrf.mxu0
      %v12325 = vadd.f32 %v12164, %v12324
      %12326 = vmatprep.mubr.bf16.mxu0 %v6628
      %12327 = vmatmul.mubr.bf16.gmra.mxu0 %v6627
      %v12328 = vpop.f32.mrf.mxu0
      %v12329 = vadd.f32 %v12168, %v12328
      %v12330 = vpop.f32.mrf.mxu0
      %v12331 = vadd.f32 %v12170, %v12330
      %v12332 = vpop.f32.mrf.mxu0
      %v12333 = vadd.f32 %v12172, %v12332
      %v12334 = vpop.f32.mrf.mxu0
      %v12335 = vadd.f32 %v12174, %v12334
      %12336 = vmatprep.mubr.bf16.mxu0 %v6644
      %12337 = vmatmul.mubr.bf16.gmra.mxu0 %v6643
      %v12338 = vpop.f32.mrf.mxu0
      %v12339 = vadd.f32 %v12178, %v12338
      %v12340 = vpop.f32.mrf.mxu0
      %v12341 = vadd.f32 %v12180, %v12340
      %v12342 = vpop.f32.mrf.mxu0
      %v12343 = vadd.f32 %v12182, %v12342
      %v12344 = vpop.f32.mrf.mxu0
      %v12345 = vadd.f32 %v12184, %v12344
      %12346 = vmatprep.mubr.bf16.mxu0 %v6660
      %12347 = vmatmul.mubr.bf16.gmra.mxu0 %v6659
      %v12348 = vpop.f32.mrf.mxu0
      %v12349 = vadd.f32 %v12188, %v12348
      %v12350 = vpop.f32.mrf.mxu0
      %v12351 = vadd.f32 %v12190, %v12350
      %v12352 = vpop.f32.mrf.mxu0
      %v12353 = vadd.f32 %v12192, %v12352
      %v12354 = vpop.f32.mrf.mxu0
      %v12355 = vadd.f32 %v12194, %v12354
      %12356 = vmatprep.mubr.bf16.mxu0 %v6676
      %12357 = vmatmul.mubr.bf16.gmra.mxu0 %v6675
      %v12358 = vpop.f32.mrf.mxu0
      %v12359 = vadd.f32 %v12198, %v12358
      %v12360 = vpop.f32.mrf.mxu0
      %v12361 = vadd.f32 %v12200, %v12360
      %v12362 = vpop.f32.mrf.mxu0
      %v12363 = vadd.f32 %v12202, %v12362
      %v12364 = vpop.f32.mrf.mxu0
      %v12365 = vadd.f32 %v12204, %v12364
      %12366 = vmatprep.mubr.bf16.mxu0 %v6692
      %12367 = vmatmul.mubr.bf16.gmra.mxu0 %v6691
      %v12368 = vpop.f32.mrf.mxu0
      %v12369 = vadd.f32 %v12208, %v12368
      %v12370 = vpop.f32.mrf.mxu0
      %v12371 = vadd.f32 %v12210, %v12370
      %v12372 = vpop.f32.mrf.mxu0
      %v12373 = vadd.f32 %v12212, %v12372
      %v12374 = vpop.f32.mrf.mxu0
      %v12375 = vadd.f32 %v12214, %v12374
      %12376 = vmatprep.mubr.bf16.mxu0 %v6708
      %12377 = vmatmul.mubr.bf16.gmra.mxu0 %v6707
      %v12378 = vpop.f32.mrf.mxu0
      %v12379 = vadd.f32 %v12218, %v12378
      %v12380 = vpop.f32.mrf.mxu0
      %v12381 = vadd.f32 %v12220, %v12380
      %v12382 = vpop.f32.mrf.mxu0
      %v12383 = vadd.f32 %v12222, %v12382
      %v12384 = vpop.f32.mrf.mxu0
      %v12385 = vadd.f32 %v12224, %v12384
      %12386 = vmatprep.mubr.bf16.mxu0 %v6724
      %12387 = vmatmul.mubr.bf16.gmra.mxu0 %v6723
      %v12388 = vpop.f32.mrf.mxu0
      %v12389 = vadd.f32 %v12228, %v12388
      %v12390 = vpop.f32.mrf.mxu0
      %v12391 = vadd.f32 %v12230, %v12390
      %v12392 = vpop.f32.mrf.mxu0
      %v12393 = vpop.f32.mrf.mxu0
      %12394 = vdwg.mxu0
      %12395 = vst [vmem:[%s231] sm:$0xff] %v10981
      %12396 = vst [vmem:[%s231 + $0x8] sm:$0xff] %v10983
      %12397 = vst [vmem:[%s231 + $0x10] sm:$0xff] %v12269
      %12398 = vst [vmem:[%s231 + $0x18] sm:$0xff] %v12271
      %12399 = vst [vmem:[%s231 + $0x20] sm:$0xff] %v10985
      %12400 = vst [vmem:[%s231 + $0x28] sm:$0xff] %v10987
      %12401 = vst [vmem:[%s231 + $0x30] sm:$0xff] %v12273
      %12402 = vst [vmem:[%s231 + $0x38] sm:$0xff] %v12275
      %12403 = vst [vmem:[%s231 + $0x40] sm:$0xff] %v10991
      %12404 = vst [vmem:[%s231 + $0x48] sm:$0xff] %v10993
      %12405 = vst [vmem:[%s231 + $0x50] sm:$0xff] %v12279
      %12406 = vst [vmem:[%s231 + $0x58] sm:$0xff] %v12281
      %12407 = vst [vmem:[%s231 + $0x60] sm:$0xff] %v10995
      %12408 = vst [vmem:[%s231 + $0x68] sm:$0xff] %v10997
      %12409 = vst [vmem:[%s231 + $0x70] sm:$0xff] %v12283
      %12410 = vst [vmem:[%s231 + $0x78] sm:$0xff] %v12285
      %12411 = vst [vmem:[%s231 + $0x80] sm:$0xff] %v11001
      %12412 = vst [vmem:[%s231 + $0x88] sm:$0xff] %v11003
      %12413 = vst [vmem:[%s231 + $0x90] sm:$0xff] %v12289
      %12414 = vst [vmem:[%s231 + $0x98] sm:$0xff] %v12291
      %12415 = vst [vmem:[%s231 + $0xa0] sm:$0xff] %v11005
      %12416 = vst [vmem:[%s231 + $0xa8] sm:$0xff] %v11007
      %12417 = vst [vmem:[%s231 + $0xb0] sm:$0xff] %v12293
      %12418 = vst [vmem:[%s231 + $0xb8] sm:$0xff] %v12295
      %12419 = vst [vmem:[%s231 + $0xc0] sm:$0xff] %v11011
      %12420 = vst [vmem:[%s231 + $0xc8] sm:$0xff] %v11013
      %12421 = vst [vmem:[%s231 + $0xd0] sm:$0xff] %v12299
      %12422 = vst [vmem:[%s231 + $0xd8] sm:$0xff] %v12301
      %12423 = vst [vmem:[%s231 + $0xe0] sm:$0xff] %v11015
      %12424 = vst [vmem:[%s231 + $0xe8] sm:$0xff] %v11017
      %12425 = vst [vmem:[%s231 + $0xf0] sm:$0xff] %v12303
      %12426 = vst [vmem:[%s231 + $0xf8] sm:$0xff] %v12305
      %12427 = vst [vmem:[%s231 + $0x100] sm:$0xff] %v11021
      %12428 = vst [vmem:[%s231 + $0x108] sm:$0xff] %v11023
      %12429 = vst [vmem:[%s231 + $0x110] sm:$0xff] %v12309
      %12430 = vst [vmem:[%s231 + $0x118] sm:$0xff] %v12311
      %12431 = vst [vmem:[%s231 + $0x120] sm:$0xff] %v11025
      %12432 = vst [vmem:[%s231 + $0x128] sm:$0xff] %v11027
      %12433 = vst [vmem:[%s231 + $0x130] sm:$0xff] %v12313
      %12434 = vst [vmem:[%s231 + $0x138] sm:$0xff] %v12315
      %12435 = vst [vmem:[%s231 + $0x140] sm:$0xff] %v11031
      %12436 = vst [vmem:[%s231 + $0x148] sm:$0xff] %v11033
      %12437 = vst [vmem:[%s231 + $0x150] sm:$0xff] %v12319
      %12438 = vst [vmem:[%s231 + $0x158] sm:$0xff] %v12321
      %12439 = vst [vmem:[%s231 + $0x160] sm:$0xff] %v11035
      %12440 = vst [vmem:[%s231 + $0x168] sm:$0xff] %v11037
      %12441 = vst [vmem:[%s231 + $0x170] sm:$0xff] %v12323
      %12442 = vst [vmem:[%s231 + $0x178] sm:$0xff] %v12325
      %12443 = vst [vmem:[%s231 + $0x180] sm:$0xff] %v11041
      %12444 = vst [vmem:[%s231 + $0x188] sm:$0xff] %v11043
      %12445 = vst [vmem:[%s231 + $0x190] sm:$0xff] %v12329
      %12446 = vst [vmem:[%s231 + $0x198] sm:$0xff] %v12331
      %12447 = vst [vmem:[%s231 + $0x1a0] sm:$0xff] %v11045
      %12448 = vst [vmem:[%s231 + $0x1a8] sm:$0xff] %v11047
      %12449 = vst [vmem:[%s231 + $0x1b0] sm:$0xff] %v12333
      %12450 = vst [vmem:[%s231 + $0x1b8] sm:$0xff] %v12335
      %12451 = vst [vmem:[%s231 + $0x1c0] sm:$0xff] %v11051
      %12452 = vst [vmem:[%s231 + $0x1c8] sm:$0xff] %v11053
      %12453 = vst [vmem:[%s231 + $0x1d0] sm:$0xff] %v12339
      %12454 = vst [vmem:[%s231 + $0x1d8] sm:$0xff] %v12341
      %12455 = vst [vmem:[%s231 + $0x1e0] sm:$0xff] %v11055
      %12456 = vst [vmem:[%s231 + $0x1e8] sm:$0xff] %v11057
      %12457 = vst [vmem:[%s231 + $0x1f0] sm:$0xff] %v12343
      %12458 = vst [vmem:[%s231 + $0x1f8] sm:$0xff] %v12345
      %12459 = vst [vmem:[%s231 + $0x200] sm:$0xff] %v11061
      %12460 = vst [vmem:[%s231 + $0x208] sm:$0xff] %v11063
      %12461 = vst [vmem:[%s231 + $0x210] sm:$0xff] %v12349
      %12462 = vst [vmem:[%s231 + $0x218] sm:$0xff] %v12351
      %12463 = vst [vmem:[%s231 + $0x220] sm:$0xff] %v11065
      %12464 = vst [vmem:[%s231 + $0x228] sm:$0xff] %v11067
      %12465 = vst [vmem:[%s231 + $0x230] sm:$0xff] %v12353
      %12466 = vst [vmem:[%s231 + $0x238] sm:$0xff] %v12355
      %12467 = vst [vmem:[%s231 + $0x240] sm:$0xff] %v11071
      %12468 = vst [vmem:[%s231 + $0x248] sm:$0xff] %v11073
      %12469 = vst [vmem:[%s231 + $0x250] sm:$0xff] %v12359
      %12470 = vst [vmem:[%s231 + $0x258] sm:$0xff] %v12361
      %12471 = vst [vmem:[%s231 + $0x260] sm:$0xff] %v11075
      %12472 = vst [vmem:[%s231 + $0x268] sm:$0xff] %v11077
      %12473 = vst [vmem:[%s231 + $0x270] sm:$0xff] %v12363
      %12474 = vst [vmem:[%s231 + $0x278] sm:$0xff] %v12365
      %12475 = vst [vmem:[%s231 + $0x280] sm:$0xff] %v11081
      %12476 = vst [vmem:[%s231 + $0x288] sm:$0xff] %v11083
      %12477 = vst [vmem:[%s231 + $0x290] sm:$0xff] %v12369
      %12478 = vst [vmem:[%s231 + $0x298] sm:$0xff] %v12371
      %12479 = vst [vmem:[%s231 + $0x2a0] sm:$0xff] %v11085
      %12480 = vst [vmem:[%s231 + $0x2a8] sm:$0xff] %v11087
      %12481 = vst [vmem:[%s231 + $0x2b0] sm:$0xff] %v12373
      %12482 = vst [vmem:[%s231 + $0x2b8] sm:$0xff] %v12375
      %12483 = vst [vmem:[%s231 + $0x2c0] sm:$0xff] %v11091
      %12484 = vst [vmem:[%s231 + $0x2c8] sm:$0xff] %v11093
      %12485 = vst [vmem:[%s231 + $0x2d0] sm:$0xff] %v12379
      %12486 = vst [vmem:[%s231 + $0x2d8] sm:$0xff] %v12381
      %12487 = vst [vmem:[%s231 + $0x2e0] sm:$0xff] %v11095
      %12488 = vst [vmem:[%s231 + $0x2e8] sm:$0xff] %v11097
      %12489 = vst [vmem:[%s231 + $0x2f0] sm:$0xff] %v12383
      %12490 = vst [vmem:[%s231 + $0x2f8] sm:$0xff] %v12385
      %12491 = vst [vmem:[%s231 + $0x300] sm:$0xff] %v11101
      %12492 = vst [vmem:[%s231 + $0x308] sm:$0xff] %v11103
      %12493 = vst [vmem:[%s231 + $0x310] sm:$0xff] %v12389
      %12494 = vst [vmem:[%s231 + $0x318] sm:$0xff] %v12391
      %s12495 = smul.u32 25, %s16
      %p12496 = scmp.lt.s32.totalorder %s12495, 49
      %s12497 = scalar_select %p12496, %s12495, 49
      %s12498 = smul.addr %s12497, 4
      %s12499 = smul.addr %s12498, 8
      %s12500 = scalar_lea.vmem %s5, %s12499
      // Predicated region
      $region41: #{poswise_ffn.1} parent=39 // pred_check
        %p12501 = pneg %p144
      $region42: #{poswise_ffn.1} parent=39 // pred_check_branch
        %12503 = sbr.rel (%p12501) target = $region44
      $region43: #{poswise_ffn.1} parent=39 // pred_region
        %s12504 = smul.u32 25, %s16
      $region44: #{poswise_ffn.1} parent=39 // pred_fallthru
        _
    $region40: #{poswise_ffn.1} parent=5 // pred_fallthru
      _
    %p12505 = scmp.le.s32.totalorder 2, %s11
    // Predicated region
    $region45: #{poswise_ffn.1} parent=5 // pred_check
      %p12506 = pneg %p12505
    $region46: #{poswise_ffn.1} parent=5 // pred_check_branch
      %12508 = sbr.rel (%p12506) target = $region48
    $region47: #{poswise_ffn.1} parent=5 // pred_region
      %s12509 = ssub.s32 %s11, 2
      // Predicated region
      $region49: #{poswise_ffn.1} parent=47 // pred_check
        %p12510 = pneg %p150
      $region50: #{poswise_ffn.1} parent=47 // pred_check_branch
        %12512 = sbr.rel (%p12510) target = $region52
      $region51: #{poswise_ffn.1} parent=47 // pred_region
        %s12513 = smul.u32 25, %s17
        %p12514 = scmp.lt.s32.totalorder %s12513, 49
        %s12515 = scalar_select %p12514, %s12513, 49
        %s12516 = smul.addr %s12515, 4
        %s12517 = smul.addr %s12516, 8
        %s12518 = scalar_lea.vmem %s5, %s12517
      $region52: #{poswise_ffn.1} parent=47 // pred_fallthru
        _
    $region48: #{poswise_ffn.1} parent=5 // pred_fallthru
      _
  $region6: #{poswise_ffn.1} parent=0 // loop_footer
    %s15 = sadd.s32 1, %s11
  $region7: #{poswise_ffn.1} parent=0 // loop_footer_branch
    %10 = sbr.rel target = $region3
  $region8: #{poswise_ffn.1} parent=0 // loop_exit
    _

</llo_original>
